<compile_context>
chip_gen: v5e
topology: v5e:2x2
jax: 0.10.0
libtpu: 0.0.40
codegen_flags: <defaults>
</compile_context>

<pallas_src>
import functools

import jax
import jax.numpy as jnp
import numpy as np
from jax.experimental import pallas as pl
from jax.experimental.pallas import tpu as pltpu

H = 15
W = 15
WP = 17                 # zero-padded board height/width (15 + 2 halo)
FLAT = WP * WP          # 289 lanes per image (back-to-back packing)
CIN_PAD = 8             # input channels padded 2 -> 8 (block covers full dim)
LANE = 128
BN_EPS = 1e-5

# Backend-adaptive compute config (see header note).
_ON_TPU = jax.default_backend() == "tpu"
ACT_DTYPE = jnp.bfloat16 if _ON_TPU else jnp.float32


# ----------------------------------------------------------------------------
# Fused kernel: all 6 conv layers on one lane-packed block of images.
# ----------------------------------------------------------------------------
def _rlnet_fused_kernel(x_ref, mask_ref,
                        w1_ref, b1_ref, w2_ref, b2_ref, w3_ref, b3_ref,
                        w4_ref, b4_ref, w5_ref, b5_ref, w6_ref, b6_ref,
                        o_ref, *, use_tpu_roll):
    """One batch block.

    x_ref   : (CIN_PAD, L) ACT_DTYPE  channel-major padded-flat activations
              (L = round_up(images_per_block * 289, 128); zero outside boards)
    mask_ref: (1, L)       f32        1.0 on interior pixels, 0.0 on halo/pad
    wk_ref  : (co, 9*ci)   ACT_DTYPE  BN-folded weights, cols ordered (tap, ci)
    bk_ref  : (co, 1)      f32        BN-folded bias
    o_ref   : (1, L)       f32        conv4 output in the same layout
    """
    mask = mask_ref[...]                       # (1, L)
    a = x_ref[...]                             # (CIN_PAD, L)
    L = a.shape[1]

    def shifted(t, off):
        # s[:, p] == t[:, p + off]; interior lanes never consume wrapped data
        # (each image's taps stay within its own 289-lane frame).
        if off % L == 0:
            return t
        if use_tpu_roll:
            return pltpu.roll(t, (-off) % L, 1)            # XLU lane rotate
        k = off % L                                        # CPU fallback
        return jnp.concatenate([t[:, k:], t[:, :k]], axis=1)

    def conv_layer(t, w_ref, b_ref, relu, apply_mask):
        # im2col: stack the 9 lane-shifted taps -> one big-K MXU matmul.
        # Taps stay in the activation dtype (bf16 on TPU): no f32 patch pass.
        taps = [shifted(t, (dh - 1) * WP + (dw - 1))
                for dh in range(3) for dw in range(3)]
        patches = jnp.concatenate(taps, axis=0)            # (9*ci, L)
        out = jnp.dot(w_ref[...], patches,
                      preferred_element_type=jnp.float32)  # (co, L) f32 acc
        out = out + b_ref[...]
        if relu:
            out = jnp.maximum(out, 0.0)
        if apply_mask:
            # Re-zero halo / alignment lanes so they act as conv zero-padding
            # for the next layer.
            out = out * mask
        return out

    act = a.dtype
    a = conv_layer(a, w1_ref, b1_ref, True, True).astype(act)   # relu(bn16(conv1))
    a = conv_layer(a, w2_ref, b2_ref, True, True).astype(act)   # relu(bn32(conv2))
    a = conv_layer(a, w3_ref, b3_ref, True, True).astype(act)   # relu(bn32(conv2_2))
    a = conv_layer(a, w4_ref, b4_ref, True, True).astype(act)   # relu(bn64(conv3))
    a = conv_layer(a, w5_ref, b5_ref, True, True).astype(act)   # relu(bn64(conv3_2))
    a = conv_layer(a, w6_ref, b6_ref, False, False)              # conv4 (no BN/ReLU/mask)

    o_ref[...] = a.astype(o_ref.dtype)


# ----------------------------------------------------------------------------
# Parameter preparation: fold BN into conv weights, reshape to matmul form.
# ----------------------------------------------------------------------------
def _prep_layer(w_hwio, conv_b, bn, pad_ci_to=None):
    """Returns (w_mat (co, 9*ci) ACT_DTYPE, bias f32 (co, 1)) with BN folded."""
    if bn is None:
        scale = jnp.ones_like(conv_b)
        bias = conv_b
    else:
        gamma, beta, mean, var = bn
        scale = gamma / jnp.sqrt(var + BN_EPS)
        bias = beta + scale * (conv_b - mean)
    w = w_hwio * scale[None, None, None, :]
    if pad_ci_to is not None and pad_ci_to > w.shape[2]:
        w = jnp.pad(w, ((0, 0), (0, 0), (0, pad_ci_to - w.shape[2]), (0, 0)))
    ci, co = w.shape[2], w.shape[3]
    w_mat = w.reshape(9 * ci, co).T            # rows: co, cols: (tap, ci)
    return w_mat.astype(ACT_DTYPE), bias.reshape(co, 1).astype(jnp.float32)


def _round_up(x, m):
    return ((x + m - 1) // m) * m


# ----------------------------------------------------------------------------
# Forward pass (mirrors RLNet.forward)
# ----------------------------------------------------------------------------
def rlnet_forward(x_nchw, params, images_per_block=16, core_parallel=False):
    n = x_nchw.shape[0]
    nb = max(1, min(images_per_block, n))       # images packed per grid step
    npad = _round_up(n, nb)                     # tail images are wasted work;
    num_blocks = npad // nb                     # pick nb dividing typical n
    group = nb * FLAT                           # real lanes per block
    L = _round_up(group, LANE)                  # lane-dense block width

    # Input layout: NCHW (n,2,15,15) -> (CIN_PAD, num_blocks*L) channel-major,
    # zero halo + block alignment padding (done once, not per layer).
    x = x_nchw.astype(ACT_DTYPE)
    x = jnp.pad(x, ((0, npad - n), (0, CIN_PAD - x.shape[1]), (1, 1), (1, 1)))
    x = x.reshape(num_blocks, nb, CIN_PAD, FLAT)
    x = jnp.transpose(x, (2, 0, 1, 3)).reshape(CIN_PAD, num_blocks, group)
    x = jnp.pad(x, ((0, 0), (0, 0), (0, L - group)))
    x = x.reshape(CIN_PAD, num_blocks * L)

    # Interior mask for one lane block (shared by every grid step).
    m = jnp.zeros((WP, WP), jnp.float32).at[1:1 + H, 1:1 + W].set(1.0)
    mask = jnp.pad(jnp.tile(m.reshape(1, FLAT), (1, nb)),
                   ((0, 0), (0, L - group)))                   # (1, L)

    # BN-folded, matmul-shaped weights / biases.
    w1, b1 = _prep_layer(*params["conv1"], params["bn16"], pad_ci_to=CIN_PAD)
    w2, b2 = _prep_layer(*params["conv2"], params["bn32"])
    w3, b3 = _prep_layer(*params["conv2_2"], params["bn32"])
    w4, b4 = _prep_layer(*params["conv3"], params["bn64"])
    w5, b5 = _prep_layer(*params["conv3_2"], params["bn64"])
    w6, b6 = _prep_layer(*params["conv4"], None)

    def full(arr):
        shape = arr.shape
        return pl.BlockSpec(shape, lambda b: (0,) * len(shape))

    # Per-step VMEM footprint: biggest patch matrix (9*64 rows) + activations
    # (2*64 rows) + f32 epilogue tile, x2 headroom, plus double-buffered input.
    # Capped at 48 MiB so the same config is safe on v7x's 64 MiB VMEM.
    act_bytes = np.dtype(ACT_DTYPE).itemsize
    per_lane = (9 * 64 + 2 * 64) * act_bytes + 64 * 4
    vmem_limit = int(min(48 * 2 ** 20,
                         max(32 * 2 ** 20,
                             2 * (L * per_lane + 2 * CIN_PAD * L * act_bytes))))

    if core_parallel and num_blocks >= 2:
        # v7x: shard batch blocks across the two TensorCores.
        dim_sem = (pltpu.CORE_PARALLEL,)
    else:
        dim_sem = ("parallel",)

    kernel = functools.partial(_rlnet_fused_kernel, use_tpu_roll=_ON_TPU)

    out_flat = pl.pallas_call(
        kernel,
        out_shape=jax.ShapeDtypeStruct((1, num_blocks * L), jnp.float32),
        grid_spec=pltpu.PrefetchScalarGridSpec(
            num_scalar_prefetch=0,
            grid=(num_blocks,),
            in_specs=[
                pl.BlockSpec((CIN_PAD, L), lambda b: (0, b)),   # activations
                full(mask),
                full(w1), full(b1), full(w2), full(b2),
                full(w3), full(b3), full(w4), full(b4),
                full(w5), full(b5), full(w6), full(b6),
            ],
            out_specs=pl.BlockSpec((1, L), lambda b: (0, b)),
        ),
        compiler_params=pltpu.CompilerParams(
            dimension_semantics=dim_sem,
            vmem_limit_bytes=vmem_limit,
        ),
    )(x, mask, w1, b1, w2, b2, w3, b3, w4, b4, w5, b5, w6, b6)

    # Gather the 15x15 interiors -> (n, 225), matching x.view(-1, 15*15).
    out = out_flat.reshape(num_blocks, L)[:, :group]
    out = out.reshape(npad, WP, WP)
    return out[:n, 1:1 + H, 1:1 + W].reshape(n, H * W)


# ----------------------------------------------------------------------------
# Deterministic parameter construction (synthetic; matches RLNet.__init__ shapes)
# ----------------------------------------------------------------------------
def _conv_params(key, ci, co):
    k1, k2 = jax.random.split(key)
    fan_in = 9.0 * ci
    w = jax.random.normal(k1, (3, 3, ci, co), jnp.float32) / jnp.sqrt(fan_in)
    b = 0.1 * jax.random.normal(k2, (co,), jnp.float32)
    return w, b


def _bn_params(key, c):
    k1, k2, k3, k4 = jax.random.split(key, 4)
    gamma = 1.0 + 0.1 * jax.random.normal(k1, (c,), jnp.float32)
    beta = 0.1 * jax.random.normal(k2, (c,), jnp.float32)
    mean = 0.1 * jax.random.normal(k3, (c,), jnp.float32)
    var = jax.random.uniform(k4, (c,), jnp.float32, minval=0.5, maxval=1.5)
    return gamma, beta, mean, var


def init_rlnet_params(key):
    keys = jax.random.split(key, 10)
    p = {}
    p["conv1"] = _conv_params(keys[0], 2, 16)
    p["conv2"] = _conv_params(keys[1], 16, 32)
    p["conv2_2"] = _conv_params(keys[2], 32, 32)
    p["conv3"] = _conv_params(keys[3], 32, 64)
    p["conv3_2"] = _conv_params(keys[4], 64, 64)
    p["conv4"] = _conv_params(keys[5], 64, 1)
    p["bn16"] = _bn_params(keys[6], 16)
    p["bn32"] = _bn_params(keys[7], 32)    # shared by conv2 and conv2_2
    p["bn64"] = _bn_params(keys[8], 64)    # shared by conv3 and conv3_2
    return p


# ----------------------------------------------------------------------------
# Pure-JAX reference (eval-mode BN) for a sanity check.
# ----------------------------------------------------------------------------
def _reference_forward(x_nchw, params):
    x = jnp.transpose(x_nchw, (0, 2, 3, 1)).astype(jnp.float32)   # NHWC

    def conv(x, w, b):
        y = jax.lax.conv_general_dilated(
            x, w, window_strides=(1, 1), padding="SAME",
            dimension_numbers=("NHWC", "HWIO", "NHWC"))
        return y + b

    def bn(x, p):
        gamma, beta, mean, var = p
        return gamma * (x - mean) / jnp.sqrt(var + BN_EPS) + beta

    w, b = params["conv1"]; x = jax.nn.relu(bn(conv(x, w, b), params["bn16"]))
    w, b = params["conv2"]; y = jax.nn.relu(bn(conv(x, w, b), params["bn32"]))
    w, b = params["conv2_2"]; x = jax.nn.relu(bn(conv(y, w, b), params["bn32"]))
    w, b = params["conv3"]; y = jax.nn.relu(bn(conv(x, w, b), params["bn64"]))
    w, b = params["conv3_2"]; x = jax.nn.relu(bn(conv(y, w, b), params["bn64"]))
    w, b = params["conv4"]; x = conv(x, w, b)
    return x.reshape(x.shape[0], H * W)


if __name__ == "__main__":
    key = jax.random.PRNGKey(0)
    k_params, k_input = jax.random.split(key)

    params = init_rlnet_params(k_params)
    # RLNet expects a 2-channel 15x15 Gomoku board; small batch=2 (NCHW).
    x = jax.random.normal(k_input, (2, 2, H, W), jnp.float32)

    fwd = jax.jit(rlnet_forward)
    out = jax.block_until_ready(fwd(x, params))
    assert out.shape == (2, H * W)

    ref = jax.block_until_ready(_reference_forward(x, params))
    if ACT_DTYPE == jnp.bfloat16:
        rtol = atol = 1e-1      # bf16 MXU operands (f32 accumulate) on TPU
    else:
        rtol = atol = 5e-3      # f32 fallback path
    np.testing.assert_allclose(np.asarray(out), np.asarray(ref),
                               rtol=rtol, atol=atol)

    print("KERNEL_OK")
</pallas_src>

<mosaic_0001>
module attributes {stable_mosaic.version = 11 : i64} {
  func.func @_rlnet_fused_kernel(%arg0: i32, %arg1: memref<8x640xf32, #tpu.memory_space<vmem>>, %arg2: memref<1x640xf32, #tpu.memory_space<vmem>>, %arg3: memref<16x72xf32, #tpu.memory_space<vmem>>, %arg4: memref<16x1xf32, #tpu.memory_space<vmem>>, %arg5: memref<32x144xf32, #tpu.memory_space<vmem>>, %arg6: memref<32x1xf32, #tpu.memory_space<vmem>>, %arg7: memref<32x288xf32, #tpu.memory_space<vmem>>, %arg8: memref<32x1xf32, #tpu.memory_space<vmem>>, %arg9: memref<64x288xf32, #tpu.memory_space<vmem>>, %arg10: memref<64x1xf32, #tpu.memory_space<vmem>>, %arg11: memref<64x576xf32, #tpu.memory_space<vmem>>, %arg12: memref<64x1xf32, #tpu.memory_space<vmem>>, %arg13: memref<1x576xf32, #tpu.memory_space<vmem>>, %arg14: memref<1x1xf32, #tpu.memory_space<vmem>>, %arg15: memref<1x640xf32, #tpu.memory_space<vmem>>) attributes {dimension_semantics = [#tpu.dimension_semantics<parallel>], iteration_bounds = array<i64: 1>, scalar_prefetch = 0 : i64, scratch_operands = 0 : i64, tpu.core_type = #tpu.core_type<tc>, window_params = [{transform_indices = @transform_0, window_bounds = array<i64: 8, 640>}, {pipeline_mode = #tpu.pipeline_mode<synchronous>, transform_indices = @transform_1, window_bounds = array<i64: 1, 640>}, {pipeline_mode = #tpu.pipeline_mode<synchronous>, transform_indices = @transform_2, window_bounds = array<i64: 16, 72>}, {pipeline_mode = #tpu.pipeline_mode<synchronous>, transform_indices = @transform_3, window_bounds = array<i64: 16, 1>}, {pipeline_mode = #tpu.pipeline_mode<synchronous>, transform_indices = @transform_4, window_bounds = array<i64: 32, 144>}, {pipeline_mode = #tpu.pipeline_mode<synchronous>, transform_indices = @transform_5, window_bounds = array<i64: 32, 1>}, {pipeline_mode = #tpu.pipeline_mode<synchronous>, transform_indices = @transform_6, window_bounds = array<i64: 32, 288>}, {pipeline_mode = #tpu.pipeline_mode<synchronous>, transform_indices = @transform_7, window_bounds = array<i64: 32, 1>}, {pipeline_mode = #tpu.pipeline_mode<synchronous>, transform_indices = @transform_8, window_bounds = array<i64: 64, 288>}, {pipeline_mode = #tpu.pipeline_mode<synchronous>, transform_indices = @transform_9, window_bounds = array<i64: 64, 1>}, {pipeline_mode = #tpu.pipeline_mode<synchronous>, transform_indices = @transform_10, window_bounds = array<i64: 64, 576>}, {pipeline_mode = #tpu.pipeline_mode<synchronous>, transform_indices = @transform_11, window_bounds = array<i64: 64, 1>}, {pipeline_mode = #tpu.pipeline_mode<synchronous>, transform_indices = @transform_12, window_bounds = array<i64: 1, 576>}, {pipeline_mode = #tpu.pipeline_mode<synchronous>, transform_indices = @transform_13, window_bounds = array<i64: 1, 1>}, {transform_indices = @transform_14, window_bounds = array<i64: 1, 640>}]} {
    %c0 = arith.constant 0 : index
    %c0_0 = arith.constant 0 : index
    %0 = vector.load %arg2[%c0, %c0_0] : memref<1x640xf32, #tpu.memory_space<vmem>>, vector<1x640xf32>
    %c0_1 = arith.constant 0 : index
    %c0_2 = arith.constant 0 : index
    %1 = vector.load %arg1[%c0_1, %c0_2] : memref<8x640xf32, #tpu.memory_space<vmem>>, vector<8x640xf32>
    %2 = vector.extract_strided_slice %1 {offsets = [0, 622], sizes = [8, 18], strides = [1, 1]} : vector<8x640xf32> to vector<8x18xf32>
    %3 = vector.extract_strided_slice %1 {offsets = [0, 0], sizes = [8, 622], strides = [1, 1]} : vector<8x640xf32> to vector<8x622xf32>
    %4 = tpu.concatenate %2, %3 in 1 : vector<8x18xf32>, vector<8x622xf32> -> vector<8x640xf32>
    %5 = vector.extract_strided_slice %1 {offsets = [0, 623], sizes = [8, 17], strides = [1, 1]} : vector<8x640xf32> to vector<8x17xf32>
    %6 = vector.extract_strided_slice %1 {offsets = [0, 0], sizes = [8, 623], strides = [1, 1]} : vector<8x640xf32> to vector<8x623xf32>
    %7 = tpu.concatenate %5, %6 in 1 : vector<8x17xf32>, vector<8x623xf32> -> vector<8x640xf32>
    %8 = vector.extract_strided_slice %1 {offsets = [0, 624], sizes = [8, 16], strides = [1, 1]} : vector<8x640xf32> to vector<8x16xf32>
    %9 = vector.extract_strided_slice %1 {offsets = [0, 0], sizes = [8, 624], strides = [1, 1]} : vector<8x640xf32> to vector<8x624xf32>
    %10 = tpu.concatenate %8, %9 in 1 : vector<8x16xf32>, vector<8x624xf32> -> vector<8x640xf32>
    %11 = vector.extract_strided_slice %1 {offsets = [0, 639], sizes = [8, 1], strides = [1, 1]} : vector<8x640xf32> to vector<8x1xf32>
    %12 = vector.extract_strided_slice %1 {offsets = [0, 0], sizes = [8, 639], strides = [1, 1]} : vector<8x640xf32> to vector<8x639xf32>
    %13 = tpu.concatenate %11, %12 in 1 : vector<8x1xf32>, vector<8x639xf32> -> vector<8x640xf32>
    %14 = vector.extract_strided_slice %1 {offsets = [0, 1], sizes = [8, 639], strides = [1, 1]} : vector<8x640xf32> to vector<8x639xf32>
    %15 = vector.extract_strided_slice %1 {offsets = [0, 0], sizes = [8, 1], strides = [1, 1]} : vector<8x640xf32> to vector<8x1xf32>
    %16 = tpu.concatenate %14, %15 in 1 : vector<8x639xf32>, vector<8x1xf32> -> vector<8x640xf32>
    %17 = vector.extract_strided_slice %1 {offsets = [0, 16], sizes = [8, 624], strides = [1, 1]} : vector<8x640xf32> to vector<8x624xf32>
    %18 = vector.extract_strided_slice %1 {offsets = [0, 0], sizes = [8, 16], strides = [1, 1]} : vector<8x640xf32> to vector<8x16xf32>
    %19 = tpu.concatenate %17, %18 in 1 : vector<8x624xf32>, vector<8x16xf32> -> vector<8x640xf32>
    %20 = vector.extract_strided_slice %1 {offsets = [0, 17], sizes = [8, 623], strides = [1, 1]} : vector<8x640xf32> to vector<8x623xf32>
    %21 = vector.extract_strided_slice %1 {offsets = [0, 0], sizes = [8, 17], strides = [1, 1]} : vector<8x640xf32> to vector<8x17xf32>
    %22 = tpu.concatenate %20, %21 in 1 : vector<8x623xf32>, vector<8x17xf32> -> vector<8x640xf32>
    %23 = vector.extract_strided_slice %1 {offsets = [0, 18], sizes = [8, 622], strides = [1, 1]} : vector<8x640xf32> to vector<8x622xf32>
    %24 = vector.extract_strided_slice %1 {offsets = [0, 0], sizes = [8, 18], strides = [1, 1]} : vector<8x640xf32> to vector<8x18xf32>
    %25 = tpu.concatenate %23, %24 in 1 : vector<8x622xf32>, vector<8x18xf32> -> vector<8x640xf32>
    %26 = tpu.concatenate %4, %7, %10, %13, %1, %16, %19, %22, %25 in 0 : vector<8x640xf32>, vector<8x640xf32>, vector<8x640xf32>, vector<8x640xf32>, vector<8x640xf32>, vector<8x640xf32>, vector<8x640xf32>, vector<8x640xf32>, vector<8x640xf32> -> vector<72x640xf32>
    %c0_3 = arith.constant 0 : index
    %c0_4 = arith.constant 0 : index
    %27 = vector.load %arg3[%c0_3, %c0_4] : memref<16x72xf32, #tpu.memory_space<vmem>>, vector<16x72xf32>
    %cst = arith.constant dense<0.000000e+00> : vector<16x640xf32>
    %28 = tpu.matmul %27, %26, %cst {dimension_numbers = #tpu.dot_dimension_numbers<[1], [0], [0], [1], [0, 0, 1, 1], [], []>} : vector<16x72xf32>, vector<72x640xf32>, vector<16x640xf32> -> vector<16x640xf32>
    %c0_5 = arith.constant 0 : index
    %c0_6 = arith.constant 0 : index
    %29 = vector.load %arg4[%c0_5, %c0_6] : memref<16x1xf32, #tpu.memory_space<vmem>>, vector<16x1xf32>
    %30 = vector.broadcast %29 : vector<16x1xf32> to vector<16x640xf32>
    %31 = arith.addf %28, %30 : vector<16x640xf32>
    %cst_7 = arith.constant 0.000000e+00 : f32
    %32 = vector.broadcast %cst_7 : f32 to vector<16x640xf32>
    %33 = arith.maximumf %31, %32 : vector<16x640xf32>
    %34 = vector.broadcast %0 : vector<1x640xf32> to vector<16x640xf32>
    %35 = arith.mulf %33, %34 : vector<16x640xf32>
    %36 = vector.extract_strided_slice %35 {offsets = [0, 622], sizes = [16, 18], strides = [1, 1]} : vector<16x640xf32> to vector<16x18xf32>
    %37 = vector.extract_strided_slice %35 {offsets = [0, 0], sizes = [16, 622], strides = [1, 1]} : vector<16x640xf32> to vector<16x622xf32>
    %38 = tpu.concatenate %36, %37 in 1 : vector<16x18xf32>, vector<16x622xf32> -> vector<16x640xf32>
    %39 = vector.extract_strided_slice %35 {offsets = [0, 623], sizes = [16, 17], strides = [1, 1]} : vector<16x640xf32> to vector<16x17xf32>
    %40 = vector.extract_strided_slice %35 {offsets = [0, 0], sizes = [16, 623], strides = [1, 1]} : vector<16x640xf32> to vector<16x623xf32>
    %41 = tpu.concatenate %39, %40 in 1 : vector<16x17xf32>, vector<16x623xf32> -> vector<16x640xf32>
    %42 = vector.extract_strided_slice %35 {offsets = [0, 624], sizes = [16, 16], strides = [1, 1]} : vector<16x640xf32> to vector<16x16xf32>
    %43 = vector.extract_strided_slice %35 {offsets = [0, 0], sizes = [16, 624], strides = [1, 1]} : vector<16x640xf32> to vector<16x624xf32>
    %44 = tpu.concatenate %42, %43 in 1 : vector<16x16xf32>, vector<16x624xf32> -> vector<16x640xf32>
    %45 = vector.extract_strided_slice %35 {offsets = [0, 639], sizes = [16, 1], strides = [1, 1]} : vector<16x640xf32> to vector<16x1xf32>
    %46 = vector.extract_strided_slice %35 {offsets = [0, 0], sizes = [16, 639], strides = [1, 1]} : vector<16x640xf32> to vector<16x639xf32>
    %47 = tpu.concatenate %45, %46 in 1 : vector<16x1xf32>, vector<16x639xf32> -> vector<16x640xf32>
    %48 = vector.extract_strided_slice %35 {offsets = [0, 1], sizes = [16, 639], strides = [1, 1]} : vector<16x640xf32> to vector<16x639xf32>
    %49 = vector.extract_strided_slice %35 {offsets = [0, 0], sizes = [16, 1], strides = [1, 1]} : vector<16x640xf32> to vector<16x1xf32>
    %50 = tpu.concatenate %48, %49 in 1 : vector<16x639xf32>, vector<16x1xf32> -> vector<16x640xf32>
    %51 = vector.extract_strided_slice %35 {offsets = [0, 16], sizes = [16, 624], strides = [1, 1]} : vector<16x640xf32> to vector<16x624xf32>
    %52 = vector.extract_strided_slice %35 {offsets = [0, 0], sizes = [16, 16], strides = [1, 1]} : vector<16x640xf32> to vector<16x16xf32>
    %53 = tpu.concatenate %51, %52 in 1 : vector<16x624xf32>, vector<16x16xf32> -> vector<16x640xf32>
    %54 = vector.extract_strided_slice %35 {offsets = [0, 17], sizes = [16, 623], strides = [1, 1]} : vector<16x640xf32> to vector<16x623xf32>
    %55 = vector.extract_strided_slice %35 {offsets = [0, 0], sizes = [16, 17], strides = [1, 1]} : vector<16x640xf32> to vector<16x17xf32>
    %56 = tpu.concatenate %54, %55 in 1 : vector<16x623xf32>, vector<16x17xf32> -> vector<16x640xf32>
    %57 = vector.extract_strided_slice %35 {offsets = [0, 18], sizes = [16, 622], strides = [1, 1]} : vector<16x640xf32> to vector<16x622xf32>
    %58 = vector.extract_strided_slice %35 {offsets = [0, 0], sizes = [16, 18], strides = [1, 1]} : vector<16x640xf32> to vector<16x18xf32>
    %59 = tpu.concatenate %57, %58 in 1 : vector<16x622xf32>, vector<16x18xf32> -> vector<16x640xf32>
    %60 = tpu.concatenate %38, %41, %44, %47, %35, %50, %53, %56, %59 in 0 : vector<16x640xf32>, vector<16x640xf32>, vector<16x640xf32>, vector<16x640xf32>, vector<16x640xf32>, vector<16x640xf32>, vector<16x640xf32>, vector<16x640xf32>, vector<16x640xf32> -> vector<144x640xf32>
    %c0_8 = arith.constant 0 : index
    %c0_9 = arith.constant 0 : index
    %61 = vector.load %arg5[%c0_8, %c0_9] : memref<32x144xf32, #tpu.memory_space<vmem>>, vector<32x144xf32>
    %cst_10 = arith.constant dense<0.000000e+00> : vector<32x640xf32>
    %62 = tpu.matmul %61, %60, %cst_10 {dimension_numbers = #tpu.dot_dimension_numbers<[1], [0], [0], [1], [0, 0, 1, 1], [], []>} : vector<32x144xf32>, vector<144x640xf32>, vector<32x640xf32> -> vector<32x640xf32>
    %c0_11 = arith.constant 0 : index
    %c0_12 = arith.constant 0 : index
    %63 = vector.load %arg6[%c0_11, %c0_12] : memref<32x1xf32, #tpu.memory_space<vmem>>, vector<32x1xf32>
    %64 = vector.broadcast %63 : vector<32x1xf32> to vector<32x640xf32>
    %65 = arith.addf %62, %64 : vector<32x640xf32>
    %cst_13 = arith.constant 0.000000e+00 : f32
    %66 = vector.broadcast %cst_13 : f32 to vector<32x640xf32>
    %67 = arith.maximumf %65, %66 : vector<32x640xf32>
    %68 = vector.broadcast %0 : vector<1x640xf32> to vector<32x640xf32>
    %69 = arith.mulf %67, %68 : vector<32x640xf32>
    %70 = vector.extract_strided_slice %69 {offsets = [0, 622], sizes = [32, 18], strides = [1, 1]} : vector<32x640xf32> to vector<32x18xf32>
    %71 = vector.extract_strided_slice %69 {offsets = [0, 0], sizes = [32, 622], strides = [1, 1]} : vector<32x640xf32> to vector<32x622xf32>
    %72 = tpu.concatenate %70, %71 in 1 : vector<32x18xf32>, vector<32x622xf32> -> vector<32x640xf32>
    %73 = vector.extract_strided_slice %69 {offsets = [0, 623], sizes = [32, 17], strides = [1, 1]} : vector<32x640xf32> to vector<32x17xf32>
    %74 = vector.extract_strided_slice %69 {offsets = [0, 0], sizes = [32, 623], strides = [1, 1]} : vector<32x640xf32> to vector<32x623xf32>
    %75 = tpu.concatenate %73, %74 in 1 : vector<32x17xf32>, vector<32x623xf32> -> vector<32x640xf32>
    %76 = vector.extract_strided_slice %69 {offsets = [0, 624], sizes = [32, 16], strides = [1, 1]} : vector<32x640xf32> to vector<32x16xf32>
    %77 = vector.extract_strided_slice %69 {offsets = [0, 0], sizes = [32, 624], strides = [1, 1]} : vector<32x640xf32> to vector<32x624xf32>
    %78 = tpu.concatenate %76, %77 in 1 : vector<32x16xf32>, vector<32x624xf32> -> vector<32x640xf32>
    %79 = vector.extract_strided_slice %69 {offsets = [0, 639], sizes = [32, 1], strides = [1, 1]} : vector<32x640xf32> to vector<32x1xf32>
    %80 = vector.extract_strided_slice %69 {offsets = [0, 0], sizes = [32, 639], strides = [1, 1]} : vector<32x640xf32> to vector<32x639xf32>
    %81 = tpu.concatenate %79, %80 in 1 : vector<32x1xf32>, vector<32x639xf32> -> vector<32x640xf32>
    %82 = vector.extract_strided_slice %69 {offsets = [0, 1], sizes = [32, 639], strides = [1, 1]} : vector<32x640xf32> to vector<32x639xf32>
    %83 = vector.extract_strided_slice %69 {offsets = [0, 0], sizes = [32, 1], strides = [1, 1]} : vector<32x640xf32> to vector<32x1xf32>
    %84 = tpu.concatenate %82, %83 in 1 : vector<32x639xf32>, vector<32x1xf32> -> vector<32x640xf32>
    %85 = vector.extract_strided_slice %69 {offsets = [0, 16], sizes = [32, 624], strides = [1, 1]} : vector<32x640xf32> to vector<32x624xf32>
    %86 = vector.extract_strided_slice %69 {offsets = [0, 0], sizes = [32, 16], strides = [1, 1]} : vector<32x640xf32> to vector<32x16xf32>
    %87 = tpu.concatenate %85, %86 in 1 : vector<32x624xf32>, vector<32x16xf32> -> vector<32x640xf32>
    %88 = vector.extract_strided_slice %69 {offsets = [0, 17], sizes = [32, 623], strides = [1, 1]} : vector<32x640xf32> to vector<32x623xf32>
    %89 = vector.extract_strided_slice %69 {offsets = [0, 0], sizes = [32, 17], strides = [1, 1]} : vector<32x640xf32> to vector<32x17xf32>
    %90 = tpu.concatenate %88, %89 in 1 : vector<32x623xf32>, vector<32x17xf32> -> vector<32x640xf32>
    %91 = vector.extract_strided_slice %69 {offsets = [0, 18], sizes = [32, 622], strides = [1, 1]} : vector<32x640xf32> to vector<32x622xf32>
    %92 = vector.extract_strided_slice %69 {offsets = [0, 0], sizes = [32, 18], strides = [1, 1]} : vector<32x640xf32> to vector<32x18xf32>
    %93 = tpu.concatenate %91, %92 in 1 : vector<32x622xf32>, vector<32x18xf32> -> vector<32x640xf32>
    %94 = tpu.concatenate %72, %75, %78, %81, %69, %84, %87, %90, %93 in 0 : vector<32x640xf32>, vector<32x640xf32>, vector<32x640xf32>, vector<32x640xf32>, vector<32x640xf32>, vector<32x640xf32>, vector<32x640xf32>, vector<32x640xf32>, vector<32x640xf32> -> vector<288x640xf32>
    %c0_14 = arith.constant 0 : index
    %c0_15 = arith.constant 0 : index
    %95 = vector.load %arg7[%c0_14, %c0_15] : memref<32x288xf32, #tpu.memory_space<vmem>>, vector<32x288xf32>
    %cst_16 = arith.constant dense<0.000000e+00> : vector<32x640xf32>
    %96 = tpu.matmul %95, %94, %cst_16 {dimension_numbers = #tpu.dot_dimension_numbers<[1], [0], [0], [1], [0, 0, 1, 1], [], []>} : vector<32x288xf32>, vector<288x640xf32>, vector<32x640xf32> -> vector<32x640xf32>
    %c0_17 = arith.constant 0 : index
    %c0_18 = arith.constant 0 : index
    %97 = vector.load %arg8[%c0_17, %c0_18] : memref<32x1xf32, #tpu.memory_space<vmem>>, vector<32x1xf32>
    %98 = vector.broadcast %97 : vector<32x1xf32> to vector<32x640xf32>
    %99 = arith.addf %96, %98 : vector<32x640xf32>
    %cst_19 = arith.constant 0.000000e+00 : f32
    %100 = vector.broadcast %cst_19 : f32 to vector<32x640xf32>
    %101 = arith.maximumf %99, %100 : vector<32x640xf32>
    %102 = vector.broadcast %0 : vector<1x640xf32> to vector<32x640xf32>
    %103 = arith.mulf %101, %102 : vector<32x640xf32>
    %104 = vector.extract_strided_slice %103 {offsets = [0, 622], sizes = [32, 18], strides = [1, 1]} : vector<32x640xf32> to vector<32x18xf32>
    %105 = vector.extract_strided_slice %103 {offsets = [0, 0], sizes = [32, 622], strides = [1, 1]} : vector<32x640xf32> to vector<32x622xf32>
    %106 = tpu.concatenate %104, %105 in 1 : vector<32x18xf32>, vector<32x622xf32> -> vector<32x640xf32>
    %107 = vector.extract_strided_slice %103 {offsets = [0, 623], sizes = [32, 17], strides = [1, 1]} : vector<32x640xf32> to vector<32x17xf32>
    %108 = vector.extract_strided_slice %103 {offsets = [0, 0], sizes = [32, 623], strides = [1, 1]} : vector<32x640xf32> to vector<32x623xf32>
    %109 = tpu.concatenate %107, %108 in 1 : vector<32x17xf32>, vector<32x623xf32> -> vector<32x640xf32>
    %110 = vector.extract_strided_slice %103 {offsets = [0, 624], sizes = [32, 16], strides = [1, 1]} : vector<32x640xf32> to vector<32x16xf32>
    %111 = vector.extract_strided_slice %103 {offsets = [0, 0], sizes = [32, 624], strides = [1, 1]} : vector<32x640xf32> to vector<32x624xf32>
    %112 = tpu.concatenate %110, %111 in 1 : vector<32x16xf32>, vector<32x624xf32> -> vector<32x640xf32>
    %113 = vector.extract_strided_slice %103 {offsets = [0, 639], sizes = [32, 1], strides = [1, 1]} : vector<32x640xf32> to vector<32x1xf32>
    %114 = vector.extract_strided_slice %103 {offsets = [0, 0], sizes = [32, 639], strides = [1, 1]} : vector<32x640xf32> to vector<32x639xf32>
    %115 = tpu.concatenate %113, %114 in 1 : vector<32x1xf32>, vector<32x639xf32> -> vector<32x640xf32>
    %116 = vector.extract_strided_slice %103 {offsets = [0, 1], sizes = [32, 639], strides = [1, 1]} : vector<32x640xf32> to vector<32x639xf32>
    %117 = vector.extract_strided_slice %103 {offsets = [0, 0], sizes = [32, 1], strides = [1, 1]} : vector<32x640xf32> to vector<32x1xf32>
    %118 = tpu.concatenate %116, %117 in 1 : vector<32x639xf32>, vector<32x1xf32> -> vector<32x640xf32>
    %119 = vector.extract_strided_slice %103 {offsets = [0, 16], sizes = [32, 624], strides = [1, 1]} : vector<32x640xf32> to vector<32x624xf32>
    %120 = vector.extract_strided_slice %103 {offsets = [0, 0], sizes = [32, 16], strides = [1, 1]} : vector<32x640xf32> to vector<32x16xf32>
    %121 = tpu.concatenate %119, %120 in 1 : vector<32x624xf32>, vector<32x16xf32> -> vector<32x640xf32>
    %122 = vector.extract_strided_slice %103 {offsets = [0, 17], sizes = [32, 623], strides = [1, 1]} : vector<32x640xf32> to vector<32x623xf32>
    %123 = vector.extract_strided_slice %103 {offsets = [0, 0], sizes = [32, 17], strides = [1, 1]} : vector<32x640xf32> to vector<32x17xf32>
    %124 = tpu.concatenate %122, %123 in 1 : vector<32x623xf32>, vector<32x17xf32> -> vector<32x640xf32>
    %125 = vector.extract_strided_slice %103 {offsets = [0, 18], sizes = [32, 622], strides = [1, 1]} : vector<32x640xf32> to vector<32x622xf32>
    %126 = vector.extract_strided_slice %103 {offsets = [0, 0], sizes = [32, 18], strides = [1, 1]} : vector<32x640xf32> to vector<32x18xf32>
    %127 = tpu.concatenate %125, %126 in 1 : vector<32x622xf32>, vector<32x18xf32> -> vector<32x640xf32>
    %128 = tpu.concatenate %106, %109, %112, %115, %103, %118, %121, %124, %127 in 0 : vector<32x640xf32>, vector<32x640xf32>, vector<32x640xf32>, vector<32x640xf32>, vector<32x640xf32>, vector<32x640xf32>, vector<32x640xf32>, vector<32x640xf32>, vector<32x640xf32> -> vector<288x640xf32>
    %c0_20 = arith.constant 0 : index
    %c0_21 = arith.constant 0 : index
    %129 = vector.load %arg9[%c0_20, %c0_21] : memref<64x288xf32, #tpu.memory_space<vmem>>, vector<64x288xf32>
    %cst_22 = arith.constant dense<0.000000e+00> : vector<64x640xf32>
    %130 = tpu.matmul %129, %128, %cst_22 {dimension_numbers = #tpu.dot_dimension_numbers<[1], [0], [0], [1], [0, 0, 1, 1], [], []>} : vector<64x288xf32>, vector<288x640xf32>, vector<64x640xf32> -> vector<64x640xf32>
    %c0_23 = arith.constant 0 : index
    %c0_24 = arith.constant 0 : index
    %131 = vector.load %arg10[%c0_23, %c0_24] : memref<64x1xf32, #tpu.memory_space<vmem>>, vector<64x1xf32>
    %132 = vector.broadcast %131 : vector<64x1xf32> to vector<64x640xf32>
    %133 = arith.addf %130, %132 : vector<64x640xf32>
    %cst_25 = arith.constant 0.000000e+00 : f32
    %134 = vector.broadcast %cst_25 : f32 to vector<64x640xf32>
    %135 = arith.maximumf %133, %134 : vector<64x640xf32>
    %136 = vector.broadcast %0 : vector<1x640xf32> to vector<64x640xf32>
    %137 = arith.mulf %135, %136 : vector<64x640xf32>
    %138 = vector.extract_strided_slice %137 {offsets = [0, 622], sizes = [64, 18], strides = [1, 1]} : vector<64x640xf32> to vector<64x18xf32>
    %139 = vector.extract_strided_slice %137 {offsets = [0, 0], sizes = [64, 622], strides = [1, 1]} : vector<64x640xf32> to vector<64x622xf32>
    %140 = tpu.concatenate %138, %139 in 1 : vector<64x18xf32>, vector<64x622xf32> -> vector<64x640xf32>
    %141 = vector.extract_strided_slice %137 {offsets = [0, 623], sizes = [64, 17], strides = [1, 1]} : vector<64x640xf32> to vector<64x17xf32>
    %142 = vector.extract_strided_slice %137 {offsets = [0, 0], sizes = [64, 623], strides = [1, 1]} : vector<64x640xf32> to vector<64x623xf32>
    %143 = tpu.concatenate %141, %142 in 1 : vector<64x17xf32>, vector<64x623xf32> -> vector<64x640xf32>
    %144 = vector.extract_strided_slice %137 {offsets = [0, 624], sizes = [64, 16], strides = [1, 1]} : vector<64x640xf32> to vector<64x16xf32>
    %145 = vector.extract_strided_slice %137 {offsets = [0, 0], sizes = [64, 624], strides = [1, 1]} : vector<64x640xf32> to vector<64x624xf32>
    %146 = tpu.concatenate %144, %145 in 1 : vector<64x16xf32>, vector<64x624xf32> -> vector<64x640xf32>
    %147 = vector.extract_strided_slice %137 {offsets = [0, 639], sizes = [64, 1], strides = [1, 1]} : vector<64x640xf32> to vector<64x1xf32>
    %148 = vector.extract_strided_slice %137 {offsets = [0, 0], sizes = [64, 639], strides = [1, 1]} : vector<64x640xf32> to vector<64x639xf32>
    %149 = tpu.concatenate %147, %148 in 1 : vector<64x1xf32>, vector<64x639xf32> -> vector<64x640xf32>
    %150 = vector.extract_strided_slice %137 {offsets = [0, 1], sizes = [64, 639], strides = [1, 1]} : vector<64x640xf32> to vector<64x639xf32>
    %151 = vector.extract_strided_slice %137 {offsets = [0, 0], sizes = [64, 1], strides = [1, 1]} : vector<64x640xf32> to vector<64x1xf32>
    %152 = tpu.concatenate %150, %151 in 1 : vector<64x639xf32>, vector<64x1xf32> -> vector<64x640xf32>
    %153 = vector.extract_strided_slice %137 {offsets = [0, 16], sizes = [64, 624], strides = [1, 1]} : vector<64x640xf32> to vector<64x624xf32>
    %154 = vector.extract_strided_slice %137 {offsets = [0, 0], sizes = [64, 16], strides = [1, 1]} : vector<64x640xf32> to vector<64x16xf32>
    %155 = tpu.concatenate %153, %154 in 1 : vector<64x624xf32>, vector<64x16xf32> -> vector<64x640xf32>
    %156 = vector.extract_strided_slice %137 {offsets = [0, 17], sizes = [64, 623], strides = [1, 1]} : vector<64x640xf32> to vector<64x623xf32>
    %157 = vector.extract_strided_slice %137 {offsets = [0, 0], sizes = [64, 17], strides = [1, 1]} : vector<64x640xf32> to vector<64x17xf32>
    %158 = tpu.concatenate %156, %157 in 1 : vector<64x623xf32>, vector<64x17xf32> -> vector<64x640xf32>
    %159 = vector.extract_strided_slice %137 {offsets = [0, 18], sizes = [64, 622], strides = [1, 1]} : vector<64x640xf32> to vector<64x622xf32>
    %160 = vector.extract_strided_slice %137 {offsets = [0, 0], sizes = [64, 18], strides = [1, 1]} : vector<64x640xf32> to vector<64x18xf32>
    %161 = tpu.concatenate %159, %160 in 1 : vector<64x622xf32>, vector<64x18xf32> -> vector<64x640xf32>
    %162 = tpu.concatenate %140, %143, %146, %149, %137, %152, %155, %158, %161 in 0 : vector<64x640xf32>, vector<64x640xf32>, vector<64x640xf32>, vector<64x640xf32>, vector<64x640xf32>, vector<64x640xf32>, vector<64x640xf32>, vector<64x640xf32>, vector<64x640xf32> -> vector<576x640xf32>
    %c0_26 = arith.constant 0 : index
    %c0_27 = arith.constant 0 : index
    %163 = vector.load %arg11[%c0_26, %c0_27] : memref<64x576xf32, #tpu.memory_space<vmem>>, vector<64x576xf32>
    %cst_28 = arith.constant dense<0.000000e+00> : vector<64x640xf32>
    %164 = tpu.matmul %163, %162, %cst_28 {dimension_numbers = #tpu.dot_dimension_numbers<[1], [0], [0], [1], [0, 0, 1, 1], [], []>} : vector<64x576xf32>, vector<576x640xf32>, vector<64x640xf32> -> vector<64x640xf32>
    %c0_29 = arith.constant 0 : index
    %c0_30 = arith.constant 0 : index
    %165 = vector.load %arg12[%c0_29, %c0_30] : memref<64x1xf32, #tpu.memory_space<vmem>>, vector<64x1xf32>
    %166 = vector.broadcast %165 : vector<64x1xf32> to vector<64x640xf32>
    %167 = arith.addf %164, %166 : vector<64x640xf32>
    %cst_31 = arith.constant 0.000000e+00 : f32
    %168 = vector.broadcast %cst_31 : f32 to vector<64x640xf32>
    %169 = arith.maximumf %167, %168 : vector<64x640xf32>
    %170 = vector.broadcast %0 : vector<1x640xf32> to vector<64x640xf32>
    %171 = arith.mulf %169, %170 : vector<64x640xf32>
    %172 = vector.extract_strided_slice %171 {offsets = [0, 622], sizes = [64, 18], strides = [1, 1]} : vector<64x640xf32> to vector<64x18xf32>
    %173 = vector.extract_strided_slice %171 {offsets = [0, 0], sizes = [64, 622], strides = [1, 1]} : vector<64x640xf32> to vector<64x622xf32>
    %174 = tpu.concatenate %172, %173 in 1 : vector<64x18xf32>, vector<64x622xf32> -> vector<64x640xf32>
    %175 = vector.extract_strided_slice %171 {offsets = [0, 623], sizes = [64, 17], strides = [1, 1]} : vector<64x640xf32> to vector<64x17xf32>
    %176 = vector.extract_strided_slice %171 {offsets = [0, 0], sizes = [64, 623], strides = [1, 1]} : vector<64x640xf32> to vector<64x623xf32>
    %177 = tpu.concatenate %175, %176 in 1 : vector<64x17xf32>, vector<64x623xf32> -> vector<64x640xf32>
    %178 = vector.extract_strided_slice %171 {offsets = [0, 624], sizes = [64, 16], strides = [1, 1]} : vector<64x640xf32> to vector<64x16xf32>
    %179 = vector.extract_strided_slice %171 {offsets = [0, 0], sizes = [64, 624], strides = [1, 1]} : vector<64x640xf32> to vector<64x624xf32>
    %180 = tpu.concatenate %178, %179 in 1 : vector<64x16xf32>, vector<64x624xf32> -> vector<64x640xf32>
    %181 = vector.extract_strided_slice %171 {offsets = [0, 639], sizes = [64, 1], strides = [1, 1]} : vector<64x640xf32> to vector<64x1xf32>
    %182 = vector.extract_strided_slice %171 {offsets = [0, 0], sizes = [64, 639], strides = [1, 1]} : vector<64x640xf32> to vector<64x639xf32>
    %183 = tpu.concatenate %181, %182 in 1 : vector<64x1xf32>, vector<64x639xf32> -> vector<64x640xf32>
    %184 = vector.extract_strided_slice %171 {offsets = [0, 1], sizes = [64, 639], strides = [1, 1]} : vector<64x640xf32> to vector<64x639xf32>
    %185 = vector.extract_strided_slice %171 {offsets = [0, 0], sizes = [64, 1], strides = [1, 1]} : vector<64x640xf32> to vector<64x1xf32>
    %186 = tpu.concatenate %184, %185 in 1 : vector<64x639xf32>, vector<64x1xf32> -> vector<64x640xf32>
    %187 = vector.extract_strided_slice %171 {offsets = [0, 16], sizes = [64, 624], strides = [1, 1]} : vector<64x640xf32> to vector<64x624xf32>
    %188 = vector.extract_strided_slice %171 {offsets = [0, 0], sizes = [64, 16], strides = [1, 1]} : vector<64x640xf32> to vector<64x16xf32>
    %189 = tpu.concatenate %187, %188 in 1 : vector<64x624xf32>, vector<64x16xf32> -> vector<64x640xf32>
    %190 = vector.extract_strided_slice %171 {offsets = [0, 17], sizes = [64, 623], strides = [1, 1]} : vector<64x640xf32> to vector<64x623xf32>
    %191 = vector.extract_strided_slice %171 {offsets = [0, 0], sizes = [64, 17], strides = [1, 1]} : vector<64x640xf32> to vector<64x17xf32>
    %192 = tpu.concatenate %190, %191 in 1 : vector<64x623xf32>, vector<64x17xf32> -> vector<64x640xf32>
    %193 = vector.extract_strided_slice %171 {offsets = [0, 18], sizes = [64, 622], strides = [1, 1]} : vector<64x640xf32> to vector<64x622xf32>
    %194 = vector.extract_strided_slice %171 {offsets = [0, 0], sizes = [64, 18], strides = [1, 1]} : vector<64x640xf32> to vector<64x18xf32>
    %195 = tpu.concatenate %193, %194 in 1 : vector<64x622xf32>, vector<64x18xf32> -> vector<64x640xf32>
    %196 = tpu.concatenate %174, %177, %180, %183, %171, %186, %189, %192, %195 in 0 : vector<64x640xf32>, vector<64x640xf32>, vector<64x640xf32>, vector<64x640xf32>, vector<64x640xf32>, vector<64x640xf32>, vector<64x640xf32>, vector<64x640xf32>, vector<64x640xf32> -> vector<576x640xf32>
    %c0_32 = arith.constant 0 : index
    %c0_33 = arith.constant 0 : index
    %197 = vector.load %arg13[%c0_32, %c0_33] : memref<1x576xf32, #tpu.memory_space<vmem>>, vector<1x576xf32>
    %cst_34 = arith.constant dense<0.000000e+00> : vector<1x640xf32>
    %198 = tpu.matmul %197, %196, %cst_34 {dimension_numbers = #tpu.dot_dimension_numbers<[1], [0], [0], [1], [0, 0, 1, 1], [], []>} : vector<1x576xf32>, vector<576x640xf32>, vector<1x640xf32> -> vector<1x640xf32>
    %c0_35 = arith.constant 0 : index
    %c0_36 = arith.constant 0 : index
    %199 = vector.load %arg14[%c0_35, %c0_36] : memref<1x1xf32, #tpu.memory_space<vmem>>, vector<1x1xf32>
    %200 = vector.broadcast %199 : vector<1x1xf32> to vector<1x640xf32>
    %201 = arith.addf %198, %200 : vector<1x640xf32>
    %c0_37 = arith.constant 0 : index
    %c0_38 = arith.constant 0 : index
    %202 = vector.load %arg15[%c0_37, %c0_38] : memref<1x640xf32, #tpu.memory_space<vmem>>, vector<1x640xf32>
    tpu.vector_store %arg15[%c0_37, %c0_38], %201 {strides = array<i32>} : memref<1x640xf32, #tpu.memory_space<vmem>>, vector<1x640xf32>,
    return
  }
  func.func @transform_0(%arg0: i32) -> (i32, i32) {
    %c0_i32 = arith.constant 0 : i32
    %c0_i32_0 = arith.constant 0 : i32
    return %c0_i32, %arg0 : i32, i32
  }
  func.func @transform_1(%arg0: i32) -> (i32, i32) {
    %c0_i32 = arith.constant 0 : i32
    %c0_i32_0 = arith.constant 0 : i32
    %c0_i32_1 = arith.constant 0 : i32
    return %c0_i32, %c0_i32_0 : i32, i32
  }
  func.func @transform_2(%arg0: i32) -> (i32, i32) {
    %c0_i32 = arith.constant 0 : i32
    %c0_i32_0 = arith.constant 0 : i32
    %c0_i32_1 = arith.constant 0 : i32
    return %c0_i32, %c0_i32_0 : i32, i32
  }
  func.func @transform_3(%arg0: i32) -> (i32, i32) {
    %c0_i32 = arith.constant 0 : i32
    %c0_i32_0 = arith.constant 0 : i32
    %c0_i32_1 = arith.constant 0 : i32
    return %c0_i32, %c0_i32_0 : i32, i32
  }
  func.func @transform_4(%arg0: i32) -> (i32, i32) {
    %c0_i32 = arith.constant 0 : i32
    %c0_i32_0 = arith.constant 0 : i32
    %c0_i32_1 = arith.constant 0 : i32
    return %c0_i32, %c0_i32_0 : i32, i32
  }
  func.func @transform_5(%arg0: i32) -> (i32, i32) {
    %c0_i32 = arith.constant 0 : i32
    %c0_i32_0 = arith.constant 0 : i32
    %c0_i32_1 = arith.constant 0 : i32
    return %c0_i32, %c0_i32_0 : i32, i32
  }
  func.func @transform_6(%arg0: i32) -> (i32, i32) {
    %c0_i32 = arith.constant 0 : i32
    %c0_i32_0 = arith.constant 0 : i32
    %c0_i32_1 = arith.constant 0 : i32
    return %c0_i32, %c0_i32_0 : i32, i32
  }
  func.func @transform_7(%arg0: i32) -> (i32, i32) {
    %c0_i32 = arith.constant 0 : i32
    %c0_i32_0 = arith.constant 0 : i32
    %c0_i32_1 = arith.constant 0 : i32
    return %c0_i32, %c0_i32_0 : i32, i32
  }
  func.func @transform_8(%arg0: i32) -> (i32, i32) {
    %c0_i32 = arith.constant 0 : i32
    %c0_i32_0 = arith.constant 0 : i32
    %c0_i32_1 = arith.constant 0 : i32
    return %c0_i32, %c0_i32_0 : i32, i32
  }
  func.func @transform_9(%arg0: i32) -> (i32, i32) {
    %c0_i32 = arith.constant 0 : i32
    %c0_i32_0 = arith.constant 0 : i32
    %c0_i32_1 = arith.constant 0 : i32
    return %c0_i32, %c0_i32_0 : i32, i32
  }
  func.func @transform_10(%arg0: i32) -> (i32, i32) {
    %c0_i32 = arith.constant 0 : i32
    %c0_i32_0 = arith.constant 0 : i32
    %c0_i32_1 = arith.constant 0 : i32
    return %c0_i32, %c0_i32_0 : i32, i32
  }
  func.func @transform_11(%arg0: i32) -> (i32, i32) {
    %c0_i32 = arith.constant 0 : i32
    %c0_i32_0 = arith.constant 0 : i32
    %c0_i32_1 = arith.constant 0 : i32
    return %c0_i32, %c0_i32_0 : i32, i32
  }
  func.func @transform_12(%arg0: i32) -> (i32, i32) {
    %c0_i32 = arith.constant 0 : i32
    %c0_i32_0 = arith.constant 0 : i32
    %c0_i32_1 = arith.constant 0 : i32
    return %c0_i32, %c0_i32_0 : i32, i32
  }
  func.func @transform_13(%arg0: i32) -> (i32, i32) {
    %c0_i32 = arith.constant 0 : i32
    %c0_i32_0 = arith.constant 0 : i32
    %c0_i32_1 = arith.constant 0 : i32
    return %c0_i32, %c0_i32_0 : i32, i32
  }
  func.func @transform_14(%arg0: i32) -> (i32, i32) {
    %c0_i32 = arith.constant 0 : i32
    %c0_i32_0 = arith.constant 0 : i32
    return %c0_i32, %arg0 : i32, i32
  }
}

</mosaic_0001>

<llo_original>
// kernel: rlnet_forward.1
$region0: #{rlnet_forward.1}
  #allocation0 [shape = 'u32[]', space=smem, size = 0x4, offset = 0x4, fixed_abs, tag = 'smem constant byte address 0x4 - core index']
  #allocation1 [shape = 'u32[72,128]{1,0:T(1,128)}', space=vmem, size = 0x9000, scoped, tag = 'internal scratch']
  #allocation2 [shape = 'f32[1,1]{1,0:T(1,128)S(1)}', space=vmem, size = 0x200, scoped, tag = 'scoped memory for rlnet_forward.1']
  %s0 = inlined_call_operand.vmem [shape: f32[8,640], index: 0, kind: input, shape index: {}]
  %s1 = inlined_call_operand.vmem [shape: f32[1,640], index: 1, kind: input, shape index: {}]
  %s2 = inlined_call_operand.vmem [shape: f32[16,72], index: 2, kind: input, shape index: {}]
  %s3 = inlined_call_operand.vmem [shape: f32[16,1], index: 3, kind: input, shape index: {}]
  %s4 = inlined_call_operand.vmem [shape: f32[32,144], index: 4, kind: input, shape index: {}]
  %s5 = inlined_call_operand.vmem [shape: f32[32,1], index: 5, kind: input, shape index: {}]
  %s6 = inlined_call_operand.vmem [shape: f32[32,288], index: 6, kind: input, shape index: {}]
  %s7 = inlined_call_operand.vmem [shape: f32[32,1], index: 7, kind: input, shape index: {}]
  %s8 = inlined_call_operand.vmem [shape: f32[64,288], index: 8, kind: input, shape index: {}]
  %s9 = inlined_call_operand.vmem [shape: f32[64,1], index: 9, kind: input, shape index: {}]
  %s10 = inlined_call_operand.vmem [shape: f32[64,576], index: 10, kind: input, shape index: {}]
  %s11 = inlined_call_operand.vmem [shape: f32[64,1], index: 11, kind: input, shape index: {}]
  %s12 = inlined_call_operand.vmem [shape: f32[1,576], index: 12, kind: input, shape index: {}]
  %s13 = inlined_call_operand.<no memory space> [shape: f32[1,1], index: 13, kind: input, shape index: {}]
  %s14 = inlined_call_operand.vmem [shape: f32[1,640], index: 14, kind: output, shape index: {}]
  %s15 = sld [smem:[#allocation0]]
  $region66: #{rlnet_forward.1} parent=0
    _
  %s17 = ssub.s32 1, %s15
  %s18 = scalar_select 0, %s17, %s15
  %v19 = vstv %s13
  %20 = vst [vmem:[#allocation2] sm:$0x1] %v19
  // Predicated region
  $region2: #{rlnet_forward.1} parent=0 // pred_check
    _
  $region3: #{rlnet_forward.1} parent=0 // pred_check_branch
    %22 = sbr.rel (0) target = $region5
  $region4: #{rlnet_forward.1} parent=0 // pred_region
    _
  $region5: #{rlnet_forward.1} parent=0 // pred_fallthru
    _
  // Predicated region
  $region6: #{rlnet_forward.1} parent=0 // pred_check
    _
  $region7: #{rlnet_forward.1} parent=0 // pred_check_branch
    %24 = sbr.rel (0) target = $region9
  $region8: #{rlnet_forward.1} parent=0 // pred_region
    _
  $region9: #{rlnet_forward.1} parent=0 // pred_fallthru
    _
  // Predicated region
  $region10: #{rlnet_forward.1} parent=0 // pred_check
    _
  $region11: #{rlnet_forward.1} parent=0 // pred_check_branch
    %26 = sbr.rel (0) target = $region13
  $region12: #{rlnet_forward.1} parent=0 // pred_region
    _
  $region13: #{rlnet_forward.1} parent=0 // pred_fallthru
    _
  // Predicated region
  $region14: #{rlnet_forward.1} parent=0 // pred_check
    _
  $region15: #{rlnet_forward.1} parent=0 // pred_check_branch
    %28 = sbr.rel (0) target = $region17
  $region16: #{rlnet_forward.1} parent=0 // pred_region
    _
  $region17: #{rlnet_forward.1} parent=0 // pred_fallthru
    _
  // Predicated region
  $region18: #{rlnet_forward.1} parent=0 // pred_check
    _
  $region19: #{rlnet_forward.1} parent=0 // pred_check_branch
    %30 = sbr.rel (0) target = $region21
  $region20: #{rlnet_forward.1} parent=0 // pred_region
    _
  $region21: #{rlnet_forward.1} parent=0 // pred_fallthru
    _
  // Predicated region
  $region22: #{rlnet_forward.1} parent=0 // pred_check
    _
  $region23: #{rlnet_forward.1} parent=0 // pred_check_branch
    %32 = sbr.rel (0) target = $region25
  $region24: #{rlnet_forward.1} parent=0 // pred_region
    _
  $region25: #{rlnet_forward.1} parent=0 // pred_fallthru
    _
  // Predicated region
  $region26: #{rlnet_forward.1} parent=0 // pred_check
    _
  $region27: #{rlnet_forward.1} parent=0 // pred_check_branch
    %34 = sbr.rel (0) target = $region29
  $region28: #{rlnet_forward.1} parent=0 // pred_region
    _
  $region29: #{rlnet_forward.1} parent=0 // pred_fallthru
    _
  // Predicated region
  $region30: #{rlnet_forward.1} parent=0 // pred_check
    _
  $region31: #{rlnet_forward.1} parent=0 // pred_check_branch
    %36 = sbr.rel (0) target = $region33
  $region32: #{rlnet_forward.1} parent=0 // pred_region
    _
  $region33: #{rlnet_forward.1} parent=0 // pred_fallthru
    _
  // Predicated region
  $region34: #{rlnet_forward.1} parent=0 // pred_check
    _
  $region35: #{rlnet_forward.1} parent=0 // pred_check_branch
    %38 = sbr.rel (0) target = $region37
  $region36: #{rlnet_forward.1} parent=0 // pred_region
    _
  $region37: #{rlnet_forward.1} parent=0 // pred_fallthru
    _
  // Predicated region
  $region38: #{rlnet_forward.1} parent=0 // pred_check
    _
  $region39: #{rlnet_forward.1} parent=0 // pred_check_branch
    %40 = sbr.rel (0) target = $region41
  $region40: #{rlnet_forward.1} parent=0 // pred_region
    _
  $region41: #{rlnet_forward.1} parent=0 // pred_fallthru
    _
  // Predicated region
  $region42: #{rlnet_forward.1} parent=0 // pred_check
    _
  $region43: #{rlnet_forward.1} parent=0 // pred_check_branch
    %42 = sbr.rel (0) target = $region45
  $region44: #{rlnet_forward.1} parent=0 // pred_region
    _
  $region45: #{rlnet_forward.1} parent=0 // pred_fallthru
    _
  // Predicated region
  $region46: #{rlnet_forward.1} parent=0 // pred_check
    _
  $region47: #{rlnet_forward.1} parent=0 // pred_check_branch
    %44 = sbr.rel (0) target = $region49
  $region48: #{rlnet_forward.1} parent=0 // pred_region
    _
  $region49: #{rlnet_forward.1} parent=0 // pred_fallthru
    _
  // Predicated region
  $region50: #{rlnet_forward.1} parent=0 // pred_check
    _
  $region51: #{rlnet_forward.1} parent=0 // pred_check_branch
    %46 = sbr.rel (0) target = $region53
  $region52: #{rlnet_forward.1} parent=0 // pred_region
    _
  $region53: #{rlnet_forward.1} parent=0 // pred_fallthru
    _
  // Predicated region
  $region54: #{rlnet_forward.1} parent=0 // pred_check
    _
  $region55: #{rlnet_forward.1} parent=0 // pred_check_branch
    %48 = sbr.rel (0) target = $region57
  $region56: #{rlnet_forward.1} parent=0 // pred_region
    _
  $region57: #{rlnet_forward.1} parent=0 // pred_fallthru
    _
  %v49 = vld [vmem:[%s1] sm:$0x1f]
  %v50 = vld [vmem:[%s0] sm:$0xff]
  %v51 = vld [vmem:[%s0 + $0x8] sm:$0xff]
  %v52 = vld [vmem:[%s0 + $0x10] sm:$0xff]
  %v53 = vld [vmem:[%s0 + $0x18] sm:$0xff]
  %v54 = vld [vmem:[%s0 + $0x20] sm:$0xff]
  %56 = vrot.lane.b32.xlu0 %v54, 18
  %v57 = vpop.permute.xlu0 %56
  %63 = vrot.lane.b32.xlu0 %v50, 18
  %v64 = vpop.permute.xlu0 %63
  %65 = vrot.lane.b32.xlu0 %v51, 18
  %v66 = vpop.permute.xlu0 %65
  %67 = vrot.lane.b32.xlu0 %v52, 18
  %v68 = vpop.permute.xlu0 %67
  %69 = vrot.lane.b32.xlu0 %v53, 18
  %v70 = vpop.permute.xlu0 %69
  %vm71 = vcmask 146432
  %v72 = vsel %vm71, %v64, %v66
  %v73 = vsel %vm71, %v66, %v68
  %v74 = vsel %vm71, %v68, %v70
  %v75 = vsel %vm71, %v70, %v57
  %v81 = vsel %vm71, %v57, %v64
  %82 = vrot.lane.b32.xlu0 %v54, 17
  %v83 = vpop.permute.xlu0 %82
  %85 = vrot.lane.b32.xlu0 %v50, 17
  %v86 = vpop.permute.xlu0 %85
  %87 = vrot.lane.b32.xlu0 %v51, 17
  %v88 = vpop.permute.xlu0 %87
  %89 = vrot.lane.b32.xlu0 %v52, 17
  %v90 = vpop.permute.xlu0 %89
  %91 = vrot.lane.b32.xlu0 %v53, 17
  %v92 = vpop.permute.xlu0 %91
  %vm93 = vcmask 138240
  %v94 = vsel %vm93, %v86, %v88
  %v95 = vsel %vm93, %v88, %v90
  %v96 = vsel %vm93, %v90, %v92
  %v97 = vsel %vm93, %v92, %v83
  %v103 = vsel %vm93, %v83, %v86
  %104 = vrot.lane.b32.xlu0 %v54, 16
  %v105 = vpop.permute.xlu0 %104
  %107 = vrot.lane.b32.xlu0 %v50, 16
  %v108 = vpop.permute.xlu0 %107
  %109 = vrot.lane.b32.xlu0 %v51, 16
  %v110 = vpop.permute.xlu0 %109
  %111 = vrot.lane.b32.xlu0 %v52, 16
  %v112 = vpop.permute.xlu0 %111
  %113 = vrot.lane.b32.xlu0 %v53, 16
  %v114 = vpop.permute.xlu0 %113
  %vm115 = vcmask 130048
  %v116 = vsel %vm115, %v108, %v110
  %v117 = vsel %vm115, %v110, %v112
  %v118 = vsel %vm115, %v112, %v114
  %v119 = vsel %vm115, %v114, %v105
  %v125 = vsel %vm115, %v105, %v108
  %126 = vrot.lane.b32.xlu0 %v54, 1
  %v127 = vpop.permute.xlu0 %126
  %129 = vrot.lane.b32.xlu0 %v50, 1
  %v130 = vpop.permute.xlu0 %129
  %131 = vrot.lane.b32.xlu0 %v51, 1
  %v132 = vpop.permute.xlu0 %131
  %133 = vrot.lane.b32.xlu0 %v52, 1
  %v134 = vpop.permute.xlu0 %133
  %135 = vrot.lane.b32.xlu0 %v53, 1
  %v136 = vpop.permute.xlu0 %135
  %vm137 = vcmask 7168
  %v138 = vsel %vm137, %v130, %v132
  %v139 = vsel %vm137, %v132, %v134
  %v140 = vsel %vm137, %v134, %v136
  %v141 = vsel %vm137, %v136, %v127
  %v147 = vsel %vm137, %v127, %v130
  %148 = vrot.lane.b32.xlu0 %v50, 127
  %v149 = vpop.permute.xlu0 %148
  %150 = vrot.lane.b32.xlu0 %v51, 127
  %v151 = vpop.permute.xlu0 %150
  %152 = vrot.lane.b32.xlu0 %v52, 127
  %v153 = vpop.permute.xlu0 %152
  %154 = vrot.lane.b32.xlu0 %v53, 127
  %v155 = vpop.permute.xlu0 %154
  %156 = vrot.lane.b32.xlu0 %v54, 127
  %v157 = vpop.permute.xlu0 %156
  %vm158 = vcmask 1039360
  %v159 = vsel %vm158, %v149, %v151
  %v160 = vsel %vm158, %v151, %v153
  %v161 = vsel %vm158, %v153, %v155
  %v162 = vsel %vm158, %v155, %v157
  %v169 = vsel %vm158, %v157, %v149
  %170 = vrot.lane.b32.xlu0 %v50, 112
  %v171 = vpop.permute.xlu0 %170
  %172 = vrot.lane.b32.xlu0 %v51, 112
  %v173 = vpop.permute.xlu0 %172
  %174 = vrot.lane.b32.xlu0 %v52, 112
  %v175 = vpop.permute.xlu0 %174
  %176 = vrot.lane.b32.xlu0 %v53, 112
  %v177 = vpop.permute.xlu0 %176
  %178 = vrot.lane.b32.xlu0 %v54, 112
  %v179 = vpop.permute.xlu0 %178
  %vm180 = vcmask 916480
  %v181 = vsel %vm180, %v171, %v173
  %v182 = vsel %vm180, %v173, %v175
  %v183 = vsel %vm180, %v175, %v177
  %v184 = vsel %vm180, %v177, %v179
  %v191 = vsel %vm180, %v179, %v171
  %192 = vrot.lane.b32.xlu0 %v50, 111
  %v193 = vpop.permute.xlu0 %192
  %194 = vrot.lane.b32.xlu0 %v51, 111
  %v195 = vpop.permute.xlu0 %194
  %196 = vrot.lane.b32.xlu0 %v52, 111
  %v197 = vpop.permute.xlu0 %196
  %198 = vrot.lane.b32.xlu0 %v53, 111
  %v199 = vpop.permute.xlu0 %198
  %200 = vrot.lane.b32.xlu0 %v54, 111
  %v201 = vpop.permute.xlu0 %200
  %vm202 = vcmask 908288
  %v203 = vsel %vm202, %v193, %v195
  %v204 = vsel %vm202, %v195, %v197
  %v205 = vsel %vm202, %v197, %v199
  %v206 = vsel %vm202, %v199, %v201
  %v213 = vsel %vm202, %v201, %v193
  %214 = vrot.lane.b32.xlu0 %v50, 110
  %v215 = vpop.permute.xlu0 %214
  %216 = vrot.lane.b32.xlu0 %v51, 110
  %v217 = vpop.permute.xlu0 %216
  %218 = vrot.lane.b32.xlu0 %v52, 110
  %v219 = vpop.permute.xlu0 %218
  %220 = vrot.lane.b32.xlu0 %v53, 110
  %v221 = vpop.permute.xlu0 %220
  %222 = vrot.lane.b32.xlu0 %v54, 110
  %v223 = vpop.permute.xlu0 %222
  %vm224 = vcmask 900096
  %v225 = vsel %vm224, %v215, %v217
  %v226 = vsel %vm224, %v217, %v219
  %v227 = vsel %vm224, %v219, %v221
  %v228 = vsel %vm224, %v221, %v223
  %v235 = vsel %vm224, %v223, %v215
  %v236 = vld [vmem:[%s2] sm:$0xff]
  %v237 = vld [vmem:[%s2 + $0x8] sm:$0xff]
  %v238 = vld [vmem:[%s3] sm:$0xff]
  %v239 = vld [vmem:[%s3 + $0x8] sm:$0xff]
  %241 = vset.pattern.permute.xlu0 0
  %242 = vperm.xlu0 %241, %v238
  %v243 = vpop.permute.xlu0 %242
  %246 = vset.pattern.permute.xlu0 0
  %247 = vperm.xlu0 %246, %v239
  %v248 = vpop.permute.xlu0 %247
  %vm250 = vcmask 588800
  %v252 = vsel %vm250, %v236, 0
  %v255 = vsel %vm250, %v237, 0
  %257 = vmatpush.msra.mxu0 0.0
  %258 = vmatpush.msra.mxu0 0.0
  %259 = vmatpush.msra.mxu0 0.0
  %260 = vmatpush.msra.mxu0 0.0
  %261 = vmatpush.msra.mxu0 0.0
  %262 = vmatpush.msra.mxu0 0.0
  %263 = vmatpush.msra.mxu0 0.0
  %264 = vmatpush.msra.mxu0 %v225
  %265 = vmatpush.msra.mxu0 %v203
  %266 = vmatpush.msra.mxu0 %v181
  %267 = vmatpush.msra.mxu0 %v159
  %268 = vmatpush.msra.mxu0 %v50
  %269 = vmatpush.msra.mxu0 %v147
  %270 = vmatpush.msra.mxu0 %v125
  %271 = vmatpush.msra.mxu0 %v103
  %272 = vmatpush.msra.mxu0 %v81
  %273 = vmatmul.f32.gmra.mxu0 %v252
  %v274 = vpop.f32.mrf.mxu0
  %v275 = vadd.f32 %v243, %v274
  %276 = vmatmul.f32.gmra.mxu0 %v255
  %v277 = vpop.f32.mrf.mxu0
  %v278 = vadd.f32 %v248, %v277
  %279 = vdwg.mxu0
  %280 = vmatpush.msra.mxu0 0.0
  %281 = vmatpush.msra.mxu0 0.0
  %282 = vmatpush.msra.mxu0 0.0
  %283 = vmatpush.msra.mxu0 0.0
  %284 = vmatpush.msra.mxu0 0.0
  %285 = vmatpush.msra.mxu0 0.0
  %286 = vmatpush.msra.mxu0 0.0
  %287 = vmatpush.msra.mxu0 %v226
  %288 = vmatpush.msra.mxu0 %v204
  %289 = vmatpush.msra.mxu0 %v182
  %290 = vmatpush.msra.mxu0 %v160
  %291 = vmatpush.msra.mxu0 %v51
  %292 = vmatpush.msra.mxu0 %v138
  %293 = vmatpush.msra.mxu0 %v116
  %294 = vmatpush.msra.mxu0 %v94
  %295 = vmatpush.msra.mxu0 %v72
  %296 = vmatmul.f32.gmra.mxu0 %v252
  %v297 = vpop.f32.mrf.mxu0
  %v298 = vadd.f32 %v243, %v297
  %299 = vmatmul.f32.gmra.mxu0 %v255
  %v300 = vpop.f32.mrf.mxu0
  %v301 = vadd.f32 %v248, %v300
  %302 = vdwg.mxu0
  %303 = vmatpush.msra.mxu0 0.0
  %304 = vmatpush.msra.mxu0 0.0
  %305 = vmatpush.msra.mxu0 0.0
  %306 = vmatpush.msra.mxu0 0.0
  %307 = vmatpush.msra.mxu0 0.0
  %308 = vmatpush.msra.mxu0 0.0
  %309 = vmatpush.msra.mxu0 0.0
  %310 = vmatpush.msra.mxu0 %v227
  %311 = vmatpush.msra.mxu0 %v205
  %312 = vmatpush.msra.mxu0 %v183
  %313 = vmatpush.msra.mxu0 %v161
  %314 = vmatpush.msra.mxu0 %v52
  %315 = vmatpush.msra.mxu0 %v139
  %316 = vmatpush.msra.mxu0 %v117
  %317 = vmatpush.msra.mxu0 %v95
  %318 = vmatpush.msra.mxu0 %v73
  %319 = vmatmul.f32.gmra.mxu0 %v252
  %v320 = vpop.f32.mrf.mxu0
  %v321 = vadd.f32 %v243, %v320
  %322 = vmatmul.f32.gmra.mxu0 %v255
  %v323 = vpop.f32.mrf.mxu0
  %v324 = vadd.f32 %v248, %v323
  %325 = vdwg.mxu0
  %326 = vmatpush.msra.mxu0 0.0
  %327 = vmatpush.msra.mxu0 0.0
  %328 = vmatpush.msra.mxu0 0.0
  %329 = vmatpush.msra.mxu0 0.0
  %330 = vmatpush.msra.mxu0 0.0
  %331 = vmatpush.msra.mxu0 0.0
  %332 = vmatpush.msra.mxu0 0.0
  %333 = vmatpush.msra.mxu0 %v228
  %334 = vmatpush.msra.mxu0 %v206
  %335 = vmatpush.msra.mxu0 %v184
  %336 = vmatpush.msra.mxu0 %v162
  %337 = vmatpush.msra.mxu0 %v53
  %338 = vmatpush.msra.mxu0 %v140
  %339 = vmatpush.msra.mxu0 %v118
  %340 = vmatpush.msra.mxu0 %v96
  %341 = vmatpush.msra.mxu0 %v74
  %342 = vmatmul.f32.gmra.mxu0 %v252
  %v343 = vpop.f32.mrf.mxu0
  %v344 = vadd.f32 %v243, %v343
  %345 = vmatmul.f32.gmra.mxu0 %v255
  %v346 = vpop.f32.mrf.mxu0
  %v347 = vadd.f32 %v248, %v346
  %348 = vdwg.mxu0
  %349 = vmatpush.msra.mxu0 0.0
  %350 = vmatpush.msra.mxu0 0.0
  %351 = vmatpush.msra.mxu0 0.0
  %352 = vmatpush.msra.mxu0 0.0
  %353 = vmatpush.msra.mxu0 0.0
  %354 = vmatpush.msra.mxu0 0.0
  %355 = vmatpush.msra.mxu0 0.0
  %356 = vmatpush.msra.mxu0 %v235
  %357 = vmatpush.msra.mxu0 %v213
  %358 = vmatpush.msra.mxu0 %v191
  %359 = vmatpush.msra.mxu0 %v169
  %360 = vmatpush.msra.mxu0 %v54
  %361 = vmatpush.msra.mxu0 %v141
  %362 = vmatpush.msra.mxu0 %v119
  %363 = vmatpush.msra.mxu0 %v97
  %364 = vmatpush.msra.mxu0 %v75
  %365 = vmatmul.f32.gmra.mxu0 %v252
  %v366 = vpop.f32.mrf.mxu0
  %v367 = vadd.f32 %v243, %v366
  %368 = vmatmul.f32.gmra.mxu0 %v255
  %v369 = vpop.f32.mrf.mxu0
  %v370 = vadd.f32 %v248, %v369
  %371 = vdwg.mxu0
  %v372 = vmax.f32 %v275, 0.0
  %v373 = vmax.f32 %v298, 0.0
  %v374 = vmax.f32 %v321, 0.0
  %v375 = vmax.f32 %v344, 0.0
  %v376 = vmax.f32 %v367, 0.0
  %v377 = vmax.f32 %v278, 0.0
  %v378 = vmax.f32 %v301, 0.0
  %v379 = vmax.f32 %v324, 0.0
  %v380 = vmax.f32 %v347, 0.0
  %v381 = vmax.f32 %v370, 0.0
  %v383 = vperm.slane %v49, 0
  %v384 = vperm.slane %v49, 1
  %v385 = vperm.slane %v49, 2
  %v386 = vperm.slane %v49, 3
  %v387 = vperm.slane %v49, 4
  %v393 = vmul.f32 %v372, %v383
  %v394 = vmul.f32 %v373, %v384
  %v395 = vmul.f32 %v374, %v385
  %v396 = vmul.f32 %v375, %v386
  %v397 = vmul.f32 %v376, %v387
  %v398 = vmul.f32 %v377, %v383
  %v399 = vmul.f32 %v378, %v384
  %v400 = vmul.f32 %v379, %v385
  %v401 = vmul.f32 %v380, %v386
  %v402 = vmul.f32 %v381, %v387
  %405 = vrot.lane.b32.xlu0 %v397, 18
  %v406 = vpop.permute.xlu0 %405
  %407 = vrot.lane.b32.xlu0 %v402, 18
  %v408 = vpop.permute.xlu0 %407
  %419 = vrot.lane.b32.xlu0 %v393, 18
  %v420 = vpop.permute.xlu0 %419
  %421 = vrot.lane.b32.xlu0 %v394, 18
  %v422 = vpop.permute.xlu0 %421
  %423 = vrot.lane.b32.xlu0 %v395, 18
  %v424 = vpop.permute.xlu0 %423
  %425 = vrot.lane.b32.xlu0 %v396, 18
  %v426 = vpop.permute.xlu0 %425
  %427 = vrot.lane.b32.xlu0 %v398, 18
  %v428 = vpop.permute.xlu0 %427
  %429 = vrot.lane.b32.xlu0 %v399, 18
  %v430 = vpop.permute.xlu0 %429
  %431 = vrot.lane.b32.xlu0 %v400, 18
  %v432 = vpop.permute.xlu0 %431
  %433 = vrot.lane.b32.xlu0 %v401, 18
  %v434 = vpop.permute.xlu0 %433
  %v435 = vsel %vm71, %v420, %v422
  %v436 = vsel %vm71, %v422, %v424
  %v437 = vsel %vm71, %v424, %v426
  %v438 = vsel %vm71, %v426, %v406
  %v439 = vsel %vm71, %v428, %v430
  %v440 = vsel %vm71, %v430, %v432
  %v441 = vsel %vm71, %v432, %v434
  %v442 = vsel %vm71, %v434, %v408
  %v453 = vsel %vm71, %v406, %v420
  %v454 = vsel %vm71, %v408, %v428
  %455 = vrot.lane.b32.xlu0 %v397, 17
  %v456 = vpop.permute.xlu0 %455
  %457 = vrot.lane.b32.xlu0 %v402, 17
  %v458 = vpop.permute.xlu0 %457
  %461 = vrot.lane.b32.xlu0 %v393, 17
  %v462 = vpop.permute.xlu0 %461
  %463 = vrot.lane.b32.xlu0 %v394, 17
  %v464 = vpop.permute.xlu0 %463
  %465 = vrot.lane.b32.xlu0 %v395, 17
  %v466 = vpop.permute.xlu0 %465
  %467 = vrot.lane.b32.xlu0 %v396, 17
  %v468 = vpop.permute.xlu0 %467
  %469 = vrot.lane.b32.xlu0 %v398, 17
  %v470 = vpop.permute.xlu0 %469
  %471 = vrot.lane.b32.xlu0 %v399, 17
  %v472 = vpop.permute.xlu0 %471
  %473 = vrot.lane.b32.xlu0 %v400, 17
  %v474 = vpop.permute.xlu0 %473
  %475 = vrot.lane.b32.xlu0 %v401, 17
  %v476 = vpop.permute.xlu0 %475
  %v477 = vsel %vm93, %v462, %v464
  %v478 = vsel %vm93, %v464, %v466
  %v479 = vsel %vm93, %v466, %v468
  %v480 = vsel %vm93, %v468, %v456
  %v481 = vsel %vm93, %v470, %v472
  %v482 = vsel %vm93, %v472, %v474
  %v483 = vsel %vm93, %v474, %v476
  %v484 = vsel %vm93, %v476, %v458
  %v495 = vsel %vm93, %v456, %v462
  %v496 = vsel %vm93, %v458, %v470
  %497 = vrot.lane.b32.xlu0 %v397, 16
  %v498 = vpop.permute.xlu0 %497
  %499 = vrot.lane.b32.xlu0 %v402, 16
  %v500 = vpop.permute.xlu0 %499
  %503 = vrot.lane.b32.xlu0 %v393, 16
  %v504 = vpop.permute.xlu0 %503
  %505 = vrot.lane.b32.xlu0 %v394, 16
  %v506 = vpop.permute.xlu0 %505
  %507 = vrot.lane.b32.xlu0 %v395, 16
  %v508 = vpop.permute.xlu0 %507
  %509 = vrot.lane.b32.xlu0 %v396, 16
  %v510 = vpop.permute.xlu0 %509
  %511 = vrot.lane.b32.xlu0 %v398, 16
  %v512 = vpop.permute.xlu0 %511
  %513 = vrot.lane.b32.xlu0 %v399, 16
  %v514 = vpop.permute.xlu0 %513
  %515 = vrot.lane.b32.xlu0 %v400, 16
  %v516 = vpop.permute.xlu0 %515
  %517 = vrot.lane.b32.xlu0 %v401, 16
  %v518 = vpop.permute.xlu0 %517
  %v519 = vsel %vm115, %v504, %v506
  %v520 = vsel %vm115, %v506, %v508
  %v521 = vsel %vm115, %v508, %v510
  %v522 = vsel %vm115, %v510, %v498
  %v523 = vsel %vm115, %v512, %v514
  %v524 = vsel %vm115, %v514, %v516
  %v525 = vsel %vm115, %v516, %v518
  %v526 = vsel %vm115, %v518, %v500
  %v537 = vsel %vm115, %v498, %v504
  %v538 = vsel %vm115, %v500, %v512
  %539 = vrot.lane.b32.xlu0 %v397, 1
  %v540 = vpop.permute.xlu0 %539
  %541 = vrot.lane.b32.xlu0 %v402, 1
  %v542 = vpop.permute.xlu0 %541
  %545 = vrot.lane.b32.xlu0 %v393, 1
  %v546 = vpop.permute.xlu0 %545
  %547 = vrot.lane.b32.xlu0 %v394, 1
  %v548 = vpop.permute.xlu0 %547
  %549 = vrot.lane.b32.xlu0 %v395, 1
  %v550 = vpop.permute.xlu0 %549
  %551 = vrot.lane.b32.xlu0 %v396, 1
  %v552 = vpop.permute.xlu0 %551
  %553 = vrot.lane.b32.xlu0 %v398, 1
  %v554 = vpop.permute.xlu0 %553
  %555 = vrot.lane.b32.xlu0 %v399, 1
  %v556 = vpop.permute.xlu0 %555
  %557 = vrot.lane.b32.xlu0 %v400, 1
  %v558 = vpop.permute.xlu0 %557
  %559 = vrot.lane.b32.xlu0 %v401, 1
  %v560 = vpop.permute.xlu0 %559
  %v561 = vsel %vm137, %v546, %v548
  %v562 = vsel %vm137, %v548, %v550
  %v563 = vsel %vm137, %v550, %v552
  %v564 = vsel %vm137, %v552, %v540
  %v565 = vsel %vm137, %v554, %v556
  %v566 = vsel %vm137, %v556, %v558
  %v567 = vsel %vm137, %v558, %v560
  %v568 = vsel %vm137, %v560, %v542
  %v579 = vsel %vm137, %v540, %v546
  %v580 = vsel %vm137, %v542, %v554
  %581 = vrot.lane.b32.xlu0 %v393, 127
  %v582 = vpop.permute.xlu0 %581
  %583 = vrot.lane.b32.xlu0 %v394, 127
  %v584 = vpop.permute.xlu0 %583
  %585 = vrot.lane.b32.xlu0 %v395, 127
  %v586 = vpop.permute.xlu0 %585
  %587 = vrot.lane.b32.xlu0 %v396, 127
  %v588 = vpop.permute.xlu0 %587
  %589 = vrot.lane.b32.xlu0 %v397, 127
  %v590 = vpop.permute.xlu0 %589
  %591 = vrot.lane.b32.xlu0 %v398, 127
  %v592 = vpop.permute.xlu0 %591
  %593 = vrot.lane.b32.xlu0 %v399, 127
  %v594 = vpop.permute.xlu0 %593
  %595 = vrot.lane.b32.xlu0 %v400, 127
  %v596 = vpop.permute.xlu0 %595
  %597 = vrot.lane.b32.xlu0 %v401, 127
  %v598 = vpop.permute.xlu0 %597
  %599 = vrot.lane.b32.xlu0 %v402, 127
  %v600 = vpop.permute.xlu0 %599
  %v601 = vsel %vm158, %v582, %v584
  %v602 = vsel %vm158, %v584, %v586
  %v603 = vsel %vm158, %v586, %v588
  %v604 = vsel %vm158, %v588, %v590
  %v605 = vsel %vm158, %v592, %v594
  %v606 = vsel %vm158, %v594, %v596
  %v607 = vsel %vm158, %v596, %v598
  %v608 = vsel %vm158, %v598, %v600
  %v621 = vsel %vm158, %v590, %v582
  %v622 = vsel %vm158, %v600, %v592
  %623 = vrot.lane.b32.xlu0 %v393, 112
  %v624 = vpop.permute.xlu0 %623
  %625 = vrot.lane.b32.xlu0 %v394, 112
  %v626 = vpop.permute.xlu0 %625
  %627 = vrot.lane.b32.xlu0 %v395, 112
  %v628 = vpop.permute.xlu0 %627
  %629 = vrot.lane.b32.xlu0 %v396, 112
  %v630 = vpop.permute.xlu0 %629
  %631 = vrot.lane.b32.xlu0 %v397, 112
  %v632 = vpop.permute.xlu0 %631
  %633 = vrot.lane.b32.xlu0 %v398, 112
  %v634 = vpop.permute.xlu0 %633
  %635 = vrot.lane.b32.xlu0 %v399, 112
  %v636 = vpop.permute.xlu0 %635
  %637 = vrot.lane.b32.xlu0 %v400, 112
  %v638 = vpop.permute.xlu0 %637
  %639 = vrot.lane.b32.xlu0 %v401, 112
  %v640 = vpop.permute.xlu0 %639
  %641 = vrot.lane.b32.xlu0 %v402, 112
  %v642 = vpop.permute.xlu0 %641
  %v643 = vsel %vm180, %v624, %v626
  %v644 = vsel %vm180, %v626, %v628
  %v645 = vsel %vm180, %v628, %v630
  %v646 = vsel %vm180, %v630, %v632
  %v647 = vsel %vm180, %v634, %v636
  %v648 = vsel %vm180, %v636, %v638
  %v649 = vsel %vm180, %v638, %v640
  %v650 = vsel %vm180, %v640, %v642
  %v663 = vsel %vm180, %v632, %v624
  %v664 = vsel %vm180, %v642, %v634
  %665 = vrot.lane.b32.xlu0 %v393, 111
  %v666 = vpop.permute.xlu0 %665
  %667 = vrot.lane.b32.xlu0 %v394, 111
  %v668 = vpop.permute.xlu0 %667
  %669 = vrot.lane.b32.xlu0 %v395, 111
  %v670 = vpop.permute.xlu0 %669
  %671 = vrot.lane.b32.xlu0 %v396, 111
  %v672 = vpop.permute.xlu0 %671
  %673 = vrot.lane.b32.xlu0 %v397, 111
  %v674 = vpop.permute.xlu0 %673
  %675 = vrot.lane.b32.xlu0 %v398, 111
  %v676 = vpop.permute.xlu0 %675
  %677 = vrot.lane.b32.xlu0 %v399, 111
  %v678 = vpop.permute.xlu0 %677
  %679 = vrot.lane.b32.xlu0 %v400, 111
  %v680 = vpop.permute.xlu0 %679
  %681 = vrot.lane.b32.xlu0 %v401, 111
  %v682 = vpop.permute.xlu0 %681
  %683 = vrot.lane.b32.xlu0 %v402, 111
  %v684 = vpop.permute.xlu0 %683
  %v685 = vsel %vm202, %v666, %v668
  %v686 = vsel %vm202, %v668, %v670
  %v687 = vsel %vm202, %v670, %v672
  %v688 = vsel %vm202, %v672, %v674
  %v689 = vsel %vm202, %v676, %v678
  %v690 = vsel %vm202, %v678, %v680
  %v691 = vsel %vm202, %v680, %v682
  %v692 = vsel %vm202, %v682, %v684
  %v705 = vsel %vm202, %v674, %v666
  %v706 = vsel %vm202, %v684, %v676
  %707 = vrot.lane.b32.xlu0 %v393, 110
  %v708 = vpop.permute.xlu0 %707
  %709 = vrot.lane.b32.xlu0 %v394, 110
  %v710 = vpop.permute.xlu0 %709
  %711 = vrot.lane.b32.xlu0 %v395, 110
  %v712 = vpop.permute.xlu0 %711
  %713 = vrot.lane.b32.xlu0 %v396, 110
  %v714 = vpop.permute.xlu0 %713
  %715 = vrot.lane.b32.xlu0 %v397, 110
  %v716 = vpop.permute.xlu0 %715
  %717 = vrot.lane.b32.xlu0 %v398, 110
  %v718 = vpop.permute.xlu0 %717
  %719 = vrot.lane.b32.xlu0 %v399, 110
  %v720 = vpop.permute.xlu0 %719
  %721 = vrot.lane.b32.xlu0 %v400, 110
  %v722 = vpop.permute.xlu0 %721
  %723 = vrot.lane.b32.xlu0 %v401, 110
  %v724 = vpop.permute.xlu0 %723
  %725 = vrot.lane.b32.xlu0 %v402, 110
  %v726 = vpop.permute.xlu0 %725
  %v727 = vsel %vm224, %v708, %v710
  %v728 = vsel %vm224, %v710, %v712
  %v729 = vsel %vm224, %v712, %v714
  %v730 = vsel %vm224, %v714, %v716
  %v731 = vsel %vm224, %v718, %v720
  %v732 = vsel %vm224, %v720, %v722
  %v733 = vsel %vm224, %v722, %v724
  %v734 = vsel %vm224, %v724, %v726
  %v747 = vsel %vm224, %v716, %v708
  %v748 = vsel %vm224, %v726, %v718
  %v749 = vld [vmem:[%s4] sm:$0xff]
  %v750 = vld [vmem:[%s4 + $0x8] sm:$0xff]
  %v751 = vld [vmem:[%s4 + $0x10] sm:$0xff]
  %v752 = vld [vmem:[%s4 + $0x18] sm:$0xff]
  %v753 = vld [vmem:[%s4 + $0x20] sm:$0xff]
  %v754 = vld [vmem:[%s4 + $0x28] sm:$0xff]
  %v755 = vld [vmem:[%s4 + $0x30] sm:$0xff]
  %v756 = vld [vmem:[%s4 + $0x38] sm:$0xff]
  %v757 = vld [vmem:[%s5] sm:$0xff]
  %v758 = vld [vmem:[%s5 + $0x8] sm:$0xff]
  %v759 = vld [vmem:[%s5 + $0x10] sm:$0xff]
  %v760 = vld [vmem:[%s5 + $0x18] sm:$0xff]
  %762 = vset.pattern.permute.xlu0 0
  %763 = vperm.xlu0 %762, %v757
  %v764 = vpop.permute.xlu0 %763
  %767 = vset.pattern.permute.xlu0 0
  %768 = vperm.xlu0 %767, %v758
  %v769 = vpop.permute.xlu0 %768
  %772 = vset.pattern.permute.xlu0 0
  %773 = vperm.xlu0 %772, %v759
  %v774 = vpop.permute.xlu0 %773
  %777 = vset.pattern.permute.xlu0 0
  %778 = vperm.xlu0 %777, %v760
  %v779 = vpop.permute.xlu0 %778
  %v782 = vsel %vm115, %v750, 0
  %v785 = vsel %vm115, %v752, 0
  %v788 = vsel %vm115, %v754, 0
  %v791 = vsel %vm115, %v756, 0
  %793 = vmatpush.msra.mxu0 %v689
  %794 = vmatpush.msra.mxu0 %v685
  %795 = vmatpush.msra.mxu0 %v647
  %796 = vmatpush.msra.mxu0 %v643
  %797 = vmatpush.msra.mxu0 %v605
  %798 = vmatpush.msra.mxu0 %v601
  %799 = vmatpush.msra.mxu0 %v398
  %800 = vmatpush.msra.mxu0 %v393
  %801 = vmatpush.msra.mxu0 %v580
  %802 = vmatpush.msra.mxu0 %v579
  %803 = vmatpush.msra.mxu0 %v538
  %804 = vmatpush.msra.mxu0 %v537
  %805 = vmatpush.msra.mxu0 %v496
  %806 = vmatpush.msra.mxu0 %v495
  %807 = vmatpush.msra.mxu0 %v454
  %808 = vmatpush.msra.mxu0 %v453
  %809 = vmatmul.f32.gmra.mxu0 %v749
  %v810 = vpop.f32.mrf.mxu0
  %v811 = vadd.f32 %v764, %v810
  %812 = vmatmul.f32.gmra.mxu0 %v751
  %v813 = vpop.f32.mrf.mxu0
  %v814 = vadd.f32 %v769, %v813
  %815 = vmatmul.f32.gmra.mxu0 %v753
  %v816 = vpop.f32.mrf.mxu0
  %v817 = vadd.f32 %v774, %v816
  %818 = vmatmul.f32.gmra.mxu0 %v755
  %v819 = vpop.f32.mrf.mxu0
  %v820 = vadd.f32 %v779, %v819
  %821 = vdwg.mxu0
  %822 = vmatpush.msra.mxu0 0.0
  %823 = vmatpush.msra.mxu0 0.0
  %824 = vmatpush.msra.mxu0 0.0
  %825 = vmatpush.msra.mxu0 0.0
  %826 = vmatpush.msra.mxu0 0.0
  %827 = vmatpush.msra.mxu0 0.0
  %828 = vmatpush.msra.mxu0 0.0
  %829 = vmatpush.msra.mxu0 0.0
  %830 = vmatpush.msra.mxu0 0.0
  %831 = vmatpush.msra.mxu0 0.0
  %832 = vmatpush.msra.mxu0 0.0
  %833 = vmatpush.msra.mxu0 0.0
  %834 = vmatpush.msra.mxu0 0.0
  %835 = vmatpush.msra.mxu0 0.0
  %836 = vmatpush.msra.mxu0 %v731
  %837 = vmatpush.msra.mxu0 %v727
  %838 = vmatmul.f32.gmra.mxu0 %v782
  %v839 = vpop.f32.mrf.mxu0
  %v840 = vadd.f32 %v811, %v839
  %841 = vmatmul.f32.gmra.mxu0 %v785
  %v842 = vpop.f32.mrf.mxu0
  %v843 = vadd.f32 %v814, %v842
  %844 = vmatmul.f32.gmra.mxu0 %v788
  %v845 = vpop.f32.mrf.mxu0
  %v846 = vadd.f32 %v817, %v845
  %847 = vmatmul.f32.gmra.mxu0 %v791
  %v848 = vpop.f32.mrf.mxu0
  %v849 = vadd.f32 %v820, %v848
  %850 = vdwg.mxu0
  %851 = vmatpush.msra.mxu0 %v690
  %852 = vmatpush.msra.mxu0 %v686
  %853 = vmatpush.msra.mxu0 %v648
  %854 = vmatpush.msra.mxu0 %v644
  %855 = vmatpush.msra.mxu0 %v606
  %856 = vmatpush.msra.mxu0 %v602
  %857 = vmatpush.msra.mxu0 %v399
  %858 = vmatpush.msra.mxu0 %v394
  %859 = vmatpush.msra.mxu0 %v565
  %860 = vmatpush.msra.mxu0 %v561
  %861 = vmatpush.msra.mxu0 %v523
  %862 = vmatpush.msra.mxu0 %v519
  %863 = vmatpush.msra.mxu0 %v481
  %864 = vmatpush.msra.mxu0 %v477
  %865 = vmatpush.msra.mxu0 %v439
  %866 = vmatpush.msra.mxu0 %v435
  %867 = vmatmul.f32.gmra.mxu0 %v749
  %v868 = vpop.f32.mrf.mxu0
  %v869 = vadd.f32 %v764, %v868
  %870 = vmatmul.f32.gmra.mxu0 %v751
  %v871 = vpop.f32.mrf.mxu0
  %v872 = vadd.f32 %v769, %v871
  %873 = vmatmul.f32.gmra.mxu0 %v753
  %v874 = vpop.f32.mrf.mxu0
  %v875 = vadd.f32 %v774, %v874
  %876 = vmatmul.f32.gmra.mxu0 %v755
  %v877 = vpop.f32.mrf.mxu0
  %v878 = vadd.f32 %v779, %v877
  %879 = vdwg.mxu0
  %880 = vmatpush.msra.mxu0 0.0
  %881 = vmatpush.msra.mxu0 0.0
  %882 = vmatpush.msra.mxu0 0.0
  %883 = vmatpush.msra.mxu0 0.0
  %884 = vmatpush.msra.mxu0 0.0
  %885 = vmatpush.msra.mxu0 0.0
  %886 = vmatpush.msra.mxu0 0.0
  %887 = vmatpush.msra.mxu0 0.0
  %888 = vmatpush.msra.mxu0 0.0
  %889 = vmatpush.msra.mxu0 0.0
  %890 = vmatpush.msra.mxu0 0.0
  %891 = vmatpush.msra.mxu0 0.0
  %892 = vmatpush.msra.mxu0 0.0
  %893 = vmatpush.msra.mxu0 0.0
  %894 = vmatpush.msra.mxu0 %v732
  %895 = vmatpush.msra.mxu0 %v728
  %896 = vmatmul.f32.gmra.mxu0 %v782
  %v897 = vpop.f32.mrf.mxu0
  %v898 = vadd.f32 %v869, %v897
  %899 = vmatmul.f32.gmra.mxu0 %v785
  %v900 = vpop.f32.mrf.mxu0
  %v901 = vadd.f32 %v872, %v900
  %902 = vmatmul.f32.gmra.mxu0 %v788
  %v903 = vpop.f32.mrf.mxu0
  %v904 = vadd.f32 %v875, %v903
  %905 = vmatmul.f32.gmra.mxu0 %v791
  %v906 = vpop.f32.mrf.mxu0
  %v907 = vadd.f32 %v878, %v906
  %908 = vdwg.mxu0
  %909 = vmatpush.msra.mxu0 %v691
  %910 = vmatpush.msra.mxu0 %v687
  %911 = vmatpush.msra.mxu0 %v649
  %912 = vmatpush.msra.mxu0 %v645
  %913 = vmatpush.msra.mxu0 %v607
  %914 = vmatpush.msra.mxu0 %v603
  %915 = vmatpush.msra.mxu0 %v400
  %916 = vmatpush.msra.mxu0 %v395
  %917 = vmatpush.msra.mxu0 %v566
  %918 = vmatpush.msra.mxu0 %v562
  %919 = vmatpush.msra.mxu0 %v524
  %920 = vmatpush.msra.mxu0 %v520
  %921 = vmatpush.msra.mxu0 %v482
  %922 = vmatpush.msra.mxu0 %v478
  %923 = vmatpush.msra.mxu0 %v440
  %924 = vmatpush.msra.mxu0 %v436
  %925 = vmatmul.f32.gmra.mxu0 %v749
  %v926 = vpop.f32.mrf.mxu0
  %v927 = vadd.f32 %v764, %v926
  %928 = vmatmul.f32.gmra.mxu0 %v751
  %v929 = vpop.f32.mrf.mxu0
  %v930 = vadd.f32 %v769, %v929
  %931 = vmatmul.f32.gmra.mxu0 %v753
  %v932 = vpop.f32.mrf.mxu0
  %v933 = vadd.f32 %v774, %v932
  %934 = vmatmul.f32.gmra.mxu0 %v755
  %v935 = vpop.f32.mrf.mxu0
  %v936 = vadd.f32 %v779, %v935
  %937 = vdwg.mxu0
  %938 = vmatpush.msra.mxu0 0.0
  %939 = vmatpush.msra.mxu0 0.0
  %940 = vmatpush.msra.mxu0 0.0
  %941 = vmatpush.msra.mxu0 0.0
  %942 = vmatpush.msra.mxu0 0.0
  %943 = vmatpush.msra.mxu0 0.0
  %944 = vmatpush.msra.mxu0 0.0
  %945 = vmatpush.msra.mxu0 0.0
  %946 = vmatpush.msra.mxu0 0.0
  %947 = vmatpush.msra.mxu0 0.0
  %948 = vmatpush.msra.mxu0 0.0
  %949 = vmatpush.msra.mxu0 0.0
  %950 = vmatpush.msra.mxu0 0.0
  %951 = vmatpush.msra.mxu0 0.0
  %952 = vmatpush.msra.mxu0 %v733
  %953 = vmatpush.msra.mxu0 %v729
  %954 = vmatmul.f32.gmra.mxu0 %v782
  %v955 = vpop.f32.mrf.mxu0
  %v956 = vadd.f32 %v927, %v955
  %957 = vmatmul.f32.gmra.mxu0 %v785
  %v958 = vpop.f32.mrf.mxu0
  %v959 = vadd.f32 %v930, %v958
  %960 = vmatmul.f32.gmra.mxu0 %v788
  %v961 = vpop.f32.mrf.mxu0
  %v962 = vadd.f32 %v933, %v961
  %963 = vmatmul.f32.gmra.mxu0 %v791
  %v964 = vpop.f32.mrf.mxu0
  %v965 = vadd.f32 %v936, %v964
  %966 = vdwg.mxu0
  %967 = vmatpush.msra.mxu0 %v692
  %968 = vmatpush.msra.mxu0 %v688
  %969 = vmatpush.msra.mxu0 %v650
  %970 = vmatpush.msra.mxu0 %v646
  %971 = vmatpush.msra.mxu0 %v608
  %972 = vmatpush.msra.mxu0 %v604
  %973 = vmatpush.msra.mxu0 %v401
  %974 = vmatpush.msra.mxu0 %v396
  %975 = vmatpush.msra.mxu0 %v567
  %976 = vmatpush.msra.mxu0 %v563
  %977 = vmatpush.msra.mxu0 %v525
  %978 = vmatpush.msra.mxu0 %v521
  %979 = vmatpush.msra.mxu0 %v483
  %980 = vmatpush.msra.mxu0 %v479
  %981 = vmatpush.msra.mxu0 %v441
  %982 = vmatpush.msra.mxu0 %v437
  %983 = vmatmul.f32.gmra.mxu0 %v749
  %v984 = vpop.f32.mrf.mxu0
  %v985 = vadd.f32 %v764, %v984
  %986 = vmatmul.f32.gmra.mxu0 %v751
  %v987 = vpop.f32.mrf.mxu0
  %v988 = vadd.f32 %v769, %v987
  %989 = vmatmul.f32.gmra.mxu0 %v753
  %v990 = vpop.f32.mrf.mxu0
  %v991 = vadd.f32 %v774, %v990
  %992 = vmatmul.f32.gmra.mxu0 %v755
  %v993 = vpop.f32.mrf.mxu0
  %v994 = vadd.f32 %v779, %v993
  %995 = vdwg.mxu0
  %996 = vmatpush.msra.mxu0 0.0
  %997 = vmatpush.msra.mxu0 0.0
  %998 = vmatpush.msra.mxu0 0.0
  %999 = vmatpush.msra.mxu0 0.0
  %1000 = vmatpush.msra.mxu0 0.0
  %1001 = vmatpush.msra.mxu0 0.0
  %1002 = vmatpush.msra.mxu0 0.0
  %1003 = vmatpush.msra.mxu0 0.0
  %1004 = vmatpush.msra.mxu0 0.0
  %1005 = vmatpush.msra.mxu0 0.0
  %1006 = vmatpush.msra.mxu0 0.0
  %1007 = vmatpush.msra.mxu0 0.0
  %1008 = vmatpush.msra.mxu0 0.0
  %1009 = vmatpush.msra.mxu0 0.0
  %1010 = vmatpush.msra.mxu0 %v734
  %1011 = vmatpush.msra.mxu0 %v730
  %1012 = vmatmul.f32.gmra.mxu0 %v782
  %v1013 = vpop.f32.mrf.mxu0
  %v1014 = vadd.f32 %v985, %v1013
  %1015 = vmatmul.f32.gmra.mxu0 %v785
  %v1016 = vpop.f32.mrf.mxu0
  %v1017 = vadd.f32 %v988, %v1016
  %1018 = vmatmul.f32.gmra.mxu0 %v788
  %v1019 = vpop.f32.mrf.mxu0
  %v1020 = vadd.f32 %v991, %v1019
  %1021 = vmatmul.f32.gmra.mxu0 %v791
  %v1022 = vpop.f32.mrf.mxu0
  %v1023 = vadd.f32 %v994, %v1022
  %1024 = vdwg.mxu0
  %1025 = vmatpush.msra.mxu0 %v706
  %1026 = vmatpush.msra.mxu0 %v705
  %1027 = vmatpush.msra.mxu0 %v664
  %1028 = vmatpush.msra.mxu0 %v663
  %1029 = vmatpush.msra.mxu0 %v622
  %1030 = vmatpush.msra.mxu0 %v621
  %1031 = vmatpush.msra.mxu0 %v402
  %1032 = vmatpush.msra.mxu0 %v397
  %1033 = vmatpush.msra.mxu0 %v568
  %1034 = vmatpush.msra.mxu0 %v564
  %1035 = vmatpush.msra.mxu0 %v526
  %1036 = vmatpush.msra.mxu0 %v522
  %1037 = vmatpush.msra.mxu0 %v484
  %1038 = vmatpush.msra.mxu0 %v480
  %1039 = vmatpush.msra.mxu0 %v442
  %1040 = vmatpush.msra.mxu0 %v438
  %1041 = vmatmul.f32.gmra.mxu0 %v749
  %v1042 = vpop.f32.mrf.mxu0
  %v1043 = vadd.f32 %v764, %v1042
  %1044 = vmatmul.f32.gmra.mxu0 %v751
  %v1045 = vpop.f32.mrf.mxu0
  %v1046 = vadd.f32 %v769, %v1045
  %1047 = vmatmul.f32.gmra.mxu0 %v753
  %v1048 = vpop.f32.mrf.mxu0
  %v1049 = vadd.f32 %v774, %v1048
  %1050 = vmatmul.f32.gmra.mxu0 %v755
  %v1051 = vpop.f32.mrf.mxu0
  %v1052 = vadd.f32 %v779, %v1051
  %1053 = vdwg.mxu0
  %1054 = vmatpush.msra.mxu0 0.0
  %1055 = vmatpush.msra.mxu0 0.0
  %1056 = vmatpush.msra.mxu0 0.0
  %1057 = vmatpush.msra.mxu0 0.0
  %1058 = vmatpush.msra.mxu0 0.0
  %1059 = vmatpush.msra.mxu0 0.0
  %1060 = vmatpush.msra.mxu0 0.0
  %1061 = vmatpush.msra.mxu0 0.0
  %1062 = vmatpush.msra.mxu0 0.0
  %1063 = vmatpush.msra.mxu0 0.0
  %1064 = vmatpush.msra.mxu0 0.0
  %1065 = vmatpush.msra.mxu0 0.0
  %1066 = vmatpush.msra.mxu0 0.0
  %1067 = vmatpush.msra.mxu0 0.0
  %1068 = vmatpush.msra.mxu0 %v748
  %1069 = vmatpush.msra.mxu0 %v747
  %1070 = vmatmul.f32.gmra.mxu0 %v782
  %v1071 = vpop.f32.mrf.mxu0
  %v1072 = vadd.f32 %v1043, %v1071
  %1073 = vmatmul.f32.gmra.mxu0 %v785
  %v1074 = vpop.f32.mrf.mxu0
  %v1075 = vadd.f32 %v1046, %v1074
  %1076 = vmatmul.f32.gmra.mxu0 %v788
  %v1077 = vpop.f32.mrf.mxu0
  %v1078 = vadd.f32 %v1049, %v1077
  %1079 = vmatmul.f32.gmra.mxu0 %v791
  %v1080 = vpop.f32.mrf.mxu0
  %v1081 = vadd.f32 %v1052, %v1080
  %1082 = vdwg.mxu0
  %v1083 = vmax.f32 %v840, 0.0
  %v1084 = vmax.f32 %v898, 0.0
  %v1085 = vmax.f32 %v956, 0.0
  %v1086 = vmax.f32 %v1014, 0.0
  %v1087 = vmax.f32 %v1072, 0.0
  %v1088 = vmax.f32 %v843, 0.0
  %v1089 = vmax.f32 %v901, 0.0
  %v1090 = vmax.f32 %v959, 0.0
  %v1091 = vmax.f32 %v1017, 0.0
  %v1092 = vmax.f32 %v1075, 0.0
  %v1093 = vmax.f32 %v846, 0.0
  %v1094 = vmax.f32 %v904, 0.0
  %v1095 = vmax.f32 %v962, 0.0
  %v1096 = vmax.f32 %v1020, 0.0
  %v1097 = vmax.f32 %v1078, 0.0
  %v1098 = vmax.f32 %v849, 0.0
  %v1099 = vmax.f32 %v907, 0.0
  %v1100 = vmax.f32 %v965, 0.0
  %v1101 = vmax.f32 %v1023, 0.0
  %v1102 = vmax.f32 %v1081, 0.0
  %v1103 = vmul.f32 %v1083, %v383
  %v1104 = vmul.f32 %v1084, %v384
  %v1105 = vmul.f32 %v1085, %v385
  %v1106 = vmul.f32 %v1086, %v386
  %v1107 = vmul.f32 %v1087, %v387
  %v1108 = vmul.f32 %v1088, %v383
  %v1109 = vmul.f32 %v1089, %v384
  %v1110 = vmul.f32 %v1090, %v385
  %v1111 = vmul.f32 %v1091, %v386
  %v1112 = vmul.f32 %v1092, %v387
  %v1113 = vmul.f32 %v1093, %v383
  %v1114 = vmul.f32 %v1094, %v384
  %v1115 = vmul.f32 %v1095, %v385
  %v1116 = vmul.f32 %v1096, %v386
  %v1117 = vmul.f32 %v1097, %v387
  %v1118 = vmul.f32 %v1098, %v383
  %v1119 = vmul.f32 %v1099, %v384
  %v1120 = vmul.f32 %v1100, %v385
  %v1121 = vmul.f32 %v1101, %v386
  %v1122 = vmul.f32 %v1102, %v387
  %1127 = vrot.lane.b32.xlu0 %v1107, 18
  %v1128 = vpop.permute.xlu0 %1127
  %1129 = vrot.lane.b32.xlu0 %v1112, 18
  %v1130 = vpop.permute.xlu0 %1129
  %1131 = vrot.lane.b32.xlu0 %v1117, 18
  %v1132 = vpop.permute.xlu0 %1131
  %1133 = vrot.lane.b32.xlu0 %v1122, 18
  %v1134 = vpop.permute.xlu0 %1133
  %1155 = vrot.lane.b32.xlu0 %v1103, 18
  %v1156 = vpop.permute.xlu0 %1155
  %1157 = vrot.lane.b32.xlu0 %v1104, 18
  %v1158 = vpop.permute.xlu0 %1157
  %1159 = vrot.lane.b32.xlu0 %v1105, 18
  %v1160 = vpop.permute.xlu0 %1159
  %1161 = vrot.lane.b32.xlu0 %v1106, 18
  %v1162 = vpop.permute.xlu0 %1161
  %1163 = vrot.lane.b32.xlu0 %v1108, 18
  %v1164 = vpop.permute.xlu0 %1163
  %1165 = vrot.lane.b32.xlu0 %v1109, 18
  %v1166 = vpop.permute.xlu0 %1165
  %1167 = vrot.lane.b32.xlu0 %v1110, 18
  %v1168 = vpop.permute.xlu0 %1167
  %1169 = vrot.lane.b32.xlu0 %v1111, 18
  %v1170 = vpop.permute.xlu0 %1169
  %1171 = vrot.lane.b32.xlu0 %v1113, 18
  %v1172 = vpop.permute.xlu0 %1171
  %1173 = vrot.lane.b32.xlu0 %v1114, 18
  %v1174 = vpop.permute.xlu0 %1173
  %1175 = vrot.lane.b32.xlu0 %v1115, 18
  %v1176 = vpop.permute.xlu0 %1175
  %1177 = vrot.lane.b32.xlu0 %v1116, 18
  %v1178 = vpop.permute.xlu0 %1177
  %1179 = vrot.lane.b32.xlu0 %v1118, 18
  %v1180 = vpop.permute.xlu0 %1179
  %1181 = vrot.lane.b32.xlu0 %v1119, 18
  %v1182 = vpop.permute.xlu0 %1181
  %1183 = vrot.lane.b32.xlu0 %v1120, 18
  %v1184 = vpop.permute.xlu0 %1183
  %1185 = vrot.lane.b32.xlu0 %v1121, 18
  %v1186 = vpop.permute.xlu0 %1185
  %v1187 = vsel %vm71, %v1156, %v1158
  %v1188 = vsel %vm71, %v1158, %v1160
  %v1189 = vsel %vm71, %v1160, %v1162
  %v1190 = vsel %vm71, %v1162, %v1128
  %v1191 = vsel %vm71, %v1164, %v1166
  %v1192 = vsel %vm71, %v1166, %v1168
  %v1193 = vsel %vm71, %v1168, %v1170
  %v1194 = vsel %vm71, %v1170, %v1130
  %v1195 = vsel %vm71, %v1172, %v1174
  %v1196 = vsel %vm71, %v1174, %v1176
  %v1197 = vsel %vm71, %v1176, %v1178
  %v1198 = vsel %vm71, %v1178, %v1132
  %v1199 = vsel %vm71, %v1180, %v1182
  %v1200 = vsel %vm71, %v1182, %v1184
  %v1201 = vsel %vm71, %v1184, %v1186
  %v1202 = vsel %vm71, %v1186, %v1134
  %v1223 = vsel %vm71, %v1128, %v1156
  %v1224 = vsel %vm71, %v1130, %v1164
  %v1225 = vsel %vm71, %v1132, %v1172
  %v1226 = vsel %vm71, %v1134, %v1180
  %1227 = vrot.lane.b32.xlu0 %v1107, 17
  %v1228 = vpop.permute.xlu0 %1227
  %1229 = vrot.lane.b32.xlu0 %v1112, 17
  %v1230 = vpop.permute.xlu0 %1229
  %1231 = vrot.lane.b32.xlu0 %v1117, 17
  %v1232 = vpop.permute.xlu0 %1231
  %1233 = vrot.lane.b32.xlu0 %v1122, 17
  %v1234 = vpop.permute.xlu0 %1233
  %1239 = vrot.lane.b32.xlu0 %v1103, 17
  %v1240 = vpop.permute.xlu0 %1239
  %1241 = vrot.lane.b32.xlu0 %v1104, 17
  %v1242 = vpop.permute.xlu0 %1241
  %1243 = vrot.lane.b32.xlu0 %v1105, 17
  %v1244 = vpop.permute.xlu0 %1243
  %1245 = vrot.lane.b32.xlu0 %v1106, 17
  %v1246 = vpop.permute.xlu0 %1245
  %1247 = vrot.lane.b32.xlu0 %v1108, 17
  %v1248 = vpop.permute.xlu0 %1247
  %1249 = vrot.lane.b32.xlu0 %v1109, 17
  %v1250 = vpop.permute.xlu0 %1249
  %1251 = vrot.lane.b32.xlu0 %v1110, 17
  %v1252 = vpop.permute.xlu0 %1251
  %1253 = vrot.lane.b32.xlu0 %v1111, 17
  %v1254 = vpop.permute.xlu0 %1253
  %1255 = vrot.lane.b32.xlu0 %v1113, 17
  %v1256 = vpop.permute.xlu0 %1255
  %1257 = vrot.lane.b32.xlu0 %v1114, 17
  %v1258 = vpop.permute.xlu0 %1257
  %1259 = vrot.lane.b32.xlu0 %v1115, 17
  %v1260 = vpop.permute.xlu0 %1259
  %1261 = vrot.lane.b32.xlu0 %v1116, 17
  %v1262 = vpop.permute.xlu0 %1261
  %1263 = vrot.lane.b32.xlu0 %v1118, 17
  %v1264 = vpop.permute.xlu0 %1263
  %1265 = vrot.lane.b32.xlu0 %v1119, 17
  %v1266 = vpop.permute.xlu0 %1265
  %1267 = vrot.lane.b32.xlu0 %v1120, 17
  %v1268 = vpop.permute.xlu0 %1267
  %1269 = vrot.lane.b32.xlu0 %v1121, 17
  %v1270 = vpop.permute.xlu0 %1269
  %v1271 = vsel %vm93, %v1240, %v1242
  %v1272 = vsel %vm93, %v1242, %v1244
  %v1273 = vsel %vm93, %v1244, %v1246
  %v1274 = vsel %vm93, %v1246, %v1228
  %v1275 = vsel %vm93, %v1248, %v1250
  %v1276 = vsel %vm93, %v1250, %v1252
  %v1277 = vsel %vm93, %v1252, %v1254
  %v1278 = vsel %vm93, %v1254, %v1230
  %v1279 = vsel %vm93, %v1256, %v1258
  %v1280 = vsel %vm93, %v1258, %v1260
  %v1281 = vsel %vm93, %v1260, %v1262
  %v1282 = vsel %vm93, %v1262, %v1232
  %v1283 = vsel %vm93, %v1264, %v1266
  %v1284 = vsel %vm93, %v1266, %v1268
  %v1285 = vsel %vm93, %v1268, %v1270
  %v1286 = vsel %vm93, %v1270, %v1234
  %v1307 = vsel %vm93, %v1228, %v1240
  %v1308 = vsel %vm93, %v1230, %v1248
  %v1309 = vsel %vm93, %v1232, %v1256
  %v1310 = vsel %vm93, %v1234, %v1264
  %1311 = vrot.lane.b32.xlu0 %v1107, 16
  %v1312 = vpop.permute.xlu0 %1311
  %1313 = vrot.lane.b32.xlu0 %v1112, 16
  %v1314 = vpop.permute.xlu0 %1313
  %1315 = vrot.lane.b32.xlu0 %v1117, 16
  %v1316 = vpop.permute.xlu0 %1315
  %1317 = vrot.lane.b32.xlu0 %v1122, 16
  %v1318 = vpop.permute.xlu0 %1317
  %1323 = vrot.lane.b32.xlu0 %v1103, 16
  %v1324 = vpop.permute.xlu0 %1323
  %1325 = vrot.lane.b32.xlu0 %v1104, 16
  %v1326 = vpop.permute.xlu0 %1325
  %1327 = vrot.lane.b32.xlu0 %v1105, 16
  %v1328 = vpop.permute.xlu0 %1327
  %1329 = vrot.lane.b32.xlu0 %v1106, 16
  %v1330 = vpop.permute.xlu0 %1329
  %1331 = vrot.lane.b32.xlu0 %v1108, 16
  %v1332 = vpop.permute.xlu0 %1331
  %1333 = vrot.lane.b32.xlu0 %v1109, 16
  %v1334 = vpop.permute.xlu0 %1333
  %1335 = vrot.lane.b32.xlu0 %v1110, 16
  %v1336 = vpop.permute.xlu0 %1335
  %1337 = vrot.lane.b32.xlu0 %v1111, 16
  %v1338 = vpop.permute.xlu0 %1337
  %1339 = vrot.lane.b32.xlu0 %v1113, 16
  %v1340 = vpop.permute.xlu0 %1339
  %1341 = vrot.lane.b32.xlu0 %v1114, 16
  %v1342 = vpop.permute.xlu0 %1341
  %1343 = vrot.lane.b32.xlu0 %v1115, 16
  %v1344 = vpop.permute.xlu0 %1343
  %1345 = vrot.lane.b32.xlu0 %v1116, 16
  %v1346 = vpop.permute.xlu0 %1345
  %1347 = vrot.lane.b32.xlu0 %v1118, 16
  %v1348 = vpop.permute.xlu0 %1347
  %1349 = vrot.lane.b32.xlu0 %v1119, 16
  %v1350 = vpop.permute.xlu0 %1349
  %1351 = vrot.lane.b32.xlu0 %v1120, 16
  %v1352 = vpop.permute.xlu0 %1351
  %1353 = vrot.lane.b32.xlu0 %v1121, 16
  %v1354 = vpop.permute.xlu0 %1353
  %v1355 = vsel %vm115, %v1324, %v1326
  %v1356 = vsel %vm115, %v1326, %v1328
  %v1357 = vsel %vm115, %v1328, %v1330
  %v1358 = vsel %vm115, %v1330, %v1312
  %v1359 = vsel %vm115, %v1332, %v1334
  %v1360 = vsel %vm115, %v1334, %v1336
  %v1361 = vsel %vm115, %v1336, %v1338
  %v1362 = vsel %vm115, %v1338, %v1314
  %v1363 = vsel %vm115, %v1340, %v1342
  %v1364 = vsel %vm115, %v1342, %v1344
  %v1365 = vsel %vm115, %v1344, %v1346
  %v1366 = vsel %vm115, %v1346, %v1316
  %v1367 = vsel %vm115, %v1348, %v1350
  %v1368 = vsel %vm115, %v1350, %v1352
  %v1369 = vsel %vm115, %v1352, %v1354
  %v1370 = vsel %vm115, %v1354, %v1318
  %v1391 = vsel %vm115, %v1312, %v1324
  %v1392 = vsel %vm115, %v1314, %v1332
  %v1393 = vsel %vm115, %v1316, %v1340
  %v1394 = vsel %vm115, %v1318, %v1348
  %1395 = vrot.lane.b32.xlu0 %v1107, 1
  %v1396 = vpop.permute.xlu0 %1395
  %1397 = vrot.lane.b32.xlu0 %v1112, 1
  %v1398 = vpop.permute.xlu0 %1397
  %1399 = vrot.lane.b32.xlu0 %v1117, 1
  %v1400 = vpop.permute.xlu0 %1399
  %1401 = vrot.lane.b32.xlu0 %v1122, 1
  %v1402 = vpop.permute.xlu0 %1401
  %1407 = vrot.lane.b32.xlu0 %v1103, 1
  %v1408 = vpop.permute.xlu0 %1407
  %1409 = vrot.lane.b32.xlu0 %v1104, 1
  %v1410 = vpop.permute.xlu0 %1409
  %1411 = vrot.lane.b32.xlu0 %v1105, 1
  %v1412 = vpop.permute.xlu0 %1411
  %1413 = vrot.lane.b32.xlu0 %v1106, 1
  %v1414 = vpop.permute.xlu0 %1413
  %1415 = vrot.lane.b32.xlu0 %v1108, 1
  %v1416 = vpop.permute.xlu0 %1415
  %1417 = vrot.lane.b32.xlu0 %v1109, 1
  %v1418 = vpop.permute.xlu0 %1417
  %1419 = vrot.lane.b32.xlu0 %v1110, 1
  %v1420 = vpop.permute.xlu0 %1419
  %1421 = vrot.lane.b32.xlu0 %v1111, 1
  %v1422 = vpop.permute.xlu0 %1421
  %1423 = vrot.lane.b32.xlu0 %v1113, 1
  %v1424 = vpop.permute.xlu0 %1423
  %1425 = vrot.lane.b32.xlu0 %v1114, 1
  %v1426 = vpop.permute.xlu0 %1425
  %1427 = vrot.lane.b32.xlu0 %v1115, 1
  %v1428 = vpop.permute.xlu0 %1427
  %1429 = vrot.lane.b32.xlu0 %v1116, 1
  %v1430 = vpop.permute.xlu0 %1429
  %1431 = vrot.lane.b32.xlu0 %v1118, 1
  %v1432 = vpop.permute.xlu0 %1431
  %1433 = vrot.lane.b32.xlu0 %v1119, 1
  %v1434 = vpop.permute.xlu0 %1433
  %1435 = vrot.lane.b32.xlu0 %v1120, 1
  %v1436 = vpop.permute.xlu0 %1435
  %1437 = vrot.lane.b32.xlu0 %v1121, 1
  %v1438 = vpop.permute.xlu0 %1437
  %v1439 = vsel %vm137, %v1408, %v1410
  %v1440 = vsel %vm137, %v1410, %v1412
  %v1441 = vsel %vm137, %v1412, %v1414
  %v1442 = vsel %vm137, %v1414, %v1396
  %v1443 = vsel %vm137, %v1416, %v1418
  %v1444 = vsel %vm137, %v1418, %v1420
  %v1445 = vsel %vm137, %v1420, %v1422
  %v1446 = vsel %vm137, %v1422, %v1398
  %v1447 = vsel %vm137, %v1424, %v1426
  %v1448 = vsel %vm137, %v1426, %v1428
  %v1449 = vsel %vm137, %v1428, %v1430
  %v1450 = vsel %vm137, %v1430, %v1400
  %v1451 = vsel %vm137, %v1432, %v1434
  %v1452 = vsel %vm137, %v1434, %v1436
  %v1453 = vsel %vm137, %v1436, %v1438
  %v1454 = vsel %vm137, %v1438, %v1402
  %v1475 = vsel %vm137, %v1396, %v1408
  %v1476 = vsel %vm137, %v1398, %v1416
  %v1477 = vsel %vm137, %v1400, %v1424
  %v1478 = vsel %vm137, %v1402, %v1432
  %1479 = vrot.lane.b32.xlu0 %v1103, 127
  %v1480 = vpop.permute.xlu0 %1479
  %1481 = vrot.lane.b32.xlu0 %v1104, 127
  %v1482 = vpop.permute.xlu0 %1481
  %1483 = vrot.lane.b32.xlu0 %v1105, 127
  %v1484 = vpop.permute.xlu0 %1483
  %1485 = vrot.lane.b32.xlu0 %v1106, 127
  %v1486 = vpop.permute.xlu0 %1485
  %1487 = vrot.lane.b32.xlu0 %v1107, 127
  %v1488 = vpop.permute.xlu0 %1487
  %1489 = vrot.lane.b32.xlu0 %v1108, 127
  %v1490 = vpop.permute.xlu0 %1489
  %1491 = vrot.lane.b32.xlu0 %v1109, 127
  %v1492 = vpop.permute.xlu0 %1491
  %1493 = vrot.lane.b32.xlu0 %v1110, 127
  %v1494 = vpop.permute.xlu0 %1493
  %1495 = vrot.lane.b32.xlu0 %v1111, 127
  %v1496 = vpop.permute.xlu0 %1495
  %1497 = vrot.lane.b32.xlu0 %v1112, 127
  %v1498 = vpop.permute.xlu0 %1497
  %1499 = vrot.lane.b32.xlu0 %v1113, 127
  %v1500 = vpop.permute.xlu0 %1499
  %1501 = vrot.lane.b32.xlu0 %v1114, 127
  %v1502 = vpop.permute.xlu0 %1501
  %1503 = vrot.lane.b32.xlu0 %v1115, 127
  %v1504 = vpop.permute.xlu0 %1503
  %1505 = vrot.lane.b32.xlu0 %v1116, 127
  %v1506 = vpop.permute.xlu0 %1505
  %1507 = vrot.lane.b32.xlu0 %v1117, 127
  %v1508 = vpop.permute.xlu0 %1507
  %1509 = vrot.lane.b32.xlu0 %v1118, 127
  %v1510 = vpop.permute.xlu0 %1509
  %1511 = vrot.lane.b32.xlu0 %v1119, 127
  %v1512 = vpop.permute.xlu0 %1511
  %1513 = vrot.lane.b32.xlu0 %v1120, 127
  %v1514 = vpop.permute.xlu0 %1513
  %1515 = vrot.lane.b32.xlu0 %v1121, 127
  %v1516 = vpop.permute.xlu0 %1515
  %1517 = vrot.lane.b32.xlu0 %v1122, 127
  %v1518 = vpop.permute.xlu0 %1517
  %v1519 = vsel %vm158, %v1480, %v1482
  %v1520 = vsel %vm158, %v1482, %v1484
  %v1521 = vsel %vm158, %v1484, %v1486
  %v1522 = vsel %vm158, %v1486, %v1488
  %v1523 = vsel %vm158, %v1490, %v1492
  %v1524 = vsel %vm158, %v1492, %v1494
  %v1525 = vsel %vm158, %v1494, %v1496
  %v1526 = vsel %vm158, %v1496, %v1498
  %v1527 = vsel %vm158, %v1500, %v1502
  %v1528 = vsel %vm158, %v1502, %v1504
  %v1529 = vsel %vm158, %v1504, %v1506
  %v1530 = vsel %vm158, %v1506, %v1508
  %v1531 = vsel %vm158, %v1510, %v1512
  %v1532 = vsel %vm158, %v1512, %v1514
  %v1533 = vsel %vm158, %v1514, %v1516
  %v1534 = vsel %vm158, %v1516, %v1518
  %v1559 = vsel %vm158, %v1488, %v1480
  %v1560 = vsel %vm158, %v1498, %v1490
  %v1561 = vsel %vm158, %v1508, %v1500
  %v1562 = vsel %vm158, %v1518, %v1510
  %1563 = vrot.lane.b32.xlu0 %v1103, 112
  %v1564 = vpop.permute.xlu0 %1563
  %1565 = vrot.lane.b32.xlu0 %v1104, 112
  %v1566 = vpop.permute.xlu0 %1565
  %1567 = vrot.lane.b32.xlu0 %v1105, 112
  %v1568 = vpop.permute.xlu0 %1567
  %1569 = vrot.lane.b32.xlu0 %v1106, 112
  %v1570 = vpop.permute.xlu0 %1569
  %1571 = vrot.lane.b32.xlu0 %v1107, 112
  %v1572 = vpop.permute.xlu0 %1571
  %1573 = vrot.lane.b32.xlu0 %v1108, 112
  %v1574 = vpop.permute.xlu0 %1573
  %1575 = vrot.lane.b32.xlu0 %v1109, 112
  %v1576 = vpop.permute.xlu0 %1575
  %1577 = vrot.lane.b32.xlu0 %v1110, 112
  %v1578 = vpop.permute.xlu0 %1577
  %1579 = vrot.lane.b32.xlu0 %v1111, 112
  %v1580 = vpop.permute.xlu0 %1579
  %1581 = vrot.lane.b32.xlu0 %v1112, 112
  %v1582 = vpop.permute.xlu0 %1581
  %1583 = vrot.lane.b32.xlu0 %v1113, 112
  %v1584 = vpop.permute.xlu0 %1583
  %1585 = vrot.lane.b32.xlu0 %v1114, 112
  %v1586 = vpop.permute.xlu0 %1585
  %1587 = vrot.lane.b32.xlu0 %v1115, 112
  %v1588 = vpop.permute.xlu0 %1587
  %1589 = vrot.lane.b32.xlu0 %v1116, 112
  %v1590 = vpop.permute.xlu0 %1589
  %1591 = vrot.lane.b32.xlu0 %v1117, 112
  %v1592 = vpop.permute.xlu0 %1591
  %1593 = vrot.lane.b32.xlu0 %v1118, 112
  %v1594 = vpop.permute.xlu0 %1593
  %1595 = vrot.lane.b32.xlu0 %v1119, 112
  %v1596 = vpop.permute.xlu0 %1595
  %1597 = vrot.lane.b32.xlu0 %v1120, 112
  %v1598 = vpop.permute.xlu0 %1597
  %1599 = vrot.lane.b32.xlu0 %v1121, 112
  %v1600 = vpop.permute.xlu0 %1599
  %1601 = vrot.lane.b32.xlu0 %v1122, 112
  %v1602 = vpop.permute.xlu0 %1601
  %v1603 = vsel %vm180, %v1564, %v1566
  %v1604 = vsel %vm180, %v1566, %v1568
  %v1605 = vsel %vm180, %v1568, %v1570
  %v1606 = vsel %vm180, %v1570, %v1572
  %v1607 = vsel %vm180, %v1574, %v1576
  %v1608 = vsel %vm180, %v1576, %v1578
  %v1609 = vsel %vm180, %v1578, %v1580
  %v1610 = vsel %vm180, %v1580, %v1582
  %v1611 = vsel %vm180, %v1584, %v1586
  %v1612 = vsel %vm180, %v1586, %v1588
  %v1613 = vsel %vm180, %v1588, %v1590
  %v1614 = vsel %vm180, %v1590, %v1592
  %v1615 = vsel %vm180, %v1594, %v1596
  %v1616 = vsel %vm180, %v1596, %v1598
  %v1617 = vsel %vm180, %v1598, %v1600
  %v1618 = vsel %vm180, %v1600, %v1602
  %v1643 = vsel %vm180, %v1572, %v1564
  %v1644 = vsel %vm180, %v1582, %v1574
  %v1645 = vsel %vm180, %v1592, %v1584
  %v1646 = vsel %vm180, %v1602, %v1594
  %1647 = vrot.lane.b32.xlu0 %v1103, 111
  %v1648 = vpop.permute.xlu0 %1647
  %1649 = vrot.lane.b32.xlu0 %v1104, 111
  %v1650 = vpop.permute.xlu0 %1649
  %1651 = vrot.lane.b32.xlu0 %v1105, 111
  %v1652 = vpop.permute.xlu0 %1651
  %1653 = vrot.lane.b32.xlu0 %v1106, 111
  %v1654 = vpop.permute.xlu0 %1653
  %1655 = vrot.lane.b32.xlu0 %v1107, 111
  %v1656 = vpop.permute.xlu0 %1655
  %1657 = vrot.lane.b32.xlu0 %v1108, 111
  %v1658 = vpop.permute.xlu0 %1657
  %1659 = vrot.lane.b32.xlu0 %v1109, 111
  %v1660 = vpop.permute.xlu0 %1659
  %1661 = vrot.lane.b32.xlu0 %v1110, 111
  %v1662 = vpop.permute.xlu0 %1661
  %1663 = vrot.lane.b32.xlu0 %v1111, 111
  %v1664 = vpop.permute.xlu0 %1663
  %1665 = vrot.lane.b32.xlu0 %v1112, 111
  %v1666 = vpop.permute.xlu0 %1665
  %1667 = vrot.lane.b32.xlu0 %v1113, 111
  %v1668 = vpop.permute.xlu0 %1667
  %1669 = vrot.lane.b32.xlu0 %v1114, 111
  %v1670 = vpop.permute.xlu0 %1669
  %1671 = vrot.lane.b32.xlu0 %v1115, 111
  %v1672 = vpop.permute.xlu0 %1671
  %1673 = vrot.lane.b32.xlu0 %v1116, 111
  %v1674 = vpop.permute.xlu0 %1673
  %1675 = vrot.lane.b32.xlu0 %v1117, 111
  %v1676 = vpop.permute.xlu0 %1675
  %1677 = vrot.lane.b32.xlu0 %v1118, 111
  %v1678 = vpop.permute.xlu0 %1677
  %1679 = vrot.lane.b32.xlu0 %v1119, 111
  %v1680 = vpop.permute.xlu0 %1679
  %1681 = vrot.lane.b32.xlu0 %v1120, 111
  %v1682 = vpop.permute.xlu0 %1681
  %1683 = vrot.lane.b32.xlu0 %v1121, 111
  %v1684 = vpop.permute.xlu0 %1683
  %1685 = vrot.lane.b32.xlu0 %v1122, 111
  %v1686 = vpop.permute.xlu0 %1685
  %v1687 = vsel %vm202, %v1648, %v1650
  %v1688 = vsel %vm202, %v1650, %v1652
  %v1689 = vsel %vm202, %v1652, %v1654
  %v1690 = vsel %vm202, %v1654, %v1656
  %v1691 = vsel %vm202, %v1658, %v1660
  %v1692 = vsel %vm202, %v1660, %v1662
  %v1693 = vsel %vm202, %v1662, %v1664
  %v1694 = vsel %vm202, %v1664, %v1666
  %v1695 = vsel %vm202, %v1668, %v1670
  %v1696 = vsel %vm202, %v1670, %v1672
  %v1697 = vsel %vm202, %v1672, %v1674
  %v1698 = vsel %vm202, %v1674, %v1676
  %v1699 = vsel %vm202, %v1678, %v1680
  %v1700 = vsel %vm202, %v1680, %v1682
  %v1701 = vsel %vm202, %v1682, %v1684
  %v1702 = vsel %vm202, %v1684, %v1686
  %v1727 = vsel %vm202, %v1656, %v1648
  %v1728 = vsel %vm202, %v1666, %v1658
  %v1729 = vsel %vm202, %v1676, %v1668
  %v1730 = vsel %vm202, %v1686, %v1678
  %1731 = vrot.lane.b32.xlu0 %v1103, 110
  %v1732 = vpop.permute.xlu0 %1731
  %1733 = vrot.lane.b32.xlu0 %v1104, 110
  %v1734 = vpop.permute.xlu0 %1733
  %1735 = vrot.lane.b32.xlu0 %v1105, 110
  %v1736 = vpop.permute.xlu0 %1735
  %1737 = vrot.lane.b32.xlu0 %v1106, 110
  %v1738 = vpop.permute.xlu0 %1737
  %1739 = vrot.lane.b32.xlu0 %v1107, 110
  %v1740 = vpop.permute.xlu0 %1739
  %1741 = vrot.lane.b32.xlu0 %v1108, 110
  %v1742 = vpop.permute.xlu0 %1741
  %1743 = vrot.lane.b32.xlu0 %v1109, 110
  %v1744 = vpop.permute.xlu0 %1743
  %1745 = vrot.lane.b32.xlu0 %v1110, 110
  %v1746 = vpop.permute.xlu0 %1745
  %1747 = vrot.lane.b32.xlu0 %v1111, 110
  %v1748 = vpop.permute.xlu0 %1747
  %1749 = vrot.lane.b32.xlu0 %v1112, 110
  %v1750 = vpop.permute.xlu0 %1749
  %1751 = vrot.lane.b32.xlu0 %v1113, 110
  %v1752 = vpop.permute.xlu0 %1751
  %1753 = vrot.lane.b32.xlu0 %v1114, 110
  %v1754 = vpop.permute.xlu0 %1753
  %1755 = vrot.lane.b32.xlu0 %v1115, 110
  %v1756 = vpop.permute.xlu0 %1755
  %1757 = vrot.lane.b32.xlu0 %v1116, 110
  %v1758 = vpop.permute.xlu0 %1757
  %1759 = vrot.lane.b32.xlu0 %v1117, 110
  %v1760 = vpop.permute.xlu0 %1759
  %1761 = vrot.lane.b32.xlu0 %v1118, 110
  %v1762 = vpop.permute.xlu0 %1761
  %1763 = vrot.lane.b32.xlu0 %v1119, 110
  %v1764 = vpop.permute.xlu0 %1763
  %1765 = vrot.lane.b32.xlu0 %v1120, 110
  %v1766 = vpop.permute.xlu0 %1765
  %1767 = vrot.lane.b32.xlu0 %v1121, 110
  %v1768 = vpop.permute.xlu0 %1767
  %1769 = vrot.lane.b32.xlu0 %v1122, 110
  %v1770 = vpop.permute.xlu0 %1769
  %v1771 = vsel %vm224, %v1732, %v1734
  %v1772 = vsel %vm224, %v1734, %v1736
  %v1773 = vsel %vm224, %v1736, %v1738
  %v1774 = vsel %vm224, %v1738, %v1740
  %v1775 = vsel %vm224, %v1742, %v1744
  %v1776 = vsel %vm224, %v1744, %v1746
  %v1777 = vsel %vm224, %v1746, %v1748
  %v1778 = vsel %vm224, %v1748, %v1750
  %v1779 = vsel %vm224, %v1752, %v1754
  %v1780 = vsel %vm224, %v1754, %v1756
  %v1781 = vsel %vm224, %v1756, %v1758
  %v1782 = vsel %vm224, %v1758, %v1760
  %v1783 = vsel %vm224, %v1762, %v1764
  %v1784 = vsel %vm224, %v1764, %v1766
  %v1785 = vsel %vm224, %v1766, %v1768
  %v1786 = vsel %vm224, %v1768, %v1770
  %v1811 = vsel %vm224, %v1740, %v1732
  %v1812 = vsel %vm224, %v1750, %v1742
  %v1813 = vsel %vm224, %v1760, %v1752
  %v1814 = vsel %vm224, %v1770, %v1762
  %v1815 = vld [vmem:[%s6] sm:$0xff]
  %v1816 = vld [vmem:[%s6 + $0x8] sm:$0xff]
  %v1817 = vld [vmem:[%s6 + $0x10] sm:$0xff]
  %v1818 = vld [vmem:[%s6 + $0x18] sm:$0xff]
  %v1819 = vld [vmem:[%s6 + $0x20] sm:$0xff]
  %v1820 = vld [vmem:[%s6 + $0x28] sm:$0xff]
  %v1821 = vld [vmem:[%s6 + $0x30] sm:$0xff]
  %v1822 = vld [vmem:[%s6 + $0x38] sm:$0xff]
  %v1823 = vld [vmem:[%s6 + $0x40] sm:$0xff]
  %v1824 = vld [vmem:[%s6 + $0x48] sm:$0xff]
  %v1825 = vld [vmem:[%s6 + $0x50] sm:$0xff]
  %v1826 = vld [vmem:[%s6 + $0x58] sm:$0xff]
  %v1827 = vld [vmem:[%s7] sm:$0xff]
  %v1828 = vld [vmem:[%s7 + $0x8] sm:$0xff]
  %v1829 = vld [vmem:[%s7 + $0x10] sm:$0xff]
  %v1830 = vld [vmem:[%s7 + $0x18] sm:$0xff]
  %1832 = vset.pattern.permute.xlu0 0
  %1833 = vperm.xlu0 %1832, %v1827
  %v1834 = vpop.permute.xlu0 %1833
  %1837 = vset.pattern.permute.xlu0 0
  %1838 = vperm.xlu0 %1837, %v1828
  %v1839 = vpop.permute.xlu0 %1838
  %1842 = vset.pattern.permute.xlu0 0
  %1843 = vperm.xlu0 %1842, %v1829
  %v1844 = vpop.permute.xlu0 %1843
  %1847 = vset.pattern.permute.xlu0 0
  %1848 = vperm.xlu0 %1847, %v1830
  %v1849 = vpop.permute.xlu0 %1848
  %vm1851 = vcmask 261120
  %v1853 = vsel %vm1851, %v1817, 0
  %v1856 = vsel %vm1851, %v1820, 0
  %v1859 = vsel %vm1851, %v1823, 0
  %v1862 = vsel %vm1851, %v1826, 0
  %1864 = vmatpush.msra.mxu0 %v1478
  %1865 = vmatpush.msra.mxu0 %v1477
  %1866 = vmatpush.msra.mxu0 %v1476
  %1867 = vmatpush.msra.mxu0 %v1475
  %1868 = vmatpush.msra.mxu0 %v1394
  %1869 = vmatpush.msra.mxu0 %v1393
  %1870 = vmatpush.msra.mxu0 %v1392
  %1871 = vmatpush.msra.mxu0 %v1391
  %1872 = vmatpush.msra.mxu0 %v1310
  %1873 = vmatpush.msra.mxu0 %v1309
  %1874 = vmatpush.msra.mxu0 %v1308
  %1875 = vmatpush.msra.mxu0 %v1307
  %1876 = vmatpush.msra.mxu0 %v1226
  %1877 = vmatpush.msra.mxu0 %v1225
  %1878 = vmatpush.msra.mxu0 %v1224
  %1879 = vmatpush.msra.mxu0 %v1223
  %1880 = vmatmul.f32.gmra.mxu0 %v1815
  %v1881 = vpop.f32.mrf.mxu0
  %v1882 = vadd.f32 %v1834, %v1881
  %1883 = vmatmul.f32.gmra.mxu0 %v1818
  %v1884 = vpop.f32.mrf.mxu0
  %v1885 = vadd.f32 %v1839, %v1884
  %1886 = vmatmul.f32.gmra.mxu0 %v1821
  %v1887 = vpop.f32.mrf.mxu0
  %v1888 = vadd.f32 %v1844, %v1887
  %1889 = vmatmul.f32.gmra.mxu0 %v1824
  %v1890 = vpop.f32.mrf.mxu0
  %v1891 = vadd.f32 %v1849, %v1890
  %1892 = vdwg.mxu0
  %1893 = vmatpush.msra.mxu0 %v1699
  %1894 = vmatpush.msra.mxu0 %v1695
  %1895 = vmatpush.msra.mxu0 %v1691
  %1896 = vmatpush.msra.mxu0 %v1687
  %1897 = vmatpush.msra.mxu0 %v1615
  %1898 = vmatpush.msra.mxu0 %v1611
  %1899 = vmatpush.msra.mxu0 %v1607
  %1900 = vmatpush.msra.mxu0 %v1603
  %1901 = vmatpush.msra.mxu0 %v1531
  %1902 = vmatpush.msra.mxu0 %v1527
  %1903 = vmatpush.msra.mxu0 %v1523
  %1904 = vmatpush.msra.mxu0 %v1519
  %1905 = vmatpush.msra.mxu0 %v1118
  %1906 = vmatpush.msra.mxu0 %v1113
  %1907 = vmatpush.msra.mxu0 %v1108
  %1908 = vmatpush.msra.mxu0 %v1103
  %1909 = vmatmul.f32.gmra.mxu0 %v1816
  %v1910 = vpop.f32.mrf.mxu0
  %v1911 = vadd.f32 %v1882, %v1910
  %1912 = vmatmul.f32.gmra.mxu0 %v1819
  %v1913 = vpop.f32.mrf.mxu0
  %v1914 = vadd.f32 %v1885, %v1913
  %1915 = vmatmul.f32.gmra.mxu0 %v1822
  %v1916 = vpop.f32.mrf.mxu0
  %v1917 = vadd.f32 %v1888, %v1916
  %1918 = vmatmul.f32.gmra.mxu0 %v1825
  %v1919 = vpop.f32.mrf.mxu0
  %v1920 = vadd.f32 %v1891, %v1919
  %1921 = vdwg.mxu0
  %1922 = vmatpush.msra.mxu0 0.0
  %1923 = vmatpush.msra.mxu0 0.0
  %1924 = vmatpush.msra.mxu0 0.0
  %1925 = vmatpush.msra.mxu0 0.0
  %1926 = vmatpush.msra.mxu0 0.0
  %1927 = vmatpush.msra.mxu0 0.0
  %1928 = vmatpush.msra.mxu0 0.0
  %1929 = vmatpush.msra.mxu0 0.0
  %1930 = vmatpush.msra.mxu0 0.0
  %1931 = vmatpush.msra.mxu0 0.0
  %1932 = vmatpush.msra.mxu0 0.0
  %1933 = vmatpush.msra.mxu0 0.0
  %1934 = vmatpush.msra.mxu0 %v1783
  %1935 = vmatpush.msra.mxu0 %v1779
  %1936 = vmatpush.msra.mxu0 %v1775
  %1937 = vmatpush.msra.mxu0 %v1771
  %1938 = vmatmul.f32.gmra.mxu0 %v1853
  %v1939 = vpop.f32.mrf.mxu0
  %v1940 = vadd.f32 %v1911, %v1939
  %1941 = vmatmul.f32.gmra.mxu0 %v1856
  %v1942 = vpop.f32.mrf.mxu0
  %v1943 = vadd.f32 %v1914, %v1942
  %1944 = vmatmul.f32.gmra.mxu0 %v1859
  %v1945 = vpop.f32.mrf.mxu0
  %v1946 = vadd.f32 %v1917, %v1945
  %1947 = vmatmul.f32.gmra.mxu0 %v1862
  %v1948 = vpop.f32.mrf.mxu0
  %v1949 = vadd.f32 %v1920, %v1948
  %1950 = vdwg.mxu0
  %1951 = vmatpush.msra.mxu0 %v1451
  %1952 = vmatpush.msra.mxu0 %v1447
  %1953 = vmatpush.msra.mxu0 %v1443
  %1954 = vmatpush.msra.mxu0 %v1439
  %1955 = vmatpush.msra.mxu0 %v1367
  %1956 = vmatpush.msra.mxu0 %v1363
  %1957 = vmatpush.msra.mxu0 %v1359
  %1958 = vmatpush.msra.mxu0 %v1355
  %1959 = vmatpush.msra.mxu0 %v1283
  %1960 = vmatpush.msra.mxu0 %v1279
  %1961 = vmatpush.msra.mxu0 %v1275
  %1962 = vmatpush.msra.mxu0 %v1271
  %1963 = vmatpush.msra.mxu0 %v1199
  %1964 = vmatpush.msra.mxu0 %v1195
  %1965 = vmatpush.msra.mxu0 %v1191
  %1966 = vmatpush.msra.mxu0 %v1187
  %1967 = vmatmul.f32.gmra.mxu0 %v1815
  %v1968 = vpop.f32.mrf.mxu0
  %v1969 = vadd.f32 %v1834, %v1968
  %1970 = vmatmul.f32.gmra.mxu0 %v1818
  %v1971 = vpop.f32.mrf.mxu0
  %v1972 = vadd.f32 %v1839, %v1971
  %1973 = vmatmul.f32.gmra.mxu0 %v1821
  %v1974 = vpop.f32.mrf.mxu0
  %v1975 = vadd.f32 %v1844, %v1974
  %1976 = vmatmul.f32.gmra.mxu0 %v1824
  %v1977 = vpop.f32.mrf.mxu0
  %v1978 = vadd.f32 %v1849, %v1977
  %1979 = vdwg.mxu0
  %1980 = vmatpush.msra.mxu0 %v1700
  %1981 = vmatpush.msra.mxu0 %v1696
  %1982 = vmatpush.msra.mxu0 %v1692
  %1983 = vmatpush.msra.mxu0 %v1688
  %1984 = vmatpush.msra.mxu0 %v1616
  %1985 = vmatpush.msra.mxu0 %v1612
  %1986 = vmatpush.msra.mxu0 %v1608
  %1987 = vmatpush.msra.mxu0 %v1604
  %1988 = vmatpush.msra.mxu0 %v1532
  %1989 = vmatpush.msra.mxu0 %v1528
  %1990 = vmatpush.msra.mxu0 %v1524
  %1991 = vmatpush.msra.mxu0 %v1520
  %1992 = vmatpush.msra.mxu0 %v1119
  %1993 = vmatpush.msra.mxu0 %v1114
  %1994 = vmatpush.msra.mxu0 %v1109
  %1995 = vmatpush.msra.mxu0 %v1104
  %1996 = vmatmul.f32.gmra.mxu0 %v1816
  %v1997 = vpop.f32.mrf.mxu0
  %v1998 = vadd.f32 %v1969, %v1997
  %1999 = vmatmul.f32.gmra.mxu0 %v1819
  %v2000 = vpop.f32.mrf.mxu0
  %v2001 = vadd.f32 %v1972, %v2000
  %2002 = vmatmul.f32.gmra.mxu0 %v1822
  %v2003 = vpop.f32.mrf.mxu0
  %v2004 = vadd.f32 %v1975, %v2003
  %2005 = vmatmul.f32.gmra.mxu0 %v1825
  %v2006 = vpop.f32.mrf.mxu0
  %v2007 = vadd.f32 %v1978, %v2006
  %2008 = vdwg.mxu0
  %2009 = vmatpush.msra.mxu0 0.0
  %2010 = vmatpush.msra.mxu0 0.0
  %2011 = vmatpush.msra.mxu0 0.0
  %2012 = vmatpush.msra.mxu0 0.0
  %2013 = vmatpush.msra.mxu0 0.0
  %2014 = vmatpush.msra.mxu0 0.0
  %2015 = vmatpush.msra.mxu0 0.0
  %2016 = vmatpush.msra.mxu0 0.0
  %2017 = vmatpush.msra.mxu0 0.0
  %2018 = vmatpush.msra.mxu0 0.0
  %2019 = vmatpush.msra.mxu0 0.0
  %2020 = vmatpush.msra.mxu0 0.0
  %2021 = vmatpush.msra.mxu0 %v1784
  %2022 = vmatpush.msra.mxu0 %v1780
  %2023 = vmatpush.msra.mxu0 %v1776
  %2024 = vmatpush.msra.mxu0 %v1772
  %2025 = vmatmul.f32.gmra.mxu0 %v1853
  %v2026 = vpop.f32.mrf.mxu0
  %v2027 = vadd.f32 %v1998, %v2026
  %2028 = vmatmul.f32.gmra.mxu0 %v1856
  %v2029 = vpop.f32.mrf.mxu0
  %v2030 = vadd.f32 %v2001, %v2029
  %2031 = vmatmul.f32.gmra.mxu0 %v1859
  %v2032 = vpop.f32.mrf.mxu0
  %v2033 = vadd.f32 %v2004, %v2032
  %2034 = vmatmul.f32.gmra.mxu0 %v1862
  %v2035 = vpop.f32.mrf.mxu0
  %v2036 = vadd.f32 %v2007, %v2035
  %2037 = vdwg.mxu0
  %2038 = vmatpush.msra.mxu0 %v1452
  %2039 = vmatpush.msra.mxu0 %v1448
  %2040 = vmatpush.msra.mxu0 %v1444
  %2041 = vmatpush.msra.mxu0 %v1440
  %2042 = vmatpush.msra.mxu0 %v1368
  %2043 = vmatpush.msra.mxu0 %v1364
  %2044 = vmatpush.msra.mxu0 %v1360
  %2045 = vmatpush.msra.mxu0 %v1356
  %2046 = vmatpush.msra.mxu0 %v1284
  %2047 = vmatpush.msra.mxu0 %v1280
  %2048 = vmatpush.msra.mxu0 %v1276
  %2049 = vmatpush.msra.mxu0 %v1272
  %2050 = vmatpush.msra.mxu0 %v1200
  %2051 = vmatpush.msra.mxu0 %v1196
  %2052 = vmatpush.msra.mxu0 %v1192
  %2053 = vmatpush.msra.mxu0 %v1188
  %2054 = vmatmul.f32.gmra.mxu0 %v1815
  %v2055 = vpop.f32.mrf.mxu0
  %v2056 = vadd.f32 %v1834, %v2055
  %2057 = vmatmul.f32.gmra.mxu0 %v1818
  %v2058 = vpop.f32.mrf.mxu0
  %v2059 = vadd.f32 %v1839, %v2058
  %2060 = vmatmul.f32.gmra.mxu0 %v1821
  %v2061 = vpop.f32.mrf.mxu0
  %v2062 = vadd.f32 %v1844, %v2061
  %2063 = vmatmul.f32.gmra.mxu0 %v1824
  %v2064 = vpop.f32.mrf.mxu0
  %v2065 = vadd.f32 %v1849, %v2064
  %2066 = vdwg.mxu0
  %2067 = vmatpush.msra.mxu0 %v1701
  %2068 = vmatpush.msra.mxu0 %v1697
  %2069 = vmatpush.msra.mxu0 %v1693
  %2070 = vmatpush.msra.mxu0 %v1689
  %2071 = vmatpush.msra.mxu0 %v1617
  %2072 = vmatpush.msra.mxu0 %v1613
  %2073 = vmatpush.msra.mxu0 %v1609
  %2074 = vmatpush.msra.mxu0 %v1605
  %2075 = vmatpush.msra.mxu0 %v1533
  %2076 = vmatpush.msra.mxu0 %v1529
  %2077 = vmatpush.msra.mxu0 %v1525
  %2078 = vmatpush.msra.mxu0 %v1521
  %2079 = vmatpush.msra.mxu0 %v1120
  %2080 = vmatpush.msra.mxu0 %v1115
  %2081 = vmatpush.msra.mxu0 %v1110
  %2082 = vmatpush.msra.mxu0 %v1105
  %2083 = vmatmul.f32.gmra.mxu0 %v1816
  %v2084 = vpop.f32.mrf.mxu0
  %v2085 = vadd.f32 %v2056, %v2084
  %2086 = vmatmul.f32.gmra.mxu0 %v1819
  %v2087 = vpop.f32.mrf.mxu0
  %v2088 = vadd.f32 %v2059, %v2087
  %2089 = vmatmul.f32.gmra.mxu0 %v1822
  %v2090 = vpop.f32.mrf.mxu0
  %v2091 = vadd.f32 %v2062, %v2090
  %2092 = vmatmul.f32.gmra.mxu0 %v1825
  %v2093 = vpop.f32.mrf.mxu0
  %v2094 = vadd.f32 %v2065, %v2093
  %2095 = vdwg.mxu0
  %2096 = vmatpush.msra.mxu0 0.0
  %2097 = vmatpush.msra.mxu0 0.0
  %2098 = vmatpush.msra.mxu0 0.0
  %2099 = vmatpush.msra.mxu0 0.0
  %2100 = vmatpush.msra.mxu0 0.0
  %2101 = vmatpush.msra.mxu0 0.0
  %2102 = vmatpush.msra.mxu0 0.0
  %2103 = vmatpush.msra.mxu0 0.0
  %2104 = vmatpush.msra.mxu0 0.0
  %2105 = vmatpush.msra.mxu0 0.0
  %2106 = vmatpush.msra.mxu0 0.0
  %2107 = vmatpush.msra.mxu0 0.0
  %2108 = vmatpush.msra.mxu0 %v1785
  %2109 = vmatpush.msra.mxu0 %v1781
  %2110 = vmatpush.msra.mxu0 %v1777
  %2111 = vmatpush.msra.mxu0 %v1773
  %2112 = vmatmul.f32.gmra.mxu0 %v1853
  %v2113 = vpop.f32.mrf.mxu0
  %v2114 = vadd.f32 %v2085, %v2113
  %2115 = vmatmul.f32.gmra.mxu0 %v1856
  %v2116 = vpop.f32.mrf.mxu0
  %v2117 = vadd.f32 %v2088, %v2116
  %2118 = vmatmul.f32.gmra.mxu0 %v1859
  %v2119 = vpop.f32.mrf.mxu0
  %v2120 = vadd.f32 %v2091, %v2119
  %2121 = vmatmul.f32.gmra.mxu0 %v1862
  %v2122 = vpop.f32.mrf.mxu0
  %v2123 = vadd.f32 %v2094, %v2122
  %2124 = vdwg.mxu0
  %2125 = vmatpush.msra.mxu0 %v1453
  %2126 = vmatpush.msra.mxu0 %v1449
  %2127 = vmatpush.msra.mxu0 %v1445
  %2128 = vmatpush.msra.mxu0 %v1441
  %2129 = vmatpush.msra.mxu0 %v1369
  %2130 = vmatpush.msra.mxu0 %v1365
  %2131 = vmatpush.msra.mxu0 %v1361
  %2132 = vmatpush.msra.mxu0 %v1357
  %2133 = vmatpush.msra.mxu0 %v1285
  %2134 = vmatpush.msra.mxu0 %v1281
  %2135 = vmatpush.msra.mxu0 %v1277
  %2136 = vmatpush.msra.mxu0 %v1273
  %2137 = vmatpush.msra.mxu0 %v1201
  %2138 = vmatpush.msra.mxu0 %v1197
  %2139 = vmatpush.msra.mxu0 %v1193
  %2140 = vmatpush.msra.mxu0 %v1189
  %2141 = vmatmul.f32.gmra.mxu0 %v1815
  %v2142 = vpop.f32.mrf.mxu0
  %v2143 = vadd.f32 %v1834, %v2142
  %2144 = vmatmul.f32.gmra.mxu0 %v1818
  %v2145 = vpop.f32.mrf.mxu0
  %v2146 = vadd.f32 %v1839, %v2145
  %2147 = vmatmul.f32.gmra.mxu0 %v1821
  %v2148 = vpop.f32.mrf.mxu0
  %v2149 = vadd.f32 %v1844, %v2148
  %2150 = vmatmul.f32.gmra.mxu0 %v1824
  %v2151 = vpop.f32.mrf.mxu0
  %v2152 = vadd.f32 %v1849, %v2151
  %2153 = vdwg.mxu0
  %2154 = vmatpush.msra.mxu0 %v1702
  %2155 = vmatpush.msra.mxu0 %v1698
  %2156 = vmatpush.msra.mxu0 %v1694
  %2157 = vmatpush.msra.mxu0 %v1690
  %2158 = vmatpush.msra.mxu0 %v1618
  %2159 = vmatpush.msra.mxu0 %v1614
  %2160 = vmatpush.msra.mxu0 %v1610
  %2161 = vmatpush.msra.mxu0 %v1606
  %2162 = vmatpush.msra.mxu0 %v1534
  %2163 = vmatpush.msra.mxu0 %v1530
  %2164 = vmatpush.msra.mxu0 %v1526
  %2165 = vmatpush.msra.mxu0 %v1522
  %2166 = vmatpush.msra.mxu0 %v1121
  %2167 = vmatpush.msra.mxu0 %v1116
  %2168 = vmatpush.msra.mxu0 %v1111
  %2169 = vmatpush.msra.mxu0 %v1106
  %2170 = vmatmul.f32.gmra.mxu0 %v1816
  %v2171 = vpop.f32.mrf.mxu0
  %v2172 = vadd.f32 %v2143, %v2171
  %2173 = vmatmul.f32.gmra.mxu0 %v1819
  %v2174 = vpop.f32.mrf.mxu0
  %v2175 = vadd.f32 %v2146, %v2174
  %2176 = vmatmul.f32.gmra.mxu0 %v1822
  %v2177 = vpop.f32.mrf.mxu0
  %v2178 = vadd.f32 %v2149, %v2177
  %2179 = vmatmul.f32.gmra.mxu0 %v1825
  %v2180 = vpop.f32.mrf.mxu0
  %v2181 = vadd.f32 %v2152, %v2180
  %2182 = vdwg.mxu0
  %2183 = vmatpush.msra.mxu0 0.0
  %2184 = vmatpush.msra.mxu0 0.0
  %2185 = vmatpush.msra.mxu0 0.0
  %2186 = vmatpush.msra.mxu0 0.0
  %2187 = vmatpush.msra.mxu0 0.0
  %2188 = vmatpush.msra.mxu0 0.0
  %2189 = vmatpush.msra.mxu0 0.0
  %2190 = vmatpush.msra.mxu0 0.0
  %2191 = vmatpush.msra.mxu0 0.0
  %2192 = vmatpush.msra.mxu0 0.0
  %2193 = vmatpush.msra.mxu0 0.0
  %2194 = vmatpush.msra.mxu0 0.0
  %2195 = vmatpush.msra.mxu0 %v1786
  %2196 = vmatpush.msra.mxu0 %v1782
  %2197 = vmatpush.msra.mxu0 %v1778
  %2198 = vmatpush.msra.mxu0 %v1774
  %2199 = vmatmul.f32.gmra.mxu0 %v1853
  %v2200 = vpop.f32.mrf.mxu0
  %v2201 = vadd.f32 %v2172, %v2200
  %2202 = vmatmul.f32.gmra.mxu0 %v1856
  %v2203 = vpop.f32.mrf.mxu0
  %v2204 = vadd.f32 %v2175, %v2203
  %2205 = vmatmul.f32.gmra.mxu0 %v1859
  %v2206 = vpop.f32.mrf.mxu0
  %v2207 = vadd.f32 %v2178, %v2206
  %2208 = vmatmul.f32.gmra.mxu0 %v1862
  %v2209 = vpop.f32.mrf.mxu0
  %v2210 = vadd.f32 %v2181, %v2209
  %2211 = vdwg.mxu0
  %2212 = vmatpush.msra.mxu0 %v1454
  %2213 = vmatpush.msra.mxu0 %v1450
  %2214 = vmatpush.msra.mxu0 %v1446
  %2215 = vmatpush.msra.mxu0 %v1442
  %2216 = vmatpush.msra.mxu0 %v1370
  %2217 = vmatpush.msra.mxu0 %v1366
  %2218 = vmatpush.msra.mxu0 %v1362
  %2219 = vmatpush.msra.mxu0 %v1358
  %2220 = vmatpush.msra.mxu0 %v1286
  %2221 = vmatpush.msra.mxu0 %v1282
  %2222 = vmatpush.msra.mxu0 %v1278
  %2223 = vmatpush.msra.mxu0 %v1274
  %2224 = vmatpush.msra.mxu0 %v1202
  %2225 = vmatpush.msra.mxu0 %v1198
  %2226 = vmatpush.msra.mxu0 %v1194
  %2227 = vmatpush.msra.mxu0 %v1190
  %2228 = vmatmul.f32.gmra.mxu0 %v1815
  %v2229 = vpop.f32.mrf.mxu0
  %v2230 = vadd.f32 %v1834, %v2229
  %2231 = vmatmul.f32.gmra.mxu0 %v1818
  %v2232 = vpop.f32.mrf.mxu0
  %v2233 = vadd.f32 %v1839, %v2232
  %2234 = vmatmul.f32.gmra.mxu0 %v1821
  %v2235 = vpop.f32.mrf.mxu0
  %v2236 = vadd.f32 %v1844, %v2235
  %2237 = vmatmul.f32.gmra.mxu0 %v1824
  %v2238 = vpop.f32.mrf.mxu0
  %v2239 = vadd.f32 %v1849, %v2238
  %2240 = vdwg.mxu0
  %2241 = vmatpush.msra.mxu0 %v1730
  %2242 = vmatpush.msra.mxu0 %v1729
  %2243 = vmatpush.msra.mxu0 %v1728
  %2244 = vmatpush.msra.mxu0 %v1727
  %2245 = vmatpush.msra.mxu0 %v1646
  %2246 = vmatpush.msra.mxu0 %v1645
  %2247 = vmatpush.msra.mxu0 %v1644
  %2248 = vmatpush.msra.mxu0 %v1643
  %2249 = vmatpush.msra.mxu0 %v1562
  %2250 = vmatpush.msra.mxu0 %v1561
  %2251 = vmatpush.msra.mxu0 %v1560
  %2252 = vmatpush.msra.mxu0 %v1559
  %2253 = vmatpush.msra.mxu0 %v1122
  %2254 = vmatpush.msra.mxu0 %v1117
  %2255 = vmatpush.msra.mxu0 %v1112
  %2256 = vmatpush.msra.mxu0 %v1107
  %2257 = vmatmul.f32.gmra.mxu0 %v1816
  %v2258 = vpop.f32.mrf.mxu0
  %v2259 = vadd.f32 %v2230, %v2258
  %2260 = vmatmul.f32.gmra.mxu0 %v1819
  %v2261 = vpop.f32.mrf.mxu0
  %v2262 = vadd.f32 %v2233, %v2261
  %2263 = vmatmul.f32.gmra.mxu0 %v1822
  %v2264 = vpop.f32.mrf.mxu0
  %v2265 = vadd.f32 %v2236, %v2264
  %2266 = vmatmul.f32.gmra.mxu0 %v1825
  %v2267 = vpop.f32.mrf.mxu0
  %v2268 = vadd.f32 %v2239, %v2267
  %2269 = vdwg.mxu0
  %2270 = vmatpush.msra.mxu0 0.0
  %2271 = vmatpush.msra.mxu0 0.0
  %2272 = vmatpush.msra.mxu0 0.0
  %2273 = vmatpush.msra.mxu0 0.0
  %2274 = vmatpush.msra.mxu0 0.0
  %2275 = vmatpush.msra.mxu0 0.0
  %2276 = vmatpush.msra.mxu0 0.0
  %2277 = vmatpush.msra.mxu0 0.0
  %2278 = vmatpush.msra.mxu0 0.0
  %2279 = vmatpush.msra.mxu0 0.0
  %2280 = vmatpush.msra.mxu0 0.0
  %2281 = vmatpush.msra.mxu0 0.0
  %2282 = vmatpush.msra.mxu0 %v1814
  %2283 = vmatpush.msra.mxu0 %v1813
  %2284 = vmatpush.msra.mxu0 %v1812
  %2285 = vmatpush.msra.mxu0 %v1811
  %2286 = vmatmul.f32.gmra.mxu0 %v1853
  %v2287 = vpop.f32.mrf.mxu0
  %v2288 = vadd.f32 %v2259, %v2287
  %2289 = vmatmul.f32.gmra.mxu0 %v1856
  %v2290 = vpop.f32.mrf.mxu0
  %v2291 = vadd.f32 %v2262, %v2290
  %2292 = vmatmul.f32.gmra.mxu0 %v1859
  %v2293 = vpop.f32.mrf.mxu0
  %v2294 = vadd.f32 %v2265, %v2293
  %2295 = vmatmul.f32.gmra.mxu0 %v1862
  %v2296 = vpop.f32.mrf.mxu0
  %v2297 = vadd.f32 %v2268, %v2296
  %2298 = vdwg.mxu0
  %v2299 = vmax.f32 %v1940, 0.0
  %v2300 = vmax.f32 %v2027, 0.0
  %v2301 = vmax.f32 %v2114, 0.0
  %v2302 = vmax.f32 %v2201, 0.0
  %v2303 = vmax.f32 %v2288, 0.0
  %v2304 = vmax.f32 %v1943, 0.0
  %v2305 = vmax.f32 %v2030, 0.0
  %v2306 = vmax.f32 %v2117, 0.0
  %v2307 = vmax.f32 %v2204, 0.0
  %v2308 = vmax.f32 %v2291, 0.0
  %v2309 = vmax.f32 %v1946, 0.0
  %v2310 = vmax.f32 %v2033, 0.0
  %v2311 = vmax.f32 %v2120, 0.0
  %v2312 = vmax.f32 %v2207, 0.0
  %v2313 = vmax.f32 %v2294, 0.0
  %v2314 = vmax.f32 %v1949, 0.0
  %v2315 = vmax.f32 %v2036, 0.0
  %v2316 = vmax.f32 %v2123, 0.0
  %v2317 = vmax.f32 %v2210, 0.0
  %v2318 = vmax.f32 %v2297, 0.0
  %v2319 = vmul.f32 %v2299, %v383
  %v2320 = vmul.f32 %v2300, %v384
  %v2321 = vmul.f32 %v2301, %v385
  %v2322 = vmul.f32 %v2302, %v386
  %v2323 = vmul.f32 %v2303, %v387
  %v2324 = vmul.f32 %v2304, %v383
  %v2325 = vmul.f32 %v2305, %v384
  %v2326 = vmul.f32 %v2306, %v385
  %v2327 = vmul.f32 %v2307, %v386
  %v2328 = vmul.f32 %v2308, %v387
  %v2329 = vmul.f32 %v2309, %v383
  %v2330 = vmul.f32 %v2310, %v384
  %v2331 = vmul.f32 %v2311, %v385
  %v2332 = vmul.f32 %v2312, %v386
  %v2333 = vmul.f32 %v2313, %v387
  %v2334 = vmul.f32 %v2314, %v383
  %v2335 = vmul.f32 %v2315, %v384
  %v2336 = vmul.f32 %v2316, %v385
  %v2337 = vmul.f32 %v2317, %v386
  %v2338 = vmul.f32 %v2318, %v387
  %2343 = vrot.lane.b32.xlu0 %v2323, 18
  %v2344 = vpop.permute.xlu0 %2343
  %2345 = vrot.lane.b32.xlu0 %v2328, 18
  %v2346 = vpop.permute.xlu0 %2345
  %2347 = vrot.lane.b32.xlu0 %v2333, 18
  %v2348 = vpop.permute.xlu0 %2347
  %2349 = vrot.lane.b32.xlu0 %v2338, 18
  %v2350 = vpop.permute.xlu0 %2349
  %2371 = vrot.lane.b32.xlu0 %v2319, 18
  %v2372 = vpop.permute.xlu0 %2371
  %2373 = vrot.lane.b32.xlu0 %v2320, 18
  %v2374 = vpop.permute.xlu0 %2373
  %2375 = vrot.lane.b32.xlu0 %v2321, 18
  %v2376 = vpop.permute.xlu0 %2375
  %2377 = vrot.lane.b32.xlu0 %v2322, 18
  %v2378 = vpop.permute.xlu0 %2377
  %2379 = vrot.lane.b32.xlu0 %v2324, 18
  %v2380 = vpop.permute.xlu0 %2379
  %2381 = vrot.lane.b32.xlu0 %v2325, 18
  %v2382 = vpop.permute.xlu0 %2381
  %2383 = vrot.lane.b32.xlu0 %v2326, 18
  %v2384 = vpop.permute.xlu0 %2383
  %2385 = vrot.lane.b32.xlu0 %v2327, 18
  %v2386 = vpop.permute.xlu0 %2385
  %2387 = vrot.lane.b32.xlu0 %v2329, 18
  %v2388 = vpop.permute.xlu0 %2387
  %2389 = vrot.lane.b32.xlu0 %v2330, 18
  %v2390 = vpop.permute.xlu0 %2389
  %2391 = vrot.lane.b32.xlu0 %v2331, 18
  %v2392 = vpop.permute.xlu0 %2391
  %2393 = vrot.lane.b32.xlu0 %v2332, 18
  %v2394 = vpop.permute.xlu0 %2393
  %2395 = vrot.lane.b32.xlu0 %v2334, 18
  %v2396 = vpop.permute.xlu0 %2395
  %2397 = vrot.lane.b32.xlu0 %v2335, 18
  %v2398 = vpop.permute.xlu0 %2397
  %2399 = vrot.lane.b32.xlu0 %v2336, 18
  %v2400 = vpop.permute.xlu0 %2399
  %2401 = vrot.lane.b32.xlu0 %v2337, 18
  %v2402 = vpop.permute.xlu0 %2401
  %v2403 = vsel %vm71, %v2372, %v2374
  %v2404 = vsel %vm71, %v2374, %v2376
  %v2405 = vsel %vm71, %v2376, %v2378
  %v2406 = vsel %vm71, %v2378, %v2344
  %v2407 = vsel %vm71, %v2380, %v2382
  %v2408 = vsel %vm71, %v2382, %v2384
  %v2409 = vsel %vm71, %v2384, %v2386
  %v2410 = vsel %vm71, %v2386, %v2346
  %v2411 = vsel %vm71, %v2388, %v2390
  %v2412 = vsel %vm71, %v2390, %v2392
  %v2413 = vsel %vm71, %v2392, %v2394
  %v2414 = vsel %vm71, %v2394, %v2348
  %v2415 = vsel %vm71, %v2396, %v2398
  %v2416 = vsel %vm71, %v2398, %v2400
  %v2417 = vsel %vm71, %v2400, %v2402
  %v2418 = vsel %vm71, %v2402, %v2350
  %v2439 = vsel %vm71, %v2344, %v2372
  %v2440 = vsel %vm71, %v2346, %v2380
  %v2441 = vsel %vm71, %v2348, %v2388
  %v2442 = vsel %vm71, %v2350, %v2396
  %2443 = vrot.lane.b32.xlu0 %v2323, 17
  %v2444 = vpop.permute.xlu0 %2443
  %2445 = vrot.lane.b32.xlu0 %v2328, 17
  %v2446 = vpop.permute.xlu0 %2445
  %2447 = vrot.lane.b32.xlu0 %v2333, 17
  %v2448 = vpop.permute.xlu0 %2447
  %2449 = vrot.lane.b32.xlu0 %v2338, 17
  %v2450 = vpop.permute.xlu0 %2449
  %2455 = vrot.lane.b32.xlu0 %v2319, 17
  %v2456 = vpop.permute.xlu0 %2455
  %2457 = vrot.lane.b32.xlu0 %v2320, 17
  %v2458 = vpop.permute.xlu0 %2457
  %2459 = vrot.lane.b32.xlu0 %v2321, 17
  %v2460 = vpop.permute.xlu0 %2459
  %2461 = vrot.lane.b32.xlu0 %v2322, 17
  %v2462 = vpop.permute.xlu0 %2461
  %2463 = vrot.lane.b32.xlu0 %v2324, 17
  %v2464 = vpop.permute.xlu0 %2463
  %2465 = vrot.lane.b32.xlu0 %v2325, 17
  %v2466 = vpop.permute.xlu0 %2465
  %2467 = vrot.lane.b32.xlu0 %v2326, 17
  %v2468 = vpop.permute.xlu0 %2467
  %2469 = vrot.lane.b32.xlu0 %v2327, 17
  %v2470 = vpop.permute.xlu0 %2469
  %2471 = vrot.lane.b32.xlu0 %v2329, 17
  %v2472 = vpop.permute.xlu0 %2471
  %2473 = vrot.lane.b32.xlu0 %v2330, 17
  %v2474 = vpop.permute.xlu0 %2473
  %2475 = vrot.lane.b32.xlu0 %v2331, 17
  %v2476 = vpop.permute.xlu0 %2475
  %2477 = vrot.lane.b32.xlu0 %v2332, 17
  %v2478 = vpop.permute.xlu0 %2477
  %2479 = vrot.lane.b32.xlu0 %v2334, 17
  %v2480 = vpop.permute.xlu0 %2479
  %2481 = vrot.lane.b32.xlu0 %v2335, 17
  %v2482 = vpop.permute.xlu0 %2481
  %2483 = vrot.lane.b32.xlu0 %v2336, 17
  %v2484 = vpop.permute.xlu0 %2483
  %2485 = vrot.lane.b32.xlu0 %v2337, 17
  %v2486 = vpop.permute.xlu0 %2485
  %v2487 = vsel %vm93, %v2456, %v2458
  %v2488 = vsel %vm93, %v2458, %v2460
  %v2489 = vsel %vm93, %v2460, %v2462
  %v2490 = vsel %vm93, %v2462, %v2444
  %v2491 = vsel %vm93, %v2464, %v2466
  %v2492 = vsel %vm93, %v2466, %v2468
  %v2493 = vsel %vm93, %v2468, %v2470
  %v2494 = vsel %vm93, %v2470, %v2446
  %v2495 = vsel %vm93, %v2472, %v2474
  %v2496 = vsel %vm93, %v2474, %v2476
  %v2497 = vsel %vm93, %v2476, %v2478
  %v2498 = vsel %vm93, %v2478, %v2448
  %v2499 = vsel %vm93, %v2480, %v2482
  %v2500 = vsel %vm93, %v2482, %v2484
  %v2501 = vsel %vm93, %v2484, %v2486
  %v2502 = vsel %vm93, %v2486, %v2450
  %v2523 = vsel %vm93, %v2444, %v2456
  %v2524 = vsel %vm93, %v2446, %v2464
  %v2525 = vsel %vm93, %v2448, %v2472
  %v2526 = vsel %vm93, %v2450, %v2480
  %2527 = vrot.lane.b32.xlu0 %v2323, 16
  %v2528 = vpop.permute.xlu0 %2527
  %2529 = vrot.lane.b32.xlu0 %v2328, 16
  %v2530 = vpop.permute.xlu0 %2529
  %2531 = vrot.lane.b32.xlu0 %v2333, 16
  %v2532 = vpop.permute.xlu0 %2531
  %2533 = vrot.lane.b32.xlu0 %v2338, 16
  %v2534 = vpop.permute.xlu0 %2533
  %2539 = vrot.lane.b32.xlu0 %v2319, 16
  %v2540 = vpop.permute.xlu0 %2539
  %2541 = vrot.lane.b32.xlu0 %v2320, 16
  %v2542 = vpop.permute.xlu0 %2541
  %2543 = vrot.lane.b32.xlu0 %v2321, 16
  %v2544 = vpop.permute.xlu0 %2543
  %2545 = vrot.lane.b32.xlu0 %v2322, 16
  %v2546 = vpop.permute.xlu0 %2545
  %2547 = vrot.lane.b32.xlu0 %v2324, 16
  %v2548 = vpop.permute.xlu0 %2547
  %2549 = vrot.lane.b32.xlu0 %v2325, 16
  %v2550 = vpop.permute.xlu0 %2549
  %2551 = vrot.lane.b32.xlu0 %v2326, 16
  %v2552 = vpop.permute.xlu0 %2551
  %2553 = vrot.lane.b32.xlu0 %v2327, 16
  %v2554 = vpop.permute.xlu0 %2553
  %2555 = vrot.lane.b32.xlu0 %v2329, 16
  %v2556 = vpop.permute.xlu0 %2555
  %2557 = vrot.lane.b32.xlu0 %v2330, 16
  %v2558 = vpop.permute.xlu0 %2557
  %2559 = vrot.lane.b32.xlu0 %v2331, 16
  %v2560 = vpop.permute.xlu0 %2559
  %2561 = vrot.lane.b32.xlu0 %v2332, 16
  %v2562 = vpop.permute.xlu0 %2561
  %2563 = vrot.lane.b32.xlu0 %v2334, 16
  %v2564 = vpop.permute.xlu0 %2563
  %2565 = vrot.lane.b32.xlu0 %v2335, 16
  %v2566 = vpop.permute.xlu0 %2565
  %2567 = vrot.lane.b32.xlu0 %v2336, 16
  %v2568 = vpop.permute.xlu0 %2567
  %2569 = vrot.lane.b32.xlu0 %v2337, 16
  %v2570 = vpop.permute.xlu0 %2569
  %v2571 = vsel %vm115, %v2540, %v2542
  %v2572 = vsel %vm115, %v2542, %v2544
  %v2573 = vsel %vm115, %v2544, %v2546
  %v2574 = vsel %vm115, %v2546, %v2528
  %v2575 = vsel %vm115, %v2548, %v2550
  %v2576 = vsel %vm115, %v2550, %v2552
  %v2577 = vsel %vm115, %v2552, %v2554
  %v2578 = vsel %vm115, %v2554, %v2530
  %v2579 = vsel %vm115, %v2556, %v2558
  %v2580 = vsel %vm115, %v2558, %v2560
  %v2581 = vsel %vm115, %v2560, %v2562
  %v2582 = vsel %vm115, %v2562, %v2532
  %v2583 = vsel %vm115, %v2564, %v2566
  %v2584 = vsel %vm115, %v2566, %v2568
  %v2585 = vsel %vm115, %v2568, %v2570
  %v2586 = vsel %vm115, %v2570, %v2534
  %v2607 = vsel %vm115, %v2528, %v2540
  %v2608 = vsel %vm115, %v2530, %v2548
  %v2609 = vsel %vm115, %v2532, %v2556
  %v2610 = vsel %vm115, %v2534, %v2564
  %2611 = vrot.lane.b32.xlu0 %v2323, 1
  %v2612 = vpop.permute.xlu0 %2611
  %2613 = vrot.lane.b32.xlu0 %v2328, 1
  %v2614 = vpop.permute.xlu0 %2613
  %2615 = vrot.lane.b32.xlu0 %v2333, 1
  %v2616 = vpop.permute.xlu0 %2615
  %2617 = vrot.lane.b32.xlu0 %v2338, 1
  %v2618 = vpop.permute.xlu0 %2617
  %2623 = vrot.lane.b32.xlu0 %v2319, 1
  %v2624 = vpop.permute.xlu0 %2623
  %2625 = vrot.lane.b32.xlu0 %v2320, 1
  %v2626 = vpop.permute.xlu0 %2625
  %2627 = vrot.lane.b32.xlu0 %v2321, 1
  %v2628 = vpop.permute.xlu0 %2627
  %2629 = vrot.lane.b32.xlu0 %v2322, 1
  %v2630 = vpop.permute.xlu0 %2629
  %2631 = vrot.lane.b32.xlu0 %v2324, 1
  %v2632 = vpop.permute.xlu0 %2631
  %2633 = vrot.lane.b32.xlu0 %v2325, 1
  %v2634 = vpop.permute.xlu0 %2633
  %2635 = vrot.lane.b32.xlu0 %v2326, 1
  %v2636 = vpop.permute.xlu0 %2635
  %2637 = vrot.lane.b32.xlu0 %v2327, 1
  %v2638 = vpop.permute.xlu0 %2637
  %2639 = vrot.lane.b32.xlu0 %v2329, 1
  %v2640 = vpop.permute.xlu0 %2639
  %2641 = vrot.lane.b32.xlu0 %v2330, 1
  %v2642 = vpop.permute.xlu0 %2641
  %2643 = vrot.lane.b32.xlu0 %v2331, 1
  %v2644 = vpop.permute.xlu0 %2643
  %2645 = vrot.lane.b32.xlu0 %v2332, 1
  %v2646 = vpop.permute.xlu0 %2645
  %2647 = vrot.lane.b32.xlu0 %v2334, 1
  %v2648 = vpop.permute.xlu0 %2647
  %2649 = vrot.lane.b32.xlu0 %v2335, 1
  %v2650 = vpop.permute.xlu0 %2649
  %2651 = vrot.lane.b32.xlu0 %v2336, 1
  %v2652 = vpop.permute.xlu0 %2651
  %2653 = vrot.lane.b32.xlu0 %v2337, 1
  %v2654 = vpop.permute.xlu0 %2653
  %v2655 = vsel %vm137, %v2624, %v2626
  %v2656 = vsel %vm137, %v2626, %v2628
  %v2657 = vsel %vm137, %v2628, %v2630
  %v2658 = vsel %vm137, %v2630, %v2612
  %v2659 = vsel %vm137, %v2632, %v2634
  %v2660 = vsel %vm137, %v2634, %v2636
  %v2661 = vsel %vm137, %v2636, %v2638
  %v2662 = vsel %vm137, %v2638, %v2614
  %v2663 = vsel %vm137, %v2640, %v2642
  %v2664 = vsel %vm137, %v2642, %v2644
  %v2665 = vsel %vm137, %v2644, %v2646
  %v2666 = vsel %vm137, %v2646, %v2616
  %v2667 = vsel %vm137, %v2648, %v2650
  %v2668 = vsel %vm137, %v2650, %v2652
  %v2669 = vsel %vm137, %v2652, %v2654
  %v2670 = vsel %vm137, %v2654, %v2618
  %v2691 = vsel %vm137, %v2612, %v2624
  %v2692 = vsel %vm137, %v2614, %v2632
  %v2693 = vsel %vm137, %v2616, %v2640
  %v2694 = vsel %vm137, %v2618, %v2648
  %2695 = vrot.lane.b32.xlu0 %v2319, 127
  %v2696 = vpop.permute.xlu0 %2695
  %2697 = vrot.lane.b32.xlu0 %v2320, 127
  %v2698 = vpop.permute.xlu0 %2697
  %2699 = vrot.lane.b32.xlu0 %v2321, 127
  %v2700 = vpop.permute.xlu0 %2699
  %2701 = vrot.lane.b32.xlu0 %v2322, 127
  %v2702 = vpop.permute.xlu0 %2701
  %2703 = vrot.lane.b32.xlu0 %v2323, 127
  %v2704 = vpop.permute.xlu0 %2703
  %2705 = vrot.lane.b32.xlu0 %v2324, 127
  %v2706 = vpop.permute.xlu0 %2705
  %2707 = vrot.lane.b32.xlu0 %v2325, 127
  %v2708 = vpop.permute.xlu0 %2707
  %2709 = vrot.lane.b32.xlu0 %v2326, 127
  %v2710 = vpop.permute.xlu0 %2709
  %2711 = vrot.lane.b32.xlu0 %v2327, 127
  %v2712 = vpop.permute.xlu0 %2711
  %2713 = vrot.lane.b32.xlu0 %v2328, 127
  %v2714 = vpop.permute.xlu0 %2713
  %2715 = vrot.lane.b32.xlu0 %v2329, 127
  %v2716 = vpop.permute.xlu0 %2715
  %2717 = vrot.lane.b32.xlu0 %v2330, 127
  %v2718 = vpop.permute.xlu0 %2717
  %2719 = vrot.lane.b32.xlu0 %v2331, 127
  %v2720 = vpop.permute.xlu0 %2719
  %2721 = vrot.lane.b32.xlu0 %v2332, 127
  %v2722 = vpop.permute.xlu0 %2721
  %2723 = vrot.lane.b32.xlu0 %v2333, 127
  %v2724 = vpop.permute.xlu0 %2723
  %2725 = vrot.lane.b32.xlu0 %v2334, 127
  %v2726 = vpop.permute.xlu0 %2725
  %2727 = vrot.lane.b32.xlu0 %v2335, 127
  %v2728 = vpop.permute.xlu0 %2727
  %2729 = vrot.lane.b32.xlu0 %v2336, 127
  %v2730 = vpop.permute.xlu0 %2729
  %2731 = vrot.lane.b32.xlu0 %v2337, 127
  %v2732 = vpop.permute.xlu0 %2731
  %2733 = vrot.lane.b32.xlu0 %v2338, 127
  %v2734 = vpop.permute.xlu0 %2733
  %v2735 = vsel %vm158, %v2696, %v2698
  %v2736 = vsel %vm158, %v2698, %v2700
  %v2737 = vsel %vm158, %v2700, %v2702
  %v2738 = vsel %vm158, %v2702, %v2704
  %v2739 = vsel %vm158, %v2706, %v2708
  %v2740 = vsel %vm158, %v2708, %v2710
  %v2741 = vsel %vm158, %v2710, %v2712
  %v2742 = vsel %vm158, %v2712, %v2714
  %v2743 = vsel %vm158, %v2716, %v2718
  %v2744 = vsel %vm158, %v2718, %v2720
  %v2745 = vsel %vm158, %v2720, %v2722
  %v2746 = vsel %vm158, %v2722, %v2724
  %v2747 = vsel %vm158, %v2726, %v2728
  %v2748 = vsel %vm158, %v2728, %v2730
  %v2749 = vsel %vm158, %v2730, %v2732
  %v2750 = vsel %vm158, %v2732, %v2734
  %v2775 = vsel %vm158, %v2704, %v2696
  %v2776 = vsel %vm158, %v2714, %v2706
  %v2777 = vsel %vm158, %v2724, %v2716
  %v2778 = vsel %vm158, %v2734, %v2726
  %2779 = vrot.lane.b32.xlu0 %v2319, 112
  %v2780 = vpop.permute.xlu0 %2779
  %2781 = vrot.lane.b32.xlu0 %v2320, 112
  %v2782 = vpop.permute.xlu0 %2781
  %2783 = vrot.lane.b32.xlu0 %v2321, 112
  %v2784 = vpop.permute.xlu0 %2783
  %2785 = vrot.lane.b32.xlu0 %v2322, 112
  %v2786 = vpop.permute.xlu0 %2785
  %2787 = vrot.lane.b32.xlu0 %v2323, 112
  %v2788 = vpop.permute.xlu0 %2787
  %2789 = vrot.lane.b32.xlu0 %v2324, 112
  %v2790 = vpop.permute.xlu0 %2789
  %2791 = vrot.lane.b32.xlu0 %v2325, 112
  %v2792 = vpop.permute.xlu0 %2791
  %2793 = vrot.lane.b32.xlu0 %v2326, 112
  %v2794 = vpop.permute.xlu0 %2793
  %2795 = vrot.lane.b32.xlu0 %v2327, 112
  %v2796 = vpop.permute.xlu0 %2795
  %2797 = vrot.lane.b32.xlu0 %v2328, 112
  %v2798 = vpop.permute.xlu0 %2797
  %2799 = vrot.lane.b32.xlu0 %v2329, 112
  %v2800 = vpop.permute.xlu0 %2799
  %2801 = vrot.lane.b32.xlu0 %v2330, 112
  %v2802 = vpop.permute.xlu0 %2801
  %2803 = vrot.lane.b32.xlu0 %v2331, 112
  %v2804 = vpop.permute.xlu0 %2803
  %2805 = vrot.lane.b32.xlu0 %v2332, 112
  %v2806 = vpop.permute.xlu0 %2805
  %2807 = vrot.lane.b32.xlu0 %v2333, 112
  %v2808 = vpop.permute.xlu0 %2807
  %2809 = vrot.lane.b32.xlu0 %v2334, 112
  %v2810 = vpop.permute.xlu0 %2809
  %2811 = vrot.lane.b32.xlu0 %v2335, 112
  %v2812 = vpop.permute.xlu0 %2811
  %2813 = vrot.lane.b32.xlu0 %v2336, 112
  %v2814 = vpop.permute.xlu0 %2813
  %2815 = vrot.lane.b32.xlu0 %v2337, 112
  %v2816 = vpop.permute.xlu0 %2815
  %2817 = vrot.lane.b32.xlu0 %v2338, 112
  %v2818 = vpop.permute.xlu0 %2817
  %v2819 = vsel %vm180, %v2780, %v2782
  %v2820 = vsel %vm180, %v2782, %v2784
  %v2821 = vsel %vm180, %v2784, %v2786
  %v2822 = vsel %vm180, %v2786, %v2788
  %v2823 = vsel %vm180, %v2790, %v2792
  %v2824 = vsel %vm180, %v2792, %v2794
  %v2825 = vsel %vm180, %v2794, %v2796
  %v2826 = vsel %vm180, %v2796, %v2798
  %v2827 = vsel %vm180, %v2800, %v2802
  %v2828 = vsel %vm180, %v2802, %v2804
  %v2829 = vsel %vm180, %v2804, %v2806
  %v2830 = vsel %vm180, %v2806, %v2808
  %v2831 = vsel %vm180, %v2810, %v2812
  %v2832 = vsel %vm180, %v2812, %v2814
  %v2833 = vsel %vm180, %v2814, %v2816
  %v2834 = vsel %vm180, %v2816, %v2818
  %v2859 = vsel %vm180, %v2788, %v2780
  %v2860 = vsel %vm180, %v2798, %v2790
  %v2861 = vsel %vm180, %v2808, %v2800
  %v2862 = vsel %vm180, %v2818, %v2810
  %2863 = vrot.lane.b32.xlu0 %v2319, 111
  %v2864 = vpop.permute.xlu0 %2863
  %2865 = vrot.lane.b32.xlu0 %v2320, 111
  %v2866 = vpop.permute.xlu0 %2865
  %2867 = vrot.lane.b32.xlu0 %v2321, 111
  %v2868 = vpop.permute.xlu0 %2867
  %2869 = vrot.lane.b32.xlu0 %v2322, 111
  %v2870 = vpop.permute.xlu0 %2869
  %2871 = vrot.lane.b32.xlu0 %v2323, 111
  %v2872 = vpop.permute.xlu0 %2871
  %2873 = vrot.lane.b32.xlu0 %v2324, 111
  %v2874 = vpop.permute.xlu0 %2873
  %2875 = vrot.lane.b32.xlu0 %v2325, 111
  %v2876 = vpop.permute.xlu0 %2875
  %2877 = vrot.lane.b32.xlu0 %v2326, 111
  %v2878 = vpop.permute.xlu0 %2877
  %2879 = vrot.lane.b32.xlu0 %v2327, 111
  %v2880 = vpop.permute.xlu0 %2879
  %2881 = vrot.lane.b32.xlu0 %v2328, 111
  %v2882 = vpop.permute.xlu0 %2881
  %2883 = vrot.lane.b32.xlu0 %v2329, 111
  %v2884 = vpop.permute.xlu0 %2883
  %2885 = vrot.lane.b32.xlu0 %v2330, 111
  %v2886 = vpop.permute.xlu0 %2885
  %2887 = vrot.lane.b32.xlu0 %v2331, 111
  %v2888 = vpop.permute.xlu0 %2887
  %2889 = vrot.lane.b32.xlu0 %v2332, 111
  %v2890 = vpop.permute.xlu0 %2889
  %2891 = vrot.lane.b32.xlu0 %v2333, 111
  %v2892 = vpop.permute.xlu0 %2891
  %2893 = vrot.lane.b32.xlu0 %v2334, 111
  %v2894 = vpop.permute.xlu0 %2893
  %2895 = vrot.lane.b32.xlu0 %v2335, 111
  %v2896 = vpop.permute.xlu0 %2895
  %2897 = vrot.lane.b32.xlu0 %v2336, 111
  %v2898 = vpop.permute.xlu0 %2897
  %2899 = vrot.lane.b32.xlu0 %v2337, 111
  %v2900 = vpop.permute.xlu0 %2899
  %2901 = vrot.lane.b32.xlu0 %v2338, 111
  %v2902 = vpop.permute.xlu0 %2901
  %v2903 = vsel %vm202, %v2864, %v2866
  %v2904 = vsel %vm202, %v2866, %v2868
  %v2905 = vsel %vm202, %v2868, %v2870
  %v2906 = vsel %vm202, %v2870, %v2872
  %v2907 = vsel %vm202, %v2874, %v2876
  %v2908 = vsel %vm202, %v2876, %v2878
  %v2909 = vsel %vm202, %v2878, %v2880
  %v2910 = vsel %vm202, %v2880, %v2882
  %v2911 = vsel %vm202, %v2884, %v2886
  %v2912 = vsel %vm202, %v2886, %v2888
  %v2913 = vsel %vm202, %v2888, %v2890
  %v2914 = vsel %vm202, %v2890, %v2892
  %v2915 = vsel %vm202, %v2894, %v2896
  %v2916 = vsel %vm202, %v2896, %v2898
  %v2917 = vsel %vm202, %v2898, %v2900
  %v2918 = vsel %vm202, %v2900, %v2902
  %v2943 = vsel %vm202, %v2872, %v2864
  %v2944 = vsel %vm202, %v2882, %v2874
  %v2945 = vsel %vm202, %v2892, %v2884
  %v2946 = vsel %vm202, %v2902, %v2894
  %2947 = vrot.lane.b32.xlu0 %v2319, 110
  %v2948 = vpop.permute.xlu0 %2947
  %2949 = vrot.lane.b32.xlu0 %v2320, 110
  %v2950 = vpop.permute.xlu0 %2949
  %2951 = vrot.lane.b32.xlu0 %v2321, 110
  %v2952 = vpop.permute.xlu0 %2951
  %2953 = vrot.lane.b32.xlu0 %v2322, 110
  %v2954 = vpop.permute.xlu0 %2953
  %2955 = vrot.lane.b32.xlu0 %v2323, 110
  %v2956 = vpop.permute.xlu0 %2955
  %2957 = vrot.lane.b32.xlu0 %v2324, 110
  %v2958 = vpop.permute.xlu0 %2957
  %2959 = vrot.lane.b32.xlu0 %v2325, 110
  %v2960 = vpop.permute.xlu0 %2959
  %2961 = vrot.lane.b32.xlu0 %v2326, 110
  %v2962 = vpop.permute.xlu0 %2961
  %2963 = vrot.lane.b32.xlu0 %v2327, 110
  %v2964 = vpop.permute.xlu0 %2963
  %2965 = vrot.lane.b32.xlu0 %v2328, 110
  %v2966 = vpop.permute.xlu0 %2965
  %2967 = vrot.lane.b32.xlu0 %v2329, 110
  %v2968 = vpop.permute.xlu0 %2967
  %2969 = vrot.lane.b32.xlu0 %v2330, 110
  %v2970 = vpop.permute.xlu0 %2969
  %2971 = vrot.lane.b32.xlu0 %v2331, 110
  %v2972 = vpop.permute.xlu0 %2971
  %2973 = vrot.lane.b32.xlu0 %v2332, 110
  %v2974 = vpop.permute.xlu0 %2973
  %2975 = vrot.lane.b32.xlu0 %v2333, 110
  %v2976 = vpop.permute.xlu0 %2975
  %2977 = vrot.lane.b32.xlu0 %v2334, 110
  %v2978 = vpop.permute.xlu0 %2977
  %2979 = vrot.lane.b32.xlu0 %v2335, 110
  %v2980 = vpop.permute.xlu0 %2979
  %2981 = vrot.lane.b32.xlu0 %v2336, 110
  %v2982 = vpop.permute.xlu0 %2981
  %2983 = vrot.lane.b32.xlu0 %v2337, 110
  %v2984 = vpop.permute.xlu0 %2983
  %2985 = vrot.lane.b32.xlu0 %v2338, 110
  %v2986 = vpop.permute.xlu0 %2985
  %v2987 = vsel %vm224, %v2948, %v2950
  %v2988 = vsel %vm224, %v2950, %v2952
  %v2989 = vsel %vm224, %v2952, %v2954
  %v2990 = vsel %vm224, %v2954, %v2956
  %v2991 = vsel %vm224, %v2958, %v2960
  %v2992 = vsel %vm224, %v2960, %v2962
  %v2993 = vsel %vm224, %v2962, %v2964
  %v2994 = vsel %vm224, %v2964, %v2966
  %v2995 = vsel %vm224, %v2968, %v2970
  %v2996 = vsel %vm224, %v2970, %v2972
  %v2997 = vsel %vm224, %v2972, %v2974
  %v2998 = vsel %vm224, %v2974, %v2976
  %v2999 = vsel %vm224, %v2978, %v2980
  %v3000 = vsel %vm224, %v2980, %v2982
  %v3001 = vsel %vm224, %v2982, %v2984
  %v3002 = vsel %vm224, %v2984, %v2986
  %v3027 = vsel %vm224, %v2956, %v2948
  %v3028 = vsel %vm224, %v2966, %v2958
  %v3029 = vsel %vm224, %v2976, %v2968
  %v3030 = vsel %vm224, %v2986, %v2978
  %v3031 = vld [vmem:[%s8] sm:$0xff]
  %v3032 = vld [vmem:[%s8 + $0x8] sm:$0xff]
  %v3033 = vld [vmem:[%s8 + $0x10] sm:$0xff]
  %v3034 = vld [vmem:[%s8 + $0x18] sm:$0xff]
  %v3035 = vld [vmem:[%s8 + $0x20] sm:$0xff]
  %v3036 = vld [vmem:[%s8 + $0x28] sm:$0xff]
  %v3037 = vld [vmem:[%s8 + $0x30] sm:$0xff]
  %v3038 = vld [vmem:[%s8 + $0x38] sm:$0xff]
  %v3039 = vld [vmem:[%s8 + $0x40] sm:$0xff]
  %v3040 = vld [vmem:[%s8 + $0x48] sm:$0xff]
  %v3041 = vld [vmem:[%s8 + $0x50] sm:$0xff]
  %v3042 = vld [vmem:[%s8 + $0x58] sm:$0xff]
  %v3043 = vld [vmem:[%s8 + $0x60] sm:$0xff]
  %v3044 = vld [vmem:[%s8 + $0x68] sm:$0xff]
  %v3045 = vld [vmem:[%s8 + $0x70] sm:$0xff]
  %v3046 = vld [vmem:[%s8 + $0x78] sm:$0xff]
  %v3047 = vld [vmem:[%s8 + $0x80] sm:$0xff]
  %v3048 = vld [vmem:[%s8 + $0x88] sm:$0xff]
  %v3049 = vld [vmem:[%s8 + $0x90] sm:$0xff]
  %v3050 = vld [vmem:[%s8 + $0x98] sm:$0xff]
  %v3051 = vld [vmem:[%s8 + $0xa0] sm:$0xff]
  %v3052 = vld [vmem:[%s8 + $0xa8] sm:$0xff]
  %v3053 = vld [vmem:[%s8 + $0xb0] sm:$0xff]
  %v3054 = vld [vmem:[%s8 + $0xb8] sm:$0xff]
  %v3055 = vld [vmem:[%s9] sm:$0xff]
  %v3056 = vld [vmem:[%s9 + $0x8] sm:$0xff]
  %v3057 = vld [vmem:[%s9 + $0x10] sm:$0xff]
  %v3058 = vld [vmem:[%s9 + $0x18] sm:$0xff]
  %v3059 = vld [vmem:[%s9 + $0x20] sm:$0xff]
  %v3060 = vld [vmem:[%s9 + $0x28] sm:$0xff]
  %v3061 = vld [vmem:[%s9 + $0x30] sm:$0xff]
  %v3062 = vld [vmem:[%s9 + $0x38] sm:$0xff]
  %3064 = vset.pattern.permute.xlu0 0
  %3065 = vperm.xlu0 %3064, %v3055
  %v3066 = vpop.permute.xlu0 %3065
  %3069 = vset.pattern.permute.xlu0 0
  %3070 = vperm.xlu0 %3069, %v3056
  %v3071 = vpop.permute.xlu0 %3070
  %3074 = vset.pattern.permute.xlu0 0
  %3075 = vperm.xlu0 %3074, %v3057
  %v3076 = vpop.permute.xlu0 %3075
  %3079 = vset.pattern.permute.xlu0 0
  %3080 = vperm.xlu0 %3079, %v3058
  %v3081 = vpop.permute.xlu0 %3080
  %3084 = vset.pattern.permute.xlu0 0
  %3085 = vperm.xlu0 %3084, %v3059
  %v3086 = vpop.permute.xlu0 %3085
  %3089 = vset.pattern.permute.xlu0 0
  %3090 = vperm.xlu0 %3089, %v3060
  %v3091 = vpop.permute.xlu0 %3090
  %3094 = vset.pattern.permute.xlu0 0
  %3095 = vperm.xlu0 %3094, %v3061
  %v3096 = vpop.permute.xlu0 %3095
  %3099 = vset.pattern.permute.xlu0 0
  %3100 = vperm.xlu0 %3099, %v3062
  %v3101 = vpop.permute.xlu0 %3100
  %v3104 = vsel %vm1851, %v3033, 0
  %v3107 = vsel %vm1851, %v3036, 0
  %v3110 = vsel %vm1851, %v3039, 0
  %v3113 = vsel %vm1851, %v3042, 0
  %v3116 = vsel %vm1851, %v3045, 0
  %v3119 = vsel %vm1851, %v3048, 0
  %v3122 = vsel %vm1851, %v3051, 0
  %v3125 = vsel %vm1851, %v3054, 0
  %3127 = vmatpush.msra.mxu0 %v2694
  %3128 = vmatpush.msra.mxu0 %v2693
  %3129 = vmatpush.msra.mxu0 %v2692
  %3130 = vmatpush.msra.mxu0 %v2691
  %3131 = vmatpush.msra.mxu0 %v2610
  %3132 = vmatpush.msra.mxu0 %v2609
  %3133 = vmatpush.msra.mxu0 %v2608
  %3134 = vmatpush.msra.mxu0 %v2607
  %3135 = vmatpush.msra.mxu0 %v2526
  %3136 = vmatpush.msra.mxu0 %v2525
  %3137 = vmatpush.msra.mxu0 %v2524
  %3138 = vmatpush.msra.mxu0 %v2523
  %3139 = vmatpush.msra.mxu0 %v2442
  %3140 = vmatpush.msra.mxu0 %v2441
  %3141 = vmatpush.msra.mxu0 %v2440
  %3142 = vmatpush.msra.mxu0 %v2439
  %3143 = vmatmul.f32.gmra.mxu0 %v3031
  %v3144 = vpop.f32.mrf.mxu0
  %v3145 = vadd.f32 %v3066, %v3144
  %3146 = vmatmul.f32.gmra.mxu0 %v3034
  %v3147 = vpop.f32.mrf.mxu0
  %v3148 = vadd.f32 %v3071, %v3147
  %3149 = vmatmul.f32.gmra.mxu0 %v3037
  %v3150 = vpop.f32.mrf.mxu0
  %v3151 = vadd.f32 %v3076, %v3150
  %3152 = vmatmul.f32.gmra.mxu0 %v3040
  %v3153 = vpop.f32.mrf.mxu0
  %v3154 = vadd.f32 %v3081, %v3153
  %3155 = vmatmul.f32.gmra.mxu0 %v3043
  %v3156 = vpop.f32.mrf.mxu0
  %v3157 = vadd.f32 %v3086, %v3156
  %3158 = vmatmul.f32.gmra.mxu0 %v3046
  %v3159 = vpop.f32.mrf.mxu0
  %v3160 = vadd.f32 %v3091, %v3159
  %3161 = vmatmul.f32.gmra.mxu0 %v3049
  %v3162 = vpop.f32.mrf.mxu0
  %v3163 = vadd.f32 %v3096, %v3162
  %3164 = vmatmul.f32.gmra.mxu0 %v3052
  %v3165 = vpop.f32.mrf.mxu0
  %v3166 = vadd.f32 %v3101, %v3165
  %3167 = vdwg.mxu0
  %3168 = vmatpush.msra.mxu0 %v2915
  %3169 = vmatpush.msra.mxu0 %v2911
  %3170 = vmatpush.msra.mxu0 %v2907
  %3171 = vmatpush.msra.mxu0 %v2903
  %3172 = vmatpush.msra.mxu0 %v2831
  %3173 = vmatpush.msra.mxu0 %v2827
  %3174 = vmatpush.msra.mxu0 %v2823
  %3175 = vmatpush.msra.mxu0 %v2819
  %3176 = vmatpush.msra.mxu0 %v2747
  %3177 = vmatpush.msra.mxu0 %v2743
  %3178 = vmatpush.msra.mxu0 %v2739
  %3179 = vmatpush.msra.mxu0 %v2735
  %3180 = vmatpush.msra.mxu0 %v2334
  %3181 = vmatpush.msra.mxu0 %v2329
  %3182 = vmatpush.msra.mxu0 %v2324
  %3183 = vmatpush.msra.mxu0 %v2319
  %3184 = vmatmul.f32.gmra.mxu0 %v3032
  %v3185 = vpop.f32.mrf.mxu0
  %v3186 = vadd.f32 %v3145, %v3185
  %3187 = vmatmul.f32.gmra.mxu0 %v3035
  %v3188 = vpop.f32.mrf.mxu0
  %v3189 = vadd.f32 %v3148, %v3188
  %3190 = vmatmul.f32.gmra.mxu0 %v3038
  %v3191 = vpop.f32.mrf.mxu0
  %v3192 = vadd.f32 %v3151, %v3191
  %3193 = vmatmul.f32.gmra.mxu0 %v3041
  %v3194 = vpop.f32.mrf.mxu0
  %v3195 = vadd.f32 %v3154, %v3194
  %3196 = vmatmul.f32.gmra.mxu0 %v3044
  %v3197 = vpop.f32.mrf.mxu0
  %v3198 = vadd.f32 %v3157, %v3197
  %3199 = vmatmul.f32.gmra.mxu0 %v3047
  %v3200 = vpop.f32.mrf.mxu0
  %v3201 = vadd.f32 %v3160, %v3200
  %3202 = vmatmul.f32.gmra.mxu0 %v3050
  %v3203 = vpop.f32.mrf.mxu0
  %v3204 = vadd.f32 %v3163, %v3203
  %3205 = vmatmul.f32.gmra.mxu0 %v3053
  %v3206 = vpop.f32.mrf.mxu0
  %v3207 = vadd.f32 %v3166, %v3206
  %3208 = vdwg.mxu0
  %3209 = vmatpush.msra.mxu0 0.0
  %3210 = vmatpush.msra.mxu0 0.0
  %3211 = vmatpush.msra.mxu0 0.0
  %3212 = vmatpush.msra.mxu0 0.0
  %3213 = vmatpush.msra.mxu0 0.0
  %3214 = vmatpush.msra.mxu0 0.0
  %3215 = vmatpush.msra.mxu0 0.0
  %3216 = vmatpush.msra.mxu0 0.0
  %3217 = vmatpush.msra.mxu0 0.0
  %3218 = vmatpush.msra.mxu0 0.0
  %3219 = vmatpush.msra.mxu0 0.0
  %3220 = vmatpush.msra.mxu0 0.0
  %3221 = vmatpush.msra.mxu0 %v2999
  %3222 = vmatpush.msra.mxu0 %v2995
  %3223 = vmatpush.msra.mxu0 %v2991
  %3224 = vmatpush.msra.mxu0 %v2987
  %3225 = vmatmul.f32.gmra.mxu0 %v3104
  %v3226 = vpop.f32.mrf.mxu0
  %v3227 = vadd.f32 %v3186, %v3226
  %3228 = vmatmul.f32.gmra.mxu0 %v3107
  %v3229 = vpop.f32.mrf.mxu0
  %v3230 = vadd.f32 %v3189, %v3229
  %3231 = vmatmul.f32.gmra.mxu0 %v3110
  %v3232 = vpop.f32.mrf.mxu0
  %v3233 = vadd.f32 %v3192, %v3232
  %3234 = vmatmul.f32.gmra.mxu0 %v3113
  %v3235 = vpop.f32.mrf.mxu0
  %v3236 = vadd.f32 %v3195, %v3235
  %3237 = vmatmul.f32.gmra.mxu0 %v3116
  %v3238 = vpop.f32.mrf.mxu0
  %v3239 = vadd.f32 %v3198, %v3238
  %3240 = vmatmul.f32.gmra.mxu0 %v3119
  %v3241 = vpop.f32.mrf.mxu0
  %v3242 = vadd.f32 %v3201, %v3241
  %3243 = vmatmul.f32.gmra.mxu0 %v3122
  %v3244 = vpop.f32.mrf.mxu0
  %v3245 = vadd.f32 %v3204, %v3244
  %3246 = vmatmul.f32.gmra.mxu0 %v3125
  %v3247 = vpop.f32.mrf.mxu0
  %v3248 = vadd.f32 %v3207, %v3247
  %3249 = vdwg.mxu0
  %3250 = vmatpush.msra.mxu0 %v2667
  %3251 = vmatpush.msra.mxu0 %v2663
  %3252 = vmatpush.msra.mxu0 %v2659
  %3253 = vmatpush.msra.mxu0 %v2655
  %3254 = vmatpush.msra.mxu0 %v2583
  %3255 = vmatpush.msra.mxu0 %v2579
  %3256 = vmatpush.msra.mxu0 %v2575
  %3257 = vmatpush.msra.mxu0 %v2571
  %3258 = vmatpush.msra.mxu0 %v2499
  %3259 = vmatpush.msra.mxu0 %v2495
  %3260 = vmatpush.msra.mxu0 %v2491
  %3261 = vmatpush.msra.mxu0 %v2487
  %3262 = vmatpush.msra.mxu0 %v2415
  %3263 = vmatpush.msra.mxu0 %v2411
  %3264 = vmatpush.msra.mxu0 %v2407
  %3265 = vmatpush.msra.mxu0 %v2403
  %3266 = vmatmul.f32.gmra.mxu0 %v3031
  %v3267 = vpop.f32.mrf.mxu0
  %v3268 = vadd.f32 %v3066, %v3267
  %3269 = vmatmul.f32.gmra.mxu0 %v3034
  %v3270 = vpop.f32.mrf.mxu0
  %v3271 = vadd.f32 %v3071, %v3270
  %3272 = vmatmul.f32.gmra.mxu0 %v3037
  %v3273 = vpop.f32.mrf.mxu0
  %v3274 = vadd.f32 %v3076, %v3273
  %3275 = vmatmul.f32.gmra.mxu0 %v3040
  %v3276 = vpop.f32.mrf.mxu0
  %v3277 = vadd.f32 %v3081, %v3276
  %3278 = vmatmul.f32.gmra.mxu0 %v3043
  %v3279 = vpop.f32.mrf.mxu0
  %v3280 = vadd.f32 %v3086, %v3279
  %3281 = vmatmul.f32.gmra.mxu0 %v3046
  %v3282 = vpop.f32.mrf.mxu0
  %v3283 = vadd.f32 %v3091, %v3282
  %3284 = vmatmul.f32.gmra.mxu0 %v3049
  %v3285 = vpop.f32.mrf.mxu0
  %v3286 = vadd.f32 %v3096, %v3285
  %3287 = vmatmul.f32.gmra.mxu0 %v3052
  %v3288 = vpop.f32.mrf.mxu0
  %v3289 = vadd.f32 %v3101, %v3288
  %3290 = vdwg.mxu0
  %3291 = vmatpush.msra.mxu0 %v2916
  %3292 = vmatpush.msra.mxu0 %v2912
  %3293 = vmatpush.msra.mxu0 %v2908
  %3294 = vmatpush.msra.mxu0 %v2904
  %3295 = vmatpush.msra.mxu0 %v2832
  %3296 = vmatpush.msra.mxu0 %v2828
  %3297 = vmatpush.msra.mxu0 %v2824
  %3298 = vmatpush.msra.mxu0 %v2820
  %3299 = vmatpush.msra.mxu0 %v2748
  %3300 = vmatpush.msra.mxu0 %v2744
  %3301 = vmatpush.msra.mxu0 %v2740
  %3302 = vmatpush.msra.mxu0 %v2736
  %3303 = vmatpush.msra.mxu0 %v2335
  %3304 = vmatpush.msra.mxu0 %v2330
  %3305 = vmatpush.msra.mxu0 %v2325
  %3306 = vmatpush.msra.mxu0 %v2320
  %3307 = vmatmul.f32.gmra.mxu0 %v3032
  %v3308 = vpop.f32.mrf.mxu0
  %v3309 = vadd.f32 %v3268, %v3308
  %3310 = vmatmul.f32.gmra.mxu0 %v3035
  %v3311 = vpop.f32.mrf.mxu0
  %v3312 = vadd.f32 %v3271, %v3311
  %3313 = vmatmul.f32.gmra.mxu0 %v3038
  %v3314 = vpop.f32.mrf.mxu0
  %v3315 = vadd.f32 %v3274, %v3314
  %3316 = vmatmul.f32.gmra.mxu0 %v3041
  %v3317 = vpop.f32.mrf.mxu0
  %v3318 = vadd.f32 %v3277, %v3317
  %3319 = vmatmul.f32.gmra.mxu0 %v3044
  %v3320 = vpop.f32.mrf.mxu0
  %v3321 = vadd.f32 %v3280, %v3320
  %3322 = vmatmul.f32.gmra.mxu0 %v3047
  %v3323 = vpop.f32.mrf.mxu0
  %v3324 = vadd.f32 %v3283, %v3323
  %3325 = vmatmul.f32.gmra.mxu0 %v3050
  %v3326 = vpop.f32.mrf.mxu0
  %v3327 = vadd.f32 %v3286, %v3326
  %3328 = vmatmul.f32.gmra.mxu0 %v3053
  %v3329 = vpop.f32.mrf.mxu0
  %v3330 = vadd.f32 %v3289, %v3329
  %3331 = vdwg.mxu0
  %3332 = vmatpush.msra.mxu0 0.0
  %3333 = vmatpush.msra.mxu0 0.0
  %3334 = vmatpush.msra.mxu0 0.0
  %3335 = vmatpush.msra.mxu0 0.0
  %3336 = vmatpush.msra.mxu0 0.0
  %3337 = vmatpush.msra.mxu0 0.0
  %3338 = vmatpush.msra.mxu0 0.0
  %3339 = vmatpush.msra.mxu0 0.0
  %3340 = vmatpush.msra.mxu0 0.0
  %3341 = vmatpush.msra.mxu0 0.0
  %3342 = vmatpush.msra.mxu0 0.0
  %3343 = vmatpush.msra.mxu0 0.0
  %3344 = vmatpush.msra.mxu0 %v3000
  %3345 = vmatpush.msra.mxu0 %v2996
  %3346 = vmatpush.msra.mxu0 %v2992
  %3347 = vmatpush.msra.mxu0 %v2988
  %3348 = vmatmul.f32.gmra.mxu0 %v3104
  %v3349 = vpop.f32.mrf.mxu0
  %v3350 = vadd.f32 %v3309, %v3349
  %3351 = vmatmul.f32.gmra.mxu0 %v3107
  %v3352 = vpop.f32.mrf.mxu0
  %v3353 = vadd.f32 %v3312, %v3352
  %3354 = vmatmul.f32.gmra.mxu0 %v3110
  %v3355 = vpop.f32.mrf.mxu0
  %v3356 = vadd.f32 %v3315, %v3355
  %3357 = vmatmul.f32.gmra.mxu0 %v3113
  %v3358 = vpop.f32.mrf.mxu0
  %v3359 = vadd.f32 %v3318, %v3358
  %3360 = vmatmul.f32.gmra.mxu0 %v3116
  %v3361 = vpop.f32.mrf.mxu0
  %v3362 = vadd.f32 %v3321, %v3361
  %3363 = vmatmul.f32.gmra.mxu0 %v3119
  %v3364 = vpop.f32.mrf.mxu0
  %v3365 = vadd.f32 %v3324, %v3364
  %3366 = vmatmul.f32.gmra.mxu0 %v3122
  %v3367 = vpop.f32.mrf.mxu0
  %v3368 = vadd.f32 %v3327, %v3367
  %3369 = vmatmul.f32.gmra.mxu0 %v3125
  %v3370 = vpop.f32.mrf.mxu0
  %v3371 = vadd.f32 %v3330, %v3370
  %3372 = vdwg.mxu0
  %3373 = vmatpush.msra.mxu0 %v2668
  %3374 = vmatpush.msra.mxu0 %v2664
  %3375 = vmatpush.msra.mxu0 %v2660
  %3376 = vmatpush.msra.mxu0 %v2656
  %3377 = vmatpush.msra.mxu0 %v2584
  %3378 = vmatpush.msra.mxu0 %v2580
  %3379 = vmatpush.msra.mxu0 %v2576
  %3380 = vmatpush.msra.mxu0 %v2572
  %3381 = vmatpush.msra.mxu0 %v2500
  %3382 = vmatpush.msra.mxu0 %v2496
  %3383 = vmatpush.msra.mxu0 %v2492
  %3384 = vmatpush.msra.mxu0 %v2488
  %3385 = vmatpush.msra.mxu0 %v2416
  %3386 = vmatpush.msra.mxu0 %v2412
  %3387 = vmatpush.msra.mxu0 %v2408
  %3388 = vmatpush.msra.mxu0 %v2404
  %3389 = vmatmul.f32.gmra.mxu0 %v3031
  %v3390 = vpop.f32.mrf.mxu0
  %v3391 = vadd.f32 %v3066, %v3390
  %3392 = vmatmul.f32.gmra.mxu0 %v3034
  %v3393 = vpop.f32.mrf.mxu0
  %v3394 = vadd.f32 %v3071, %v3393
  %3395 = vmatmul.f32.gmra.mxu0 %v3037
  %v3396 = vpop.f32.mrf.mxu0
  %v3397 = vadd.f32 %v3076, %v3396
  %3398 = vmatmul.f32.gmra.mxu0 %v3040
  %v3399 = vpop.f32.mrf.mxu0
  %v3400 = vadd.f32 %v3081, %v3399
  %3401 = vmatmul.f32.gmra.mxu0 %v3043
  %v3402 = vpop.f32.mrf.mxu0
  %v3403 = vadd.f32 %v3086, %v3402
  %3404 = vmatmul.f32.gmra.mxu0 %v3046
  %v3405 = vpop.f32.mrf.mxu0
  %v3406 = vadd.f32 %v3091, %v3405
  %3407 = vmatmul.f32.gmra.mxu0 %v3049
  %v3408 = vpop.f32.mrf.mxu0
  %v3409 = vadd.f32 %v3096, %v3408
  %3410 = vmatmul.f32.gmra.mxu0 %v3052
  %v3411 = vpop.f32.mrf.mxu0
  %v3412 = vadd.f32 %v3101, %v3411
  %3413 = vdwg.mxu0
  %3414 = vmatpush.msra.mxu0 %v2917
  %3415 = vmatpush.msra.mxu0 %v2913
  %3416 = vmatpush.msra.mxu0 %v2909
  %3417 = vmatpush.msra.mxu0 %v2905
  %3418 = vmatpush.msra.mxu0 %v2833
  %3419 = vmatpush.msra.mxu0 %v2829
  %3420 = vmatpush.msra.mxu0 %v2825
  %3421 = vmatpush.msra.mxu0 %v2821
  %3422 = vmatpush.msra.mxu0 %v2749
  %3423 = vmatpush.msra.mxu0 %v2745
  %3424 = vmatpush.msra.mxu0 %v2741
  %3425 = vmatpush.msra.mxu0 %v2737
  %3426 = vmatpush.msra.mxu0 %v2336
  %3427 = vmatpush.msra.mxu0 %v2331
  %3428 = vmatpush.msra.mxu0 %v2326
  %3429 = vmatpush.msra.mxu0 %v2321
  %3430 = vmatmul.f32.gmra.mxu0 %v3032
  %v3431 = vpop.f32.mrf.mxu0
  %v3432 = vadd.f32 %v3391, %v3431
  %3433 = vmatmul.f32.gmra.mxu0 %v3035
  %v3434 = vpop.f32.mrf.mxu0
  %v3435 = vadd.f32 %v3394, %v3434
  %3436 = vmatmul.f32.gmra.mxu0 %v3038
  %v3437 = vpop.f32.mrf.mxu0
  %v3438 = vadd.f32 %v3397, %v3437
  %3439 = vmatmul.f32.gmra.mxu0 %v3041
  %v3440 = vpop.f32.mrf.mxu0
  %v3441 = vadd.f32 %v3400, %v3440
  %3442 = vmatmul.f32.gmra.mxu0 %v3044
  %v3443 = vpop.f32.mrf.mxu0
  %v3444 = vadd.f32 %v3403, %v3443
  %3445 = vmatmul.f32.gmra.mxu0 %v3047
  %v3446 = vpop.f32.mrf.mxu0
  %v3447 = vadd.f32 %v3406, %v3446
  %3448 = vmatmul.f32.gmra.mxu0 %v3050
  %v3449 = vpop.f32.mrf.mxu0
  %v3450 = vadd.f32 %v3409, %v3449
  %3451 = vmatmul.f32.gmra.mxu0 %v3053
  %v3452 = vpop.f32.mrf.mxu0
  %v3453 = vadd.f32 %v3412, %v3452
  %3454 = vdwg.mxu0
  %3455 = vmatpush.msra.mxu0 0.0
  %3456 = vmatpush.msra.mxu0 0.0
  %3457 = vmatpush.msra.mxu0 0.0
  %3458 = vmatpush.msra.mxu0 0.0
  %3459 = vmatpush.msra.mxu0 0.0
  %3460 = vmatpush.msra.mxu0 0.0
  %3461 = vmatpush.msra.mxu0 0.0
  %3462 = vmatpush.msra.mxu0 0.0
  %3463 = vmatpush.msra.mxu0 0.0
  %3464 = vmatpush.msra.mxu0 0.0
  %3465 = vmatpush.msra.mxu0 0.0
  %3466 = vmatpush.msra.mxu0 0.0
  %3467 = vmatpush.msra.mxu0 %v3001
  %3468 = vmatpush.msra.mxu0 %v2997
  %3469 = vmatpush.msra.mxu0 %v2993
  %3470 = vmatpush.msra.mxu0 %v2989
  %3471 = vmatmul.f32.gmra.mxu0 %v3104
  %v3472 = vpop.f32.mrf.mxu0
  %v3473 = vadd.f32 %v3432, %v3472
  %3474 = vmatmul.f32.gmra.mxu0 %v3107
  %v3475 = vpop.f32.mrf.mxu0
  %v3476 = vadd.f32 %v3435, %v3475
  %3477 = vmatmul.f32.gmra.mxu0 %v3110
  %v3478 = vpop.f32.mrf.mxu0
  %v3479 = vadd.f32 %v3438, %v3478
  %3480 = vmatmul.f32.gmra.mxu0 %v3113
  %v3481 = vpop.f32.mrf.mxu0
  %v3482 = vadd.f32 %v3441, %v3481
  %3483 = vmatmul.f32.gmra.mxu0 %v3116
  %v3484 = vpop.f32.mrf.mxu0
  %v3485 = vadd.f32 %v3444, %v3484
  %3486 = vmatmul.f32.gmra.mxu0 %v3119
  %v3487 = vpop.f32.mrf.mxu0
  %v3488 = vadd.f32 %v3447, %v3487
  %3489 = vmatmul.f32.gmra.mxu0 %v3122
  %v3490 = vpop.f32.mrf.mxu0
  %v3491 = vadd.f32 %v3450, %v3490
  %3492 = vmatmul.f32.gmra.mxu0 %v3125
  %v3493 = vpop.f32.mrf.mxu0
  %v3494 = vadd.f32 %v3453, %v3493
  %3495 = vdwg.mxu0
  %3496 = vmatpush.msra.mxu0 %v2669
  %3497 = vmatpush.msra.mxu0 %v2665
  %3498 = vmatpush.msra.mxu0 %v2661
  %3499 = vmatpush.msra.mxu0 %v2657
  %3500 = vmatpush.msra.mxu0 %v2585
  %3501 = vmatpush.msra.mxu0 %v2581
  %3502 = vmatpush.msra.mxu0 %v2577
  %3503 = vmatpush.msra.mxu0 %v2573
  %3504 = vmatpush.msra.mxu0 %v2501
  %3505 = vmatpush.msra.mxu0 %v2497
  %3506 = vmatpush.msra.mxu0 %v2493
  %3507 = vmatpush.msra.mxu0 %v2489
  %3508 = vmatpush.msra.mxu0 %v2417
  %3509 = vmatpush.msra.mxu0 %v2413
  %3510 = vmatpush.msra.mxu0 %v2409
  %3511 = vmatpush.msra.mxu0 %v2405
  %3512 = vmatmul.f32.gmra.mxu0 %v3031
  %v3513 = vpop.f32.mrf.mxu0
  %v3514 = vadd.f32 %v3066, %v3513
  %3515 = vmatmul.f32.gmra.mxu0 %v3034
  %v3516 = vpop.f32.mrf.mxu0
  %v3517 = vadd.f32 %v3071, %v3516
  %3518 = vmatmul.f32.gmra.mxu0 %v3037
  %v3519 = vpop.f32.mrf.mxu0
  %v3520 = vadd.f32 %v3076, %v3519
  %3521 = vmatmul.f32.gmra.mxu0 %v3040
  %v3522 = vpop.f32.mrf.mxu0
  %v3523 = vadd.f32 %v3081, %v3522
  %3524 = vmatmul.f32.gmra.mxu0 %v3043
  %v3525 = vpop.f32.mrf.mxu0
  %v3526 = vadd.f32 %v3086, %v3525
  %3527 = vmatmul.f32.gmra.mxu0 %v3046
  %v3528 = vpop.f32.mrf.mxu0
  %v3529 = vadd.f32 %v3091, %v3528
  %3530 = vmatmul.f32.gmra.mxu0 %v3049
  %v3531 = vpop.f32.mrf.mxu0
  %v3532 = vadd.f32 %v3096, %v3531
  %3533 = vmatmul.f32.gmra.mxu0 %v3052
  %v3534 = vpop.f32.mrf.mxu0
  %v3535 = vadd.f32 %v3101, %v3534
  %3536 = vdwg.mxu0
  %3537 = vmatpush.msra.mxu0 %v2918
  %3538 = vmatpush.msra.mxu0 %v2914
  %3539 = vmatpush.msra.mxu0 %v2910
  %3540 = vmatpush.msra.mxu0 %v2906
  %3541 = vmatpush.msra.mxu0 %v2834
  %3542 = vmatpush.msra.mxu0 %v2830
  %3543 = vmatpush.msra.mxu0 %v2826
  %3544 = vmatpush.msra.mxu0 %v2822
  %3545 = vmatpush.msra.mxu0 %v2750
  %3546 = vmatpush.msra.mxu0 %v2746
  %3547 = vmatpush.msra.mxu0 %v2742
  %3548 = vmatpush.msra.mxu0 %v2738
  %3549 = vmatpush.msra.mxu0 %v2337
  %3550 = vmatpush.msra.mxu0 %v2332
  %3551 = vmatpush.msra.mxu0 %v2327
  %3552 = vmatpush.msra.mxu0 %v2322
  %3553 = vmatmul.f32.gmra.mxu0 %v3032
  %v3554 = vpop.f32.mrf.mxu0
  %v3555 = vadd.f32 %v3514, %v3554
  %3556 = vmatmul.f32.gmra.mxu0 %v3035
  %v3557 = vpop.f32.mrf.mxu0
  %v3558 = vadd.f32 %v3517, %v3557
  %3559 = vmatmul.f32.gmra.mxu0 %v3038
  %v3560 = vpop.f32.mrf.mxu0
  %v3561 = vadd.f32 %v3520, %v3560
  %3562 = vmatmul.f32.gmra.mxu0 %v3041
  %v3563 = vpop.f32.mrf.mxu0
  %v3564 = vadd.f32 %v3523, %v3563
  %3565 = vmatmul.f32.gmra.mxu0 %v3044
  %v3566 = vpop.f32.mrf.mxu0
  %v3567 = vadd.f32 %v3526, %v3566
  %3568 = vmatmul.f32.gmra.mxu0 %v3047
  %v3569 = vpop.f32.mrf.mxu0
  %v3570 = vadd.f32 %v3529, %v3569
  %3571 = vmatmul.f32.gmra.mxu0 %v3050
  %v3572 = vpop.f32.mrf.mxu0
  %v3573 = vadd.f32 %v3532, %v3572
  %3574 = vmatmul.f32.gmra.mxu0 %v3053
  %v3575 = vpop.f32.mrf.mxu0
  %v3576 = vadd.f32 %v3535, %v3575
  %3577 = vdwg.mxu0
  %3578 = vmatpush.msra.mxu0 0.0
  %3579 = vmatpush.msra.mxu0 0.0
  %3580 = vmatpush.msra.mxu0 0.0
  %3581 = vmatpush.msra.mxu0 0.0
  %3582 = vmatpush.msra.mxu0 0.0
  %3583 = vmatpush.msra.mxu0 0.0
  %3584 = vmatpush.msra.mxu0 0.0
  %3585 = vmatpush.msra.mxu0 0.0
  %3586 = vmatpush.msra.mxu0 0.0
  %3587 = vmatpush.msra.mxu0 0.0
  %3588 = vmatpush.msra.mxu0 0.0
  %3589 = vmatpush.msra.mxu0 0.0
  %3590 = vmatpush.msra.mxu0 %v3002
  %3591 = vmatpush.msra.mxu0 %v2998
  %3592 = vmatpush.msra.mxu0 %v2994
  %3593 = vmatpush.msra.mxu0 %v2990
  %3594 = vmatmul.f32.gmra.mxu0 %v3104
  %v3595 = vpop.f32.mrf.mxu0
  %v3596 = vadd.f32 %v3555, %v3595
  %3597 = vmatmul.f32.gmra.mxu0 %v3107
  %v3598 = vpop.f32.mrf.mxu0
  %v3599 = vadd.f32 %v3558, %v3598
  %3600 = vmatmul.f32.gmra.mxu0 %v3110
  %v3601 = vpop.f32.mrf.mxu0
  %v3602 = vadd.f32 %v3561, %v3601
  %3603 = vmatmul.f32.gmra.mxu0 %v3113
  %v3604 = vpop.f32.mrf.mxu0
  %v3605 = vadd.f32 %v3564, %v3604
  %3606 = vmatmul.f32.gmra.mxu0 %v3116
  %v3607 = vpop.f32.mrf.mxu0
  %v3608 = vadd.f32 %v3567, %v3607
  %3609 = vmatmul.f32.gmra.mxu0 %v3119
  %v3610 = vpop.f32.mrf.mxu0
  %v3611 = vadd.f32 %v3570, %v3610
  %3612 = vmatmul.f32.gmra.mxu0 %v3122
  %v3613 = vpop.f32.mrf.mxu0
  %v3614 = vadd.f32 %v3573, %v3613
  %3615 = vmatmul.f32.gmra.mxu0 %v3125
  %v3616 = vpop.f32.mrf.mxu0
  %v3617 = vadd.f32 %v3576, %v3616
  %3618 = vdwg.mxu0
  %3619 = vmatpush.msra.mxu0 %v2670
  %3620 = vmatpush.msra.mxu0 %v2666
  %3621 = vmatpush.msra.mxu0 %v2662
  %3622 = vmatpush.msra.mxu0 %v2658
  %3623 = vmatpush.msra.mxu0 %v2586
  %3624 = vmatpush.msra.mxu0 %v2582
  %3625 = vmatpush.msra.mxu0 %v2578
  %3626 = vmatpush.msra.mxu0 %v2574
  %3627 = vmatpush.msra.mxu0 %v2502
  %3628 = vmatpush.msra.mxu0 %v2498
  %3629 = vmatpush.msra.mxu0 %v2494
  %3630 = vmatpush.msra.mxu0 %v2490
  %3631 = vmatpush.msra.mxu0 %v2418
  %3632 = vmatpush.msra.mxu0 %v2414
  %3633 = vmatpush.msra.mxu0 %v2410
  %3634 = vmatpush.msra.mxu0 %v2406
  %3635 = vmatmul.f32.gmra.mxu0 %v3031
  %v3636 = vpop.f32.mrf.mxu0
  %v3637 = vadd.f32 %v3066, %v3636
  %3638 = vmatmul.f32.gmra.mxu0 %v3034
  %v3639 = vpop.f32.mrf.mxu0
  %v3640 = vadd.f32 %v3071, %v3639
  %3641 = vmatmul.f32.gmra.mxu0 %v3037
  %v3642 = vpop.f32.mrf.mxu0
  %v3643 = vadd.f32 %v3076, %v3642
  %3644 = vmatmul.f32.gmra.mxu0 %v3040
  %v3645 = vpop.f32.mrf.mxu0
  %v3646 = vadd.f32 %v3081, %v3645
  %3647 = vmatmul.f32.gmra.mxu0 %v3043
  %v3648 = vpop.f32.mrf.mxu0
  %v3649 = vadd.f32 %v3086, %v3648
  %3650 = vmatmul.f32.gmra.mxu0 %v3046
  %v3651 = vpop.f32.mrf.mxu0
  %v3652 = vadd.f32 %v3091, %v3651
  %3653 = vmatmul.f32.gmra.mxu0 %v3049
  %v3654 = vpop.f32.mrf.mxu0
  %v3655 = vadd.f32 %v3096, %v3654
  %3656 = vmatmul.f32.gmra.mxu0 %v3052
  %v3657 = vpop.f32.mrf.mxu0
  %v3658 = vadd.f32 %v3101, %v3657
  %3659 = vdwg.mxu0
  %3660 = vmatpush.msra.mxu0 %v2946
  %3661 = vmatpush.msra.mxu0 %v2945
  %3662 = vmatpush.msra.mxu0 %v2944
  %3663 = vmatpush.msra.mxu0 %v2943
  %3664 = vmatpush.msra.mxu0 %v2862
  %3665 = vmatpush.msra.mxu0 %v2861
  %3666 = vmatpush.msra.mxu0 %v2860
  %3667 = vmatpush.msra.mxu0 %v2859
  %3668 = vmatpush.msra.mxu0 %v2778
  %3669 = vmatpush.msra.mxu0 %v2777
  %3670 = vmatpush.msra.mxu0 %v2776
  %3671 = vmatpush.msra.mxu0 %v2775
  %3672 = vmatpush.msra.mxu0 %v2338
  %3673 = vmatpush.msra.mxu0 %v2333
  %3674 = vmatpush.msra.mxu0 %v2328
  %3675 = vmatpush.msra.mxu0 %v2323
  %3676 = vmatmul.f32.gmra.mxu0 %v3032
  %v3677 = vpop.f32.mrf.mxu0
  %v3678 = vadd.f32 %v3637, %v3677
  %3679 = vmatmul.f32.gmra.mxu0 %v3035
  %v3680 = vpop.f32.mrf.mxu0
  %v3681 = vadd.f32 %v3640, %v3680
  %3682 = vmatmul.f32.gmra.mxu0 %v3038
  %v3683 = vpop.f32.mrf.mxu0
  %v3684 = vadd.f32 %v3643, %v3683
  %3685 = vmatmul.f32.gmra.mxu0 %v3041
  %v3686 = vpop.f32.mrf.mxu0
  %v3687 = vadd.f32 %v3646, %v3686
  %3688 = vmatmul.f32.gmra.mxu0 %v3044
  %v3689 = vpop.f32.mrf.mxu0
  %v3690 = vadd.f32 %v3649, %v3689
  %3691 = vmatmul.f32.gmra.mxu0 %v3047
  %v3692 = vpop.f32.mrf.mxu0
  %v3693 = vadd.f32 %v3652, %v3692
  %3694 = vmatmul.f32.gmra.mxu0 %v3050
  %v3695 = vpop.f32.mrf.mxu0
  %v3696 = vadd.f32 %v3655, %v3695
  %3697 = vmatmul.f32.gmra.mxu0 %v3053
  %v3698 = vpop.f32.mrf.mxu0
  %v3699 = vadd.f32 %v3658, %v3698
  %3700 = vdwg.mxu0
  %3701 = vmatpush.msra.mxu0 0.0
  %3702 = vmatpush.msra.mxu0 0.0
  %3703 = vmatpush.msra.mxu0 0.0
  %3704 = vmatpush.msra.mxu0 0.0
  %3705 = vmatpush.msra.mxu0 0.0
  %3706 = vmatpush.msra.mxu0 0.0
  %3707 = vmatpush.msra.mxu0 0.0
  %3708 = vmatpush.msra.mxu0 0.0
  %3709 = vmatpush.msra.mxu0 0.0
  %3710 = vmatpush.msra.mxu0 0.0
  %3711 = vmatpush.msra.mxu0 0.0
  %3712 = vmatpush.msra.mxu0 0.0
  %3713 = vmatpush.msra.mxu0 %v3030
  %3714 = vmatpush.msra.mxu0 %v3029
  %3715 = vmatpush.msra.mxu0 %v3028
  %3716 = vmatpush.msra.mxu0 %v3027
  %3717 = vmatmul.f32.gmra.mxu0 %v3104
  %v3718 = vpop.f32.mrf.mxu0
  %v3719 = vadd.f32 %v3678, %v3718
  %3720 = vmatmul.f32.gmra.mxu0 %v3107
  %v3721 = vpop.f32.mrf.mxu0
  %v3722 = vadd.f32 %v3681, %v3721
  %3723 = vmatmul.f32.gmra.mxu0 %v3110
  %v3724 = vpop.f32.mrf.mxu0
  %v3725 = vadd.f32 %v3684, %v3724
  %3726 = vmatmul.f32.gmra.mxu0 %v3113
  %v3727 = vpop.f32.mrf.mxu0
  %v3728 = vadd.f32 %v3687, %v3727
  %3729 = vmatmul.f32.gmra.mxu0 %v3116
  %v3730 = vpop.f32.mrf.mxu0
  %v3731 = vadd.f32 %v3690, %v3730
  %3732 = vmatmul.f32.gmra.mxu0 %v3119
  %v3733 = vpop.f32.mrf.mxu0
  %v3734 = vadd.f32 %v3693, %v3733
  %3735 = vmatmul.f32.gmra.mxu0 %v3122
  %v3736 = vpop.f32.mrf.mxu0
  %v3737 = vadd.f32 %v3696, %v3736
  %3738 = vmatmul.f32.gmra.mxu0 %v3125
  %v3739 = vpop.f32.mrf.mxu0
  %v3740 = vadd.f32 %v3699, %v3739
  %3741 = vdwg.mxu0
  %v3742 = vmax.f32 %v3227, 0.0
  %v3743 = vmax.f32 %v3350, 0.0
  %v3744 = vmax.f32 %v3473, 0.0
  %v3745 = vmax.f32 %v3596, 0.0
  %v3746 = vmax.f32 %v3719, 0.0
  %v3747 = vmax.f32 %v3230, 0.0
  %v3748 = vmax.f32 %v3353, 0.0
  %v3749 = vmax.f32 %v3476, 0.0
  %v3750 = vmax.f32 %v3599, 0.0
  %v3751 = vmax.f32 %v3722, 0.0
  %v3752 = vmax.f32 %v3233, 0.0
  %v3753 = vmax.f32 %v3356, 0.0
  %v3754 = vmax.f32 %v3479, 0.0
  %v3755 = vmax.f32 %v3602, 0.0
  %v3756 = vmax.f32 %v3725, 0.0
  %v3757 = vmax.f32 %v3236, 0.0
  %v3758 = vmax.f32 %v3359, 0.0
  %v3759 = vmax.f32 %v3482, 0.0
  %v3760 = vmax.f32 %v3605, 0.0
  %v3761 = vmax.f32 %v3728, 0.0
  %v3762 = vmax.f32 %v3239, 0.0
  %v3763 = vmax.f32 %v3362, 0.0
  %v3764 = vmax.f32 %v3485, 0.0
  %v3765 = vmax.f32 %v3608, 0.0
  %v3766 = vmax.f32 %v3731, 0.0
  %v3767 = vmax.f32 %v3242, 0.0
  %v3768 = vmax.f32 %v3365, 0.0
  %v3769 = vmax.f32 %v3488, 0.0
  %v3770 = vmax.f32 %v3611, 0.0
  %v3771 = vmax.f32 %v3734, 0.0
  %v3772 = vmax.f32 %v3245, 0.0
  %v3773 = vmax.f32 %v3368, 0.0
  %v3774 = vmax.f32 %v3491, 0.0
  %v3775 = vmax.f32 %v3614, 0.0
  %v3776 = vmax.f32 %v3737, 0.0
  %v3777 = vmax.f32 %v3248, 0.0
  %v3778 = vmax.f32 %v3371, 0.0
  %v3779 = vmax.f32 %v3494, 0.0
  %v3780 = vmax.f32 %v3617, 0.0
  %v3781 = vmax.f32 %v3740, 0.0
  %v3782 = vmul.f32 %v3742, %v383
  %v3783 = vmul.f32 %v3743, %v384
  %v3784 = vmul.f32 %v3744, %v385
  %v3785 = vmul.f32 %v3745, %v386
  %v3786 = vmul.f32 %v3746, %v387
  %v3787 = vmul.f32 %v3747, %v383
  %v3788 = vmul.f32 %v3748, %v384
  %v3789 = vmul.f32 %v3749, %v385
  %v3790 = vmul.f32 %v3750, %v386
  %v3791 = vmul.f32 %v3751, %v387
  %v3792 = vmul.f32 %v3752, %v383
  %v3793 = vmul.f32 %v3753, %v384
  %v3794 = vmul.f32 %v3754, %v385
  %v3795 = vmul.f32 %v3755, %v386
  %v3796 = vmul.f32 %v3756, %v387
  %v3797 = vmul.f32 %v3757, %v383
  %v3798 = vmul.f32 %v3758, %v384
  %v3799 = vmul.f32 %v3759, %v385
  %v3800 = vmul.f32 %v3760, %v386
  %v3801 = vmul.f32 %v3761, %v387
  %v3802 = vmul.f32 %v3762, %v383
  %v3803 = vmul.f32 %v3763, %v384
  %v3804 = vmul.f32 %v3764, %v385
  %v3805 = vmul.f32 %v3765, %v386
  %v3806 = vmul.f32 %v3766, %v387
  %v3807 = vmul.f32 %v3767, %v383
  %v3808 = vmul.f32 %v3768, %v384
  %v3809 = vmul.f32 %v3769, %v385
  %v3810 = vmul.f32 %v3770, %v386
  %v3811 = vmul.f32 %v3771, %v387
  %v3812 = vmul.f32 %v3772, %v383
  %v3813 = vmul.f32 %v3773, %v384
  %v3814 = vmul.f32 %v3774, %v385
  %v3815 = vmul.f32 %v3775, %v386
  %v3816 = vmul.f32 %v3776, %v387
  %v3817 = vmul.f32 %v3777, %v383
  %v3818 = vmul.f32 %v3778, %v384
  %v3819 = vmul.f32 %v3779, %v385
  %v3820 = vmul.f32 %v3780, %v386
  %v3821 = vmul.f32 %v3781, %v387
  %3830 = vrot.lane.b32.xlu0 %v3786, 18
  %v3831 = vpop.permute.xlu0 %3830
  %3832 = vrot.lane.b32.xlu0 %v3791, 18
  %v3833 = vpop.permute.xlu0 %3832
  %3834 = vrot.lane.b32.xlu0 %v3796, 18
  %v3835 = vpop.permute.xlu0 %3834
  %3836 = vrot.lane.b32.xlu0 %v3801, 18
  %v3837 = vpop.permute.xlu0 %3836
  %3838 = vrot.lane.b32.xlu0 %v3806, 18
  %v3839 = vpop.permute.xlu0 %3838
  %3840 = vrot.lane.b32.xlu0 %v3811, 18
  %v3841 = vpop.permute.xlu0 %3840
  %3842 = vrot.lane.b32.xlu0 %v3816, 18
  %v3843 = vpop.permute.xlu0 %3842
  %3844 = vrot.lane.b32.xlu0 %v3821, 18
  %v3845 = vpop.permute.xlu0 %3844
  %3886 = vrot.lane.b32.xlu0 %v3782, 18
  %v3887 = vpop.permute.xlu0 %3886
  %3888 = vrot.lane.b32.xlu0 %v3783, 18
  %v3889 = vpop.permute.xlu0 %3888
  %3890 = vrot.lane.b32.xlu0 %v3784, 18
  %v3891 = vpop.permute.xlu0 %3890
  %3892 = vrot.lane.b32.xlu0 %v3785, 18
  %v3893 = vpop.permute.xlu0 %3892
  %3894 = vrot.lane.b32.xlu0 %v3787, 18
  %v3895 = vpop.permute.xlu0 %3894
  %3896 = vrot.lane.b32.xlu0 %v3788, 18
  %v3897 = vpop.permute.xlu0 %3896
  %3898 = vrot.lane.b32.xlu0 %v3789, 18
  %v3899 = vpop.permute.xlu0 %3898
  %3900 = vrot.lane.b32.xlu0 %v3790, 18
  %v3901 = vpop.permute.xlu0 %3900
  %3902 = vrot.lane.b32.xlu0 %v3792, 18
  %v3903 = vpop.permute.xlu0 %3902
  %3904 = vrot.lane.b32.xlu0 %v3793, 18
  %v3905 = vpop.permute.xlu0 %3904
  %3906 = vrot.lane.b32.xlu0 %v3794, 18
  %v3907 = vpop.permute.xlu0 %3906
  %3908 = vrot.lane.b32.xlu0 %v3795, 18
  %v3909 = vpop.permute.xlu0 %3908
  %3910 = vrot.lane.b32.xlu0 %v3797, 18
  %v3911 = vpop.permute.xlu0 %3910
  %3912 = vrot.lane.b32.xlu0 %v3798, 18
  %v3913 = vpop.permute.xlu0 %3912
  %3914 = vrot.lane.b32.xlu0 %v3799, 18
  %v3915 = vpop.permute.xlu0 %3914
  %3916 = vrot.lane.b32.xlu0 %v3800, 18
  %v3917 = vpop.permute.xlu0 %3916
  %3918 = vrot.lane.b32.xlu0 %v3802, 18
  %v3919 = vpop.permute.xlu0 %3918
  %3920 = vrot.lane.b32.xlu0 %v3803, 18
  %v3921 = vpop.permute.xlu0 %3920
  %3922 = vrot.lane.b32.xlu0 %v3804, 18
  %v3923 = vpop.permute.xlu0 %3922
  %3924 = vrot.lane.b32.xlu0 %v3805, 18
  %v3925 = vpop.permute.xlu0 %3924
  %3926 = vrot.lane.b32.xlu0 %v3807, 18
  %v3927 = vpop.permute.xlu0 %3926
  %3928 = vrot.lane.b32.xlu0 %v3808, 18
  %v3929 = vpop.permute.xlu0 %3928
  %3930 = vrot.lane.b32.xlu0 %v3809, 18
  %v3931 = vpop.permute.xlu0 %3930
  %3932 = vrot.lane.b32.xlu0 %v3810, 18
  %v3933 = vpop.permute.xlu0 %3932
  %3934 = vrot.lane.b32.xlu0 %v3812, 18
  %v3935 = vpop.permute.xlu0 %3934
  %3936 = vrot.lane.b32.xlu0 %v3813, 18
  %v3937 = vpop.permute.xlu0 %3936
  %3938 = vrot.lane.b32.xlu0 %v3814, 18
  %v3939 = vpop.permute.xlu0 %3938
  %3940 = vrot.lane.b32.xlu0 %v3815, 18
  %v3941 = vpop.permute.xlu0 %3940
  %3942 = vrot.lane.b32.xlu0 %v3817, 18
  %v3943 = vpop.permute.xlu0 %3942
  %3944 = vrot.lane.b32.xlu0 %v3818, 18
  %v3945 = vpop.permute.xlu0 %3944
  %3946 = vrot.lane.b32.xlu0 %v3819, 18
  %v3947 = vpop.permute.xlu0 %3946
  %3948 = vrot.lane.b32.xlu0 %v3820, 18
  %v3949 = vpop.permute.xlu0 %3948
  %v3950 = vsel %vm71, %v3887, %v3889
  %v3951 = vsel %vm71, %v3889, %v3891
  %v3952 = vsel %vm71, %v3891, %v3893
  %v3953 = vsel %vm71, %v3893, %v3831
  %v3954 = vsel %vm71, %v3895, %v3897
  %v3955 = vsel %vm71, %v3897, %v3899
  %v3956 = vsel %vm71, %v3899, %v3901
  %v3957 = vsel %vm71, %v3901, %v3833
  %v3958 = vsel %vm71, %v3903, %v3905
  %v3959 = vsel %vm71, %v3905, %v3907
  %v3960 = vsel %vm71, %v3907, %v3909
  %v3961 = vsel %vm71, %v3909, %v3835
  %v3962 = vsel %vm71, %v3911, %v3913
  %v3963 = vsel %vm71, %v3913, %v3915
  %v3964 = vsel %vm71, %v3915, %v3917
  %v3965 = vsel %vm71, %v3917, %v3837
  %v3966 = vsel %vm71, %v3919, %v3921
  %v3967 = vsel %vm71, %v3921, %v3923
  %v3968 = vsel %vm71, %v3923, %v3925
  %v3969 = vsel %vm71, %v3925, %v3839
  %v3970 = vsel %vm71, %v3927, %v3929
  %v3971 = vsel %vm71, %v3929, %v3931
  %v3972 = vsel %vm71, %v3931, %v3933
  %v3973 = vsel %vm71, %v3933, %v3841
  %v3974 = vsel %vm71, %v3935, %v3937
  %v3975 = vsel %vm71, %v3937, %v3939
  %v3976 = vsel %vm71, %v3939, %v3941
  %v3977 = vsel %vm71, %v3941, %v3843
  %v3978 = vsel %vm71, %v3943, %v3945
  %v3979 = vsel %vm71, %v3945, %v3947
  %v3980 = vsel %vm71, %v3947, %v3949
  %v3981 = vsel %vm71, %v3949, %v3845
  %v4022 = vsel %vm71, %v3831, %v3887
  %v4023 = vsel %vm71, %v3833, %v3895
  %v4024 = vsel %vm71, %v3835, %v3903
  %v4025 = vsel %vm71, %v3837, %v3911
  %v4026 = vsel %vm71, %v3839, %v3919
  %v4027 = vsel %vm71, %v3841, %v3927
  %v4028 = vsel %vm71, %v3843, %v3935
  %v4029 = vsel %vm71, %v3845, %v3943
  %4030 = vrot.lane.b32.xlu0 %v3786, 17
  %v4031 = vpop.permute.xlu0 %4030
  %4032 = vrot.lane.b32.xlu0 %v3791, 17
  %v4033 = vpop.permute.xlu0 %4032
  %4034 = vrot.lane.b32.xlu0 %v3796, 17
  %v4035 = vpop.permute.xlu0 %4034
  %4036 = vrot.lane.b32.xlu0 %v3801, 17
  %v4037 = vpop.permute.xlu0 %4036
  %4038 = vrot.lane.b32.xlu0 %v3806, 17
  %v4039 = vpop.permute.xlu0 %4038
  %4040 = vrot.lane.b32.xlu0 %v3811, 17
  %v4041 = vpop.permute.xlu0 %4040
  %4042 = vrot.lane.b32.xlu0 %v3816, 17
  %v4043 = vpop.permute.xlu0 %4042
  %4044 = vrot.lane.b32.xlu0 %v3821, 17
  %v4045 = vpop.permute.xlu0 %4044
  %4054 = vrot.lane.b32.xlu0 %v3782, 17
  %v4055 = vpop.permute.xlu0 %4054
  %4056 = vrot.lane.b32.xlu0 %v3783, 17
  %v4057 = vpop.permute.xlu0 %4056
  %4058 = vrot.lane.b32.xlu0 %v3784, 17
  %v4059 = vpop.permute.xlu0 %4058
  %4060 = vrot.lane.b32.xlu0 %v3785, 17
  %v4061 = vpop.permute.xlu0 %4060
  %4062 = vrot.lane.b32.xlu0 %v3787, 17
  %v4063 = vpop.permute.xlu0 %4062
  %4064 = vrot.lane.b32.xlu0 %v3788, 17
  %v4065 = vpop.permute.xlu0 %4064
  %4066 = vrot.lane.b32.xlu0 %v3789, 17
  %v4067 = vpop.permute.xlu0 %4066
  %4068 = vrot.lane.b32.xlu0 %v3790, 17
  %v4069 = vpop.permute.xlu0 %4068
  %4070 = vrot.lane.b32.xlu0 %v3792, 17
  %v4071 = vpop.permute.xlu0 %4070
  %4072 = vrot.lane.b32.xlu0 %v3793, 17
  %v4073 = vpop.permute.xlu0 %4072
  %4074 = vrot.lane.b32.xlu0 %v3794, 17
  %v4075 = vpop.permute.xlu0 %4074
  %4076 = vrot.lane.b32.xlu0 %v3795, 17
  %v4077 = vpop.permute.xlu0 %4076
  %4078 = vrot.lane.b32.xlu0 %v3797, 17
  %v4079 = vpop.permute.xlu0 %4078
  %4080 = vrot.lane.b32.xlu0 %v3798, 17
  %v4081 = vpop.permute.xlu0 %4080
  %4082 = vrot.lane.b32.xlu0 %v3799, 17
  %v4083 = vpop.permute.xlu0 %4082
  %4084 = vrot.lane.b32.xlu0 %v3800, 17
  %v4085 = vpop.permute.xlu0 %4084
  %4086 = vrot.lane.b32.xlu0 %v3802, 17
  %v4087 = vpop.permute.xlu0 %4086
  %4088 = vrot.lane.b32.xlu0 %v3803, 17
  %v4089 = vpop.permute.xlu0 %4088
  %4090 = vrot.lane.b32.xlu0 %v3804, 17
  %v4091 = vpop.permute.xlu0 %4090
  %4092 = vrot.lane.b32.xlu0 %v3805, 17
  %v4093 = vpop.permute.xlu0 %4092
  %4094 = vrot.lane.b32.xlu0 %v3807, 17
  %v4095 = vpop.permute.xlu0 %4094
  %4096 = vrot.lane.b32.xlu0 %v3808, 17
  %v4097 = vpop.permute.xlu0 %4096
  %4098 = vrot.lane.b32.xlu0 %v3809, 17
  %v4099 = vpop.permute.xlu0 %4098
  %4100 = vrot.lane.b32.xlu0 %v3810, 17
  %v4101 = vpop.permute.xlu0 %4100
  %4102 = vrot.lane.b32.xlu0 %v3812, 17
  %v4103 = vpop.permute.xlu0 %4102
  %4104 = vrot.lane.b32.xlu0 %v3813, 17
  %v4105 = vpop.permute.xlu0 %4104
  %4106 = vrot.lane.b32.xlu0 %v3814, 17
  %v4107 = vpop.permute.xlu0 %4106
  %4108 = vrot.lane.b32.xlu0 %v3815, 17
  %v4109 = vpop.permute.xlu0 %4108
  %4110 = vrot.lane.b32.xlu0 %v3817, 17
  %v4111 = vpop.permute.xlu0 %4110
  %4112 = vrot.lane.b32.xlu0 %v3818, 17
  %v4113 = vpop.permute.xlu0 %4112
  %4114 = vrot.lane.b32.xlu0 %v3819, 17
  %v4115 = vpop.permute.xlu0 %4114
  %4116 = vrot.lane.b32.xlu0 %v3820, 17
  %v4117 = vpop.permute.xlu0 %4116
  %v4118 = vsel %vm93, %v4055, %v4057
  %v4119 = vsel %vm93, %v4057, %v4059
  %v4120 = vsel %vm93, %v4059, %v4061
  %v4121 = vsel %vm93, %v4061, %v4031
  %v4122 = vsel %vm93, %v4063, %v4065
  %v4123 = vsel %vm93, %v4065, %v4067
  %v4124 = vsel %vm93, %v4067, %v4069
  %v4125 = vsel %vm93, %v4069, %v4033
  %v4126 = vsel %vm93, %v4071, %v4073
  %v4127 = vsel %vm93, %v4073, %v4075
  %v4128 = vsel %vm93, %v4075, %v4077
  %v4129 = vsel %vm93, %v4077, %v4035
  %v4130 = vsel %vm93, %v4079, %v4081
  %v4131 = vsel %vm93, %v4081, %v4083
  %v4132 = vsel %vm93, %v4083, %v4085
  %v4133 = vsel %vm93, %v4085, %v4037
  %v4134 = vsel %vm93, %v4087, %v4089
  %v4135 = vsel %vm93, %v4089, %v4091
  %v4136 = vsel %vm93, %v4091, %v4093
  %v4137 = vsel %vm93, %v4093, %v4039
  %v4138 = vsel %vm93, %v4095, %v4097
  %v4139 = vsel %vm93, %v4097, %v4099
  %v4140 = vsel %vm93, %v4099, %v4101
  %v4141 = vsel %vm93, %v4101, %v4041
  %v4142 = vsel %vm93, %v4103, %v4105
  %v4143 = vsel %vm93, %v4105, %v4107
  %v4144 = vsel %vm93, %v4107, %v4109
  %v4145 = vsel %vm93, %v4109, %v4043
  %v4146 = vsel %vm93, %v4111, %v4113
  %v4147 = vsel %vm93, %v4113, %v4115
  %v4148 = vsel %vm93, %v4115, %v4117
  %v4149 = vsel %vm93, %v4117, %v4045
  %v4190 = vsel %vm93, %v4031, %v4055
  %v4191 = vsel %vm93, %v4033, %v4063
  %v4192 = vsel %vm93, %v4035, %v4071
  %v4193 = vsel %vm93, %v4037, %v4079
  %v4194 = vsel %vm93, %v4039, %v4087
  %v4195 = vsel %vm93, %v4041, %v4095
  %v4196 = vsel %vm93, %v4043, %v4103
  %v4197 = vsel %vm93, %v4045, %v4111
  %4198 = vrot.lane.b32.xlu0 %v3786, 16
  %v4199 = vpop.permute.xlu0 %4198
  %4200 = vrot.lane.b32.xlu0 %v3791, 16
  %v4201 = vpop.permute.xlu0 %4200
  %4202 = vrot.lane.b32.xlu0 %v3796, 16
  %v4203 = vpop.permute.xlu0 %4202
  %4204 = vrot.lane.b32.xlu0 %v3801, 16
  %v4205 = vpop.permute.xlu0 %4204
  %4206 = vrot.lane.b32.xlu0 %v3806, 16
  %v4207 = vpop.permute.xlu0 %4206
  %4208 = vrot.lane.b32.xlu0 %v3811, 16
  %v4209 = vpop.permute.xlu0 %4208
  %4210 = vrot.lane.b32.xlu0 %v3816, 16
  %v4211 = vpop.permute.xlu0 %4210
  %4212 = vrot.lane.b32.xlu0 %v3821, 16
  %v4213 = vpop.permute.xlu0 %4212
  %4222 = vrot.lane.b32.xlu0 %v3782, 16
  %v4223 = vpop.permute.xlu0 %4222
  %4224 = vrot.lane.b32.xlu0 %v3783, 16
  %v4225 = vpop.permute.xlu0 %4224
  %4226 = vrot.lane.b32.xlu0 %v3784, 16
  %v4227 = vpop.permute.xlu0 %4226
  %4228 = vrot.lane.b32.xlu0 %v3785, 16
  %v4229 = vpop.permute.xlu0 %4228
  %4230 = vrot.lane.b32.xlu0 %v3787, 16
  %v4231 = vpop.permute.xlu0 %4230
  %4232 = vrot.lane.b32.xlu0 %v3788, 16
  %v4233 = vpop.permute.xlu0 %4232
  %4234 = vrot.lane.b32.xlu0 %v3789, 16
  %v4235 = vpop.permute.xlu0 %4234
  %4236 = vrot.lane.b32.xlu0 %v3790, 16
  %v4237 = vpop.permute.xlu0 %4236
  %4238 = vrot.lane.b32.xlu0 %v3792, 16
  %v4239 = vpop.permute.xlu0 %4238
  %4240 = vrot.lane.b32.xlu0 %v3793, 16
  %v4241 = vpop.permute.xlu0 %4240
  %4242 = vrot.lane.b32.xlu0 %v3794, 16
  %v4243 = vpop.permute.xlu0 %4242
  %4244 = vrot.lane.b32.xlu0 %v3795, 16
  %v4245 = vpop.permute.xlu0 %4244
  %4246 = vrot.lane.b32.xlu0 %v3797, 16
  %v4247 = vpop.permute.xlu0 %4246
  %4248 = vrot.lane.b32.xlu0 %v3798, 16
  %v4249 = vpop.permute.xlu0 %4248
  %4250 = vrot.lane.b32.xlu0 %v3799, 16
  %v4251 = vpop.permute.xlu0 %4250
  %4252 = vrot.lane.b32.xlu0 %v3800, 16
  %v4253 = vpop.permute.xlu0 %4252
  %4254 = vrot.lane.b32.xlu0 %v3802, 16
  %v4255 = vpop.permute.xlu0 %4254
  %4256 = vrot.lane.b32.xlu0 %v3803, 16
  %v4257 = vpop.permute.xlu0 %4256
  %4258 = vrot.lane.b32.xlu0 %v3804, 16
  %v4259 = vpop.permute.xlu0 %4258
  %4260 = vrot.lane.b32.xlu0 %v3805, 16
  %v4261 = vpop.permute.xlu0 %4260
  %4262 = vrot.lane.b32.xlu0 %v3807, 16
  %v4263 = vpop.permute.xlu0 %4262
  %4264 = vrot.lane.b32.xlu0 %v3808, 16
  %v4265 = vpop.permute.xlu0 %4264
  %4266 = vrot.lane.b32.xlu0 %v3809, 16
  %v4267 = vpop.permute.xlu0 %4266
  %4268 = vrot.lane.b32.xlu0 %v3810, 16
  %v4269 = vpop.permute.xlu0 %4268
  %4270 = vrot.lane.b32.xlu0 %v3812, 16
  %v4271 = vpop.permute.xlu0 %4270
  %4272 = vrot.lane.b32.xlu0 %v3813, 16
  %v4273 = vpop.permute.xlu0 %4272
  %4274 = vrot.lane.b32.xlu0 %v3814, 16
  %v4275 = vpop.permute.xlu0 %4274
  %4276 = vrot.lane.b32.xlu0 %v3815, 16
  %v4277 = vpop.permute.xlu0 %4276
  %4278 = vrot.lane.b32.xlu0 %v3817, 16
  %v4279 = vpop.permute.xlu0 %4278
  %4280 = vrot.lane.b32.xlu0 %v3818, 16
  %v4281 = vpop.permute.xlu0 %4280
  %4282 = vrot.lane.b32.xlu0 %v3819, 16
  %v4283 = vpop.permute.xlu0 %4282
  %4284 = vrot.lane.b32.xlu0 %v3820, 16
  %v4285 = vpop.permute.xlu0 %4284
  %v4286 = vsel %vm115, %v4223, %v4225
  %v4287 = vsel %vm115, %v4225, %v4227
  %v4288 = vsel %vm115, %v4227, %v4229
  %v4289 = vsel %vm115, %v4229, %v4199
  %v4290 = vsel %vm115, %v4231, %v4233
  %v4291 = vsel %vm115, %v4233, %v4235
  %v4292 = vsel %vm115, %v4235, %v4237
  %v4293 = vsel %vm115, %v4237, %v4201
  %v4294 = vsel %vm115, %v4239, %v4241
  %v4295 = vsel %vm115, %v4241, %v4243
  %v4296 = vsel %vm115, %v4243, %v4245
  %v4297 = vsel %vm115, %v4245, %v4203
  %v4298 = vsel %vm115, %v4247, %v4249
  %v4299 = vsel %vm115, %v4249, %v4251
  %v4300 = vsel %vm115, %v4251, %v4253
  %v4301 = vsel %vm115, %v4253, %v4205
  %v4302 = vsel %vm115, %v4255, %v4257
  %v4303 = vsel %vm115, %v4257, %v4259
  %v4304 = vsel %vm115, %v4259, %v4261
  %v4305 = vsel %vm115, %v4261, %v4207
  %v4306 = vsel %vm115, %v4263, %v4265
  %v4307 = vsel %vm115, %v4265, %v4267
  %v4308 = vsel %vm115, %v4267, %v4269
  %v4309 = vsel %vm115, %v4269, %v4209
  %v4310 = vsel %vm115, %v4271, %v4273
  %v4311 = vsel %vm115, %v4273, %v4275
  %v4312 = vsel %vm115, %v4275, %v4277
  %v4313 = vsel %vm115, %v4277, %v4211
  %v4314 = vsel %vm115, %v4279, %v4281
  %v4315 = vsel %vm115, %v4281, %v4283
  %v4316 = vsel %vm115, %v4283, %v4285
  %v4317 = vsel %vm115, %v4285, %v4213
  %v4358 = vsel %vm115, %v4199, %v4223
  %v4359 = vsel %vm115, %v4201, %v4231
  %v4360 = vsel %vm115, %v4203, %v4239
  %v4361 = vsel %vm115, %v4205, %v4247
  %v4362 = vsel %vm115, %v4207, %v4255
  %v4363 = vsel %vm115, %v4209, %v4263
  %v4364 = vsel %vm115, %v4211, %v4271
  %v4365 = vsel %vm115, %v4213, %v4279
  %4366 = vrot.lane.b32.xlu0 %v3786, 1
  %v4367 = vpop.permute.xlu0 %4366
  %4368 = vrot.lane.b32.xlu0 %v3791, 1
  %v4369 = vpop.permute.xlu0 %4368
  %4370 = vrot.lane.b32.xlu0 %v3796, 1
  %v4371 = vpop.permute.xlu0 %4370
  %4372 = vrot.lane.b32.xlu0 %v3801, 1
  %v4373 = vpop.permute.xlu0 %4372
  %4374 = vrot.lane.b32.xlu0 %v3806, 1
  %v4375 = vpop.permute.xlu0 %4374
  %4376 = vrot.lane.b32.xlu0 %v3811, 1
  %v4377 = vpop.permute.xlu0 %4376
  %4378 = vrot.lane.b32.xlu0 %v3816, 1
  %v4379 = vpop.permute.xlu0 %4378
  %4380 = vrot.lane.b32.xlu0 %v3821, 1
  %v4381 = vpop.permute.xlu0 %4380
  %4390 = vrot.lane.b32.xlu0 %v3782, 1
  %v4391 = vpop.permute.xlu0 %4390
  %4392 = vrot.lane.b32.xlu0 %v3783, 1
  %v4393 = vpop.permute.xlu0 %4392
  %4394 = vrot.lane.b32.xlu0 %v3784, 1
  %v4395 = vpop.permute.xlu0 %4394
  %4396 = vrot.lane.b32.xlu0 %v3785, 1
  %v4397 = vpop.permute.xlu0 %4396
  %4398 = vrot.lane.b32.xlu0 %v3787, 1
  %v4399 = vpop.permute.xlu0 %4398
  %4400 = vrot.lane.b32.xlu0 %v3788, 1
  %v4401 = vpop.permute.xlu0 %4400
  %4402 = vrot.lane.b32.xlu0 %v3789, 1
  %v4403 = vpop.permute.xlu0 %4402
  %4404 = vrot.lane.b32.xlu0 %v3790, 1
  %v4405 = vpop.permute.xlu0 %4404
  %4406 = vrot.lane.b32.xlu0 %v3792, 1
  %v4407 = vpop.permute.xlu0 %4406
  %4408 = vrot.lane.b32.xlu0 %v3793, 1
  %v4409 = vpop.permute.xlu0 %4408
  %4410 = vrot.lane.b32.xlu0 %v3794, 1
  %v4411 = vpop.permute.xlu0 %4410
  %4412 = vrot.lane.b32.xlu0 %v3795, 1
  %v4413 = vpop.permute.xlu0 %4412
  %4414 = vrot.lane.b32.xlu0 %v3797, 1
  %v4415 = vpop.permute.xlu0 %4414
  %4416 = vrot.lane.b32.xlu0 %v3798, 1
  %v4417 = vpop.permute.xlu0 %4416
  %4418 = vrot.lane.b32.xlu0 %v3799, 1
  %v4419 = vpop.permute.xlu0 %4418
  %4420 = vrot.lane.b32.xlu0 %v3800, 1
  %v4421 = vpop.permute.xlu0 %4420
  %4422 = vrot.lane.b32.xlu0 %v3802, 1
  %v4423 = vpop.permute.xlu0 %4422
  %4424 = vrot.lane.b32.xlu0 %v3803, 1
  %v4425 = vpop.permute.xlu0 %4424
  %4426 = vrot.lane.b32.xlu0 %v3804, 1
  %v4427 = vpop.permute.xlu0 %4426
  %4428 = vrot.lane.b32.xlu0 %v3805, 1
  %v4429 = vpop.permute.xlu0 %4428
  %4430 = vrot.lane.b32.xlu0 %v3807, 1
  %v4431 = vpop.permute.xlu0 %4430
  %4432 = vrot.lane.b32.xlu0 %v3808, 1
  %v4433 = vpop.permute.xlu0 %4432
  %4434 = vrot.lane.b32.xlu0 %v3809, 1
  %v4435 = vpop.permute.xlu0 %4434
  %4436 = vrot.lane.b32.xlu0 %v3810, 1
  %v4437 = vpop.permute.xlu0 %4436
  %4438 = vrot.lane.b32.xlu0 %v3812, 1
  %v4439 = vpop.permute.xlu0 %4438
  %4440 = vrot.lane.b32.xlu0 %v3813, 1
  %v4441 = vpop.permute.xlu0 %4440
  %4442 = vrot.lane.b32.xlu0 %v3814, 1
  %v4443 = vpop.permute.xlu0 %4442
  %4444 = vrot.lane.b32.xlu0 %v3815, 1
  %v4445 = vpop.permute.xlu0 %4444
  %4446 = vrot.lane.b32.xlu0 %v3817, 1
  %v4447 = vpop.permute.xlu0 %4446
  %4448 = vrot.lane.b32.xlu0 %v3818, 1
  %v4449 = vpop.permute.xlu0 %4448
  %4450 = vrot.lane.b32.xlu0 %v3819, 1
  %v4451 = vpop.permute.xlu0 %4450
  %4452 = vrot.lane.b32.xlu0 %v3820, 1
  %v4453 = vpop.permute.xlu0 %4452
  %v4454 = vsel %vm137, %v4391, %v4393
  %v4455 = vsel %vm137, %v4393, %v4395
  %v4456 = vsel %vm137, %v4395, %v4397
  %v4457 = vsel %vm137, %v4397, %v4367
  %v4458 = vsel %vm137, %v4399, %v4401
  %v4459 = vsel %vm137, %v4401, %v4403
  %v4460 = vsel %vm137, %v4403, %v4405
  %v4461 = vsel %vm137, %v4405, %v4369
  %v4462 = vsel %vm137, %v4407, %v4409
  %v4463 = vsel %vm137, %v4409, %v4411
  %v4464 = vsel %vm137, %v4411, %v4413
  %v4465 = vsel %vm137, %v4413, %v4371
  %v4466 = vsel %vm137, %v4415, %v4417
  %v4467 = vsel %vm137, %v4417, %v4419
  %v4468 = vsel %vm137, %v4419, %v4421
  %v4469 = vsel %vm137, %v4421, %v4373
  %v4470 = vsel %vm137, %v4423, %v4425
  %v4471 = vsel %vm137, %v4425, %v4427
  %v4472 = vsel %vm137, %v4427, %v4429
  %v4473 = vsel %vm137, %v4429, %v4375
  %v4474 = vsel %vm137, %v4431, %v4433
  %v4475 = vsel %vm137, %v4433, %v4435
  %v4476 = vsel %vm137, %v4435, %v4437
  %v4477 = vsel %vm137, %v4437, %v4377
  %v4478 = vsel %vm137, %v4439, %v4441
  %v4479 = vsel %vm137, %v4441, %v4443
  %v4480 = vsel %vm137, %v4443, %v4445
  %v4481 = vsel %vm137, %v4445, %v4379
  %v4482 = vsel %vm137, %v4447, %v4449
  %v4483 = vsel %vm137, %v4449, %v4451
  %v4484 = vsel %vm137, %v4451, %v4453
  %v4485 = vsel %vm137, %v4453, %v4381
  %v4526 = vsel %vm137, %v4367, %v4391
  %v4527 = vsel %vm137, %v4369, %v4399
  %v4528 = vsel %vm137, %v4371, %v4407
  %v4529 = vsel %vm137, %v4373, %v4415
  %v4530 = vsel %vm137, %v4375, %v4423
  %v4531 = vsel %vm137, %v4377, %v4431
  %v4532 = vsel %vm137, %v4379, %v4439
  %v4533 = vsel %vm137, %v4381, %v4447
  %4534 = vrot.lane.b32.xlu0 %v3782, 127
  %v4535 = vpop.permute.xlu0 %4534
  %4536 = vrot.lane.b32.xlu0 %v3783, 127
  %v4537 = vpop.permute.xlu0 %4536
  %4538 = vrot.lane.b32.xlu0 %v3784, 127
  %v4539 = vpop.permute.xlu0 %4538
  %4540 = vrot.lane.b32.xlu0 %v3785, 127
  %v4541 = vpop.permute.xlu0 %4540
  %4542 = vrot.lane.b32.xlu0 %v3786, 127
  %v4543 = vpop.permute.xlu0 %4542
  %4544 = vrot.lane.b32.xlu0 %v3787, 127
  %v4545 = vpop.permute.xlu0 %4544
  %4546 = vrot.lane.b32.xlu0 %v3788, 127
  %v4547 = vpop.permute.xlu0 %4546
  %4548 = vrot.lane.b32.xlu0 %v3789, 127
  %v4549 = vpop.permute.xlu0 %4548
  %4550 = vrot.lane.b32.xlu0 %v3790, 127
  %v4551 = vpop.permute.xlu0 %4550
  %4552 = vrot.lane.b32.xlu0 %v3791, 127
  %v4553 = vpop.permute.xlu0 %4552
  %4554 = vrot.lane.b32.xlu0 %v3792, 127
  %v4555 = vpop.permute.xlu0 %4554
  %4556 = vrot.lane.b32.xlu0 %v3793, 127
  %v4557 = vpop.permute.xlu0 %4556
  %4558 = vrot.lane.b32.xlu0 %v3794, 127
  %v4559 = vpop.permute.xlu0 %4558
  %4560 = vrot.lane.b32.xlu0 %v3795, 127
  %v4561 = vpop.permute.xlu0 %4560
  %4562 = vrot.lane.b32.xlu0 %v3796, 127
  %v4563 = vpop.permute.xlu0 %4562
  %4564 = vrot.lane.b32.xlu0 %v3797, 127
  %v4565 = vpop.permute.xlu0 %4564
  %4566 = vrot.lane.b32.xlu0 %v3798, 127
  %v4567 = vpop.permute.xlu0 %4566
  %4568 = vrot.lane.b32.xlu0 %v3799, 127
  %v4569 = vpop.permute.xlu0 %4568
  %4570 = vrot.lane.b32.xlu0 %v3800, 127
  %v4571 = vpop.permute.xlu0 %4570
  %4572 = vrot.lane.b32.xlu0 %v3801, 127
  %v4573 = vpop.permute.xlu0 %4572
  %4574 = vrot.lane.b32.xlu0 %v3802, 127
  %v4575 = vpop.permute.xlu0 %4574
  %4576 = vrot.lane.b32.xlu0 %v3803, 127
  %v4577 = vpop.permute.xlu0 %4576
  %4578 = vrot.lane.b32.xlu0 %v3804, 127
  %v4579 = vpop.permute.xlu0 %4578
  %4580 = vrot.lane.b32.xlu0 %v3805, 127
  %v4581 = vpop.permute.xlu0 %4580
  %4582 = vrot.lane.b32.xlu0 %v3806, 127
  %v4583 = vpop.permute.xlu0 %4582
  %4584 = vrot.lane.b32.xlu0 %v3807, 127
  %v4585 = vpop.permute.xlu0 %4584
  %4586 = vrot.lane.b32.xlu0 %v3808, 127
  %v4587 = vpop.permute.xlu0 %4586
  %4588 = vrot.lane.b32.xlu0 %v3809, 127
  %v4589 = vpop.permute.xlu0 %4588
  %4590 = vrot.lane.b32.xlu0 %v3810, 127
  %v4591 = vpop.permute.xlu0 %4590
  %4592 = vrot.lane.b32.xlu0 %v3811, 127
  %v4593 = vpop.permute.xlu0 %4592
  %4594 = vrot.lane.b32.xlu0 %v3812, 127
  %v4595 = vpop.permute.xlu0 %4594
  %4596 = vrot.lane.b32.xlu0 %v3813, 127
  %v4597 = vpop.permute.xlu0 %4596
  %4598 = vrot.lane.b32.xlu0 %v3814, 127
  %v4599 = vpop.permute.xlu0 %4598
  %4600 = vrot.lane.b32.xlu0 %v3815, 127
  %v4601 = vpop.permute.xlu0 %4600
  %4602 = vrot.lane.b32.xlu0 %v3816, 127
  %v4603 = vpop.permute.xlu0 %4602
  %4604 = vrot.lane.b32.xlu0 %v3817, 127
  %v4605 = vpop.permute.xlu0 %4604
  %4606 = vrot.lane.b32.xlu0 %v3818, 127
  %v4607 = vpop.permute.xlu0 %4606
  %4608 = vrot.lane.b32.xlu0 %v3819, 127
  %v4609 = vpop.permute.xlu0 %4608
  %4610 = vrot.lane.b32.xlu0 %v3820, 127
  %v4611 = vpop.permute.xlu0 %4610
  %4612 = vrot.lane.b32.xlu0 %v3821, 127
  %v4613 = vpop.permute.xlu0 %4612
  %v4614 = vsel %vm158, %v4535, %v4537
  %v4615 = vsel %vm158, %v4537, %v4539
  %v4616 = vsel %vm158, %v4539, %v4541
  %v4617 = vsel %vm158, %v4541, %v4543
  %v4618 = vsel %vm158, %v4545, %v4547
  %v4619 = vsel %vm158, %v4547, %v4549
  %v4620 = vsel %vm158, %v4549, %v4551
  %v4621 = vsel %vm158, %v4551, %v4553
  %v4622 = vsel %vm158, %v4555, %v4557
  %v4623 = vsel %vm158, %v4557, %v4559
  %v4624 = vsel %vm158, %v4559, %v4561
  %v4625 = vsel %vm158, %v4561, %v4563
  %v4626 = vsel %vm158, %v4565, %v4567
  %v4627 = vsel %vm158, %v4567, %v4569
  %v4628 = vsel %vm158, %v4569, %v4571
  %v4629 = vsel %vm158, %v4571, %v4573
  %v4630 = vsel %vm158, %v4575, %v4577
  %v4631 = vsel %vm158, %v4577, %v4579
  %v4632 = vsel %vm158, %v4579, %v4581
  %v4633 = vsel %vm158, %v4581, %v4583
  %v4634 = vsel %vm158, %v4585, %v4587
  %v4635 = vsel %vm158, %v4587, %v4589
  %v4636 = vsel %vm158, %v4589, %v4591
  %v4637 = vsel %vm158, %v4591, %v4593
  %v4638 = vsel %vm158, %v4595, %v4597
  %v4639 = vsel %vm158, %v4597, %v4599
  %v4640 = vsel %vm158, %v4599, %v4601
  %v4641 = vsel %vm158, %v4601, %v4603
  %v4642 = vsel %vm158, %v4605, %v4607
  %v4643 = vsel %vm158, %v4607, %v4609
  %v4644 = vsel %vm158, %v4609, %v4611
  %v4645 = vsel %vm158, %v4611, %v4613
  %v4694 = vsel %vm158, %v4543, %v4535
  %v4695 = vsel %vm158, %v4553, %v4545
  %v4696 = vsel %vm158, %v4563, %v4555
  %v4697 = vsel %vm158, %v4573, %v4565
  %v4698 = vsel %vm158, %v4583, %v4575
  %v4699 = vsel %vm158, %v4593, %v4585
  %v4700 = vsel %vm158, %v4603, %v4595
  %v4701 = vsel %vm158, %v4613, %v4605
  %4702 = vrot.lane.b32.xlu0 %v3782, 112
  %v4703 = vpop.permute.xlu0 %4702
  %4704 = vrot.lane.b32.xlu0 %v3783, 112
  %v4705 = vpop.permute.xlu0 %4704
  %4706 = vrot.lane.b32.xlu0 %v3784, 112
  %v4707 = vpop.permute.xlu0 %4706
  %4708 = vrot.lane.b32.xlu0 %v3785, 112
  %v4709 = vpop.permute.xlu0 %4708
  %4710 = vrot.lane.b32.xlu0 %v3786, 112
  %v4711 = vpop.permute.xlu0 %4710
  %4712 = vrot.lane.b32.xlu0 %v3787, 112
  %v4713 = vpop.permute.xlu0 %4712
  %4714 = vrot.lane.b32.xlu0 %v3788, 112
  %v4715 = vpop.permute.xlu0 %4714
  %4716 = vrot.lane.b32.xlu0 %v3789, 112
  %v4717 = vpop.permute.xlu0 %4716
  %4718 = vrot.lane.b32.xlu0 %v3790, 112
  %v4719 = vpop.permute.xlu0 %4718
  %4720 = vrot.lane.b32.xlu0 %v3791, 112
  %v4721 = vpop.permute.xlu0 %4720
  %4722 = vrot.lane.b32.xlu0 %v3792, 112
  %v4723 = vpop.permute.xlu0 %4722
  %4724 = vrot.lane.b32.xlu0 %v3793, 112
  %v4725 = vpop.permute.xlu0 %4724
  %4726 = vrot.lane.b32.xlu0 %v3794, 112
  %v4727 = vpop.permute.xlu0 %4726
  %4728 = vrot.lane.b32.xlu0 %v3795, 112
  %v4729 = vpop.permute.xlu0 %4728
  %4730 = vrot.lane.b32.xlu0 %v3796, 112
  %v4731 = vpop.permute.xlu0 %4730
  %4732 = vrot.lane.b32.xlu0 %v3797, 112
  %v4733 = vpop.permute.xlu0 %4732
  %4734 = vrot.lane.b32.xlu0 %v3798, 112
  %v4735 = vpop.permute.xlu0 %4734
  %4736 = vrot.lane.b32.xlu0 %v3799, 112
  %v4737 = vpop.permute.xlu0 %4736
  %4738 = vrot.lane.b32.xlu0 %v3800, 112
  %v4739 = vpop.permute.xlu0 %4738
  %4740 = vrot.lane.b32.xlu0 %v3801, 112
  %v4741 = vpop.permute.xlu0 %4740
  %4742 = vrot.lane.b32.xlu0 %v3802, 112
  %v4743 = vpop.permute.xlu0 %4742
  %4744 = vrot.lane.b32.xlu0 %v3803, 112
  %v4745 = vpop.permute.xlu0 %4744
  %4746 = vrot.lane.b32.xlu0 %v3804, 112
  %v4747 = vpop.permute.xlu0 %4746
  %4748 = vrot.lane.b32.xlu0 %v3805, 112
  %v4749 = vpop.permute.xlu0 %4748
  %4750 = vrot.lane.b32.xlu0 %v3806, 112
  %v4751 = vpop.permute.xlu0 %4750
  %4752 = vrot.lane.b32.xlu0 %v3807, 112
  %v4753 = vpop.permute.xlu0 %4752
  %4754 = vrot.lane.b32.xlu0 %v3808, 112
  %v4755 = vpop.permute.xlu0 %4754
  %4756 = vrot.lane.b32.xlu0 %v3809, 112
  %v4757 = vpop.permute.xlu0 %4756
  %4758 = vrot.lane.b32.xlu0 %v3810, 112
  %v4759 = vpop.permute.xlu0 %4758
  %4760 = vrot.lane.b32.xlu0 %v3811, 112
  %v4761 = vpop.permute.xlu0 %4760
  %4762 = vrot.lane.b32.xlu0 %v3812, 112
  %v4763 = vpop.permute.xlu0 %4762
  %4764 = vrot.lane.b32.xlu0 %v3813, 112
  %v4765 = vpop.permute.xlu0 %4764
  %4766 = vrot.lane.b32.xlu0 %v3814, 112
  %v4767 = vpop.permute.xlu0 %4766
  %4768 = vrot.lane.b32.xlu0 %v3815, 112
  %v4769 = vpop.permute.xlu0 %4768
  %4770 = vrot.lane.b32.xlu0 %v3816, 112
  %v4771 = vpop.permute.xlu0 %4770
  %4772 = vrot.lane.b32.xlu0 %v3817, 112
  %v4773 = vpop.permute.xlu0 %4772
  %4774 = vrot.lane.b32.xlu0 %v3818, 112
  %v4775 = vpop.permute.xlu0 %4774
  %4776 = vrot.lane.b32.xlu0 %v3819, 112
  %v4777 = vpop.permute.xlu0 %4776
  %4778 = vrot.lane.b32.xlu0 %v3820, 112
  %v4779 = vpop.permute.xlu0 %4778
  %4780 = vrot.lane.b32.xlu0 %v3821, 112
  %v4781 = vpop.permute.xlu0 %4780
  %v4782 = vsel %vm180, %v4703, %v4705
  %v4783 = vsel %vm180, %v4705, %v4707
  %v4784 = vsel %vm180, %v4707, %v4709
  %v4785 = vsel %vm180, %v4709, %v4711
  %v4786 = vsel %vm180, %v4713, %v4715
  %v4787 = vsel %vm180, %v4715, %v4717
  %v4788 = vsel %vm180, %v4717, %v4719
  %v4789 = vsel %vm180, %v4719, %v4721
  %v4790 = vsel %vm180, %v4723, %v4725
  %v4791 = vsel %vm180, %v4725, %v4727
  %v4792 = vsel %vm180, %v4727, %v4729
  %v4793 = vsel %vm180, %v4729, %v4731
  %v4794 = vsel %vm180, %v4733, %v4735
  %v4795 = vsel %vm180, %v4735, %v4737
  %v4796 = vsel %vm180, %v4737, %v4739
  %v4797 = vsel %vm180, %v4739, %v4741
  %v4798 = vsel %vm180, %v4743, %v4745
  %v4799 = vsel %vm180, %v4745, %v4747
  %v4800 = vsel %vm180, %v4747, %v4749
  %v4801 = vsel %vm180, %v4749, %v4751
  %v4802 = vsel %vm180, %v4753, %v4755
  %v4803 = vsel %vm180, %v4755, %v4757
  %v4804 = vsel %vm180, %v4757, %v4759
  %v4805 = vsel %vm180, %v4759, %v4761
  %v4806 = vsel %vm180, %v4763, %v4765
  %v4807 = vsel %vm180, %v4765, %v4767
  %v4808 = vsel %vm180, %v4767, %v4769
  %v4809 = vsel %vm180, %v4769, %v4771
  %v4810 = vsel %vm180, %v4773, %v4775
  %v4811 = vsel %vm180, %v4775, %v4777
  %v4812 = vsel %vm180, %v4777, %v4779
  %v4813 = vsel %vm180, %v4779, %v4781
  %v4862 = vsel %vm180, %v4711, %v4703
  %v4863 = vsel %vm180, %v4721, %v4713
  %v4864 = vsel %vm180, %v4731, %v4723
  %v4865 = vsel %vm180, %v4741, %v4733
  %v4866 = vsel %vm180, %v4751, %v4743
  %v4867 = vsel %vm180, %v4761, %v4753
  %v4868 = vsel %vm180, %v4771, %v4763
  %v4869 = vsel %vm180, %v4781, %v4773
  %4870 = vrot.lane.b32.xlu0 %v3782, 111
  %v4871 = vpop.permute.xlu0 %4870
  %4872 = vrot.lane.b32.xlu0 %v3783, 111
  %v4873 = vpop.permute.xlu0 %4872
  %4874 = vrot.lane.b32.xlu0 %v3784, 111
  %v4875 = vpop.permute.xlu0 %4874
  %4876 = vrot.lane.b32.xlu0 %v3785, 111
  %v4877 = vpop.permute.xlu0 %4876
  %4878 = vrot.lane.b32.xlu0 %v3786, 111
  %v4879 = vpop.permute.xlu0 %4878
  %4880 = vrot.lane.b32.xlu0 %v3787, 111
  %v4881 = vpop.permute.xlu0 %4880
  %4882 = vrot.lane.b32.xlu0 %v3788, 111
  %v4883 = vpop.permute.xlu0 %4882
  %4884 = vrot.lane.b32.xlu0 %v3789, 111
  %v4885 = vpop.permute.xlu0 %4884
  %4886 = vrot.lane.b32.xlu0 %v3790, 111
  %v4887 = vpop.permute.xlu0 %4886
  %4888 = vrot.lane.b32.xlu0 %v3791, 111
  %v4889 = vpop.permute.xlu0 %4888
  %4890 = vrot.lane.b32.xlu0 %v3792, 111
  %v4891 = vpop.permute.xlu0 %4890
  %4892 = vrot.lane.b32.xlu0 %v3793, 111
  %v4893 = vpop.permute.xlu0 %4892
  %4894 = vrot.lane.b32.xlu0 %v3794, 111
  %v4895 = vpop.permute.xlu0 %4894
  %4896 = vrot.lane.b32.xlu0 %v3795, 111
  %v4897 = vpop.permute.xlu0 %4896
  %4898 = vrot.lane.b32.xlu0 %v3796, 111
  %v4899 = vpop.permute.xlu0 %4898
  %4900 = vrot.lane.b32.xlu0 %v3797, 111
  %v4901 = vpop.permute.xlu0 %4900
  %4902 = vrot.lane.b32.xlu0 %v3798, 111
  %v4903 = vpop.permute.xlu0 %4902
  %4904 = vrot.lane.b32.xlu0 %v3799, 111
  %v4905 = vpop.permute.xlu0 %4904
  %4906 = vrot.lane.b32.xlu0 %v3800, 111
  %v4907 = vpop.permute.xlu0 %4906
  %4908 = vrot.lane.b32.xlu0 %v3801, 111
  %v4909 = vpop.permute.xlu0 %4908
  %4910 = vrot.lane.b32.xlu0 %v3802, 111
  %v4911 = vpop.permute.xlu0 %4910
  %4912 = vrot.lane.b32.xlu0 %v3803, 111
  %v4913 = vpop.permute.xlu0 %4912
  %4914 = vrot.lane.b32.xlu0 %v3804, 111
  %v4915 = vpop.permute.xlu0 %4914
  %4916 = vrot.lane.b32.xlu0 %v3805, 111
  %v4917 = vpop.permute.xlu0 %4916
  %4918 = vrot.lane.b32.xlu0 %v3806, 111
  %v4919 = vpop.permute.xlu0 %4918
  %4920 = vrot.lane.b32.xlu0 %v3807, 111
  %v4921 = vpop.permute.xlu0 %4920
  %4922 = vrot.lane.b32.xlu0 %v3808, 111
  %v4923 = vpop.permute.xlu0 %4922
  %4924 = vrot.lane.b32.xlu0 %v3809, 111
  %v4925 = vpop.permute.xlu0 %4924
  %4926 = vrot.lane.b32.xlu0 %v3810, 111
  %v4927 = vpop.permute.xlu0 %4926
  %4928 = vrot.lane.b32.xlu0 %v3811, 111
  %v4929 = vpop.permute.xlu0 %4928
  %4930 = vrot.lane.b32.xlu0 %v3812, 111
  %v4931 = vpop.permute.xlu0 %4930
  %4932 = vrot.lane.b32.xlu0 %v3813, 111
  %v4933 = vpop.permute.xlu0 %4932
  %4934 = vrot.lane.b32.xlu0 %v3814, 111
  %v4935 = vpop.permute.xlu0 %4934
  %4936 = vrot.lane.b32.xlu0 %v3815, 111
  %v4937 = vpop.permute.xlu0 %4936
  %4938 = vrot.lane.b32.xlu0 %v3816, 111
  %v4939 = vpop.permute.xlu0 %4938
  %4940 = vrot.lane.b32.xlu0 %v3817, 111
  %v4941 = vpop.permute.xlu0 %4940
  %4942 = vrot.lane.b32.xlu0 %v3818, 111
  %v4943 = vpop.permute.xlu0 %4942
  %4944 = vrot.lane.b32.xlu0 %v3819, 111
  %v4945 = vpop.permute.xlu0 %4944
  %4946 = vrot.lane.b32.xlu0 %v3820, 111
  %v4947 = vpop.permute.xlu0 %4946
  %4948 = vrot.lane.b32.xlu0 %v3821, 111
  %v4949 = vpop.permute.xlu0 %4948
  %v4950 = vsel %vm202, %v4871, %v4873
  %v4951 = vsel %vm202, %v4873, %v4875
  %v4952 = vsel %vm202, %v4875, %v4877
  %v4953 = vsel %vm202, %v4877, %v4879
  %v4954 = vsel %vm202, %v4881, %v4883
  %v4955 = vsel %vm202, %v4883, %v4885
  %v4956 = vsel %vm202, %v4885, %v4887
  %v4957 = vsel %vm202, %v4887, %v4889
  %v4958 = vsel %vm202, %v4891, %v4893
  %v4959 = vsel %vm202, %v4893, %v4895
  %v4960 = vsel %vm202, %v4895, %v4897
  %v4961 = vsel %vm202, %v4897, %v4899
  %v4962 = vsel %vm202, %v4901, %v4903
  %v4963 = vsel %vm202, %v4903, %v4905
  %v4964 = vsel %vm202, %v4905, %v4907
  %v4965 = vsel %vm202, %v4907, %v4909
  %v4966 = vsel %vm202, %v4911, %v4913
  %v4967 = vsel %vm202, %v4913, %v4915
  %v4968 = vsel %vm202, %v4915, %v4917
  %v4969 = vsel %vm202, %v4917, %v4919
  %v4970 = vsel %vm202, %v4921, %v4923
  %v4971 = vsel %vm202, %v4923, %v4925
  %v4972 = vsel %vm202, %v4925, %v4927
  %v4973 = vsel %vm202, %v4927, %v4929
  %v4974 = vsel %vm202, %v4931, %v4933
  %v4975 = vsel %vm202, %v4933, %v4935
  %v4976 = vsel %vm202, %v4935, %v4937
  %v4977 = vsel %vm202, %v4937, %v4939
  %v4978 = vsel %vm202, %v4941, %v4943
  %v4979 = vsel %vm202, %v4943, %v4945
  %v4980 = vsel %vm202, %v4945, %v4947
  %v4981 = vsel %vm202, %v4947, %v4949
  %v5030 = vsel %vm202, %v4879, %v4871
  %v5031 = vsel %vm202, %v4889, %v4881
  %v5032 = vsel %vm202, %v4899, %v4891
  %v5033 = vsel %vm202, %v4909, %v4901
  %v5034 = vsel %vm202, %v4919, %v4911
  %v5035 = vsel %vm202, %v4929, %v4921
  %v5036 = vsel %vm202, %v4939, %v4931
  %v5037 = vsel %vm202, %v4949, %v4941
  %5038 = vrot.lane.b32.xlu0 %v3782, 110
  %v5039 = vpop.permute.xlu0 %5038
  %5040 = vrot.lane.b32.xlu0 %v3783, 110
  %v5041 = vpop.permute.xlu0 %5040
  %5042 = vrot.lane.b32.xlu0 %v3784, 110
  %v5043 = vpop.permute.xlu0 %5042
  %5044 = vrot.lane.b32.xlu0 %v3785, 110
  %v5045 = vpop.permute.xlu0 %5044
  %5046 = vrot.lane.b32.xlu0 %v3786, 110
  %v5047 = vpop.permute.xlu0 %5046
  %5048 = vrot.lane.b32.xlu0 %v3787, 110
  %v5049 = vpop.permute.xlu0 %5048
  %5050 = vrot.lane.b32.xlu0 %v3788, 110
  %v5051 = vpop.permute.xlu0 %5050
  %5052 = vrot.lane.b32.xlu0 %v3789, 110
  %v5053 = vpop.permute.xlu0 %5052
  %5054 = vrot.lane.b32.xlu0 %v3790, 110
  %v5055 = vpop.permute.xlu0 %5054
  %5056 = vrot.lane.b32.xlu0 %v3791, 110
  %v5057 = vpop.permute.xlu0 %5056
  %5058 = vrot.lane.b32.xlu0 %v3792, 110
  %v5059 = vpop.permute.xlu0 %5058
  %5060 = vrot.lane.b32.xlu0 %v3793, 110
  %v5061 = vpop.permute.xlu0 %5060
  %5062 = vrot.lane.b32.xlu0 %v3794, 110
  %v5063 = vpop.permute.xlu0 %5062
  %5064 = vrot.lane.b32.xlu0 %v3795, 110
  %v5065 = vpop.permute.xlu0 %5064
  %5066 = vrot.lane.b32.xlu0 %v3796, 110
  %v5067 = vpop.permute.xlu0 %5066
  %5068 = vrot.lane.b32.xlu0 %v3797, 110
  %v5069 = vpop.permute.xlu0 %5068
  %5070 = vrot.lane.b32.xlu0 %v3798, 110
  %v5071 = vpop.permute.xlu0 %5070
  %5072 = vrot.lane.b32.xlu0 %v3799, 110
  %v5073 = vpop.permute.xlu0 %5072
  %5074 = vrot.lane.b32.xlu0 %v3800, 110
  %v5075 = vpop.permute.xlu0 %5074
  %5076 = vrot.lane.b32.xlu0 %v3801, 110
  %v5077 = vpop.permute.xlu0 %5076
  %5078 = vrot.lane.b32.xlu0 %v3802, 110
  %v5079 = vpop.permute.xlu0 %5078
  %5080 = vrot.lane.b32.xlu0 %v3803, 110
  %v5081 = vpop.permute.xlu0 %5080
  %5082 = vrot.lane.b32.xlu0 %v3804, 110
  %v5083 = vpop.permute.xlu0 %5082
  %5084 = vrot.lane.b32.xlu0 %v3805, 110
  %v5085 = vpop.permute.xlu0 %5084
  %5086 = vrot.lane.b32.xlu0 %v3806, 110
  %v5087 = vpop.permute.xlu0 %5086
  %5088 = vrot.lane.b32.xlu0 %v3807, 110
  %v5089 = vpop.permute.xlu0 %5088
  %5090 = vrot.lane.b32.xlu0 %v3808, 110
  %v5091 = vpop.permute.xlu0 %5090
  %5092 = vrot.lane.b32.xlu0 %v3809, 110
  %v5093 = vpop.permute.xlu0 %5092
  %5094 = vrot.lane.b32.xlu0 %v3810, 110
  %v5095 = vpop.permute.xlu0 %5094
  %5096 = vrot.lane.b32.xlu0 %v3811, 110
  %v5097 = vpop.permute.xlu0 %5096
  %5098 = vrot.lane.b32.xlu0 %v3812, 110
  %v5099 = vpop.permute.xlu0 %5098
  %5100 = vrot.lane.b32.xlu0 %v3813, 110
  %v5101 = vpop.permute.xlu0 %5100
  %5102 = vrot.lane.b32.xlu0 %v3814, 110
  %v5103 = vpop.permute.xlu0 %5102
  %5104 = vrot.lane.b32.xlu0 %v3815, 110
  %v5105 = vpop.permute.xlu0 %5104
  %5106 = vrot.lane.b32.xlu0 %v3816, 110
  %v5107 = vpop.permute.xlu0 %5106
  %5108 = vrot.lane.b32.xlu0 %v3817, 110
  %v5109 = vpop.permute.xlu0 %5108
  %5110 = vrot.lane.b32.xlu0 %v3818, 110
  %v5111 = vpop.permute.xlu0 %5110
  %5112 = vrot.lane.b32.xlu0 %v3819, 110
  %v5113 = vpop.permute.xlu0 %5112
  %5114 = vrot.lane.b32.xlu0 %v3820, 110
  %v5115 = vpop.permute.xlu0 %5114
  %5116 = vrot.lane.b32.xlu0 %v3821, 110
  %v5117 = vpop.permute.xlu0 %5116
  %v5118 = vsel %vm224, %v5039, %v5041
  %v5119 = vsel %vm224, %v5041, %v5043
  %v5120 = vsel %vm224, %v5043, %v5045
  %v5121 = vsel %vm224, %v5045, %v5047
  %v5122 = vsel %vm224, %v5049, %v5051
  %v5123 = vsel %vm224, %v5051, %v5053
  %v5124 = vsel %vm224, %v5053, %v5055
  %v5125 = vsel %vm224, %v5055, %v5057
  %v5126 = vsel %vm224, %v5059, %v5061
  %v5127 = vsel %vm224, %v5061, %v5063
  %v5128 = vsel %vm224, %v5063, %v5065
  %v5129 = vsel %vm224, %v5065, %v5067
  %v5130 = vsel %vm224, %v5069, %v5071
  %v5131 = vsel %vm224, %v5071, %v5073
  %v5132 = vsel %vm224, %v5073, %v5075
  %v5133 = vsel %vm224, %v5075, %v5077
  %v5134 = vsel %vm224, %v5079, %v5081
  %v5135 = vsel %vm224, %v5081, %v5083
  %v5136 = vsel %vm224, %v5083, %v5085
  %v5137 = vsel %vm224, %v5085, %v5087
  %v5138 = vsel %vm224, %v5089, %v5091
  %v5139 = vsel %vm224, %v5091, %v5093
  %v5140 = vsel %vm224, %v5093, %v5095
  %v5141 = vsel %vm224, %v5095, %v5097
  %v5142 = vsel %vm224, %v5099, %v5101
  %v5143 = vsel %vm224, %v5101, %v5103
  %v5144 = vsel %vm224, %v5103, %v5105
  %v5145 = vsel %vm224, %v5105, %v5107
  %v5146 = vsel %vm224, %v5109, %v5111
  %v5147 = vsel %vm224, %v5111, %v5113
  %v5148 = vsel %vm224, %v5113, %v5115
  %v5149 = vsel %vm224, %v5115, %v5117
  %v5198 = vsel %vm224, %v5047, %v5039
  %v5199 = vsel %vm224, %v5057, %v5049
  %v5200 = vsel %vm224, %v5067, %v5059
  %v5201 = vsel %vm224, %v5077, %v5069
  %v5202 = vsel %vm224, %v5087, %v5079
  %v5203 = vsel %vm224, %v5097, %v5089
  %v5204 = vsel %vm224, %v5107, %v5099
  %v5205 = vsel %vm224, %v5117, %v5109
  %v5206 = vld [vmem:[%s10] sm:$0xff]
  %v5207 = vld [vmem:[%s10 + $0x8] sm:$0xff]
  %v5208 = vld [vmem:[%s10 + $0x10] sm:$0xff]
  %v5209 = vld [vmem:[%s10 + $0x18] sm:$0xff]
  %v5210 = vld [vmem:[%s10 + $0x20] sm:$0xff]
  %v5211 = vld [vmem:[%s10 + $0x28] sm:$0xff]
  %v5212 = vld [vmem:[%s10 + $0x30] sm:$0xff]
  %v5213 = vld [vmem:[%s10 + $0x38] sm:$0xff]
  %v5214 = vld [vmem:[%s10 + $0x40] sm:$0xff]
  %v5215 = vld [vmem:[%s10 + $0x48] sm:$0xff]
  %v5216 = vld [vmem:[%s10 + $0x50] sm:$0xff]
  %v5217 = vld [vmem:[%s10 + $0x58] sm:$0xff]
  %v5218 = vld [vmem:[%s10 + $0x60] sm:$0xff]
  %v5219 = vld [vmem:[%s10 + $0x68] sm:$0xff]
  %v5220 = vld [vmem:[%s10 + $0x70] sm:$0xff]
  %v5221 = vld [vmem:[%s10 + $0x78] sm:$0xff]
  %v5222 = vld [vmem:[%s10 + $0x80] sm:$0xff]
  %v5223 = vld [vmem:[%s10 + $0x88] sm:$0xff]
  %v5224 = vld [vmem:[%s10 + $0x90] sm:$0xff]
  %v5225 = vld [vmem:[%s10 + $0x98] sm:$0xff]
  %v5226 = vld [vmem:[%s10 + $0xa0] sm:$0xff]
  %v5227 = vld [vmem:[%s10 + $0xa8] sm:$0xff]
  %v5228 = vld [vmem:[%s10 + $0xb0] sm:$0xff]
  %v5229 = vld [vmem:[%s10 + $0xb8] sm:$0xff]
  %v5230 = vld [vmem:[%s10 + $0xc0] sm:$0xff]
  %v5231 = vld [vmem:[%s10 + $0xc8] sm:$0xff]
  %v5232 = vld [vmem:[%s10 + $0xd0] sm:$0xff]
  %v5233 = vld [vmem:[%s10 + $0xd8] sm:$0xff]
  %v5234 = vld [vmem:[%s10 + $0xe0] sm:$0xff]
  %v5235 = vld [vmem:[%s10 + $0xe8] sm:$0xff]
  %v5236 = vld [vmem:[%s10 + $0xf0] sm:$0xff]
  %v5237 = vld [vmem:[%s10 + $0xf8] sm:$0xff]
  %v5238 = vld [vmem:[%s10 + $0x100] sm:$0xff]
  %v5239 = vld [vmem:[%s10 + $0x108] sm:$0xff]
  %v5240 = vld [vmem:[%s10 + $0x110] sm:$0xff]
  %v5241 = vld [vmem:[%s10 + $0x118] sm:$0xff]
  %v5242 = vld [vmem:[%s10 + $0x120] sm:$0xff]
  %v5243 = vld [vmem:[%s10 + $0x128] sm:$0xff]
  %v5244 = vld [vmem:[%s10 + $0x130] sm:$0xff]
  %v5245 = vld [vmem:[%s10 + $0x138] sm:$0xff]
  %v5246 = vld [vmem:[%s11] sm:$0xff]
  %v5247 = vld [vmem:[%s11 + $0x8] sm:$0xff]
  %v5248 = vld [vmem:[%s11 + $0x10] sm:$0xff]
  %v5249 = vld [vmem:[%s11 + $0x18] sm:$0xff]
  %v5250 = vld [vmem:[%s11 + $0x20] sm:$0xff]
  %v5251 = vld [vmem:[%s11 + $0x28] sm:$0xff]
  %v5252 = vld [vmem:[%s11 + $0x30] sm:$0xff]
  %v5253 = vld [vmem:[%s11 + $0x38] sm:$0xff]
  %5255 = vset.pattern.permute.xlu0 0
  %5256 = vperm.xlu0 %5255, %v5246
  %v5257 = vpop.permute.xlu0 %5256
  %5260 = vset.pattern.permute.xlu0 0
  %5261 = vperm.xlu0 %5260, %v5247
  %v5262 = vpop.permute.xlu0 %5261
  %5265 = vset.pattern.permute.xlu0 0
  %5266 = vperm.xlu0 %5265, %v5248
  %v5267 = vpop.permute.xlu0 %5266
  %5270 = vset.pattern.permute.xlu0 0
  %5271 = vperm.xlu0 %5270, %v5249
  %v5272 = vpop.permute.xlu0 %5271
  %5275 = vset.pattern.permute.xlu0 0
  %5276 = vperm.xlu0 %5275, %v5250
  %v5277 = vpop.permute.xlu0 %5276
  %5280 = vset.pattern.permute.xlu0 0
  %5281 = vperm.xlu0 %5280, %v5251
  %v5282 = vpop.permute.xlu0 %5281
  %5285 = vset.pattern.permute.xlu0 0
  %5286 = vperm.xlu0 %5285, %v5252
  %v5287 = vpop.permute.xlu0 %5286
  %5290 = vset.pattern.permute.xlu0 0
  %5291 = vperm.xlu0 %5290, %v5253
  %v5292 = vpop.permute.xlu0 %5291
  %vm5294 = vcmask 523264
  %v5296 = vsel %vm5294, %v5210, 0
  %v5299 = vsel %vm5294, %v5215, 0
  %v5302 = vsel %vm5294, %v5220, 0
  %v5305 = vsel %vm5294, %v5225, 0
  %v5308 = vsel %vm5294, %v5230, 0
  %v5311 = vsel %vm5294, %v5235, 0
  %v5314 = vsel %vm5294, %v5240, 0
  %v5317 = vsel %vm5294, %v5245, 0
  %5319 = vmatpush.msra.mxu0 %v4197
  %5320 = vmatpush.msra.mxu0 %v4196
  %5321 = vmatpush.msra.mxu0 %v4195
  %5322 = vmatpush.msra.mxu0 %v4194
  %5323 = vmatpush.msra.mxu0 %v4193
  %5324 = vmatpush.msra.mxu0 %v4192
  %5325 = vmatpush.msra.mxu0 %v4191
  %5326 = vmatpush.msra.mxu0 %v4190
  %5327 = vmatpush.msra.mxu0 %v4029
  %5328 = vmatpush.msra.mxu0 %v4028
  %5329 = vmatpush.msra.mxu0 %v4027
  %5330 = vmatpush.msra.mxu0 %v4026
  %5331 = vmatpush.msra.mxu0 %v4025
  %5332 = vmatpush.msra.mxu0 %v4024
  %5333 = vmatpush.msra.mxu0 %v4023
  %5334 = vmatpush.msra.mxu0 %v4022
  %5335 = vmatmul.f32.gmra.mxu0 %v5206
  %v5336 = vpop.f32.mrf.mxu0
  %v5337 = vadd.f32 %v5257, %v5336
  %5338 = vmatmul.f32.gmra.mxu0 %v5211
  %v5339 = vpop.f32.mrf.mxu0
  %v5340 = vadd.f32 %v5262, %v5339
  %5341 = vmatmul.f32.gmra.mxu0 %v5216
  %v5342 = vpop.f32.mrf.mxu0
  %v5343 = vadd.f32 %v5267, %v5342
  %5344 = vmatmul.f32.gmra.mxu0 %v5221
  %v5345 = vpop.f32.mrf.mxu0
  %v5346 = vadd.f32 %v5272, %v5345
  %5347 = vmatmul.f32.gmra.mxu0 %v5226
  %v5348 = vpop.f32.mrf.mxu0
  %v5349 = vadd.f32 %v5277, %v5348
  %5350 = vmatmul.f32.gmra.mxu0 %v5231
  %v5351 = vpop.f32.mrf.mxu0
  %v5352 = vadd.f32 %v5282, %v5351
  %5353 = vmatmul.f32.gmra.mxu0 %v5236
  %v5354 = vpop.f32.mrf.mxu0
  %v5355 = vadd.f32 %v5287, %v5354
  %5356 = vmatmul.f32.gmra.mxu0 %v5241
  %v5357 = vpop.f32.mrf.mxu0
  %v5358 = vadd.f32 %v5292, %v5357
  %5359 = vdwg.mxu0
  %5360 = vmatpush.msra.mxu0 %v4533
  %5361 = vmatpush.msra.mxu0 %v4532
  %5362 = vmatpush.msra.mxu0 %v4531
  %5363 = vmatpush.msra.mxu0 %v4530
  %5364 = vmatpush.msra.mxu0 %v4529
  %5365 = vmatpush.msra.mxu0 %v4528
  %5366 = vmatpush.msra.mxu0 %v4527
  %5367 = vmatpush.msra.mxu0 %v4526
  %5368 = vmatpush.msra.mxu0 %v4365
  %5369 = vmatpush.msra.mxu0 %v4364
  %5370 = vmatpush.msra.mxu0 %v4363
  %5371 = vmatpush.msra.mxu0 %v4362
  %5372 = vmatpush.msra.mxu0 %v4361
  %5373 = vmatpush.msra.mxu0 %v4360
  %5374 = vmatpush.msra.mxu0 %v4359
  %5375 = vmatpush.msra.mxu0 %v4358
  %5376 = vmatmul.f32.gmra.mxu0 %v5207
  %v5377 = vpop.f32.mrf.mxu0
  %v5378 = vadd.f32 %v5337, %v5377
  %5379 = vmatmul.f32.gmra.mxu0 %v5212
  %v5380 = vpop.f32.mrf.mxu0
  %v5381 = vadd.f32 %v5340, %v5380
  %5382 = vmatmul.f32.gmra.mxu0 %v5217
  %v5383 = vpop.f32.mrf.mxu0
  %v5384 = vadd.f32 %v5343, %v5383
  %5385 = vmatmul.f32.gmra.mxu0 %v5222
  %v5386 = vpop.f32.mrf.mxu0
  %v5387 = vadd.f32 %v5346, %v5386
  %5388 = vmatmul.f32.gmra.mxu0 %v5227
  %v5389 = vpop.f32.mrf.mxu0
  %v5390 = vadd.f32 %v5349, %v5389
  %5391 = vmatmul.f32.gmra.mxu0 %v5232
  %v5392 = vpop.f32.mrf.mxu0
  %v5393 = vadd.f32 %v5352, %v5392
  %5394 = vmatmul.f32.gmra.mxu0 %v5237
  %v5395 = vpop.f32.mrf.mxu0
  %v5396 = vadd.f32 %v5355, %v5395
  %5397 = vmatmul.f32.gmra.mxu0 %v5242
  %v5398 = vpop.f32.mrf.mxu0
  %v5399 = vadd.f32 %v5358, %v5398
  %5400 = vdwg.mxu0
  %5401 = vmatpush.msra.mxu0 %v4642
  %5402 = vmatpush.msra.mxu0 %v4638
  %5403 = vmatpush.msra.mxu0 %v4634
  %5404 = vmatpush.msra.mxu0 %v4630
  %5405 = vmatpush.msra.mxu0 %v4626
  %5406 = vmatpush.msra.mxu0 %v4622
  %5407 = vmatpush.msra.mxu0 %v4618
  %5408 = vmatpush.msra.mxu0 %v4614
  %5409 = vmatpush.msra.mxu0 %v3817
  %5410 = vmatpush.msra.mxu0 %v3812
  %5411 = vmatpush.msra.mxu0 %v3807
  %5412 = vmatpush.msra.mxu0 %v3802
  %5413 = vmatpush.msra.mxu0 %v3797
  %5414 = vmatpush.msra.mxu0 %v3792
  %5415 = vmatpush.msra.mxu0 %v3787
  %5416 = vmatpush.msra.mxu0 %v3782
  %5417 = vmatmul.f32.gmra.mxu0 %v5208
  %v5418 = vpop.f32.mrf.mxu0
  %v5419 = vadd.f32 %v5378, %v5418
  %5420 = vmatmul.f32.gmra.mxu0 %v5213
  %v5421 = vpop.f32.mrf.mxu0
  %v5422 = vadd.f32 %v5381, %v5421
  %5423 = vmatmul.f32.gmra.mxu0 %v5218
  %v5424 = vpop.f32.mrf.mxu0
  %v5425 = vadd.f32 %v5384, %v5424
  %5426 = vmatmul.f32.gmra.mxu0 %v5223
  %v5427 = vpop.f32.mrf.mxu0
  %v5428 = vadd.f32 %v5387, %v5427
  %5429 = vmatmul.f32.gmra.mxu0 %v5228
  %v5430 = vpop.f32.mrf.mxu0
  %v5431 = vadd.f32 %v5390, %v5430
  %5432 = vmatmul.f32.gmra.mxu0 %v5233
  %v5433 = vpop.f32.mrf.mxu0
  %v5434 = vadd.f32 %v5393, %v5433
  %5435 = vmatmul.f32.gmra.mxu0 %v5238
  %v5436 = vpop.f32.mrf.mxu0
  %v5437 = vadd.f32 %v5396, %v5436
  %5438 = vmatmul.f32.gmra.mxu0 %v5243
  %v5439 = vpop.f32.mrf.mxu0
  %v5440 = vadd.f32 %v5399, %v5439
  %5441 = vdwg.mxu0
  %5442 = vmatpush.msra.mxu0 %v4978
  %5443 = vmatpush.msra.mxu0 %v4974
  %5444 = vmatpush.msra.mxu0 %v4970
  %5445 = vmatpush.msra.mxu0 %v4966
  %5446 = vmatpush.msra.mxu0 %v4962
  %5447 = vmatpush.msra.mxu0 %v4958
  %5448 = vmatpush.msra.mxu0 %v4954
  %5449 = vmatpush.msra.mxu0 %v4950
  %5450 = vmatpush.msra.mxu0 %v4810
  %5451 = vmatpush.msra.mxu0 %v4806
  %5452 = vmatpush.msra.mxu0 %v4802
  %5453 = vmatpush.msra.mxu0 %v4798
  %5454 = vmatpush.msra.mxu0 %v4794
  %5455 = vmatpush.msra.mxu0 %v4790
  %5456 = vmatpush.msra.mxu0 %v4786
  %5457 = vmatpush.msra.mxu0 %v4782
  %5458 = vmatmul.f32.gmra.mxu0 %v5209
  %v5459 = vpop.f32.mrf.mxu0
  %v5460 = vadd.f32 %v5419, %v5459
  %5461 = vmatmul.f32.gmra.mxu0 %v5214
  %v5462 = vpop.f32.mrf.mxu0
  %v5463 = vadd.f32 %v5422, %v5462
  %5464 = vmatmul.f32.gmra.mxu0 %v5219
  %v5465 = vpop.f32.mrf.mxu0
  %v5466 = vadd.f32 %v5425, %v5465
  %5467 = vmatmul.f32.gmra.mxu0 %v5224
  %v5468 = vpop.f32.mrf.mxu0
  %v5469 = vadd.f32 %v5428, %v5468
  %5470 = vmatmul.f32.gmra.mxu0 %v5229
  %v5471 = vpop.f32.mrf.mxu0
  %v5472 = vadd.f32 %v5431, %v5471
  %5473 = vmatmul.f32.gmra.mxu0 %v5234
  %v5474 = vpop.f32.mrf.mxu0
  %v5475 = vadd.f32 %v5434, %v5474
  %5476 = vmatmul.f32.gmra.mxu0 %v5239
  %v5477 = vpop.f32.mrf.mxu0
  %v5478 = vadd.f32 %v5437, %v5477
  %5479 = vmatmul.f32.gmra.mxu0 %v5244
  %v5480 = vpop.f32.mrf.mxu0
  %v5481 = vadd.f32 %v5440, %v5480
  %5482 = vdwg.mxu0
  %5483 = vmatpush.msra.mxu0 0.0
  %5484 = vmatpush.msra.mxu0 0.0
  %5485 = vmatpush.msra.mxu0 0.0
  %5486 = vmatpush.msra.mxu0 0.0
  %5487 = vmatpush.msra.mxu0 0.0
  %5488 = vmatpush.msra.mxu0 0.0
  %5489 = vmatpush.msra.mxu0 0.0
  %5490 = vmatpush.msra.mxu0 0.0
  %5491 = vmatpush.msra.mxu0 %v5146
  %5492 = vmatpush.msra.mxu0 %v5142
  %5493 = vmatpush.msra.mxu0 %v5138
  %5494 = vmatpush.msra.mxu0 %v5134
  %5495 = vmatpush.msra.mxu0 %v5130
  %5496 = vmatpush.msra.mxu0 %v5126
  %5497 = vmatpush.msra.mxu0 %v5122
  %5498 = vmatpush.msra.mxu0 %v5118
  %5499 = vmatmul.f32.gmra.mxu0 %v5296
  %v5500 = vpop.f32.mrf.mxu0
  %v5501 = vadd.f32 %v5460, %v5500
  %5502 = vmatmul.f32.gmra.mxu0 %v5299
  %v5503 = vpop.f32.mrf.mxu0
  %v5504 = vadd.f32 %v5463, %v5503
  %5505 = vmatmul.f32.gmra.mxu0 %v5302
  %v5506 = vpop.f32.mrf.mxu0
  %v5507 = vadd.f32 %v5466, %v5506
  %5508 = vmatmul.f32.gmra.mxu0 %v5305
  %v5509 = vpop.f32.mrf.mxu0
  %v5510 = vadd.f32 %v5469, %v5509
  %5511 = vmatmul.f32.gmra.mxu0 %v5308
  %v5512 = vpop.f32.mrf.mxu0
  %v5513 = vadd.f32 %v5472, %v5512
  %5514 = vmatmul.f32.gmra.mxu0 %v5311
  %v5515 = vpop.f32.mrf.mxu0
  %v5516 = vadd.f32 %v5475, %v5515
  %5517 = vmatmul.f32.gmra.mxu0 %v5314
  %v5518 = vpop.f32.mrf.mxu0
  %v5519 = vadd.f32 %v5478, %v5518
  %5520 = vmatmul.f32.gmra.mxu0 %v5317
  %v5521 = vpop.f32.mrf.mxu0
  %v5522 = vadd.f32 %v5481, %v5521
  %5523 = vdwg.mxu0
  %5524 = vmatpush.msra.mxu0 %v4146
  %5525 = vmatpush.msra.mxu0 %v4142
  %5526 = vmatpush.msra.mxu0 %v4138
  %5527 = vmatpush.msra.mxu0 %v4134
  %5528 = vmatpush.msra.mxu0 %v4130
  %5529 = vmatpush.msra.mxu0 %v4126
  %5530 = vmatpush.msra.mxu0 %v4122
  %5531 = vmatpush.msra.mxu0 %v4118
  %5532 = vmatpush.msra.mxu0 %v3978
  %5533 = vmatpush.msra.mxu0 %v3974
  %5534 = vmatpush.msra.mxu0 %v3970
  %5535 = vmatpush.msra.mxu0 %v3966
  %5536 = vmatpush.msra.mxu0 %v3962
  %5537 = vmatpush.msra.mxu0 %v3958
  %5538 = vmatpush.msra.mxu0 %v3954
  %5539 = vmatpush.msra.mxu0 %v3950
  %5540 = vmatmul.f32.gmra.mxu0 %v5206
  %v5541 = vpop.f32.mrf.mxu0
  %v5542 = vadd.f32 %v5257, %v5541
  %5543 = vmatmul.f32.gmra.mxu0 %v5211
  %v5544 = vpop.f32.mrf.mxu0
  %v5545 = vadd.f32 %v5262, %v5544
  %5546 = vmatmul.f32.gmra.mxu0 %v5216
  %v5547 = vpop.f32.mrf.mxu0
  %v5548 = vadd.f32 %v5267, %v5547
  %5549 = vmatmul.f32.gmra.mxu0 %v5221
  %v5550 = vpop.f32.mrf.mxu0
  %v5551 = vadd.f32 %v5272, %v5550
  %5552 = vmatmul.f32.gmra.mxu0 %v5226
  %v5553 = vpop.f32.mrf.mxu0
  %v5554 = vadd.f32 %v5277, %v5553
  %5555 = vmatmul.f32.gmra.mxu0 %v5231
  %v5556 = vpop.f32.mrf.mxu0
  %v5557 = vadd.f32 %v5282, %v5556
  %5558 = vmatmul.f32.gmra.mxu0 %v5236
  %v5559 = vpop.f32.mrf.mxu0
  %v5560 = vadd.f32 %v5287, %v5559
  %5561 = vmatmul.f32.gmra.mxu0 %v5241
  %v5562 = vpop.f32.mrf.mxu0
  %v5563 = vadd.f32 %v5292, %v5562
  %5564 = vdwg.mxu0
  %5565 = vmatpush.msra.mxu0 %v4482
  %5566 = vmatpush.msra.mxu0 %v4478
  %5567 = vmatpush.msra.mxu0 %v4474
  %5568 = vmatpush.msra.mxu0 %v4470
  %5569 = vmatpush.msra.mxu0 %v4466
  %5570 = vmatpush.msra.mxu0 %v4462
  %5571 = vmatpush.msra.mxu0 %v4458
  %5572 = vmatpush.msra.mxu0 %v4454
  %5573 = vmatpush.msra.mxu0 %v4314
  %5574 = vmatpush.msra.mxu0 %v4310
  %5575 = vmatpush.msra.mxu0 %v4306
  %5576 = vmatpush.msra.mxu0 %v4302
  %5577 = vmatpush.msra.mxu0 %v4298
  %5578 = vmatpush.msra.mxu0 %v4294
  %5579 = vmatpush.msra.mxu0 %v4290
  %5580 = vmatpush.msra.mxu0 %v4286
  %5581 = vmatmul.f32.gmra.mxu0 %v5207
  %v5582 = vpop.f32.mrf.mxu0
  %v5583 = vadd.f32 %v5542, %v5582
  %5584 = vmatmul.f32.gmra.mxu0 %v5212
  %v5585 = vpop.f32.mrf.mxu0
  %v5586 = vadd.f32 %v5545, %v5585
  %5587 = vmatmul.f32.gmra.mxu0 %v5217
  %v5588 = vpop.f32.mrf.mxu0
  %v5589 = vadd.f32 %v5548, %v5588
  %5590 = vmatmul.f32.gmra.mxu0 %v5222
  %v5591 = vpop.f32.mrf.mxu0
  %v5592 = vadd.f32 %v5551, %v5591
  %5593 = vmatmul.f32.gmra.mxu0 %v5227
  %v5594 = vpop.f32.mrf.mxu0
  %v5595 = vadd.f32 %v5554, %v5594
  %5596 = vmatmul.f32.gmra.mxu0 %v5232
  %v5597 = vpop.f32.mrf.mxu0
  %v5598 = vadd.f32 %v5557, %v5597
  %5599 = vmatmul.f32.gmra.mxu0 %v5237
  %v5600 = vpop.f32.mrf.mxu0
  %v5601 = vadd.f32 %v5560, %v5600
  %5602 = vmatmul.f32.gmra.mxu0 %v5242
  %v5603 = vpop.f32.mrf.mxu0
  %v5604 = vadd.f32 %v5563, %v5603
  %5605 = vdwg.mxu0
  %5606 = vmatpush.msra.mxu0 %v4643
  %5607 = vmatpush.msra.mxu0 %v4639
  %5608 = vmatpush.msra.mxu0 %v4635
  %5609 = vmatpush.msra.mxu0 %v4631
  %5610 = vmatpush.msra.mxu0 %v4627
  %5611 = vmatpush.msra.mxu0 %v4623
  %5612 = vmatpush.msra.mxu0 %v4619
  %5613 = vmatpush.msra.mxu0 %v4615
  %5614 = vmatpush.msra.mxu0 %v3818
  %5615 = vmatpush.msra.mxu0 %v3813
  %5616 = vmatpush.msra.mxu0 %v3808
  %5617 = vmatpush.msra.mxu0 %v3803
  %5618 = vmatpush.msra.mxu0 %v3798
  %5619 = vmatpush.msra.mxu0 %v3793
  %5620 = vmatpush.msra.mxu0 %v3788
  %5621 = vmatpush.msra.mxu0 %v3783
  %5622 = vmatmul.f32.gmra.mxu0 %v5208
  %v5623 = vpop.f32.mrf.mxu0
  %v5624 = vadd.f32 %v5583, %v5623
  %5625 = vmatmul.f32.gmra.mxu0 %v5213
  %v5626 = vpop.f32.mrf.mxu0
  %v5627 = vadd.f32 %v5586, %v5626
  %5628 = vmatmul.f32.gmra.mxu0 %v5218
  %v5629 = vpop.f32.mrf.mxu0
  %v5630 = vadd.f32 %v5589, %v5629
  %5631 = vmatmul.f32.gmra.mxu0 %v5223
  %v5632 = vpop.f32.mrf.mxu0
  %v5633 = vadd.f32 %v5592, %v5632
  %5634 = vmatmul.f32.gmra.mxu0 %v5228
  %v5635 = vpop.f32.mrf.mxu0
  %v5636 = vadd.f32 %v5595, %v5635
  %5637 = vmatmul.f32.gmra.mxu0 %v5233
  %v5638 = vpop.f32.mrf.mxu0
  %v5639 = vadd.f32 %v5598, %v5638
  %5640 = vmatmul.f32.gmra.mxu0 %v5238
  %v5641 = vpop.f32.mrf.mxu0
  %v5642 = vadd.f32 %v5601, %v5641
  %5643 = vmatmul.f32.gmra.mxu0 %v5243
  %v5644 = vpop.f32.mrf.mxu0
  %v5645 = vadd.f32 %v5604, %v5644
  %5646 = vdwg.mxu0
  %5647 = vmatpush.msra.mxu0 %v4979
  %5648 = vmatpush.msra.mxu0 %v4975
  %5649 = vmatpush.msra.mxu0 %v4971
  %5650 = vmatpush.msra.mxu0 %v4967
  %5651 = vmatpush.msra.mxu0 %v4963
  %5652 = vmatpush.msra.mxu0 %v4959
  %5653 = vmatpush.msra.mxu0 %v4955
  %5654 = vmatpush.msra.mxu0 %v4951
  %5655 = vmatpush.msra.mxu0 %v4811
  %5656 = vmatpush.msra.mxu0 %v4807
  %5657 = vmatpush.msra.mxu0 %v4803
  %5658 = vmatpush.msra.mxu0 %v4799
  %5659 = vmatpush.msra.mxu0 %v4795
  %5660 = vmatpush.msra.mxu0 %v4791
  %5661 = vmatpush.msra.mxu0 %v4787
  %5662 = vmatpush.msra.mxu0 %v4783
  %5663 = vmatmul.f32.gmra.mxu0 %v5209
  %v5664 = vpop.f32.mrf.mxu0
  %v5665 = vadd.f32 %v5624, %v5664
  %5666 = vmatmul.f32.gmra.mxu0 %v5214
  %v5667 = vpop.f32.mrf.mxu0
  %v5668 = vadd.f32 %v5627, %v5667
  %5669 = vmatmul.f32.gmra.mxu0 %v5219
  %v5670 = vpop.f32.mrf.mxu0
  %v5671 = vadd.f32 %v5630, %v5670
  %5672 = vmatmul.f32.gmra.mxu0 %v5224
  %v5673 = vpop.f32.mrf.mxu0
  %v5674 = vadd.f32 %v5633, %v5673
  %5675 = vmatmul.f32.gmra.mxu0 %v5229
  %v5676 = vpop.f32.mrf.mxu0
  %v5677 = vadd.f32 %v5636, %v5676
  %5678 = vmatmul.f32.gmra.mxu0 %v5234
  %v5679 = vpop.f32.mrf.mxu0
  %v5680 = vadd.f32 %v5639, %v5679
  %5681 = vmatmul.f32.gmra.mxu0 %v5239
  %v5682 = vpop.f32.mrf.mxu0
  %v5683 = vadd.f32 %v5642, %v5682
  %5684 = vmatmul.f32.gmra.mxu0 %v5244
  %v5685 = vpop.f32.mrf.mxu0
  %v5686 = vadd.f32 %v5645, %v5685
  %5687 = vdwg.mxu0
  %5688 = vmatpush.msra.mxu0 0.0
  %5689 = vmatpush.msra.mxu0 0.0
  %5690 = vmatpush.msra.mxu0 0.0
  %5691 = vmatpush.msra.mxu0 0.0
  %5692 = vmatpush.msra.mxu0 0.0
  %5693 = vmatpush.msra.mxu0 0.0
  %5694 = vmatpush.msra.mxu0 0.0
  %5695 = vmatpush.msra.mxu0 0.0
  %5696 = vmatpush.msra.mxu0 %v5147
  %5697 = vmatpush.msra.mxu0 %v5143
  %5698 = vmatpush.msra.mxu0 %v5139
  %5699 = vmatpush.msra.mxu0 %v5135
  %5700 = vmatpush.msra.mxu0 %v5131
  %5701 = vmatpush.msra.mxu0 %v5127
  %5702 = vmatpush.msra.mxu0 %v5123
  %5703 = vmatpush.msra.mxu0 %v5119
  %5704 = vmatmul.f32.gmra.mxu0 %v5296
  %v5705 = vpop.f32.mrf.mxu0
  %v5706 = vadd.f32 %v5665, %v5705
  %5707 = vmatmul.f32.gmra.mxu0 %v5299
  %v5708 = vpop.f32.mrf.mxu0
  %v5709 = vadd.f32 %v5668, %v5708
  %5710 = vmatmul.f32.gmra.mxu0 %v5302
  %v5711 = vpop.f32.mrf.mxu0
  %v5712 = vadd.f32 %v5671, %v5711
  %5713 = vmatmul.f32.gmra.mxu0 %v5305
  %v5714 = vpop.f32.mrf.mxu0
  %v5715 = vadd.f32 %v5674, %v5714
  %5716 = vmatmul.f32.gmra.mxu0 %v5308
  %v5717 = vpop.f32.mrf.mxu0
  %v5718 = vadd.f32 %v5677, %v5717
  %5719 = vmatmul.f32.gmra.mxu0 %v5311
  %v5720 = vpop.f32.mrf.mxu0
  %v5721 = vadd.f32 %v5680, %v5720
  %5722 = vmatmul.f32.gmra.mxu0 %v5314
  %v5723 = vpop.f32.mrf.mxu0
  %v5724 = vadd.f32 %v5683, %v5723
  %5725 = vmatmul.f32.gmra.mxu0 %v5317
  %v5726 = vpop.f32.mrf.mxu0
  %v5727 = vadd.f32 %v5686, %v5726
  %5728 = vdwg.mxu0
  %5729 = vmatpush.msra.mxu0 %v4147
  %5730 = vmatpush.msra.mxu0 %v4143
  %5731 = vmatpush.msra.mxu0 %v4139
  %5732 = vmatpush.msra.mxu0 %v4135
  %5733 = vmatpush.msra.mxu0 %v4131
  %5734 = vmatpush.msra.mxu0 %v4127
  %5735 = vmatpush.msra.mxu0 %v4123
  %5736 = vmatpush.msra.mxu0 %v4119
  %5737 = vmatpush.msra.mxu0 %v3979
  %5738 = vmatpush.msra.mxu0 %v3975
  %5739 = vmatpush.msra.mxu0 %v3971
  %5740 = vmatpush.msra.mxu0 %v3967
  %5741 = vmatpush.msra.mxu0 %v3963
  %5742 = vmatpush.msra.mxu0 %v3959
  %5743 = vmatpush.msra.mxu0 %v3955
  %5744 = vmatpush.msra.mxu0 %v3951
  %5745 = vmatmul.f32.gmra.mxu0 %v5206
  %v5746 = vpop.f32.mrf.mxu0
  %v5747 = vadd.f32 %v5257, %v5746
  %5748 = vmatmul.f32.gmra.mxu0 %v5211
  %v5749 = vpop.f32.mrf.mxu0
  %v5750 = vadd.f32 %v5262, %v5749
  %5751 = vmatmul.f32.gmra.mxu0 %v5216
  %v5752 = vpop.f32.mrf.mxu0
  %v5753 = vadd.f32 %v5267, %v5752
  %5754 = vmatmul.f32.gmra.mxu0 %v5221
  %v5755 = vpop.f32.mrf.mxu0
  %v5756 = vadd.f32 %v5272, %v5755
  %5757 = vmatmul.f32.gmra.mxu0 %v5226
  %v5758 = vpop.f32.mrf.mxu0
  %v5759 = vadd.f32 %v5277, %v5758
  %5760 = vmatmul.f32.gmra.mxu0 %v5231
  %v5761 = vpop.f32.mrf.mxu0
  %v5762 = vadd.f32 %v5282, %v5761
  %5763 = vmatmul.f32.gmra.mxu0 %v5236
  %v5764 = vpop.f32.mrf.mxu0
  %v5765 = vadd.f32 %v5287, %v5764
  %5766 = vmatmul.f32.gmra.mxu0 %v5241
  %v5767 = vpop.f32.mrf.mxu0
  %v5768 = vadd.f32 %v5292, %v5767
  %5769 = vdwg.mxu0
  %5770 = vmatpush.msra.mxu0 %v4483
  %5771 = vmatpush.msra.mxu0 %v4479
  %5772 = vmatpush.msra.mxu0 %v4475
  %5773 = vmatpush.msra.mxu0 %v4471
  %5774 = vmatpush.msra.mxu0 %v4467
  %5775 = vmatpush.msra.mxu0 %v4463
  %5776 = vmatpush.msra.mxu0 %v4459
  %5777 = vmatpush.msra.mxu0 %v4455
  %5778 = vmatpush.msra.mxu0 %v4315
  %5779 = vmatpush.msra.mxu0 %v4311
  %5780 = vmatpush.msra.mxu0 %v4307
  %5781 = vmatpush.msra.mxu0 %v4303
  %5782 = vmatpush.msra.mxu0 %v4299
  %5783 = vmatpush.msra.mxu0 %v4295
  %5784 = vmatpush.msra.mxu0 %v4291
  %5785 = vmatpush.msra.mxu0 %v4287
  %5786 = vmatmul.f32.gmra.mxu0 %v5207
  %v5787 = vpop.f32.mrf.mxu0
  %v5788 = vadd.f32 %v5747, %v5787
  %5789 = vmatmul.f32.gmra.mxu0 %v5212
  %v5790 = vpop.f32.mrf.mxu0
  %v5791 = vadd.f32 %v5750, %v5790
  %5792 = vmatmul.f32.gmra.mxu0 %v5217
  %v5793 = vpop.f32.mrf.mxu0
  %v5794 = vadd.f32 %v5753, %v5793
  %5795 = vmatmul.f32.gmra.mxu0 %v5222
  %v5796 = vpop.f32.mrf.mxu0
  %v5797 = vadd.f32 %v5756, %v5796
  %5798 = vmatmul.f32.gmra.mxu0 %v5227
  %v5799 = vpop.f32.mrf.mxu0
  %v5800 = vadd.f32 %v5759, %v5799
  %5801 = vmatmul.f32.gmra.mxu0 %v5232
  %v5802 = vpop.f32.mrf.mxu0
  %v5803 = vadd.f32 %v5762, %v5802
  %5804 = vmatmul.f32.gmra.mxu0 %v5237
  %v5805 = vpop.f32.mrf.mxu0
  %v5806 = vadd.f32 %v5765, %v5805
  %5807 = vmatmul.f32.gmra.mxu0 %v5242
  %v5808 = vpop.f32.mrf.mxu0
  %v5809 = vadd.f32 %v5768, %v5808
  %5810 = vdwg.mxu0
  %5811 = vmatpush.msra.mxu0 %v4644
  %5812 = vmatpush.msra.mxu0 %v4640
  %5813 = vmatpush.msra.mxu0 %v4636
  %5814 = vmatpush.msra.mxu0 %v4632
  %5815 = vmatpush.msra.mxu0 %v4628
  %5816 = vmatpush.msra.mxu0 %v4624
  %5817 = vmatpush.msra.mxu0 %v4620
  %5818 = vmatpush.msra.mxu0 %v4616
  %5819 = vmatpush.msra.mxu0 %v3819
  %5820 = vmatpush.msra.mxu0 %v3814
  %5821 = vmatpush.msra.mxu0 %v3809
  %5822 = vmatpush.msra.mxu0 %v3804
  %5823 = vmatpush.msra.mxu0 %v3799
  %5824 = vmatpush.msra.mxu0 %v3794
  %5825 = vmatpush.msra.mxu0 %v3789
  %5826 = vmatpush.msra.mxu0 %v3784
  %5827 = vmatmul.f32.gmra.mxu0 %v5208
  %v5828 = vpop.f32.mrf.mxu0
  %v5829 = vadd.f32 %v5788, %v5828
  %5830 = vmatmul.f32.gmra.mxu0 %v5213
  %v5831 = vpop.f32.mrf.mxu0
  %v5832 = vadd.f32 %v5791, %v5831
  %5833 = vmatmul.f32.gmra.mxu0 %v5218
  %v5834 = vpop.f32.mrf.mxu0
  %v5835 = vadd.f32 %v5794, %v5834
  %5836 = vmatmul.f32.gmra.mxu0 %v5223
  %v5837 = vpop.f32.mrf.mxu0
  %v5838 = vadd.f32 %v5797, %v5837
  %5839 = vmatmul.f32.gmra.mxu0 %v5228
  %v5840 = vpop.f32.mrf.mxu0
  %v5841 = vadd.f32 %v5800, %v5840
  %5842 = vmatmul.f32.gmra.mxu0 %v5233
  %v5843 = vpop.f32.mrf.mxu0
  %v5844 = vadd.f32 %v5803, %v5843
  %5845 = vmatmul.f32.gmra.mxu0 %v5238
  %v5846 = vpop.f32.mrf.mxu0
  %v5847 = vadd.f32 %v5806, %v5846
  %5848 = vmatmul.f32.gmra.mxu0 %v5243
  %v5849 = vpop.f32.mrf.mxu0
  %v5850 = vadd.f32 %v5809, %v5849
  %5851 = vdwg.mxu0
  %5852 = vmatpush.msra.mxu0 %v4980
  %5853 = vmatpush.msra.mxu0 %v4976
  %5854 = vmatpush.msra.mxu0 %v4972
  %5855 = vmatpush.msra.mxu0 %v4968
  %5856 = vmatpush.msra.mxu0 %v4964
  %5857 = vmatpush.msra.mxu0 %v4960
  %5858 = vmatpush.msra.mxu0 %v4956
  %5859 = vmatpush.msra.mxu0 %v4952
  %5860 = vmatpush.msra.mxu0 %v4812
  %5861 = vmatpush.msra.mxu0 %v4808
  %5862 = vmatpush.msra.mxu0 %v4804
  %5863 = vmatpush.msra.mxu0 %v4800
  %5864 = vmatpush.msra.mxu0 %v4796
  %5865 = vmatpush.msra.mxu0 %v4792
  %5866 = vmatpush.msra.mxu0 %v4788
  %5867 = vmatpush.msra.mxu0 %v4784
  %5868 = vmatmul.f32.gmra.mxu0 %v5209
  %v5869 = vpop.f32.mrf.mxu0
  %v5870 = vadd.f32 %v5829, %v5869
  %5871 = vmatmul.f32.gmra.mxu0 %v5214
  %v5872 = vpop.f32.mrf.mxu0
  %v5873 = vadd.f32 %v5832, %v5872
  %5874 = vmatmul.f32.gmra.mxu0 %v5219
  %v5875 = vpop.f32.mrf.mxu0
  %v5876 = vadd.f32 %v5835, %v5875
  %5877 = vmatmul.f32.gmra.mxu0 %v5224
  %v5878 = vpop.f32.mrf.mxu0
  %v5879 = vadd.f32 %v5838, %v5878
  %5880 = vmatmul.f32.gmra.mxu0 %v5229
  %v5881 = vpop.f32.mrf.mxu0
  %v5882 = vadd.f32 %v5841, %v5881
  %5883 = vmatmul.f32.gmra.mxu0 %v5234
  %v5884 = vpop.f32.mrf.mxu0
  %v5885 = vadd.f32 %v5844, %v5884
  %5886 = vmatmul.f32.gmra.mxu0 %v5239
  %v5887 = vpop.f32.mrf.mxu0
  %v5888 = vadd.f32 %v5847, %v5887
  %5889 = vmatmul.f32.gmra.mxu0 %v5244
  %v5890 = vpop.f32.mrf.mxu0
  %v5891 = vadd.f32 %v5850, %v5890
  %5892 = vdwg.mxu0
  %5893 = vmatpush.msra.mxu0 0.0
  %5894 = vmatpush.msra.mxu0 0.0
  %5895 = vmatpush.msra.mxu0 0.0
  %5896 = vmatpush.msra.mxu0 0.0
  %5897 = vmatpush.msra.mxu0 0.0
  %5898 = vmatpush.msra.mxu0 0.0
  %5899 = vmatpush.msra.mxu0 0.0
  %5900 = vmatpush.msra.mxu0 0.0
  %5901 = vmatpush.msra.mxu0 %v5148
  %5902 = vmatpush.msra.mxu0 %v5144
  %5903 = vmatpush.msra.mxu0 %v5140
  %5904 = vmatpush.msra.mxu0 %v5136
  %5905 = vmatpush.msra.mxu0 %v5132
  %5906 = vmatpush.msra.mxu0 %v5128
  %5907 = vmatpush.msra.mxu0 %v5124
  %5908 = vmatpush.msra.mxu0 %v5120
  %5909 = vmatmul.f32.gmra.mxu0 %v5296
  %v5910 = vpop.f32.mrf.mxu0
  %v5911 = vadd.f32 %v5870, %v5910
  %5912 = vmatmul.f32.gmra.mxu0 %v5299
  %v5913 = vpop.f32.mrf.mxu0
  %v5914 = vadd.f32 %v5873, %v5913
  %5915 = vmatmul.f32.gmra.mxu0 %v5302
  %v5916 = vpop.f32.mrf.mxu0
  %v5917 = vadd.f32 %v5876, %v5916
  %5918 = vmatmul.f32.gmra.mxu0 %v5305
  %v5919 = vpop.f32.mrf.mxu0
  %v5920 = vadd.f32 %v5879, %v5919
  %5921 = vmatmul.f32.gmra.mxu0 %v5308
  %v5922 = vpop.f32.mrf.mxu0
  %v5923 = vadd.f32 %v5882, %v5922
  %5924 = vmatmul.f32.gmra.mxu0 %v5311
  %v5925 = vpop.f32.mrf.mxu0
  %v5926 = vadd.f32 %v5885, %v5925
  %5927 = vmatmul.f32.gmra.mxu0 %v5314
  %v5928 = vpop.f32.mrf.mxu0
  %v5929 = vadd.f32 %v5888, %v5928
  %5930 = vmatmul.f32.gmra.mxu0 %v5317
  %v5931 = vpop.f32.mrf.mxu0
  %v5932 = vadd.f32 %v5891, %v5931
  %5933 = vdwg.mxu0
  %5934 = vmatpush.msra.mxu0 %v4148
  %5935 = vmatpush.msra.mxu0 %v4144
  %5936 = vmatpush.msra.mxu0 %v4140
  %5937 = vmatpush.msra.mxu0 %v4136
  %5938 = vmatpush.msra.mxu0 %v4132
  %5939 = vmatpush.msra.mxu0 %v4128
  %5940 = vmatpush.msra.mxu0 %v4124
  %5941 = vmatpush.msra.mxu0 %v4120
  %5942 = vmatpush.msra.mxu0 %v3980
  %5943 = vmatpush.msra.mxu0 %v3976
  %5944 = vmatpush.msra.mxu0 %v3972
  %5945 = vmatpush.msra.mxu0 %v3968
  %5946 = vmatpush.msra.mxu0 %v3964
  %5947 = vmatpush.msra.mxu0 %v3960
  %5948 = vmatpush.msra.mxu0 %v3956
  %5949 = vmatpush.msra.mxu0 %v3952
  %5950 = vmatmul.f32.gmra.mxu0 %v5206
  %v5951 = vpop.f32.mrf.mxu0
  %v5952 = vadd.f32 %v5257, %v5951
  %5953 = vmatmul.f32.gmra.mxu0 %v5211
  %v5954 = vpop.f32.mrf.mxu0
  %v5955 = vadd.f32 %v5262, %v5954
  %5956 = vmatmul.f32.gmra.mxu0 %v5216
  %v5957 = vpop.f32.mrf.mxu0
  %v5958 = vadd.f32 %v5267, %v5957
  %5959 = vmatmul.f32.gmra.mxu0 %v5221
  %v5960 = vpop.f32.mrf.mxu0
  %v5961 = vadd.f32 %v5272, %v5960
  %5962 = vmatmul.f32.gmra.mxu0 %v5226
  %v5963 = vpop.f32.mrf.mxu0
  %v5964 = vadd.f32 %v5277, %v5963
  %5965 = vmatmul.f32.gmra.mxu0 %v5231
  %v5966 = vpop.f32.mrf.mxu0
  %v5967 = vadd.f32 %v5282, %v5966
  %5968 = vmatmul.f32.gmra.mxu0 %v5236
  %v5969 = vpop.f32.mrf.mxu0
  %v5970 = vadd.f32 %v5287, %v5969
  %5971 = vmatmul.f32.gmra.mxu0 %v5241
  %v5972 = vpop.f32.mrf.mxu0
  %v5973 = vadd.f32 %v5292, %v5972
  %5974 = vdwg.mxu0
  %5975 = vmatpush.msra.mxu0 %v4484
  %5976 = vmatpush.msra.mxu0 %v4480
  %5977 = vmatpush.msra.mxu0 %v4476
  %5978 = vmatpush.msra.mxu0 %v4472
  %5979 = vmatpush.msra.mxu0 %v4468
  %5980 = vmatpush.msra.mxu0 %v4464
  %5981 = vmatpush.msra.mxu0 %v4460
  %5982 = vmatpush.msra.mxu0 %v4456
  %5983 = vmatpush.msra.mxu0 %v4316
  %5984 = vmatpush.msra.mxu0 %v4312
  %5985 = vmatpush.msra.mxu0 %v4308
  %5986 = vmatpush.msra.mxu0 %v4304
  %5987 = vmatpush.msra.mxu0 %v4300
  %5988 = vmatpush.msra.mxu0 %v4296
  %5989 = vmatpush.msra.mxu0 %v4292
  %5990 = vmatpush.msra.mxu0 %v4288
  %5991 = vmatmul.f32.gmra.mxu0 %v5207
  %v5992 = vpop.f32.mrf.mxu0
  %v5993 = vadd.f32 %v5952, %v5992
  %5994 = vmatmul.f32.gmra.mxu0 %v5212
  %v5995 = vpop.f32.mrf.mxu0
  %v5996 = vadd.f32 %v5955, %v5995
  %5997 = vmatmul.f32.gmra.mxu0 %v5217
  %v5998 = vpop.f32.mrf.mxu0
  %v5999 = vadd.f32 %v5958, %v5998
  %6000 = vmatmul.f32.gmra.mxu0 %v5222
  %v6001 = vpop.f32.mrf.mxu0
  %v6002 = vadd.f32 %v5961, %v6001
  %6003 = vmatmul.f32.gmra.mxu0 %v5227
  %v6004 = vpop.f32.mrf.mxu0
  %v6005 = vadd.f32 %v5964, %v6004
  %6006 = vmatmul.f32.gmra.mxu0 %v5232
  %v6007 = vpop.f32.mrf.mxu0
  %v6008 = vadd.f32 %v5967, %v6007
  %6009 = vmatmul.f32.gmra.mxu0 %v5237
  %v6010 = vpop.f32.mrf.mxu0
  %v6011 = vadd.f32 %v5970, %v6010
  %6012 = vmatmul.f32.gmra.mxu0 %v5242
  %v6013 = vpop.f32.mrf.mxu0
  %v6014 = vadd.f32 %v5973, %v6013
  %6015 = vdwg.mxu0
  %6016 = vmatpush.msra.mxu0 %v4645
  %6017 = vmatpush.msra.mxu0 %v4641
  %6018 = vmatpush.msra.mxu0 %v4637
  %6019 = vmatpush.msra.mxu0 %v4633
  %6020 = vmatpush.msra.mxu0 %v4629
  %6021 = vmatpush.msra.mxu0 %v4625
  %6022 = vmatpush.msra.mxu0 %v4621
  %6023 = vmatpush.msra.mxu0 %v4617
  %6024 = vmatpush.msra.mxu0 %v3820
  %6025 = vmatpush.msra.mxu0 %v3815
  %6026 = vmatpush.msra.mxu0 %v3810
  %6027 = vmatpush.msra.mxu0 %v3805
  %6028 = vmatpush.msra.mxu0 %v3800
  %6029 = vmatpush.msra.mxu0 %v3795
  %6030 = vmatpush.msra.mxu0 %v3790
  %6031 = vmatpush.msra.mxu0 %v3785
  %6032 = vmatmul.f32.gmra.mxu0 %v5208
  %v6033 = vpop.f32.mrf.mxu0
  %v6034 = vadd.f32 %v5993, %v6033
  %6035 = vmatmul.f32.gmra.mxu0 %v5213
  %v6036 = vpop.f32.mrf.mxu0
  %v6037 = vadd.f32 %v5996, %v6036
  %6038 = vmatmul.f32.gmra.mxu0 %v5218
  %v6039 = vpop.f32.mrf.mxu0
  %v6040 = vadd.f32 %v5999, %v6039
  %6041 = vmatmul.f32.gmra.mxu0 %v5223
  %v6042 = vpop.f32.mrf.mxu0
  %v6043 = vadd.f32 %v6002, %v6042
  %6044 = vmatmul.f32.gmra.mxu0 %v5228
  %v6045 = vpop.f32.mrf.mxu0
  %v6046 = vadd.f32 %v6005, %v6045
  %6047 = vmatmul.f32.gmra.mxu0 %v5233
  %v6048 = vpop.f32.mrf.mxu0
  %v6049 = vadd.f32 %v6008, %v6048
  %6050 = vmatmul.f32.gmra.mxu0 %v5238
  %v6051 = vpop.f32.mrf.mxu0
  %v6052 = vadd.f32 %v6011, %v6051
  %6053 = vmatmul.f32.gmra.mxu0 %v5243
  %v6054 = vpop.f32.mrf.mxu0
  %v6055 = vadd.f32 %v6014, %v6054
  %6056 = vdwg.mxu0
  %6057 = vmatpush.msra.mxu0 %v4981
  %6058 = vmatpush.msra.mxu0 %v4977
  %6059 = vmatpush.msra.mxu0 %v4973
  %6060 = vmatpush.msra.mxu0 %v4969
  %6061 = vmatpush.msra.mxu0 %v4965
  %6062 = vmatpush.msra.mxu0 %v4961
  %6063 = vmatpush.msra.mxu0 %v4957
  %6064 = vmatpush.msra.mxu0 %v4953
  %6065 = vmatpush.msra.mxu0 %v4813
  %6066 = vmatpush.msra.mxu0 %v4809
  %6067 = vmatpush.msra.mxu0 %v4805
  %6068 = vmatpush.msra.mxu0 %v4801
  %6069 = vmatpush.msra.mxu0 %v4797
  %6070 = vmatpush.msra.mxu0 %v4793
  %6071 = vmatpush.msra.mxu0 %v4789
  %6072 = vmatpush.msra.mxu0 %v4785
  %6073 = vmatmul.f32.gmra.mxu0 %v5209
  %v6074 = vpop.f32.mrf.mxu0
  %v6075 = vadd.f32 %v6034, %v6074
  %6076 = vmatmul.f32.gmra.mxu0 %v5214
  %v6077 = vpop.f32.mrf.mxu0
  %v6078 = vadd.f32 %v6037, %v6077
  %6079 = vmatmul.f32.gmra.mxu0 %v5219
  %v6080 = vpop.f32.mrf.mxu0
  %v6081 = vadd.f32 %v6040, %v6080
  %6082 = vmatmul.f32.gmra.mxu0 %v5224
  %v6083 = vpop.f32.mrf.mxu0
  %v6084 = vadd.f32 %v6043, %v6083
  %6085 = vmatmul.f32.gmra.mxu0 %v5229
  %v6086 = vpop.f32.mrf.mxu0
  %v6087 = vadd.f32 %v6046, %v6086
  %6088 = vmatmul.f32.gmra.mxu0 %v5234
  %v6089 = vpop.f32.mrf.mxu0
  %v6090 = vadd.f32 %v6049, %v6089
  %6091 = vmatmul.f32.gmra.mxu0 %v5239
  %v6092 = vpop.f32.mrf.mxu0
  %v6093 = vadd.f32 %v6052, %v6092
  %6094 = vmatmul.f32.gmra.mxu0 %v5244
  %v6095 = vpop.f32.mrf.mxu0
  %v6096 = vadd.f32 %v6055, %v6095
  %6097 = vdwg.mxu0
  %6098 = vmatpush.msra.mxu0 0.0
  %6099 = vmatpush.msra.mxu0 0.0
  %6100 = vmatpush.msra.mxu0 0.0
  %6101 = vmatpush.msra.mxu0 0.0
  %6102 = vmatpush.msra.mxu0 0.0
  %6103 = vmatpush.msra.mxu0 0.0
  %6104 = vmatpush.msra.mxu0 0.0
  %6105 = vmatpush.msra.mxu0 0.0
  %6106 = vmatpush.msra.mxu0 %v5149
  %6107 = vmatpush.msra.mxu0 %v5145
  %6108 = vmatpush.msra.mxu0 %v5141
  %6109 = vmatpush.msra.mxu0 %v5137
  %6110 = vmatpush.msra.mxu0 %v5133
  %6111 = vmatpush.msra.mxu0 %v5129
  %6112 = vmatpush.msra.mxu0 %v5125
  %6113 = vmatpush.msra.mxu0 %v5121
  %6114 = vmatmul.f32.gmra.mxu0 %v5296
  %v6115 = vpop.f32.mrf.mxu0
  %v6116 = vadd.f32 %v6075, %v6115
  %6117 = vmatmul.f32.gmra.mxu0 %v5299
  %v6118 = vpop.f32.mrf.mxu0
  %v6119 = vadd.f32 %v6078, %v6118
  %6120 = vmatmul.f32.gmra.mxu0 %v5302
  %v6121 = vpop.f32.mrf.mxu0
  %v6122 = vadd.f32 %v6081, %v6121
  %6123 = vmatmul.f32.gmra.mxu0 %v5305
  %v6124 = vpop.f32.mrf.mxu0
  %v6125 = vadd.f32 %v6084, %v6124
  %6126 = vmatmul.f32.gmra.mxu0 %v5308
  %v6127 = vpop.f32.mrf.mxu0
  %v6128 = vadd.f32 %v6087, %v6127
  %6129 = vmatmul.f32.gmra.mxu0 %v5311
  %v6130 = vpop.f32.mrf.mxu0
  %v6131 = vadd.f32 %v6090, %v6130
  %6132 = vmatmul.f32.gmra.mxu0 %v5314
  %v6133 = vpop.f32.mrf.mxu0
  %v6134 = vadd.f32 %v6093, %v6133
  %6135 = vmatmul.f32.gmra.mxu0 %v5317
  %v6136 = vpop.f32.mrf.mxu0
  %v6137 = vadd.f32 %v6096, %v6136
  %6138 = vdwg.mxu0
  %6139 = vmatpush.msra.mxu0 %v4149
  %6140 = vmatpush.msra.mxu0 %v4145
  %6141 = vmatpush.msra.mxu0 %v4141
  %6142 = vmatpush.msra.mxu0 %v4137
  %6143 = vmatpush.msra.mxu0 %v4133
  %6144 = vmatpush.msra.mxu0 %v4129
  %6145 = vmatpush.msra.mxu0 %v4125
  %6146 = vmatpush.msra.mxu0 %v4121
  %6147 = vmatpush.msra.mxu0 %v3981
  %6148 = vmatpush.msra.mxu0 %v3977
  %6149 = vmatpush.msra.mxu0 %v3973
  %6150 = vmatpush.msra.mxu0 %v3969
  %6151 = vmatpush.msra.mxu0 %v3965
  %6152 = vmatpush.msra.mxu0 %v3961
  %6153 = vmatpush.msra.mxu0 %v3957
  %6154 = vmatpush.msra.mxu0 %v3953
  %6155 = vmatmul.f32.gmra.mxu0 %v5206
  %v6156 = vpop.f32.mrf.mxu0
  %v6157 = vadd.f32 %v5257, %v6156
  %6158 = vmatmul.f32.gmra.mxu0 %v5211
  %v6159 = vpop.f32.mrf.mxu0
  %v6160 = vadd.f32 %v5262, %v6159
  %6161 = vmatmul.f32.gmra.mxu0 %v5216
  %v6162 = vpop.f32.mrf.mxu0
  %v6163 = vadd.f32 %v5267, %v6162
  %6164 = vmatmul.f32.gmra.mxu0 %v5221
  %v6165 = vpop.f32.mrf.mxu0
  %v6166 = vadd.f32 %v5272, %v6165
  %6167 = vmatmul.f32.gmra.mxu0 %v5226
  %v6168 = vpop.f32.mrf.mxu0
  %v6169 = vadd.f32 %v5277, %v6168
  %6170 = vmatmul.f32.gmra.mxu0 %v5231
  %v6171 = vpop.f32.mrf.mxu0
  %v6172 = vadd.f32 %v5282, %v6171
  %6173 = vmatmul.f32.gmra.mxu0 %v5236
  %v6174 = vpop.f32.mrf.mxu0
  %v6175 = vadd.f32 %v5287, %v6174
  %6176 = vmatmul.f32.gmra.mxu0 %v5241
  %v6177 = vpop.f32.mrf.mxu0
  %v6178 = vadd.f32 %v5292, %v6177
  %6179 = vdwg.mxu0
  %6180 = vmatpush.msra.mxu0 %v4485
  %6181 = vmatpush.msra.mxu0 %v4481
  %6182 = vmatpush.msra.mxu0 %v4477
  %6183 = vmatpush.msra.mxu0 %v4473
  %6184 = vmatpush.msra.mxu0 %v4469
  %6185 = vmatpush.msra.mxu0 %v4465
  %6186 = vmatpush.msra.mxu0 %v4461
  %6187 = vmatpush.msra.mxu0 %v4457
  %6188 = vmatpush.msra.mxu0 %v4317
  %6189 = vmatpush.msra.mxu0 %v4313
  %6190 = vmatpush.msra.mxu0 %v4309
  %6191 = vmatpush.msra.mxu0 %v4305
  %6192 = vmatpush.msra.mxu0 %v4301
  %6193 = vmatpush.msra.mxu0 %v4297
  %6194 = vmatpush.msra.mxu0 %v4293
  %6195 = vmatpush.msra.mxu0 %v4289
  %6196 = vmatmul.f32.gmra.mxu0 %v5207
  %v6197 = vpop.f32.mrf.mxu0
  %v6198 = vadd.f32 %v6157, %v6197
  %6199 = vmatmul.f32.gmra.mxu0 %v5212
  %v6200 = vpop.f32.mrf.mxu0
  %v6201 = vadd.f32 %v6160, %v6200
  %6202 = vmatmul.f32.gmra.mxu0 %v5217
  %v6203 = vpop.f32.mrf.mxu0
  %v6204 = vadd.f32 %v6163, %v6203
  %6205 = vmatmul.f32.gmra.mxu0 %v5222
  %v6206 = vpop.f32.mrf.mxu0
  %v6207 = vadd.f32 %v6166, %v6206
  %6208 = vmatmul.f32.gmra.mxu0 %v5227
  %v6209 = vpop.f32.mrf.mxu0
  %v6210 = vadd.f32 %v6169, %v6209
  %6211 = vmatmul.f32.gmra.mxu0 %v5232
  %v6212 = vpop.f32.mrf.mxu0
  %v6213 = vadd.f32 %v6172, %v6212
  %6214 = vmatmul.f32.gmra.mxu0 %v5237
  %v6215 = vpop.f32.mrf.mxu0
  %v6216 = vadd.f32 %v6175, %v6215
  %6217 = vmatmul.f32.gmra.mxu0 %v5242
  %v6218 = vpop.f32.mrf.mxu0
  %v6219 = vadd.f32 %v6178, %v6218
  %6220 = vdwg.mxu0
  %6221 = vmatpush.msra.mxu0 %v4701
  %6222 = vmatpush.msra.mxu0 %v4700
  %6223 = vmatpush.msra.mxu0 %v4699
  %6224 = vmatpush.msra.mxu0 %v4698
  %6225 = vmatpush.msra.mxu0 %v4697
  %6226 = vmatpush.msra.mxu0 %v4696
  %6227 = vmatpush.msra.mxu0 %v4695
  %6228 = vmatpush.msra.mxu0 %v4694
  %6229 = vmatpush.msra.mxu0 %v3821
  %6230 = vmatpush.msra.mxu0 %v3816
  %6231 = vmatpush.msra.mxu0 %v3811
  %6232 = vmatpush.msra.mxu0 %v3806
  %6233 = vmatpush.msra.mxu0 %v3801
  %6234 = vmatpush.msra.mxu0 %v3796
  %6235 = vmatpush.msra.mxu0 %v3791
  %6236 = vmatpush.msra.mxu0 %v3786
  %6237 = vmatmul.f32.gmra.mxu0 %v5208
  %v6238 = vpop.f32.mrf.mxu0
  %v6239 = vadd.f32 %v6198, %v6238
  %6240 = vmatmul.f32.gmra.mxu0 %v5213
  %v6241 = vpop.f32.mrf.mxu0
  %v6242 = vadd.f32 %v6201, %v6241
  %6243 = vmatmul.f32.gmra.mxu0 %v5218
  %v6244 = vpop.f32.mrf.mxu0
  %v6245 = vadd.f32 %v6204, %v6244
  %6246 = vmatmul.f32.gmra.mxu0 %v5223
  %v6247 = vpop.f32.mrf.mxu0
  %v6248 = vadd.f32 %v6207, %v6247
  %6249 = vmatmul.f32.gmra.mxu0 %v5228
  %v6250 = vpop.f32.mrf.mxu0
  %v6251 = vadd.f32 %v6210, %v6250
  %6252 = vmatmul.f32.gmra.mxu0 %v5233
  %v6253 = vpop.f32.mrf.mxu0
  %v6254 = vadd.f32 %v6213, %v6253
  %6255 = vmatmul.f32.gmra.mxu0 %v5238
  %v6256 = vpop.f32.mrf.mxu0
  %v6257 = vadd.f32 %v6216, %v6256
  %6258 = vmatmul.f32.gmra.mxu0 %v5243
  %v6259 = vpop.f32.mrf.mxu0
  %v6260 = vadd.f32 %v6219, %v6259
  %6261 = vdwg.mxu0
  %6262 = vmatpush.msra.mxu0 %v5037
  %6263 = vmatpush.msra.mxu0 %v5036
  %6264 = vmatpush.msra.mxu0 %v5035
  %6265 = vmatpush.msra.mxu0 %v5034
  %6266 = vmatpush.msra.mxu0 %v5033
  %6267 = vmatpush.msra.mxu0 %v5032
  %6268 = vmatpush.msra.mxu0 %v5031
  %6269 = vmatpush.msra.mxu0 %v5030
  %6270 = vmatpush.msra.mxu0 %v4869
  %6271 = vmatpush.msra.mxu0 %v4868
  %6272 = vmatpush.msra.mxu0 %v4867
  %6273 = vmatpush.msra.mxu0 %v4866
  %6274 = vmatpush.msra.mxu0 %v4865
  %6275 = vmatpush.msra.mxu0 %v4864
  %6276 = vmatpush.msra.mxu0 %v4863
  %6277 = vmatpush.msra.mxu0 %v4862
  %6278 = vmatmul.f32.gmra.mxu0 %v5209
  %v6279 = vpop.f32.mrf.mxu0
  %v6280 = vadd.f32 %v6239, %v6279
  %6281 = vmatmul.f32.gmra.mxu0 %v5214
  %v6282 = vpop.f32.mrf.mxu0
  %v6283 = vadd.f32 %v6242, %v6282
  %6284 = vmatmul.f32.gmra.mxu0 %v5219
  %v6285 = vpop.f32.mrf.mxu0
  %v6286 = vadd.f32 %v6245, %v6285
  %6287 = vmatmul.f32.gmra.mxu0 %v5224
  %v6288 = vpop.f32.mrf.mxu0
  %v6289 = vadd.f32 %v6248, %v6288
  %6290 = vmatmul.f32.gmra.mxu0 %v5229
  %v6291 = vpop.f32.mrf.mxu0
  %v6292 = vadd.f32 %v6251, %v6291
  %6293 = vmatmul.f32.gmra.mxu0 %v5234
  %v6294 = vpop.f32.mrf.mxu0
  %v6295 = vadd.f32 %v6254, %v6294
  %6296 = vmatmul.f32.gmra.mxu0 %v5239
  %v6297 = vpop.f32.mrf.mxu0
  %v6298 = vadd.f32 %v6257, %v6297
  %6299 = vmatmul.f32.gmra.mxu0 %v5244
  %v6300 = vpop.f32.mrf.mxu0
  %v6301 = vadd.f32 %v6260, %v6300
  %6302 = vdwg.mxu0
  %6303 = vmatpush.msra.mxu0 0.0
  %6304 = vmatpush.msra.mxu0 0.0
  %6305 = vmatpush.msra.mxu0 0.0
  %6306 = vmatpush.msra.mxu0 0.0
  %6307 = vmatpush.msra.mxu0 0.0
  %6308 = vmatpush.msra.mxu0 0.0
  %6309 = vmatpush.msra.mxu0 0.0
  %6310 = vmatpush.msra.mxu0 0.0
  %6311 = vmatpush.msra.mxu0 %v5205
  %6312 = vmatpush.msra.mxu0 %v5204
  %6313 = vmatpush.msra.mxu0 %v5203
  %6314 = vmatpush.msra.mxu0 %v5202
  %6315 = vmatpush.msra.mxu0 %v5201
  %6316 = vmatpush.msra.mxu0 %v5200
  %6317 = vmatpush.msra.mxu0 %v5199
  %6318 = vmatpush.msra.mxu0 %v5198
  %6319 = vmatmul.f32.gmra.mxu0 %v5296
  %v6320 = vpop.f32.mrf.mxu0
  %v6321 = vadd.f32 %v6280, %v6320
  %6322 = vmatmul.f32.gmra.mxu0 %v5299
  %v6323 = vpop.f32.mrf.mxu0
  %v6324 = vadd.f32 %v6283, %v6323
  %6325 = vmatmul.f32.gmra.mxu0 %v5302
  %v6326 = vpop.f32.mrf.mxu0
  %v6327 = vadd.f32 %v6286, %v6326
  %6328 = vmatmul.f32.gmra.mxu0 %v5305
  %v6329 = vpop.f32.mrf.mxu0
  %v6330 = vadd.f32 %v6289, %v6329
  %6331 = vmatmul.f32.gmra.mxu0 %v5308
  %v6332 = vpop.f32.mrf.mxu0
  %v6333 = vadd.f32 %v6292, %v6332
  %6334 = vmatmul.f32.gmra.mxu0 %v5311
  %v6335 = vpop.f32.mrf.mxu0
  %v6336 = vadd.f32 %v6295, %v6335
  %6337 = vmatmul.f32.gmra.mxu0 %v5314
  %v6338 = vpop.f32.mrf.mxu0
  %v6339 = vadd.f32 %v6298, %v6338
  %6340 = vmatmul.f32.gmra.mxu0 %v5317
  %v6341 = vpop.f32.mrf.mxu0
  %v6342 = vadd.f32 %v6301, %v6341
  %6343 = vdwg.mxu0
  %v6344 = vmax.f32 %v5501, 0.0
  %v6345 = vmax.f32 %v5706, 0.0
  %v6346 = vmax.f32 %v5911, 0.0
  %v6347 = vmax.f32 %v6116, 0.0
  %v6348 = vmax.f32 %v6321, 0.0
  %v6349 = vmax.f32 %v5504, 0.0
  %v6350 = vmax.f32 %v5709, 0.0
  %v6351 = vmax.f32 %v5914, 0.0
  %v6352 = vmax.f32 %v6119, 0.0
  %v6353 = vmax.f32 %v6324, 0.0
  %v6354 = vmax.f32 %v5507, 0.0
  %v6355 = vmax.f32 %v5712, 0.0
  %v6356 = vmax.f32 %v5917, 0.0
  %v6357 = vmax.f32 %v6122, 0.0
  %v6358 = vmax.f32 %v6327, 0.0
  %v6359 = vmax.f32 %v5510, 0.0
  %v6360 = vmax.f32 %v5715, 0.0
  %v6361 = vmax.f32 %v5920, 0.0
  %v6362 = vmax.f32 %v6125, 0.0
  %v6363 = vmax.f32 %v6330, 0.0
  %v6364 = vmax.f32 %v5513, 0.0
  %v6365 = vmax.f32 %v5718, 0.0
  %v6366 = vmax.f32 %v5923, 0.0
  %v6367 = vmax.f32 %v6128, 0.0
  %v6368 = vmax.f32 %v6333, 0.0
  %v6369 = vmax.f32 %v5516, 0.0
  %v6370 = vmax.f32 %v5721, 0.0
  %v6371 = vmax.f32 %v5926, 0.0
  %v6372 = vmax.f32 %v6131, 0.0
  %v6373 = vmax.f32 %v6336, 0.0
  %v6374 = vmax.f32 %v5519, 0.0
  %v6375 = vmax.f32 %v5724, 0.0
  %v6376 = vmax.f32 %v5929, 0.0
  %v6377 = vmax.f32 %v6134, 0.0
  %v6378 = vmax.f32 %v6339, 0.0
  %v6379 = vmax.f32 %v5522, 0.0
  %v6380 = vmax.f32 %v5727, 0.0
  %v6381 = vmax.f32 %v5932, 0.0
  %v6382 = vmax.f32 %v6137, 0.0
  %v6383 = vmax.f32 %v6342, 0.0
  %v6384 = vmul.f32 %v6344, %v383
  %v6385 = vmul.f32 %v6345, %v384
  %v6386 = vmul.f32 %v6346, %v385
  %v6387 = vmul.f32 %v6347, %v386
  %v6388 = vmul.f32 %v6348, %v387
  %v6389 = vmul.f32 %v6349, %v383
  %v6390 = vmul.f32 %v6350, %v384
  %v6391 = vmul.f32 %v6351, %v385
  %v6392 = vmul.f32 %v6352, %v386
  %v6393 = vmul.f32 %v6353, %v387
  %v6394 = vmul.f32 %v6354, %v383
  %v6395 = vmul.f32 %v6355, %v384
  %v6396 = vmul.f32 %v6356, %v385
  %v6397 = vmul.f32 %v6357, %v386
  %v6398 = vmul.f32 %v6358, %v387
  %v6399 = vmul.f32 %v6359, %v383
  %v6400 = vmul.f32 %v6360, %v384
  %v6401 = vmul.f32 %v6361, %v385
  %v6402 = vmul.f32 %v6362, %v386
  %v6403 = vmul.f32 %v6363, %v387
  %v6404 = vmul.f32 %v6364, %v383
  %v6405 = vmul.f32 %v6365, %v384
  %v6406 = vmul.f32 %v6366, %v385
  %v6407 = vmul.f32 %v6367, %v386
  %v6408 = vmul.f32 %v6368, %v387
  %v6409 = vmul.f32 %v6369, %v383
  %v6410 = vmul.f32 %v6370, %v384
  %v6411 = vmul.f32 %v6371, %v385
  %v6412 = vmul.f32 %v6372, %v386
  %v6413 = vmul.f32 %v6373, %v387
  %v6414 = vmul.f32 %v6374, %v383
  %v6415 = vmul.f32 %v6375, %v384
  %v6416 = vmul.f32 %v6376, %v385
  %v6417 = vmul.f32 %v6377, %v386
  %v6418 = vmul.f32 %v6378, %v387
  %v6419 = vmul.f32 %v6379, %v383
  %v6420 = vmul.f32 %v6380, %v384
  %v6421 = vmul.f32 %v6381, %v385
  %v6422 = vmul.f32 %v6382, %v386
  %v6423 = vmul.f32 %v6383, %v387
  %6432 = vrot.lane.b32.xlu0 %v6388, 18
  %v6433 = vpop.permute.xlu0 %6432
  %6434 = vrot.lane.b32.xlu0 %v6393, 18
  %v6435 = vpop.permute.xlu0 %6434
  %6436 = vrot.lane.b32.xlu0 %v6398, 18
  %v6437 = vpop.permute.xlu0 %6436
  %6438 = vrot.lane.b32.xlu0 %v6403, 18
  %v6439 = vpop.permute.xlu0 %6438
  %6440 = vrot.lane.b32.xlu0 %v6408, 18
  %v6441 = vpop.permute.xlu0 %6440
  %6442 = vrot.lane.b32.xlu0 %v6413, 18
  %v6443 = vpop.permute.xlu0 %6442
  %6444 = vrot.lane.b32.xlu0 %v6418, 18
  %v6445 = vpop.permute.xlu0 %6444
  %6446 = vrot.lane.b32.xlu0 %v6423, 18
  %v6447 = vpop.permute.xlu0 %6446
  %6488 = vrot.lane.b32.xlu0 %v6384, 18
  %v6489 = vpop.permute.xlu0 %6488
  %6490 = vrot.lane.b32.xlu0 %v6385, 18
  %v6491 = vpop.permute.xlu0 %6490
  %6492 = vrot.lane.b32.xlu0 %v6386, 18
  %v6493 = vpop.permute.xlu0 %6492
  %6494 = vrot.lane.b32.xlu0 %v6387, 18
  %v6495 = vpop.permute.xlu0 %6494
  %6496 = vrot.lane.b32.xlu0 %v6389, 18
  %v6497 = vpop.permute.xlu0 %6496
  %6498 = vrot.lane.b32.xlu0 %v6390, 18
  %v6499 = vpop.permute.xlu0 %6498
  %6500 = vrot.lane.b32.xlu0 %v6391, 18
  %v6501 = vpop.permute.xlu0 %6500
  %6502 = vrot.lane.b32.xlu0 %v6392, 18
  %v6503 = vpop.permute.xlu0 %6502
  %6504 = vrot.lane.b32.xlu0 %v6394, 18
  %v6505 = vpop.permute.xlu0 %6504
  %6506 = vrot.lane.b32.xlu0 %v6395, 18
  %v6507 = vpop.permute.xlu0 %6506
  %6508 = vrot.lane.b32.xlu0 %v6396, 18
  %v6509 = vpop.permute.xlu0 %6508
  %6510 = vrot.lane.b32.xlu0 %v6397, 18
  %v6511 = vpop.permute.xlu0 %6510
  %6512 = vrot.lane.b32.xlu0 %v6399, 18
  %v6513 = vpop.permute.xlu0 %6512
  %6514 = vrot.lane.b32.xlu0 %v6400, 18
  %v6515 = vpop.permute.xlu0 %6514
  %6516 = vrot.lane.b32.xlu0 %v6401, 18
  %v6517 = vpop.permute.xlu0 %6516
  %6518 = vrot.lane.b32.xlu0 %v6402, 18
  %v6519 = vpop.permute.xlu0 %6518
  %6520 = vrot.lane.b32.xlu0 %v6404, 18
  %v6521 = vpop.permute.xlu0 %6520
  %6522 = vrot.lane.b32.xlu0 %v6405, 18
  %v6523 = vpop.permute.xlu0 %6522
  %6524 = vrot.lane.b32.xlu0 %v6406, 18
  %v6525 = vpop.permute.xlu0 %6524
  %6526 = vrot.lane.b32.xlu0 %v6407, 18
  %v6527 = vpop.permute.xlu0 %6526
  %6528 = vrot.lane.b32.xlu0 %v6409, 18
  %v6529 = vpop.permute.xlu0 %6528
  %6530 = vrot.lane.b32.xlu0 %v6410, 18
  %v6531 = vpop.permute.xlu0 %6530
  %6532 = vrot.lane.b32.xlu0 %v6411, 18
  %v6533 = vpop.permute.xlu0 %6532
  %6534 = vrot.lane.b32.xlu0 %v6412, 18
  %v6535 = vpop.permute.xlu0 %6534
  %6536 = vrot.lane.b32.xlu0 %v6414, 18
  %v6537 = vpop.permute.xlu0 %6536
  %6538 = vrot.lane.b32.xlu0 %v6415, 18
  %v6539 = vpop.permute.xlu0 %6538
  %6540 = vrot.lane.b32.xlu0 %v6416, 18
  %v6541 = vpop.permute.xlu0 %6540
  %6542 = vrot.lane.b32.xlu0 %v6417, 18
  %v6543 = vpop.permute.xlu0 %6542
  %6544 = vrot.lane.b32.xlu0 %v6419, 18
  %v6545 = vpop.permute.xlu0 %6544
  %6546 = vrot.lane.b32.xlu0 %v6420, 18
  %v6547 = vpop.permute.xlu0 %6546
  %6548 = vrot.lane.b32.xlu0 %v6421, 18
  %v6549 = vpop.permute.xlu0 %6548
  %6550 = vrot.lane.b32.xlu0 %v6422, 18
  %v6551 = vpop.permute.xlu0 %6550
  %v6552 = vsel %vm71, %v6489, %v6491
  %v6553 = vsel %vm71, %v6491, %v6493
  %v6554 = vsel %vm71, %v6493, %v6495
  %v6555 = vsel %vm71, %v6495, %v6433
  %v6556 = vsel %vm71, %v6497, %v6499
  %v6557 = vsel %vm71, %v6499, %v6501
  %v6558 = vsel %vm71, %v6501, %v6503
  %v6559 = vsel %vm71, %v6503, %v6435
  %v6560 = vsel %vm71, %v6505, %v6507
  %v6561 = vsel %vm71, %v6507, %v6509
  %v6562 = vsel %vm71, %v6509, %v6511
  %v6563 = vsel %vm71, %v6511, %v6437
  %v6564 = vsel %vm71, %v6513, %v6515
  %v6565 = vsel %vm71, %v6515, %v6517
  %v6566 = vsel %vm71, %v6517, %v6519
  %v6567 = vsel %vm71, %v6519, %v6439
  %v6568 = vsel %vm71, %v6521, %v6523
  %v6569 = vsel %vm71, %v6523, %v6525
  %v6570 = vsel %vm71, %v6525, %v6527
  %v6571 = vsel %vm71, %v6527, %v6441
  %v6572 = vsel %vm71, %v6529, %v6531
  %v6573 = vsel %vm71, %v6531, %v6533
  %v6574 = vsel %vm71, %v6533, %v6535
  %v6575 = vsel %vm71, %v6535, %v6443
  %v6576 = vsel %vm71, %v6537, %v6539
  %v6577 = vsel %vm71, %v6539, %v6541
  %v6578 = vsel %vm71, %v6541, %v6543
  %v6579 = vsel %vm71, %v6543, %v6445
  %v6580 = vsel %vm71, %v6545, %v6547
  %v6581 = vsel %vm71, %v6547, %v6549
  %v6582 = vsel %vm71, %v6549, %v6551
  %v6583 = vsel %vm71, %v6551, %v6447
  %v6624 = vsel %vm71, %v6433, %v6489
  %v6625 = vsel %vm71, %v6435, %v6497
  %v6626 = vsel %vm71, %v6437, %v6505
  %v6627 = vsel %vm71, %v6439, %v6513
  %v6628 = vsel %vm71, %v6441, %v6521
  %v6629 = vsel %vm71, %v6443, %v6529
  %v6630 = vsel %vm71, %v6445, %v6537
  %v6631 = vsel %vm71, %v6447, %v6545
  %6632 = vrot.lane.b32.xlu0 %v6388, 17
  %v6633 = vpop.permute.xlu0 %6632
  %6634 = vrot.lane.b32.xlu0 %v6393, 17
  %v6635 = vpop.permute.xlu0 %6634
  %6636 = vrot.lane.b32.xlu0 %v6398, 17
  %v6637 = vpop.permute.xlu0 %6636
  %6638 = vrot.lane.b32.xlu0 %v6403, 17
  %v6639 = vpop.permute.xlu0 %6638
  %6640 = vrot.lane.b32.xlu0 %v6408, 17
  %v6641 = vpop.permute.xlu0 %6640
  %6642 = vrot.lane.b32.xlu0 %v6413, 17
  %v6643 = vpop.permute.xlu0 %6642
  %6644 = vrot.lane.b32.xlu0 %v6418, 17
  %v6645 = vpop.permute.xlu0 %6644
  %6646 = vrot.lane.b32.xlu0 %v6423, 17
  %v6647 = vpop.permute.xlu0 %6646
  %6656 = vrot.lane.b32.xlu0 %v6384, 17
  %v6657 = vpop.permute.xlu0 %6656
  %6658 = vrot.lane.b32.xlu0 %v6385, 17
  %v6659 = vpop.permute.xlu0 %6658
  %6660 = vrot.lane.b32.xlu0 %v6386, 17
  %v6661 = vpop.permute.xlu0 %6660
  %6662 = vrot.lane.b32.xlu0 %v6387, 17
  %v6663 = vpop.permute.xlu0 %6662
  %6664 = vrot.lane.b32.xlu0 %v6389, 17
  %v6665 = vpop.permute.xlu0 %6664
  %6666 = vrot.lane.b32.xlu0 %v6390, 17
  %v6667 = vpop.permute.xlu0 %6666
  %6668 = vrot.lane.b32.xlu0 %v6391, 17
  %v6669 = vpop.permute.xlu0 %6668
  %6670 = vrot.lane.b32.xlu0 %v6392, 17
  %v6671 = vpop.permute.xlu0 %6670
  %6672 = vrot.lane.b32.xlu0 %v6394, 17
  %v6673 = vpop.permute.xlu0 %6672
  %6674 = vrot.lane.b32.xlu0 %v6395, 17
  %v6675 = vpop.permute.xlu0 %6674
  %6676 = vrot.lane.b32.xlu0 %v6396, 17
  %v6677 = vpop.permute.xlu0 %6676
  %6678 = vrot.lane.b32.xlu0 %v6397, 17
  %v6679 = vpop.permute.xlu0 %6678
  %6680 = vrot.lane.b32.xlu0 %v6399, 17
  %v6681 = vpop.permute.xlu0 %6680
  %6682 = vrot.lane.b32.xlu0 %v6400, 17
  %v6683 = vpop.permute.xlu0 %6682
  %6684 = vrot.lane.b32.xlu0 %v6401, 17
  %v6685 = vpop.permute.xlu0 %6684
  %6686 = vrot.lane.b32.xlu0 %v6402, 17
  %v6687 = vpop.permute.xlu0 %6686
  %6688 = vrot.lane.b32.xlu0 %v6404, 17
  %v6689 = vpop.permute.xlu0 %6688
  %6690 = vrot.lane.b32.xlu0 %v6405, 17
  %v6691 = vpop.permute.xlu0 %6690
  %6692 = vrot.lane.b32.xlu0 %v6406, 17
  %v6693 = vpop.permute.xlu0 %6692
  %6694 = vrot.lane.b32.xlu0 %v6407, 17
  %v6695 = vpop.permute.xlu0 %6694
  %6696 = vrot.lane.b32.xlu0 %v6409, 17
  %v6697 = vpop.permute.xlu0 %6696
  %6698 = vrot.lane.b32.xlu0 %v6410, 17
  %v6699 = vpop.permute.xlu0 %6698
  %6700 = vrot.lane.b32.xlu0 %v6411, 17
  %v6701 = vpop.permute.xlu0 %6700
  %6702 = vrot.lane.b32.xlu0 %v6412, 17
  %v6703 = vpop.permute.xlu0 %6702
  %6704 = vrot.lane.b32.xlu0 %v6414, 17
  %v6705 = vpop.permute.xlu0 %6704
  %6706 = vrot.lane.b32.xlu0 %v6415, 17
  %v6707 = vpop.permute.xlu0 %6706
  %6708 = vrot.lane.b32.xlu0 %v6416, 17
  %v6709 = vpop.permute.xlu0 %6708
  %6710 = vrot.lane.b32.xlu0 %v6417, 17
  %v6711 = vpop.permute.xlu0 %6710
  %6712 = vrot.lane.b32.xlu0 %v6419, 17
  %v6713 = vpop.permute.xlu0 %6712
  %6714 = vrot.lane.b32.xlu0 %v6420, 17
  %v6715 = vpop.permute.xlu0 %6714
  %6716 = vrot.lane.b32.xlu0 %v6421, 17
  %v6717 = vpop.permute.xlu0 %6716
  %6718 = vrot.lane.b32.xlu0 %v6422, 17
  %v6719 = vpop.permute.xlu0 %6718
  %v6720 = vsel %vm93, %v6657, %v6659
  %v6721 = vsel %vm93, %v6659, %v6661
  %v6722 = vsel %vm93, %v6661, %v6663
  %v6723 = vsel %vm93, %v6663, %v6633
  %v6724 = vsel %vm93, %v6665, %v6667
  %v6725 = vsel %vm93, %v6667, %v6669
  %v6726 = vsel %vm93, %v6669, %v6671
  %v6727 = vsel %vm93, %v6671, %v6635
  %v6728 = vsel %vm93, %v6673, %v6675
  %v6729 = vsel %vm93, %v6675, %v6677
  %v6730 = vsel %vm93, %v6677, %v6679
  %v6731 = vsel %vm93, %v6679, %v6637
  %v6732 = vsel %vm93, %v6681, %v6683
  %v6733 = vsel %vm93, %v6683, %v6685
  %v6734 = vsel %vm93, %v6685, %v6687
  %v6735 = vsel %vm93, %v6687, %v6639
  %v6736 = vsel %vm93, %v6689, %v6691
  %v6737 = vsel %vm93, %v6691, %v6693
  %v6738 = vsel %vm93, %v6693, %v6695
  %v6739 = vsel %vm93, %v6695, %v6641
  %v6740 = vsel %vm93, %v6697, %v6699
  %v6741 = vsel %vm93, %v6699, %v6701
  %v6742 = vsel %vm93, %v6701, %v6703
  %v6743 = vsel %vm93, %v6703, %v6643
  %v6744 = vsel %vm93, %v6705, %v6707
  %v6745 = vsel %vm93, %v6707, %v6709
  %v6746 = vsel %vm93, %v6709, %v6711
  %v6747 = vsel %vm93, %v6711, %v6645
  %v6748 = vsel %vm93, %v6713, %v6715
  %v6749 = vsel %vm93, %v6715, %v6717
  %v6750 = vsel %vm93, %v6717, %v6719
  %v6751 = vsel %vm93, %v6719, %v6647
  %v6792 = vsel %vm93, %v6633, %v6657
  %v6793 = vsel %vm93, %v6635, %v6665
  %v6794 = vsel %vm93, %v6637, %v6673
  %v6795 = vsel %vm93, %v6639, %v6681
  %v6796 = vsel %vm93, %v6641, %v6689
  %v6797 = vsel %vm93, %v6643, %v6697
  %v6798 = vsel %vm93, %v6645, %v6705
  %v6799 = vsel %vm93, %v6647, %v6713
  %6800 = vrot.lane.b32.xlu0 %v6388, 16
  %v6801 = vpop.permute.xlu0 %6800
  %6802 = vrot.lane.b32.xlu0 %v6393, 16
  %v6803 = vpop.permute.xlu0 %6802
  %6804 = vrot.lane.b32.xlu0 %v6398, 16
  %v6805 = vpop.permute.xlu0 %6804
  %6806 = vrot.lane.b32.xlu0 %v6403, 16
  %v6807 = vpop.permute.xlu0 %6806
  %6808 = vrot.lane.b32.xlu0 %v6408, 16
  %v6809 = vpop.permute.xlu0 %6808
  %6810 = vrot.lane.b32.xlu0 %v6413, 16
  %v6811 = vpop.permute.xlu0 %6810
  %6812 = vrot.lane.b32.xlu0 %v6418, 16
  %v6813 = vpop.permute.xlu0 %6812
  %6814 = vrot.lane.b32.xlu0 %v6423, 16
  %v6815 = vpop.permute.xlu0 %6814
  %6824 = vrot.lane.b32.xlu0 %v6384, 16
  %v6825 = vpop.permute.xlu0 %6824
  %6826 = vrot.lane.b32.xlu0 %v6385, 16
  %v6827 = vpop.permute.xlu0 %6826
  %6828 = vrot.lane.b32.xlu0 %v6386, 16
  %v6829 = vpop.permute.xlu0 %6828
  %6830 = vrot.lane.b32.xlu0 %v6387, 16
  %v6831 = vpop.permute.xlu0 %6830
  %6832 = vrot.lane.b32.xlu0 %v6389, 16
  %v6833 = vpop.permute.xlu0 %6832
  %6834 = vrot.lane.b32.xlu0 %v6390, 16
  %v6835 = vpop.permute.xlu0 %6834
  %6836 = vrot.lane.b32.xlu0 %v6391, 16
  %v6837 = vpop.permute.xlu0 %6836
  %6838 = vrot.lane.b32.xlu0 %v6392, 16
  %v6839 = vpop.permute.xlu0 %6838
  %6840 = vrot.lane.b32.xlu0 %v6394, 16
  %v6841 = vpop.permute.xlu0 %6840
  %6842 = vrot.lane.b32.xlu0 %v6395, 16
  %v6843 = vpop.permute.xlu0 %6842
  %6844 = vrot.lane.b32.xlu0 %v6396, 16
  %v6845 = vpop.permute.xlu0 %6844
  %6846 = vrot.lane.b32.xlu0 %v6397, 16
  %v6847 = vpop.permute.xlu0 %6846
  %6848 = vrot.lane.b32.xlu0 %v6399, 16
  %v6849 = vpop.permute.xlu0 %6848
  %6850 = vrot.lane.b32.xlu0 %v6400, 16
  %v6851 = vpop.permute.xlu0 %6850
  %6852 = vrot.lane.b32.xlu0 %v6401, 16
  %v6853 = vpop.permute.xlu0 %6852
  %6854 = vrot.lane.b32.xlu0 %v6402, 16
  %v6855 = vpop.permute.xlu0 %6854
  %6856 = vrot.lane.b32.xlu0 %v6404, 16
  %v6857 = vpop.permute.xlu0 %6856
  %6858 = vrot.lane.b32.xlu0 %v6405, 16
  %v6859 = vpop.permute.xlu0 %6858
  %6860 = vrot.lane.b32.xlu0 %v6406, 16
  %v6861 = vpop.permute.xlu0 %6860
  %6862 = vrot.lane.b32.xlu0 %v6407, 16
  %v6863 = vpop.permute.xlu0 %6862
  %6864 = vrot.lane.b32.xlu0 %v6409, 16
  %v6865 = vpop.permute.xlu0 %6864
  %6866 = vrot.lane.b32.xlu0 %v6410, 16
  %v6867 = vpop.permute.xlu0 %6866
  %6868 = vrot.lane.b32.xlu0 %v6411, 16
  %v6869 = vpop.permute.xlu0 %6868
  %6870 = vrot.lane.b32.xlu0 %v6412, 16
  %v6871 = vpop.permute.xlu0 %6870
  %6872 = vrot.lane.b32.xlu0 %v6414, 16
  %v6873 = vpop.permute.xlu0 %6872
  %6874 = vrot.lane.b32.xlu0 %v6415, 16
  %v6875 = vpop.permute.xlu0 %6874
  %6876 = vrot.lane.b32.xlu0 %v6416, 16
  %v6877 = vpop.permute.xlu0 %6876
  %6878 = vrot.lane.b32.xlu0 %v6417, 16
  %v6879 = vpop.permute.xlu0 %6878
  %6880 = vrot.lane.b32.xlu0 %v6419, 16
  %v6881 = vpop.permute.xlu0 %6880
  %6882 = vrot.lane.b32.xlu0 %v6420, 16
  %v6883 = vpop.permute.xlu0 %6882
  %6884 = vrot.lane.b32.xlu0 %v6421, 16
  %v6885 = vpop.permute.xlu0 %6884
  %6886 = vrot.lane.b32.xlu0 %v6422, 16
  %v6887 = vpop.permute.xlu0 %6886
  %v6888 = vsel %vm115, %v6825, %v6827
  %v6889 = vsel %vm115, %v6827, %v6829
  %v6890 = vsel %vm115, %v6829, %v6831
  %v6891 = vsel %vm115, %v6831, %v6801
  %v6892 = vsel %vm115, %v6833, %v6835
  %v6893 = vsel %vm115, %v6835, %v6837
  %v6894 = vsel %vm115, %v6837, %v6839
  %v6895 = vsel %vm115, %v6839, %v6803
  %v6896 = vsel %vm115, %v6841, %v6843
  %v6897 = vsel %vm115, %v6843, %v6845
  %v6898 = vsel %vm115, %v6845, %v6847
  %v6899 = vsel %vm115, %v6847, %v6805
  %v6900 = vsel %vm115, %v6849, %v6851
  %v6901 = vsel %vm115, %v6851, %v6853
  %v6902 = vsel %vm115, %v6853, %v6855
  %v6903 = vsel %vm115, %v6855, %v6807
  %v6904 = vsel %vm115, %v6857, %v6859
  %v6905 = vsel %vm115, %v6859, %v6861
  %v6906 = vsel %vm115, %v6861, %v6863
  %v6907 = vsel %vm115, %v6863, %v6809
  %v6908 = vsel %vm115, %v6865, %v6867
  %v6909 = vsel %vm115, %v6867, %v6869
  %v6910 = vsel %vm115, %v6869, %v6871
  %v6911 = vsel %vm115, %v6871, %v6811
  %v6912 = vsel %vm115, %v6873, %v6875
  %v6913 = vsel %vm115, %v6875, %v6877
  %v6914 = vsel %vm115, %v6877, %v6879
  %v6915 = vsel %vm115, %v6879, %v6813
  %v6916 = vsel %vm115, %v6881, %v6883
  %v6917 = vsel %vm115, %v6883, %v6885
  %v6918 = vsel %vm115, %v6885, %v6887
  %v6919 = vsel %vm115, %v6887, %v6815
  %v6960 = vsel %vm115, %v6801, %v6825
  %v6961 = vsel %vm115, %v6803, %v6833
  %v6962 = vsel %vm115, %v6805, %v6841
  %v6963 = vsel %vm115, %v6807, %v6849
  %v6964 = vsel %vm115, %v6809, %v6857
  %v6965 = vsel %vm115, %v6811, %v6865
  %v6966 = vsel %vm115, %v6813, %v6873
  %v6967 = vsel %vm115, %v6815, %v6881
  %6968 = vrot.lane.b32.xlu0 %v6388, 1
  %v6969 = vpop.permute.xlu0 %6968
  %6970 = vrot.lane.b32.xlu0 %v6393, 1
  %v6971 = vpop.permute.xlu0 %6970
  %6972 = vrot.lane.b32.xlu0 %v6398, 1
  %v6973 = vpop.permute.xlu0 %6972
  %6974 = vrot.lane.b32.xlu0 %v6403, 1
  %v6975 = vpop.permute.xlu0 %6974
  %6976 = vrot.lane.b32.xlu0 %v6408, 1
  %v6977 = vpop.permute.xlu0 %6976
  %6978 = vrot.lane.b32.xlu0 %v6413, 1
  %v6979 = vpop.permute.xlu0 %6978
  %6980 = vrot.lane.b32.xlu0 %v6418, 1
  %v6981 = vpop.permute.xlu0 %6980
  %6982 = vrot.lane.b32.xlu0 %v6423, 1
  %v6983 = vpop.permute.xlu0 %6982
  %6992 = vrot.lane.b32.xlu0 %v6384, 1
  %v6993 = vpop.permute.xlu0 %6992
  %6994 = vrot.lane.b32.xlu0 %v6385, 1
  %v6995 = vpop.permute.xlu0 %6994
  %6996 = vrot.lane.b32.xlu0 %v6386, 1
  %v6997 = vpop.permute.xlu0 %6996
  %6998 = vrot.lane.b32.xlu0 %v6387, 1
  %v6999 = vpop.permute.xlu0 %6998
  %7000 = vrot.lane.b32.xlu0 %v6389, 1
  %v7001 = vpop.permute.xlu0 %7000
  %7002 = vrot.lane.b32.xlu0 %v6390, 1
  %v7003 = vpop.permute.xlu0 %7002
  %7004 = vrot.lane.b32.xlu0 %v6391, 1
  %v7005 = vpop.permute.xlu0 %7004
  %7006 = vrot.lane.b32.xlu0 %v6392, 1
  %v7007 = vpop.permute.xlu0 %7006
  %7008 = vrot.lane.b32.xlu0 %v6394, 1
  %v7009 = vpop.permute.xlu0 %7008
  %7010 = vrot.lane.b32.xlu0 %v6395, 1
  %v7011 = vpop.permute.xlu0 %7010
  %7012 = vrot.lane.b32.xlu0 %v6396, 1
  %v7013 = vpop.permute.xlu0 %7012
  %7014 = vrot.lane.b32.xlu0 %v6397, 1
  %v7015 = vpop.permute.xlu0 %7014
  %7016 = vrot.lane.b32.xlu0 %v6399, 1
  %v7017 = vpop.permute.xlu0 %7016
  %7018 = vrot.lane.b32.xlu0 %v6400, 1
  %v7019 = vpop.permute.xlu0 %7018
  %7020 = vrot.lane.b32.xlu0 %v6401, 1
  %v7021 = vpop.permute.xlu0 %7020
  %7022 = vrot.lane.b32.xlu0 %v6402, 1
  %v7023 = vpop.permute.xlu0 %7022
  %7024 = vrot.lane.b32.xlu0 %v6404, 1
  %v7025 = vpop.permute.xlu0 %7024
  %7026 = vrot.lane.b32.xlu0 %v6405, 1
  %v7027 = vpop.permute.xlu0 %7026
  %7028 = vrot.lane.b32.xlu0 %v6406, 1
  %v7029 = vpop.permute.xlu0 %7028
  %7030 = vrot.lane.b32.xlu0 %v6407, 1
  %v7031 = vpop.permute.xlu0 %7030
  %7032 = vrot.lane.b32.xlu0 %v6409, 1
  %v7033 = vpop.permute.xlu0 %7032
  %7034 = vrot.lane.b32.xlu0 %v6410, 1
  %v7035 = vpop.permute.xlu0 %7034
  %7036 = vrot.lane.b32.xlu0 %v6411, 1
  %v7037 = vpop.permute.xlu0 %7036
  %7038 = vrot.lane.b32.xlu0 %v6412, 1
  %v7039 = vpop.permute.xlu0 %7038
  %7040 = vrot.lane.b32.xlu0 %v6414, 1
  %v7041 = vpop.permute.xlu0 %7040
  %7042 = vrot.lane.b32.xlu0 %v6415, 1
  %v7043 = vpop.permute.xlu0 %7042
  %7044 = vrot.lane.b32.xlu0 %v6416, 1
  %v7045 = vpop.permute.xlu0 %7044
  %7046 = vrot.lane.b32.xlu0 %v6417, 1
  %v7047 = vpop.permute.xlu0 %7046
  %7048 = vrot.lane.b32.xlu0 %v6419, 1
  %v7049 = vpop.permute.xlu0 %7048
  %7050 = vrot.lane.b32.xlu0 %v6420, 1
  %v7051 = vpop.permute.xlu0 %7050
  %7052 = vrot.lane.b32.xlu0 %v6421, 1
  %v7053 = vpop.permute.xlu0 %7052
  %7054 = vrot.lane.b32.xlu0 %v6422, 1
  %v7055 = vpop.permute.xlu0 %7054
  %v7056 = vsel %vm137, %v6993, %v6995
  %v7057 = vsel %vm137, %v6995, %v6997
  %v7058 = vsel %vm137, %v6997, %v6999
  %v7059 = vsel %vm137, %v6999, %v6969
  %v7060 = vsel %vm137, %v7001, %v7003
  %v7061 = vsel %vm137, %v7003, %v7005
  %v7062 = vsel %vm137, %v7005, %v7007
  %v7063 = vsel %vm137, %v7007, %v6971
  %v7064 = vsel %vm137, %v7009, %v7011
  %v7065 = vsel %vm137, %v7011, %v7013
  %v7066 = vsel %vm137, %v7013, %v7015
  %v7067 = vsel %vm137, %v7015, %v6973
  %v7068 = vsel %vm137, %v7017, %v7019
  %v7069 = vsel %vm137, %v7019, %v7021
  %v7070 = vsel %vm137, %v7021, %v7023
  %v7071 = vsel %vm137, %v7023, %v6975
  %v7072 = vsel %vm137, %v7025, %v7027
  %v7073 = vsel %vm137, %v7027, %v7029
  %v7074 = vsel %vm137, %v7029, %v7031
  %v7075 = vsel %vm137, %v7031, %v6977
  %v7076 = vsel %vm137, %v7033, %v7035
  %v7077 = vsel %vm137, %v7035, %v7037
  %v7078 = vsel %vm137, %v7037, %v7039
  %v7079 = vsel %vm137, %v7039, %v6979
  %v7080 = vsel %vm137, %v7041, %v7043
  %v7081 = vsel %vm137, %v7043, %v7045
  %v7082 = vsel %vm137, %v7045, %v7047
  %v7083 = vsel %vm137, %v7047, %v6981
  %v7084 = vsel %vm137, %v7049, %v7051
  %v7085 = vsel %vm137, %v7051, %v7053
  %v7086 = vsel %vm137, %v7053, %v7055
  %v7087 = vsel %vm137, %v7055, %v6983
  %v7128 = vsel %vm137, %v6969, %v6993
  %v7129 = vsel %vm137, %v6971, %v7001
  %v7130 = vsel %vm137, %v6973, %v7009
  %v7131 = vsel %vm137, %v6975, %v7017
  %v7132 = vsel %vm137, %v6977, %v7025
  %v7133 = vsel %vm137, %v6979, %v7033
  %v7134 = vsel %vm137, %v6981, %v7041
  %v7135 = vsel %vm137, %v6983, %v7049
  %7136 = vrot.lane.b32.xlu0 %v6384, 127
  %v7137 = vpop.permute.xlu0 %7136
  %7138 = vrot.lane.b32.xlu0 %v6385, 127
  %v7139 = vpop.permute.xlu0 %7138
  %7140 = vrot.lane.b32.xlu0 %v6386, 127
  %v7141 = vpop.permute.xlu0 %7140
  %7142 = vrot.lane.b32.xlu0 %v6387, 127
  %v7143 = vpop.permute.xlu0 %7142
  %7144 = vrot.lane.b32.xlu0 %v6388, 127
  %v7145 = vpop.permute.xlu0 %7144
  %7146 = vrot.lane.b32.xlu0 %v6389, 127
  %v7147 = vpop.permute.xlu0 %7146
  %7148 = vrot.lane.b32.xlu0 %v6390, 127
  %v7149 = vpop.permute.xlu0 %7148
  %7150 = vrot.lane.b32.xlu0 %v6391, 127
  %v7151 = vpop.permute.xlu0 %7150
  %7152 = vrot.lane.b32.xlu0 %v6392, 127
  %v7153 = vpop.permute.xlu0 %7152
  %7154 = vrot.lane.b32.xlu0 %v6393, 127
  %v7155 = vpop.permute.xlu0 %7154
  %7156 = vrot.lane.b32.xlu0 %v6394, 127
  %v7157 = vpop.permute.xlu0 %7156
  %7158 = vrot.lane.b32.xlu0 %v6395, 127
  %v7159 = vpop.permute.xlu0 %7158
  %7160 = vrot.lane.b32.xlu0 %v6396, 127
  %v7161 = vpop.permute.xlu0 %7160
  %7162 = vrot.lane.b32.xlu0 %v6397, 127
  %v7163 = vpop.permute.xlu0 %7162
  %7164 = vrot.lane.b32.xlu0 %v6398, 127
  %v7165 = vpop.permute.xlu0 %7164
  %7166 = vrot.lane.b32.xlu0 %v6399, 127
  %v7167 = vpop.permute.xlu0 %7166
  %7168 = vrot.lane.b32.xlu0 %v6400, 127
  %v7169 = vpop.permute.xlu0 %7168
  %7170 = vrot.lane.b32.xlu0 %v6401, 127
  %v7171 = vpop.permute.xlu0 %7170
  %7172 = vrot.lane.b32.xlu0 %v6402, 127
  %v7173 = vpop.permute.xlu0 %7172
  %7174 = vrot.lane.b32.xlu0 %v6403, 127
  %v7175 = vpop.permute.xlu0 %7174
  %7176 = vrot.lane.b32.xlu0 %v6404, 127
  %v7177 = vpop.permute.xlu0 %7176
  %7178 = vrot.lane.b32.xlu0 %v6405, 127
  %v7179 = vpop.permute.xlu0 %7178
  %7180 = vrot.lane.b32.xlu0 %v6406, 127
  %v7181 = vpop.permute.xlu0 %7180
  %7182 = vrot.lane.b32.xlu0 %v6407, 127
  %v7183 = vpop.permute.xlu0 %7182
  %7184 = vrot.lane.b32.xlu0 %v6408, 127
  %v7185 = vpop.permute.xlu0 %7184
  %7186 = vrot.lane.b32.xlu0 %v6409, 127
  %v7187 = vpop.permute.xlu0 %7186
  %7188 = vrot.lane.b32.xlu0 %v6410, 127
  %v7189 = vpop.permute.xlu0 %7188
  %7190 = vrot.lane.b32.xlu0 %v6411, 127
  %v7191 = vpop.permute.xlu0 %7190
  %7192 = vrot.lane.b32.xlu0 %v6412, 127
  %v7193 = vpop.permute.xlu0 %7192
  %7194 = vrot.lane.b32.xlu0 %v6413, 127
  %v7195 = vpop.permute.xlu0 %7194
  %7196 = vrot.lane.b32.xlu0 %v6414, 127
  %v7197 = vpop.permute.xlu0 %7196
  %7198 = vrot.lane.b32.xlu0 %v6415, 127
  %v7199 = vpop.permute.xlu0 %7198
  %7200 = vrot.lane.b32.xlu0 %v6416, 127
  %v7201 = vpop.permute.xlu0 %7200
  %7202 = vrot.lane.b32.xlu0 %v6417, 127
  %v7203 = vpop.permute.xlu0 %7202
  %7204 = vrot.lane.b32.xlu0 %v6418, 127
  %v7205 = vpop.permute.xlu0 %7204
  %7206 = vrot.lane.b32.xlu0 %v6419, 127
  %v7207 = vpop.permute.xlu0 %7206
  %7208 = vrot.lane.b32.xlu0 %v6420, 127
  %v7209 = vpop.permute.xlu0 %7208
  %7210 = vrot.lane.b32.xlu0 %v6421, 127
  %v7211 = vpop.permute.xlu0 %7210
  %7212 = vrot.lane.b32.xlu0 %v6422, 127
  %v7213 = vpop.permute.xlu0 %7212
  %7214 = vrot.lane.b32.xlu0 %v6423, 127
  %v7215 = vpop.permute.xlu0 %7214
  %v7216 = vsel %vm158, %v7137, %v7139
  %v7217 = vsel %vm158, %v7139, %v7141
  %v7218 = vsel %vm158, %v7141, %v7143
  %v7219 = vsel %vm158, %v7143, %v7145
  %v7220 = vsel %vm158, %v7147, %v7149
  %v7221 = vsel %vm158, %v7149, %v7151
  %v7222 = vsel %vm158, %v7151, %v7153
  %v7223 = vsel %vm158, %v7153, %v7155
  %v7224 = vsel %vm158, %v7157, %v7159
  %v7225 = vsel %vm158, %v7159, %v7161
  %v7226 = vsel %vm158, %v7161, %v7163
  %v7227 = vsel %vm158, %v7163, %v7165
  %v7228 = vsel %vm158, %v7167, %v7169
  %v7229 = vsel %vm158, %v7169, %v7171
  %v7230 = vsel %vm158, %v7171, %v7173
  %v7231 = vsel %vm158, %v7173, %v7175
  %v7232 = vsel %vm158, %v7177, %v7179
  %v7233 = vsel %vm158, %v7179, %v7181
  %v7234 = vsel %vm158, %v7181, %v7183
  %v7235 = vsel %vm158, %v7183, %v7185
  %v7236 = vsel %vm158, %v7187, %v7189
  %v7237 = vsel %vm158, %v7189, %v7191
  %v7238 = vsel %vm158, %v7191, %v7193
  %v7239 = vsel %vm158, %v7193, %v7195
  %v7240 = vsel %vm158, %v7197, %v7199
  %v7241 = vsel %vm158, %v7199, %v7201
  %v7242 = vsel %vm158, %v7201, %v7203
  %v7243 = vsel %vm158, %v7203, %v7205
  %v7244 = vsel %vm158, %v7207, %v7209
  %v7245 = vsel %vm158, %v7209, %v7211
  %v7246 = vsel %vm158, %v7211, %v7213
  %v7247 = vsel %vm158, %v7213, %v7215
  %v7296 = vsel %vm158, %v7145, %v7137
  %v7297 = vsel %vm158, %v7155, %v7147
  %v7298 = vsel %vm158, %v7165, %v7157
  %v7299 = vsel %vm158, %v7175, %v7167
  %v7300 = vsel %vm158, %v7185, %v7177
  %v7301 = vsel %vm158, %v7195, %v7187
  %v7302 = vsel %vm158, %v7205, %v7197
  %v7303 = vsel %vm158, %v7215, %v7207
  %7304 = vrot.lane.b32.xlu0 %v6384, 112
  %v7305 = vpop.permute.xlu0 %7304
  %7306 = vrot.lane.b32.xlu0 %v6385, 112
  %v7307 = vpop.permute.xlu0 %7306
  %7308 = vrot.lane.b32.xlu0 %v6386, 112
  %v7309 = vpop.permute.xlu0 %7308
  %7310 = vrot.lane.b32.xlu0 %v6387, 112
  %v7311 = vpop.permute.xlu0 %7310
  %7312 = vrot.lane.b32.xlu0 %v6388, 112
  %v7313 = vpop.permute.xlu0 %7312
  %7314 = vrot.lane.b32.xlu0 %v6389, 112
  %v7315 = vpop.permute.xlu0 %7314
  %7316 = vrot.lane.b32.xlu0 %v6390, 112
  %v7317 = vpop.permute.xlu0 %7316
  %7318 = vrot.lane.b32.xlu0 %v6391, 112
  %v7319 = vpop.permute.xlu0 %7318
  %7320 = vrot.lane.b32.xlu0 %v6392, 112
  %v7321 = vpop.permute.xlu0 %7320
  %7322 = vrot.lane.b32.xlu0 %v6393, 112
  %v7323 = vpop.permute.xlu0 %7322
  %7324 = vrot.lane.b32.xlu0 %v6394, 112
  %v7325 = vpop.permute.xlu0 %7324
  %7326 = vrot.lane.b32.xlu0 %v6395, 112
  %v7327 = vpop.permute.xlu0 %7326
  %7328 = vrot.lane.b32.xlu0 %v6396, 112
  %v7329 = vpop.permute.xlu0 %7328
  %7330 = vrot.lane.b32.xlu0 %v6397, 112
  %v7331 = vpop.permute.xlu0 %7330
  %7332 = vrot.lane.b32.xlu0 %v6398, 112
  %v7333 = vpop.permute.xlu0 %7332
  %7334 = vrot.lane.b32.xlu0 %v6399, 112
  %v7335 = vpop.permute.xlu0 %7334
  %7336 = vrot.lane.b32.xlu0 %v6400, 112
  %v7337 = vpop.permute.xlu0 %7336
  %7338 = vrot.lane.b32.xlu0 %v6401, 112
  %v7339 = vpop.permute.xlu0 %7338
  %7340 = vrot.lane.b32.xlu0 %v6402, 112
  %v7341 = vpop.permute.xlu0 %7340
  %7342 = vrot.lane.b32.xlu0 %v6403, 112
  %v7343 = vpop.permute.xlu0 %7342
  %7344 = vrot.lane.b32.xlu0 %v6404, 112
  %v7345 = vpop.permute.xlu0 %7344
  %7346 = vrot.lane.b32.xlu0 %v6405, 112
  %v7347 = vpop.permute.xlu0 %7346
  %7348 = vrot.lane.b32.xlu0 %v6406, 112
  %v7349 = vpop.permute.xlu0 %7348
  %7350 = vrot.lane.b32.xlu0 %v6407, 112
  %v7351 = vpop.permute.xlu0 %7350
  %7352 = vrot.lane.b32.xlu0 %v6408, 112
  %v7353 = vpop.permute.xlu0 %7352
  %7354 = vrot.lane.b32.xlu0 %v6409, 112
  %v7355 = vpop.permute.xlu0 %7354
  %7356 = vrot.lane.b32.xlu0 %v6410, 112
  %v7357 = vpop.permute.xlu0 %7356
  %7358 = vrot.lane.b32.xlu0 %v6411, 112
  %v7359 = vpop.permute.xlu0 %7358
  %7360 = vrot.lane.b32.xlu0 %v6412, 112
  %v7361 = vpop.permute.xlu0 %7360
  %7362 = vrot.lane.b32.xlu0 %v6413, 112
  %v7363 = vpop.permute.xlu0 %7362
  %7364 = vrot.lane.b32.xlu0 %v6414, 112
  %v7365 = vpop.permute.xlu0 %7364
  %7366 = vrot.lane.b32.xlu0 %v6415, 112
  %v7367 = vpop.permute.xlu0 %7366
  %7368 = vrot.lane.b32.xlu0 %v6416, 112
  %v7369 = vpop.permute.xlu0 %7368
  %7370 = vrot.lane.b32.xlu0 %v6417, 112
  %v7371 = vpop.permute.xlu0 %7370
  %7372 = vrot.lane.b32.xlu0 %v6418, 112
  %v7373 = vpop.permute.xlu0 %7372
  %7374 = vrot.lane.b32.xlu0 %v6419, 112
  %v7375 = vpop.permute.xlu0 %7374
  %7376 = vrot.lane.b32.xlu0 %v6420, 112
  %v7377 = vpop.permute.xlu0 %7376
  %7378 = vrot.lane.b32.xlu0 %v6421, 112
  %v7379 = vpop.permute.xlu0 %7378
  %7380 = vrot.lane.b32.xlu0 %v6422, 112
  %v7381 = vpop.permute.xlu0 %7380
  %7382 = vrot.lane.b32.xlu0 %v6423, 112
  %v7383 = vpop.permute.xlu0 %7382
  %v7384 = vsel %vm180, %v7305, %v7307
  %v7385 = vsel %vm180, %v7307, %v7309
  %v7386 = vsel %vm180, %v7309, %v7311
  %v7387 = vsel %vm180, %v7311, %v7313
  %v7388 = vsel %vm180, %v7315, %v7317
  %v7389 = vsel %vm180, %v7317, %v7319
  %v7390 = vsel %vm180, %v7319, %v7321
  %v7391 = vsel %vm180, %v7321, %v7323
  %v7392 = vsel %vm180, %v7325, %v7327
  %v7393 = vsel %vm180, %v7327, %v7329
  %v7394 = vsel %vm180, %v7329, %v7331
  %v7395 = vsel %vm180, %v7331, %v7333
  %v7396 = vsel %vm180, %v7335, %v7337
  %v7397 = vsel %vm180, %v7337, %v7339
  %v7398 = vsel %vm180, %v7339, %v7341
  %v7399 = vsel %vm180, %v7341, %v7343
  %v7400 = vsel %vm180, %v7345, %v7347
  %v7401 = vsel %vm180, %v7347, %v7349
  %v7402 = vsel %vm180, %v7349, %v7351
  %v7403 = vsel %vm180, %v7351, %v7353
  %v7404 = vsel %vm180, %v7355, %v7357
  %v7405 = vsel %vm180, %v7357, %v7359
  %v7406 = vsel %vm180, %v7359, %v7361
  %v7407 = vsel %vm180, %v7361, %v7363
  %v7408 = vsel %vm180, %v7365, %v7367
  %v7409 = vsel %vm180, %v7367, %v7369
  %v7410 = vsel %vm180, %v7369, %v7371
  %v7411 = vsel %vm180, %v7371, %v7373
  %v7412 = vsel %vm180, %v7375, %v7377
  %v7413 = vsel %vm180, %v7377, %v7379
  %v7414 = vsel %vm180, %v7379, %v7381
  %v7415 = vsel %vm180, %v7381, %v7383
  %v7464 = vsel %vm180, %v7313, %v7305
  %v7465 = vsel %vm180, %v7323, %v7315
  %v7466 = vsel %vm180, %v7333, %v7325
  %v7467 = vsel %vm180, %v7343, %v7335
  %v7468 = vsel %vm180, %v7353, %v7345
  %v7469 = vsel %vm180, %v7363, %v7355
  %v7470 = vsel %vm180, %v7373, %v7365
  %v7471 = vsel %vm180, %v7383, %v7375
  %7472 = vrot.lane.b32.xlu0 %v6384, 111
  %v7473 = vpop.permute.xlu0 %7472
  %7474 = vrot.lane.b32.xlu0 %v6385, 111
  %v7475 = vpop.permute.xlu0 %7474
  %7476 = vrot.lane.b32.xlu0 %v6386, 111
  %v7477 = vpop.permute.xlu0 %7476
  %7478 = vrot.lane.b32.xlu0 %v6387, 111
  %v7479 = vpop.permute.xlu0 %7478
  %7480 = vrot.lane.b32.xlu0 %v6388, 111
  %v7481 = vpop.permute.xlu0 %7480
  %7482 = vrot.lane.b32.xlu0 %v6389, 111
  %v7483 = vpop.permute.xlu0 %7482
  %7484 = vrot.lane.b32.xlu0 %v6390, 111
  %v7485 = vpop.permute.xlu0 %7484
  %7486 = vrot.lane.b32.xlu0 %v6391, 111
  %v7487 = vpop.permute.xlu0 %7486
  %7488 = vrot.lane.b32.xlu0 %v6392, 111
  %v7489 = vpop.permute.xlu0 %7488
  %7490 = vrot.lane.b32.xlu0 %v6393, 111
  %v7491 = vpop.permute.xlu0 %7490
  %7492 = vrot.lane.b32.xlu0 %v6394, 111
  %v7493 = vpop.permute.xlu0 %7492
  %7494 = vrot.lane.b32.xlu0 %v6395, 111
  %v7495 = vpop.permute.xlu0 %7494
  %7496 = vrot.lane.b32.xlu0 %v6396, 111
  %v7497 = vpop.permute.xlu0 %7496
  %7498 = vrot.lane.b32.xlu0 %v6397, 111
  %v7499 = vpop.permute.xlu0 %7498
  %7500 = vrot.lane.b32.xlu0 %v6398, 111
  %v7501 = vpop.permute.xlu0 %7500
  %7502 = vrot.lane.b32.xlu0 %v6399, 111
  %v7503 = vpop.permute.xlu0 %7502
  %7504 = vrot.lane.b32.xlu0 %v6400, 111
  %v7505 = vpop.permute.xlu0 %7504
  %7506 = vrot.lane.b32.xlu0 %v6401, 111
  %v7507 = vpop.permute.xlu0 %7506
  %7508 = vrot.lane.b32.xlu0 %v6402, 111
  %v7509 = vpop.permute.xlu0 %7508
  %7510 = vrot.lane.b32.xlu0 %v6403, 111
  %v7511 = vpop.permute.xlu0 %7510
  %7512 = vrot.lane.b32.xlu0 %v6404, 111
  %v7513 = vpop.permute.xlu0 %7512
  %7514 = vrot.lane.b32.xlu0 %v6405, 111
  %v7515 = vpop.permute.xlu0 %7514
  %7516 = vrot.lane.b32.xlu0 %v6406, 111
  %v7517 = vpop.permute.xlu0 %7516
  %7518 = vrot.lane.b32.xlu0 %v6407, 111
  %v7519 = vpop.permute.xlu0 %7518
  %7520 = vrot.lane.b32.xlu0 %v6408, 111
  %v7521 = vpop.permute.xlu0 %7520
  %7522 = vrot.lane.b32.xlu0 %v6409, 111
  %v7523 = vpop.permute.xlu0 %7522
  %7524 = vrot.lane.b32.xlu0 %v6410, 111
  %v7525 = vpop.permute.xlu0 %7524
  %7526 = vrot.lane.b32.xlu0 %v6411, 111
  %v7527 = vpop.permute.xlu0 %7526
  %7528 = vrot.lane.b32.xlu0 %v6412, 111
  %v7529 = vpop.permute.xlu0 %7528
  %7530 = vrot.lane.b32.xlu0 %v6413, 111
  %v7531 = vpop.permute.xlu0 %7530
  %7532 = vrot.lane.b32.xlu0 %v6414, 111
  %v7533 = vpop.permute.xlu0 %7532
  %7534 = vrot.lane.b32.xlu0 %v6415, 111
  %v7535 = vpop.permute.xlu0 %7534
  %7536 = vrot.lane.b32.xlu0 %v6416, 111
  %v7537 = vpop.permute.xlu0 %7536
  %7538 = vrot.lane.b32.xlu0 %v6417, 111
  %v7539 = vpop.permute.xlu0 %7538
  %7540 = vrot.lane.b32.xlu0 %v6418, 111
  %v7541 = vpop.permute.xlu0 %7540
  %7542 = vrot.lane.b32.xlu0 %v6419, 111
  %v7543 = vpop.permute.xlu0 %7542
  %7544 = vrot.lane.b32.xlu0 %v6420, 111
  %v7545 = vpop.permute.xlu0 %7544
  %7546 = vrot.lane.b32.xlu0 %v6421, 111
  %v7547 = vpop.permute.xlu0 %7546
  %7548 = vrot.lane.b32.xlu0 %v6422, 111
  %v7549 = vpop.permute.xlu0 %7548
  %7550 = vrot.lane.b32.xlu0 %v6423, 111
  %v7551 = vpop.permute.xlu0 %7550
  %v7552 = vsel %vm202, %v7473, %v7475
  %v7553 = vsel %vm202, %v7475, %v7477
  %v7554 = vsel %vm202, %v7477, %v7479
  %v7555 = vsel %vm202, %v7479, %v7481
  %v7556 = vsel %vm202, %v7483, %v7485
  %v7557 = vsel %vm202, %v7485, %v7487
  %v7558 = vsel %vm202, %v7487, %v7489
  %v7559 = vsel %vm202, %v7489, %v7491
  %v7560 = vsel %vm202, %v7493, %v7495
  %v7561 = vsel %vm202, %v7495, %v7497
  %v7562 = vsel %vm202, %v7497, %v7499
  %v7563 = vsel %vm202, %v7499, %v7501
  %v7564 = vsel %vm202, %v7503, %v7505
  %v7565 = vsel %vm202, %v7505, %v7507
  %v7566 = vsel %vm202, %v7507, %v7509
  %v7567 = vsel %vm202, %v7509, %v7511
  %v7568 = vsel %vm202, %v7513, %v7515
  %v7569 = vsel %vm202, %v7515, %v7517
  %v7570 = vsel %vm202, %v7517, %v7519
  %v7571 = vsel %vm202, %v7519, %v7521
  %v7572 = vsel %vm202, %v7523, %v7525
  %v7573 = vsel %vm202, %v7525, %v7527
  %v7574 = vsel %vm202, %v7527, %v7529
  %v7575 = vsel %vm202, %v7529, %v7531
  %v7576 = vsel %vm202, %v7533, %v7535
  %v7577 = vsel %vm202, %v7535, %v7537
  %v7578 = vsel %vm202, %v7537, %v7539
  %v7579 = vsel %vm202, %v7539, %v7541
  %v7580 = vsel %vm202, %v7543, %v7545
  %v7581 = vsel %vm202, %v7545, %v7547
  %v7582 = vsel %vm202, %v7547, %v7549
  %v7583 = vsel %vm202, %v7549, %v7551
  %v7632 = vsel %vm202, %v7481, %v7473
  %v7633 = vsel %vm202, %v7491, %v7483
  %v7634 = vsel %vm202, %v7501, %v7493
  %v7635 = vsel %vm202, %v7511, %v7503
  %v7636 = vsel %vm202, %v7521, %v7513
  %v7637 = vsel %vm202, %v7531, %v7523
  %v7638 = vsel %vm202, %v7541, %v7533
  %v7639 = vsel %vm202, %v7551, %v7543
  %7640 = vrot.lane.b32.xlu0 %v6384, 110
  %v7641 = vpop.permute.xlu0 %7640
  %7642 = vrot.lane.b32.xlu0 %v6385, 110
  %v7643 = vpop.permute.xlu0 %7642
  %7644 = vrot.lane.b32.xlu0 %v6386, 110
  %v7645 = vpop.permute.xlu0 %7644
  %7646 = vrot.lane.b32.xlu0 %v6387, 110
  %v7647 = vpop.permute.xlu0 %7646
  %7648 = vrot.lane.b32.xlu0 %v6388, 110
  %v7649 = vpop.permute.xlu0 %7648
  %7650 = vrot.lane.b32.xlu0 %v6389, 110
  %v7651 = vpop.permute.xlu0 %7650
  %7652 = vrot.lane.b32.xlu0 %v6390, 110
  %v7653 = vpop.permute.xlu0 %7652
  %7654 = vrot.lane.b32.xlu0 %v6391, 110
  %v7655 = vpop.permute.xlu0 %7654
  %7656 = vrot.lane.b32.xlu0 %v6392, 110
  %v7657 = vpop.permute.xlu0 %7656
  %7658 = vrot.lane.b32.xlu0 %v6393, 110
  %v7659 = vpop.permute.xlu0 %7658
  %7660 = vrot.lane.b32.xlu0 %v6394, 110
  %v7661 = vpop.permute.xlu0 %7660
  %7662 = vrot.lane.b32.xlu0 %v6395, 110
  %v7663 = vpop.permute.xlu0 %7662
  %7664 = vrot.lane.b32.xlu0 %v6396, 110
  %v7665 = vpop.permute.xlu0 %7664
  %7666 = vrot.lane.b32.xlu0 %v6397, 110
  %v7667 = vpop.permute.xlu0 %7666
  %7668 = vrot.lane.b32.xlu0 %v6398, 110
  %v7669 = vpop.permute.xlu0 %7668
  %7670 = vrot.lane.b32.xlu0 %v6399, 110
  %v7671 = vpop.permute.xlu0 %7670
  %7672 = vrot.lane.b32.xlu0 %v6400, 110
  %v7673 = vpop.permute.xlu0 %7672
  %7674 = vrot.lane.b32.xlu0 %v6401, 110
  %v7675 = vpop.permute.xlu0 %7674
  %7676 = vrot.lane.b32.xlu0 %v6402, 110
  %v7677 = vpop.permute.xlu0 %7676
  %7678 = vrot.lane.b32.xlu0 %v6403, 110
  %v7679 = vpop.permute.xlu0 %7678
  %7680 = vrot.lane.b32.xlu0 %v6404, 110
  %v7681 = vpop.permute.xlu0 %7680
  %7682 = vrot.lane.b32.xlu0 %v6405, 110
  %v7683 = vpop.permute.xlu0 %7682
  %7684 = vrot.lane.b32.xlu0 %v6406, 110
  %v7685 = vpop.permute.xlu0 %7684
  %7686 = vrot.lane.b32.xlu0 %v6407, 110
  %v7687 = vpop.permute.xlu0 %7686
  %7688 = vrot.lane.b32.xlu0 %v6408, 110
  %v7689 = vpop.permute.xlu0 %7688
  %7690 = vrot.lane.b32.xlu0 %v6409, 110
  %v7691 = vpop.permute.xlu0 %7690
  %7692 = vrot.lane.b32.xlu0 %v6410, 110
  %v7693 = vpop.permute.xlu0 %7692
  %7694 = vrot.lane.b32.xlu0 %v6411, 110
  %v7695 = vpop.permute.xlu0 %7694
  %7696 = vrot.lane.b32.xlu0 %v6412, 110
  %v7697 = vpop.permute.xlu0 %7696
  %7698 = vrot.lane.b32.xlu0 %v6413, 110
  %v7699 = vpop.permute.xlu0 %7698
  %7700 = vrot.lane.b32.xlu0 %v6414, 110
  %v7701 = vpop.permute.xlu0 %7700
  %7702 = vrot.lane.b32.xlu0 %v6415, 110
  %v7703 = vpop.permute.xlu0 %7702
  %7704 = vrot.lane.b32.xlu0 %v6416, 110
  %v7705 = vpop.permute.xlu0 %7704
  %7706 = vrot.lane.b32.xlu0 %v6417, 110
  %v7707 = vpop.permute.xlu0 %7706
  %7708 = vrot.lane.b32.xlu0 %v6418, 110
  %v7709 = vpop.permute.xlu0 %7708
  %7710 = vrot.lane.b32.xlu0 %v6419, 110
  %v7711 = vpop.permute.xlu0 %7710
  %7712 = vrot.lane.b32.xlu0 %v6420, 110
  %v7713 = vpop.permute.xlu0 %7712
  %7714 = vrot.lane.b32.xlu0 %v6421, 110
  %v7715 = vpop.permute.xlu0 %7714
  %7716 = vrot.lane.b32.xlu0 %v6422, 110
  %v7717 = vpop.permute.xlu0 %7716
  %7718 = vrot.lane.b32.xlu0 %v6423, 110
  %v7719 = vpop.permute.xlu0 %7718
  %v7720 = vsel %vm224, %v7641, %v7643
  %v7721 = vsel %vm224, %v7643, %v7645
  %v7722 = vsel %vm224, %v7645, %v7647
  %v7723 = vsel %vm224, %v7647, %v7649
  %v7724 = vsel %vm224, %v7651, %v7653
  %v7725 = vsel %vm224, %v7653, %v7655
  %v7726 = vsel %vm224, %v7655, %v7657
  %v7727 = vsel %vm224, %v7657, %v7659
  %v7728 = vsel %vm224, %v7661, %v7663
  %v7729 = vsel %vm224, %v7663, %v7665
  %v7730 = vsel %vm224, %v7665, %v7667
  %v7731 = vsel %vm224, %v7667, %v7669
  %v7732 = vsel %vm224, %v7671, %v7673
  %v7733 = vsel %vm224, %v7673, %v7675
  %v7734 = vsel %vm224, %v7675, %v7677
  %v7735 = vsel %vm224, %v7677, %v7679
  %v7736 = vsel %vm224, %v7681, %v7683
  %v7737 = vsel %vm224, %v7683, %v7685
  %v7738 = vsel %vm224, %v7685, %v7687
  %v7739 = vsel %vm224, %v7687, %v7689
  %v7740 = vsel %vm224, %v7691, %v7693
  %v7741 = vsel %vm224, %v7693, %v7695
  %v7742 = vsel %vm224, %v7695, %v7697
  %v7743 = vsel %vm224, %v7697, %v7699
  %v7744 = vsel %vm224, %v7701, %v7703
  %v7745 = vsel %vm224, %v7703, %v7705
  %v7746 = vsel %vm224, %v7705, %v7707
  %v7747 = vsel %vm224, %v7707, %v7709
  %v7748 = vsel %vm224, %v7711, %v7713
  %v7749 = vsel %vm224, %v7713, %v7715
  %v7750 = vsel %vm224, %v7715, %v7717
  %v7751 = vsel %vm224, %v7717, %v7719
  %v7800 = vsel %vm224, %v7649, %v7641
  %v7801 = vsel %vm224, %v7659, %v7651
  %v7802 = vsel %vm224, %v7669, %v7661
  %v7803 = vsel %vm224, %v7679, %v7671
  %v7804 = vsel %vm224, %v7689, %v7681
  %v7805 = vsel %vm224, %v7699, %v7691
  %v7806 = vsel %vm224, %v7709, %v7701
  %v7807 = vsel %vm224, %v7719, %v7711
  %v7808 = vld [vmem:[%s12] sm:$0x1f]
  %v7809 = vld [vmem:[#allocation2] sm:$0x1]
  %7811 = vset.pattern.permute.xlu0 0
  %7812 = vperm.xlu0 %7811, %v7809
  %v7813 = vpop.permute.xlu0 %7812
  %v7815 = vperm.slane %v7813, 0
  %v7817 = vperm.slane %v7808, 0
  %v7818 = vperm.slane %v7808, 1
  %v7819 = vperm.slane %v7808, 2
  %v7820 = vperm.slane %v7808, 3
  %v7821 = vperm.slane %v7808, 4
  %v7826 = vsel %vm5294, %v7821, 0
  %7828 = vmatpush.msra.mxu0 %v6799
  %7829 = vmatpush.msra.mxu0 %v6798
  %7830 = vmatpush.msra.mxu0 %v6797
  %7831 = vmatpush.msra.mxu0 %v6796
  %7832 = vmatpush.msra.mxu0 %v6795
  %7833 = vmatpush.msra.mxu0 %v6794
  %7834 = vmatpush.msra.mxu0 %v6793
  %7835 = vmatpush.msra.mxu0 %v6792
  %7836 = vmatpush.msra.mxu0 %v6631
  %7837 = vmatpush.msra.mxu0 %v6630
  %7838 = vmatpush.msra.mxu0 %v6629
  %7839 = vmatpush.msra.mxu0 %v6628
  %7840 = vmatpush.msra.mxu0 %v6627
  %7841 = vmatpush.msra.mxu0 %v6626
  %7842 = vmatpush.msra.mxu0 %v6625
  %7843 = vmatpush.msra.mxu0 %v6624
  %7844 = vmatmul.f32.gmra.mxu0 %v7817
  %v7845 = vpop.f32.mrf.mxu0
  %v7846 = vadd.f32 %v7815, %v7845
  %7847 = vdwg.mxu0
  %7848 = vmatpush.msra.mxu0 %v7135
  %7849 = vmatpush.msra.mxu0 %v7134
  %7850 = vmatpush.msra.mxu0 %v7133
  %7851 = vmatpush.msra.mxu0 %v7132
  %7852 = vmatpush.msra.mxu0 %v7131
  %7853 = vmatpush.msra.mxu0 %v7130
  %7854 = vmatpush.msra.mxu0 %v7129
  %7855 = vmatpush.msra.mxu0 %v7128
  %7856 = vmatpush.msra.mxu0 %v6967
  %7857 = vmatpush.msra.mxu0 %v6966
  %7858 = vmatpush.msra.mxu0 %v6965
  %7859 = vmatpush.msra.mxu0 %v6964
  %7860 = vmatpush.msra.mxu0 %v6963
  %7861 = vmatpush.msra.mxu0 %v6962
  %7862 = vmatpush.msra.mxu0 %v6961
  %7863 = vmatpush.msra.mxu0 %v6960
  %7864 = vmatmul.f32.gmra.mxu0 %v7818
  %v7865 = vpop.f32.mrf.mxu0
  %v7866 = vadd.f32 %v7846, %v7865
  %7867 = vdwg.mxu0
  %7868 = vmatpush.msra.mxu0 %v7244
  %7869 = vmatpush.msra.mxu0 %v7240
  %7870 = vmatpush.msra.mxu0 %v7236
  %7871 = vmatpush.msra.mxu0 %v7232
  %7872 = vmatpush.msra.mxu0 %v7228
  %7873 = vmatpush.msra.mxu0 %v7224
  %7874 = vmatpush.msra.mxu0 %v7220
  %7875 = vmatpush.msra.mxu0 %v7216
  %7876 = vmatpush.msra.mxu0 %v6419
  %7877 = vmatpush.msra.mxu0 %v6414
  %7878 = vmatpush.msra.mxu0 %v6409
  %7879 = vmatpush.msra.mxu0 %v6404
  %7880 = vmatpush.msra.mxu0 %v6399
  %7881 = vmatpush.msra.mxu0 %v6394
  %7882 = vmatpush.msra.mxu0 %v6389
  %7883 = vmatpush.msra.mxu0 %v6384
  %7884 = vmatmul.f32.gmra.mxu0 %v7819
  %v7885 = vpop.f32.mrf.mxu0
  %v7886 = vadd.f32 %v7866, %v7885
  %7887 = vdwg.mxu0
  %7888 = vmatpush.msra.mxu0 %v7580
  %7889 = vmatpush.msra.mxu0 %v7576
  %7890 = vmatpush.msra.mxu0 %v7572
  %7891 = vmatpush.msra.mxu0 %v7568
  %7892 = vmatpush.msra.mxu0 %v7564
  %7893 = vmatpush.msra.mxu0 %v7560
  %7894 = vmatpush.msra.mxu0 %v7556
  %7895 = vmatpush.msra.mxu0 %v7552
  %7896 = vmatpush.msra.mxu0 %v7412
  %7897 = vmatpush.msra.mxu0 %v7408
  %7898 = vmatpush.msra.mxu0 %v7404
  %7899 = vmatpush.msra.mxu0 %v7400
  %7900 = vmatpush.msra.mxu0 %v7396
  %7901 = vmatpush.msra.mxu0 %v7392
  %7902 = vmatpush.msra.mxu0 %v7388
  %7903 = vmatpush.msra.mxu0 %v7384
  %7904 = vmatmul.f32.gmra.mxu0 %v7820
  %v7905 = vpop.f32.mrf.mxu0
  %v7906 = vadd.f32 %v7886, %v7905
  %7907 = vdwg.mxu0
  %7908 = vmatpush.msra.mxu0 0.0
  %7909 = vmatpush.msra.mxu0 0.0
  %7910 = vmatpush.msra.mxu0 0.0
  %7911 = vmatpush.msra.mxu0 0.0
  %7912 = vmatpush.msra.mxu0 0.0
  %7913 = vmatpush.msra.mxu0 0.0
  %7914 = vmatpush.msra.mxu0 0.0
  %7915 = vmatpush.msra.mxu0 0.0
  %7916 = vmatpush.msra.mxu0 %v7748
  %7917 = vmatpush.msra.mxu0 %v7744
  %7918 = vmatpush.msra.mxu0 %v7740
  %7919 = vmatpush.msra.mxu0 %v7736
  %7920 = vmatpush.msra.mxu0 %v7732
  %7921 = vmatpush.msra.mxu0 %v7728
  %7922 = vmatpush.msra.mxu0 %v7724
  %7923 = vmatpush.msra.mxu0 %v7720
  %7924 = vmatmul.f32.gmra.mxu0 %v7826
  %v7925 = vpop.f32.mrf.mxu0
  %v7926 = vadd.f32 %v7906, %v7925
  %7927 = vdwg.mxu0
  %7928 = vmatpush.msra.mxu0 %v6748
  %7929 = vmatpush.msra.mxu0 %v6744
  %7930 = vmatpush.msra.mxu0 %v6740
  %7931 = vmatpush.msra.mxu0 %v6736
  %7932 = vmatpush.msra.mxu0 %v6732
  %7933 = vmatpush.msra.mxu0 %v6728
  %7934 = vmatpush.msra.mxu0 %v6724
  %7935 = vmatpush.msra.mxu0 %v6720
  %7936 = vmatpush.msra.mxu0 %v6580
  %7937 = vmatpush.msra.mxu0 %v6576
  %7938 = vmatpush.msra.mxu0 %v6572
  %7939 = vmatpush.msra.mxu0 %v6568
  %7940 = vmatpush.msra.mxu0 %v6564
  %7941 = vmatpush.msra.mxu0 %v6560
  %7942 = vmatpush.msra.mxu0 %v6556
  %7943 = vmatpush.msra.mxu0 %v6552
  %7944 = vmatmul.f32.gmra.mxu0 %v7817
  %v7945 = vpop.f32.mrf.mxu0
  %v7946 = vadd.f32 %v7815, %v7945
  %7947 = vdwg.mxu0
  %7948 = vmatpush.msra.mxu0 %v7084
  %7949 = vmatpush.msra.mxu0 %v7080
  %7950 = vmatpush.msra.mxu0 %v7076
  %7951 = vmatpush.msra.mxu0 %v7072
  %7952 = vmatpush.msra.mxu0 %v7068
  %7953 = vmatpush.msra.mxu0 %v7064
  %7954 = vmatpush.msra.mxu0 %v7060
  %7955 = vmatpush.msra.mxu0 %v7056
  %7956 = vmatpush.msra.mxu0 %v6916
  %7957 = vmatpush.msra.mxu0 %v6912
  %7958 = vmatpush.msra.mxu0 %v6908
  %7959 = vmatpush.msra.mxu0 %v6904
  %7960 = vmatpush.msra.mxu0 %v6900
  %7961 = vmatpush.msra.mxu0 %v6896
  %7962 = vmatpush.msra.mxu0 %v6892
  %7963 = vmatpush.msra.mxu0 %v6888
  %7964 = vmatmul.f32.gmra.mxu0 %v7818
  %v7965 = vpop.f32.mrf.mxu0
  %v7966 = vadd.f32 %v7946, %v7965
  %7967 = vdwg.mxu0
  %7968 = vmatpush.msra.mxu0 %v7245
  %7969 = vmatpush.msra.mxu0 %v7241
  %7970 = vmatpush.msra.mxu0 %v7237
  %7971 = vmatpush.msra.mxu0 %v7233
  %7972 = vmatpush.msra.mxu0 %v7229
  %7973 = vmatpush.msra.mxu0 %v7225
  %7974 = vmatpush.msra.mxu0 %v7221
  %7975 = vmatpush.msra.mxu0 %v7217
  %7976 = vmatpush.msra.mxu0 %v6420
  %7977 = vmatpush.msra.mxu0 %v6415
  %7978 = vmatpush.msra.mxu0 %v6410
  %7979 = vmatpush.msra.mxu0 %v6405
  %7980 = vmatpush.msra.mxu0 %v6400
  %7981 = vmatpush.msra.mxu0 %v6395
  %7982 = vmatpush.msra.mxu0 %v6390
  %7983 = vmatpush.msra.mxu0 %v6385
  %7984 = vmatmul.f32.gmra.mxu0 %v7819
  %v7985 = vpop.f32.mrf.mxu0
  %v7986 = vadd.f32 %v7966, %v7985
  %7987 = vdwg.mxu0
  %7988 = vmatpush.msra.mxu0 %v7581
  %7989 = vmatpush.msra.mxu0 %v7577
  %7990 = vmatpush.msra.mxu0 %v7573
  %7991 = vmatpush.msra.mxu0 %v7569
  %7992 = vmatpush.msra.mxu0 %v7565
  %7993 = vmatpush.msra.mxu0 %v7561
  %7994 = vmatpush.msra.mxu0 %v7557
  %7995 = vmatpush.msra.mxu0 %v7553
  %7996 = vmatpush.msra.mxu0 %v7413
  %7997 = vmatpush.msra.mxu0 %v7409
  %7998 = vmatpush.msra.mxu0 %v7405
  %7999 = vmatpush.msra.mxu0 %v7401
  %8000 = vmatpush.msra.mxu0 %v7397
  %8001 = vmatpush.msra.mxu0 %v7393
  %8002 = vmatpush.msra.mxu0 %v7389
  %8003 = vmatpush.msra.mxu0 %v7385
  %8004 = vmatmul.f32.gmra.mxu0 %v7820
  %v8005 = vpop.f32.mrf.mxu0
  %v8006 = vadd.f32 %v7986, %v8005
  %8007 = vdwg.mxu0
  %8008 = vmatpush.msra.mxu0 0.0
  %8009 = vmatpush.msra.mxu0 0.0
  %8010 = vmatpush.msra.mxu0 0.0
  %8011 = vmatpush.msra.mxu0 0.0
  %8012 = vmatpush.msra.mxu0 0.0
  %8013 = vmatpush.msra.mxu0 0.0
  %8014 = vmatpush.msra.mxu0 0.0
  %8015 = vmatpush.msra.mxu0 0.0
  %8016 = vmatpush.msra.mxu0 %v7749
  %8017 = vmatpush.msra.mxu0 %v7745
  %8018 = vmatpush.msra.mxu0 %v7741
  %8019 = vmatpush.msra.mxu0 %v7737
  %8020 = vmatpush.msra.mxu0 %v7733
  %8021 = vmatpush.msra.mxu0 %v7729
  %8022 = vmatpush.msra.mxu0 %v7725
  %8023 = vmatpush.msra.mxu0 %v7721
  %8024 = vmatmul.f32.gmra.mxu0 %v7826
  %v8025 = vpop.f32.mrf.mxu0
  %v8026 = vadd.f32 %v8006, %v8025
  %8027 = vdwg.mxu0
  %8028 = vmatpush.msra.mxu0 %v6749
  %8029 = vmatpush.msra.mxu0 %v6745
  %8030 = vmatpush.msra.mxu0 %v6741
  %8031 = vmatpush.msra.mxu0 %v6737
  %8032 = vmatpush.msra.mxu0 %v6733
  %8033 = vmatpush.msra.mxu0 %v6729
  %8034 = vmatpush.msra.mxu0 %v6725
  %8035 = vmatpush.msra.mxu0 %v6721
  %8036 = vmatpush.msra.mxu0 %v6581
  %8037 = vmatpush.msra.mxu0 %v6577
  %8038 = vmatpush.msra.mxu0 %v6573
  %8039 = vmatpush.msra.mxu0 %v6569
  %8040 = vmatpush.msra.mxu0 %v6565
  %8041 = vmatpush.msra.mxu0 %v6561
  %8042 = vmatpush.msra.mxu0 %v6557
  %8043 = vmatpush.msra.mxu0 %v6553
  %8044 = vmatmul.f32.gmra.mxu0 %v7817
  %v8045 = vpop.f32.mrf.mxu0
  %v8046 = vadd.f32 %v7815, %v8045
  %8047 = vdwg.mxu0
  %8048 = vmatpush.msra.mxu0 %v7085
  %8049 = vmatpush.msra.mxu0 %v7081
  %8050 = vmatpush.msra.mxu0 %v7077
  %8051 = vmatpush.msra.mxu0 %v7073
  %8052 = vmatpush.msra.mxu0 %v7069
  %8053 = vmatpush.msra.mxu0 %v7065
  %8054 = vmatpush.msra.mxu0 %v7061
  %8055 = vmatpush.msra.mxu0 %v7057
  %8056 = vmatpush.msra.mxu0 %v6917
  %8057 = vmatpush.msra.mxu0 %v6913
  %8058 = vmatpush.msra.mxu0 %v6909
  %8059 = vmatpush.msra.mxu0 %v6905
  %8060 = vmatpush.msra.mxu0 %v6901
  %8061 = vmatpush.msra.mxu0 %v6897
  %8062 = vmatpush.msra.mxu0 %v6893
  %8063 = vmatpush.msra.mxu0 %v6889
  %8064 = vmatmul.f32.gmra.mxu0 %v7818
  %v8065 = vpop.f32.mrf.mxu0
  %v8066 = vadd.f32 %v8046, %v8065
  %8067 = vdwg.mxu0
  %8068 = vmatpush.msra.mxu0 %v7246
  %8069 = vmatpush.msra.mxu0 %v7242
  %8070 = vmatpush.msra.mxu0 %v7238
  %8071 = vmatpush.msra.mxu0 %v7234
  %8072 = vmatpush.msra.mxu0 %v7230
  %8073 = vmatpush.msra.mxu0 %v7226
  %8074 = vmatpush.msra.mxu0 %v7222
  %8075 = vmatpush.msra.mxu0 %v7218
  %8076 = vmatpush.msra.mxu0 %v6421
  %8077 = vmatpush.msra.mxu0 %v6416
  %8078 = vmatpush.msra.mxu0 %v6411
  %8079 = vmatpush.msra.mxu0 %v6406
  %8080 = vmatpush.msra.mxu0 %v6401
  %8081 = vmatpush.msra.mxu0 %v6396
  %8082 = vmatpush.msra.mxu0 %v6391
  %8083 = vmatpush.msra.mxu0 %v6386
  %8084 = vmatmul.f32.gmra.mxu0 %v7819
  %v8085 = vpop.f32.mrf.mxu0
  %v8086 = vadd.f32 %v8066, %v8085
  %8087 = vdwg.mxu0
  %8088 = vmatpush.msra.mxu0 %v7582
  %8089 = vmatpush.msra.mxu0 %v7578
  %8090 = vmatpush.msra.mxu0 %v7574
  %8091 = vmatpush.msra.mxu0 %v7570
  %8092 = vmatpush.msra.mxu0 %v7566
  %8093 = vmatpush.msra.mxu0 %v7562
  %8094 = vmatpush.msra.mxu0 %v7558
  %8095 = vmatpush.msra.mxu0 %v7554
  %8096 = vmatpush.msra.mxu0 %v7414
  %8097 = vmatpush.msra.mxu0 %v7410
  %8098 = vmatpush.msra.mxu0 %v7406
  %8099 = vmatpush.msra.mxu0 %v7402
  %8100 = vmatpush.msra.mxu0 %v7398
  %8101 = vmatpush.msra.mxu0 %v7394
  %8102 = vmatpush.msra.mxu0 %v7390
  %8103 = vmatpush.msra.mxu0 %v7386
  %8104 = vmatmul.f32.gmra.mxu0 %v7820
  %v8105 = vpop.f32.mrf.mxu0
  %v8106 = vadd.f32 %v8086, %v8105
  %8107 = vdwg.mxu0
  %8108 = vmatpush.msra.mxu0 0.0
  %8109 = vmatpush.msra.mxu0 0.0
  %8110 = vmatpush.msra.mxu0 0.0
  %8111 = vmatpush.msra.mxu0 0.0
  %8112 = vmatpush.msra.mxu0 0.0
  %8113 = vmatpush.msra.mxu0 0.0
  %8114 = vmatpush.msra.mxu0 0.0
  %8115 = vmatpush.msra.mxu0 0.0
  %8116 = vmatpush.msra.mxu0 %v7750
  %8117 = vmatpush.msra.mxu0 %v7746
  %8118 = vmatpush.msra.mxu0 %v7742
  %8119 = vmatpush.msra.mxu0 %v7738
  %8120 = vmatpush.msra.mxu0 %v7734
  %8121 = vmatpush.msra.mxu0 %v7730
  %8122 = vmatpush.msra.mxu0 %v7726
  %8123 = vmatpush.msra.mxu0 %v7722
  %8124 = vmatmul.f32.gmra.mxu0 %v7826
  %v8125 = vpop.f32.mrf.mxu0
  %v8126 = vadd.f32 %v8106, %v8125
  %8127 = vdwg.mxu0
  %8128 = vmatpush.msra.mxu0 %v6750
  %8129 = vmatpush.msra.mxu0 %v6746
  %8130 = vmatpush.msra.mxu0 %v6742
  %8131 = vmatpush.msra.mxu0 %v6738
  %8132 = vmatpush.msra.mxu0 %v6734
  %8133 = vmatpush.msra.mxu0 %v6730
  %8134 = vmatpush.msra.mxu0 %v6726
  %8135 = vmatpush.msra.mxu0 %v6722
  %8136 = vmatpush.msra.mxu0 %v6582
  %8137 = vmatpush.msra.mxu0 %v6578
  %8138 = vmatpush.msra.mxu0 %v6574
  %8139 = vmatpush.msra.mxu0 %v6570
  %8140 = vmatpush.msra.mxu0 %v6566
  %8141 = vmatpush.msra.mxu0 %v6562
  %8142 = vmatpush.msra.mxu0 %v6558
  %8143 = vmatpush.msra.mxu0 %v6554
  %8144 = vmatmul.f32.gmra.mxu0 %v7817
  %v8145 = vpop.f32.mrf.mxu0
  %v8146 = vadd.f32 %v7815, %v8145
  %8147 = vdwg.mxu0
  %8148 = vmatpush.msra.mxu0 %v7086
  %8149 = vmatpush.msra.mxu0 %v7082
  %8150 = vmatpush.msra.mxu0 %v7078
  %8151 = vmatpush.msra.mxu0 %v7074
  %8152 = vmatpush.msra.mxu0 %v7070
  %8153 = vmatpush.msra.mxu0 %v7066
  %8154 = vmatpush.msra.mxu0 %v7062
  %8155 = vmatpush.msra.mxu0 %v7058
  %8156 = vmatpush.msra.mxu0 %v6918
  %8157 = vmatpush.msra.mxu0 %v6914
  %8158 = vmatpush.msra.mxu0 %v6910
  %8159 = vmatpush.msra.mxu0 %v6906
  %8160 = vmatpush.msra.mxu0 %v6902
  %8161 = vmatpush.msra.mxu0 %v6898
  %8162 = vmatpush.msra.mxu0 %v6894
  %8163 = vmatpush.msra.mxu0 %v6890
  %8164 = vmatmul.f32.gmra.mxu0 %v7818
  %v8165 = vpop.f32.mrf.mxu0
  %v8166 = vadd.f32 %v8146, %v8165
  %8167 = vdwg.mxu0
  %8168 = vmatpush.msra.mxu0 %v7247
  %8169 = vmatpush.msra.mxu0 %v7243
  %8170 = vmatpush.msra.mxu0 %v7239
  %8171 = vmatpush.msra.mxu0 %v7235
  %8172 = vmatpush.msra.mxu0 %v7231
  %8173 = vmatpush.msra.mxu0 %v7227
  %8174 = vmatpush.msra.mxu0 %v7223
  %8175 = vmatpush.msra.mxu0 %v7219
  %8176 = vmatpush.msra.mxu0 %v6422
  %8177 = vmatpush.msra.mxu0 %v6417
  %8178 = vmatpush.msra.mxu0 %v6412
  %8179 = vmatpush.msra.mxu0 %v6407
  %8180 = vmatpush.msra.mxu0 %v6402
  %8181 = vmatpush.msra.mxu0 %v6397
  %8182 = vmatpush.msra.mxu0 %v6392
  %8183 = vmatpush.msra.mxu0 %v6387
  %8184 = vmatmul.f32.gmra.mxu0 %v7819
  %v8185 = vpop.f32.mrf.mxu0
  %v8186 = vadd.f32 %v8166, %v8185
  %8187 = vdwg.mxu0
  %8188 = vmatpush.msra.mxu0 %v7583
  %8189 = vmatpush.msra.mxu0 %v7579
  %8190 = vmatpush.msra.mxu0 %v7575
  %8191 = vmatpush.msra.mxu0 %v7571
  %8192 = vmatpush.msra.mxu0 %v7567
  %8193 = vmatpush.msra.mxu0 %v7563
  %8194 = vmatpush.msra.mxu0 %v7559
  %8195 = vmatpush.msra.mxu0 %v7555
  %8196 = vmatpush.msra.mxu0 %v7415
  %8197 = vmatpush.msra.mxu0 %v7411
  %8198 = vmatpush.msra.mxu0 %v7407
  %8199 = vmatpush.msra.mxu0 %v7403
  %8200 = vmatpush.msra.mxu0 %v7399
  %8201 = vmatpush.msra.mxu0 %v7395
  %8202 = vmatpush.msra.mxu0 %v7391
  %8203 = vmatpush.msra.mxu0 %v7387
  %8204 = vmatmul.f32.gmra.mxu0 %v7820
  %v8205 = vpop.f32.mrf.mxu0
  %v8206 = vadd.f32 %v8186, %v8205
  %8207 = vdwg.mxu0
  %8208 = vmatpush.msra.mxu0 0.0
  %8209 = vmatpush.msra.mxu0 0.0
  %8210 = vmatpush.msra.mxu0 0.0
  %8211 = vmatpush.msra.mxu0 0.0
  %8212 = vmatpush.msra.mxu0 0.0
  %8213 = vmatpush.msra.mxu0 0.0
  %8214 = vmatpush.msra.mxu0 0.0
  %8215 = vmatpush.msra.mxu0 0.0
  %8216 = vmatpush.msra.mxu0 %v7751
  %8217 = vmatpush.msra.mxu0 %v7747
  %8218 = vmatpush.msra.mxu0 %v7743
  %8219 = vmatpush.msra.mxu0 %v7739
  %8220 = vmatpush.msra.mxu0 %v7735
  %8221 = vmatpush.msra.mxu0 %v7731
  %8222 = vmatpush.msra.mxu0 %v7727
  %8223 = vmatpush.msra.mxu0 %v7723
  %8224 = vmatmul.f32.gmra.mxu0 %v7826
  %v8225 = vpop.f32.mrf.mxu0
  %v8226 = vadd.f32 %v8206, %v8225
  %8227 = vdwg.mxu0
  %8228 = vmatpush.msra.mxu0 %v6751
  %8229 = vmatpush.msra.mxu0 %v6747
  %8230 = vmatpush.msra.mxu0 %v6743
  %8231 = vmatpush.msra.mxu0 %v6739
  %8232 = vmatpush.msra.mxu0 %v6735
  %8233 = vmatpush.msra.mxu0 %v6731
  %8234 = vmatpush.msra.mxu0 %v6727
  %8235 = vmatpush.msra.mxu0 %v6723
  %8236 = vmatpush.msra.mxu0 %v6583
  %8237 = vmatpush.msra.mxu0 %v6579
  %8238 = vmatpush.msra.mxu0 %v6575
  %8239 = vmatpush.msra.mxu0 %v6571
  %8240 = vmatpush.msra.mxu0 %v6567
  %8241 = vmatpush.msra.mxu0 %v6563
  %8242 = vmatpush.msra.mxu0 %v6559
  %8243 = vmatpush.msra.mxu0 %v6555
  %8244 = vmatmul.f32.gmra.mxu0 %v7817
  %v8245 = vpop.f32.mrf.mxu0
  %v8246 = vadd.f32 %v7815, %v8245
  %8247 = vdwg.mxu0
  %8248 = vmatpush.msra.mxu0 %v7087
  %8249 = vmatpush.msra.mxu0 %v7083
  %8250 = vmatpush.msra.mxu0 %v7079
  %8251 = vmatpush.msra.mxu0 %v7075
  %8252 = vmatpush.msra.mxu0 %v7071
  %8253 = vmatpush.msra.mxu0 %v7067
  %8254 = vmatpush.msra.mxu0 %v7063
  %8255 = vmatpush.msra.mxu0 %v7059
  %8256 = vmatpush.msra.mxu0 %v6919
  %8257 = vmatpush.msra.mxu0 %v6915
  %8258 = vmatpush.msra.mxu0 %v6911
  %8259 = vmatpush.msra.mxu0 %v6907
  %8260 = vmatpush.msra.mxu0 %v6903
  %8261 = vmatpush.msra.mxu0 %v6899
  %8262 = vmatpush.msra.mxu0 %v6895
  %8263 = vmatpush.msra.mxu0 %v6891
  %8264 = vmatmul.f32.gmra.mxu0 %v7818
  %v8265 = vpop.f32.mrf.mxu0
  %v8266 = vadd.f32 %v8246, %v8265
  %8267 = vdwg.mxu0
  %8268 = vmatpush.msra.mxu0 %v7303
  %8269 = vmatpush.msra.mxu0 %v7302
  %8270 = vmatpush.msra.mxu0 %v7301
  %8271 = vmatpush.msra.mxu0 %v7300
  %8272 = vmatpush.msra.mxu0 %v7299
  %8273 = vmatpush.msra.mxu0 %v7298
  %8274 = vmatpush.msra.mxu0 %v7297
  %8275 = vmatpush.msra.mxu0 %v7296
  %8276 = vmatpush.msra.mxu0 %v6423
  %8277 = vmatpush.msra.mxu0 %v6418
  %8278 = vmatpush.msra.mxu0 %v6413
  %8279 = vmatpush.msra.mxu0 %v6408
  %8280 = vmatpush.msra.mxu0 %v6403
  %8281 = vmatpush.msra.mxu0 %v6398
  %8282 = vmatpush.msra.mxu0 %v6393
  %8283 = vmatpush.msra.mxu0 %v6388
  %8284 = vmatmul.f32.gmra.mxu0 %v7819
  %v8285 = vpop.f32.mrf.mxu0
  %v8286 = vadd.f32 %v8266, %v8285
  %8287 = vdwg.mxu0
  %8288 = vmatpush.msra.mxu0 %v7639
  %8289 = vmatpush.msra.mxu0 %v7638
  %8290 = vmatpush.msra.mxu0 %v7637
  %8291 = vmatpush.msra.mxu0 %v7636
  %8292 = vmatpush.msra.mxu0 %v7635
  %8293 = vmatpush.msra.mxu0 %v7634
  %8294 = vmatpush.msra.mxu0 %v7633
  %8295 = vmatpush.msra.mxu0 %v7632
  %8296 = vmatpush.msra.mxu0 %v7471
  %8297 = vmatpush.msra.mxu0 %v7470
  %8298 = vmatpush.msra.mxu0 %v7469
  %8299 = vmatpush.msra.mxu0 %v7468
  %8300 = vmatpush.msra.mxu0 %v7467
  %8301 = vmatpush.msra.mxu0 %v7466
  %8302 = vmatpush.msra.mxu0 %v7465
  %8303 = vmatpush.msra.mxu0 %v7464
  %8304 = vmatmul.f32.gmra.mxu0 %v7820
  %v8305 = vpop.f32.mrf.mxu0
  %v8306 = vadd.f32 %v8286, %v8305
  %8307 = vdwg.mxu0
  %8308 = vmatpush.msra.mxu0 0.0
  %8309 = vmatpush.msra.mxu0 0.0
  %8310 = vmatpush.msra.mxu0 0.0
  %8311 = vmatpush.msra.mxu0 0.0
  %8312 = vmatpush.msra.mxu0 0.0
  %8313 = vmatpush.msra.mxu0 0.0
  %8314 = vmatpush.msra.mxu0 0.0
  %8315 = vmatpush.msra.mxu0 0.0
  %8316 = vmatpush.msra.mxu0 %v7807
  %8317 = vmatpush.msra.mxu0 %v7806
  %8318 = vmatpush.msra.mxu0 %v7805
  %8319 = vmatpush.msra.mxu0 %v7804
  %8320 = vmatpush.msra.mxu0 %v7803
  %8321 = vmatpush.msra.mxu0 %v7802
  %8322 = vmatpush.msra.mxu0 %v7801
  %8323 = vmatpush.msra.mxu0 %v7800
  %8324 = vmatmul.f32.gmra.mxu0 %v7826
  %v8325 = vpop.f32.mrf.mxu0
  %v8326 = vadd.f32 %v8306, %v8325
  %8327 = vdwg.mxu0
  %v8333 = vrot.slane %v8026, 7
  %v8334 = vrot.slane %v8126, 6
  %v8335 = vrot.slane %v8226, 5
  %v8336 = vrot.slane %v8326, 4
  %vm8337 = vcmask 1040384
  %v8338 = vsel %vm8337, %v7926, %v8333
  %vm8339 = vcmask 1041408
  %v8340 = vsel %vm8339, %v8338, %v8334
  %vm8341 = vcmask 1043459
  %v8342 = vsel %vm8341, %v8335, %v8336
  %vm8343 = vcmask 1042432
  %v8344 = vsel %vm8343, %v8340, %v8342
  %v8346 = vlaneseq
  %vm8347 = vcmp.ge.s32.totalorder %v8346, 0
  %vm8348 = vcmp.lt.s32.totalorder %v8346, 640
  %vm8349 = vmand %vm8347, %vm8348
  %8350 = vst.msk [vmem:[%s14] sm:$0x1f] %vm8349, %v8344
  // Predicated region
  $region58: #{rlnet_forward.1} parent=0 // pred_check
    _
  $region59: #{rlnet_forward.1} parent=0 // pred_check_branch
    %8352 = sbr.rel (0) target = $region61
  $region60: #{rlnet_forward.1} parent=0 // pred_region
    _
  $region61: #{rlnet_forward.1} parent=0 // pred_fallthru
    _
  // Predicated region
  $region62: #{rlnet_forward.1} parent=0 // pred_check
    _
  $region63: #{rlnet_forward.1} parent=0 // pred_check_branch
    %8354 = sbr.rel (0) target = $region65
  $region64: #{rlnet_forward.1} parent=0 // pred_region
    _
  $region65: #{rlnet_forward.1} parent=0 // pred_fallthru
    _

</llo_original>
